<compile_context>
chip_gen: v7x
topology: tpu7x:2x2x1
jax: 0.10.0
libtpu: 0.0.40
codegen_flags: <defaults>
</compile_context>

<pallas_src>
import math

import jax
import jax.numpy as jnp
from jax import lax
from jax.experimental import pallas as pl
from jax.experimental.pallas import tpu as pltpu

HP = 128  # padded per-gate / hidden lane width (one full vreg of lanes)


# --------------------------------------------------------------------------
# Fused kernel: stacked LSTM (PyTorch gate order [i, f, g, o]) + MLP head
# --------------------------------------------------------------------------
def disc_kernel(x_ref, wih_ref, whh_ref, b_ref,
                w1_ref, b1_ref, w2_ref, b2_ref, w3_ref, b3_ref, w4_ref, b4_ref,
                o_ref, h_all, xg_sc, h_sc, c_sc):
    T, BB, hp = x_ref.shape          # static: (time, batch-block, 128)
    L = wih_ref.shape[0]             # static: num LSTM layers
    G = wih_ref.shape[2]             # static: 4 * 128 gate width

    for l in range(L):               # static layer loop
        # ---- hoisted input projection for ALL timesteps (bias folded in) ----
        if l == 0:
            inp = x_ref[...].reshape(T * BB, hp)
        else:
            inp = h_all[...].reshape(T * BB, hp)
        xg = jnp.dot(inp, wih_ref[l],
                     preferred_element_type=jnp.float32) + b_ref[l]
        xg_sc[...] = xg.reshape(T, BB, G)

        h_sc[...] = jnp.zeros_like(h_sc)
        c_sc[...] = jnp.zeros_like(c_sc)
        whh_l = whh_ref.at[l]        # Ref view, no load

        def time_body(t, carry):
            gates = xg_sc[t] + jnp.dot(h_sc[...], whh_l[...],
                                       preferred_element_type=jnp.float32)
            # 128-lane-aligned gate blocks: pure vreg selection, no lane shuffles.
            i = jax.nn.sigmoid(gates[:, 0 * hp:1 * hp])
            f = jax.nn.sigmoid(gates[:, 1 * hp:2 * hp])
            g = jnp.tanh(gates[:, 2 * hp:3 * hp])
            o = jax.nn.sigmoid(gates[:, 3 * hp:4 * hp])
            c_new = f * c_sc[...] + i * g
            h_new = o * jnp.tanh(c_new)
            c_sc[...] = c_new
            h_sc[...] = h_new
            h_all[t] = h_new
            return carry

        lax.fori_loop(0, T, time_body, 0, unroll=True)

    # ---- fused MLP head on the (T*BB, 128) hidden slab ----
    # TODO(synk): Dropout(0.5) layers are inference-mode identity (no RNG mask).
    hf = h_all[...].reshape(T * BB, hp)
    h1 = jnp.maximum(
        jnp.dot(hf, w1_ref[...], preferred_element_type=jnp.float32)
        + b1_ref[...], 0.0)
    h2 = jnp.maximum(
        jnp.dot(h1, w2_ref[...], preferred_element_type=jnp.float32)
        + b2_ref[...], 0.0)
    h3 = jnp.maximum(
        jnp.dot(h2, w3_ref[...], preferred_element_type=jnp.float32)
        + b3_ref[...], 0.0)
    logits = (jnp.dot(h3, w4_ref[...], preferred_element_type=jnp.float32)
              + b4_ref[...])
    # Lane-dense (128-wide) output; real probability lives in column 0.
    o_ref[...] = jax.nn.sigmoid(logits).reshape(T, BB, hp)


# --------------------------------------------------------------------------
# Parameter handling: PyTorch-style params -> padded / lane-aligned layout
# --------------------------------------------------------------------------
def init_torch_style_params(key, input_size, hidden_size, num_layers):
    """Synthetic params with PyTorch shapes & uniform init bounds."""
    H = hidden_size
    k = 1.0 / math.sqrt(H)
    n_keys = num_layers * 4 + 8
    keys = iter(jax.random.split(key, n_keys))
    lstm = []
    for l in range(num_layers):
        din = input_size if l == 0 else H
        w_ih = jax.random.uniform(next(keys), (4 * H, din), jnp.float32, -k, k)
        w_hh = jax.random.uniform(next(keys), (4 * H, H), jnp.float32, -k, k)
        b_ih = jax.random.uniform(next(keys), (4 * H,), jnp.float32, -k, k)
        b_hh = jax.random.uniform(next(keys), (4 * H,), jnp.float32, -k, k)
        lstm.append((w_ih, w_hh, b_ih, b_hh))
    dims = [(input_size, 256), (256, 128), (128, 64), (64, 1)]
    mlp = []
    for fan_in, fan_out in dims:
        kw = 1.0 / math.sqrt(fan_in)
        w = jax.random.uniform(next(keys), (fan_out, fan_in), jnp.float32, -kw, kw)
        b = jax.random.uniform(next(keys), (fan_out,), jnp.float32, -kw, kw)
        mlp.append((w, b))
    return {"lstm": lstm, "mlp": mlp}


def pack_params(params, hidden_size):
    """Pad each gate / fan-out to a 128-lane block; pre-transpose weights."""
    H = hidden_size
    lstm = params["lstm"]
    L = len(lstm)
    wih_p = jnp.zeros((L, HP, 4 * HP), jnp.float32)
    whh_p = jnp.zeros((L, HP, 4 * HP), jnp.float32)
    b_p = jnp.zeros((L, 1, 4 * HP), jnp.float32)
    for l, (w_ih, w_hh, b_ih, b_hh) in enumerate(lstm):
        din = w_ih.shape[1]
        b_sum = b_ih + b_hh
        for g in range(4):
            wih_p = wih_p.at[l, :din, g * HP:g * HP + H].set(w_ih[g * H:(g + 1) * H, :].T)
            whh_p = whh_p.at[l, :H, g * HP:g * HP + H].set(w_hh[g * H:(g + 1) * H, :].T)
            b_p = b_p.at[l, 0, g * HP:g * HP + H].set(b_sum[g * H:(g + 1) * H])

    (w1, b1), (w2, b2), (w3, b3), (w4, b4) = params["mlp"]
    w1p = jnp.zeros((HP, 256), jnp.float32).at[:w1.shape[1], :].set(w1.T)
    b1p = b1[None, :]
    w2p = w2.T                                                      # (256, 128)
    b2p = b2[None, :]
    w3p = jnp.zeros((128, 128), jnp.float32).at[:, :64].set(w3.T)   # pad 64->128
    b3p = jnp.zeros((1, 128), jnp.float32).at[0, :64].set(b3)
    w4p = jnp.zeros((128, 128), jnp.float32).at[:64, :1].set(w4.T)  # pad 1->128
    b4p = jnp.zeros((1, 128), jnp.float32).at[0, :1].set(b4)
    return {"wih": wih_p, "whh": whh_p, "b": b_p,
            "mlp": (w1p, b1p, w2p, b2p, w3p, b3p, w4p, b4p)}


# --------------------------------------------------------------------------
# Wrapper
# --------------------------------------------------------------------------
def discriminator_forward(x, packed, *, block_b=8):
    """x: (B, T, D) batch_first; returns (B, T, 1)."""
    B, T, D = x.shape
    assert D <= HP
    Bp = max(block_b, ((B + block_b - 1) // block_b) * block_b)

    # time-major, batch padded to sublane multiple, features padded to 128 lanes
    x_tm = jnp.transpose(x.astype(jnp.float32), (1, 0, 2))          # (T, B, D)
    x_pad = jnp.zeros((T, Bp, HP), jnp.float32).at[:, :B, :D].set(x_tm)

    w_args = (packed["wih"], packed["whh"], packed["b"]) + packed["mlp"]

    def full_spec(arr):
        return pl.BlockSpec(arr.shape, lambda i: (0,) * arr.ndim)

    out = pl.pallas_call(
        disc_kernel,
        out_shape=jax.ShapeDtypeStruct((T, Bp, HP), jnp.float32),
        grid_spec=pltpu.PrefetchScalarGridSpec(
            num_scalar_prefetch=0,
            grid=(Bp // block_b,),                        # batch-parallel grid
            in_specs=[pl.BlockSpec((T, block_b, HP), lambda i: (0, i, 0))]
                     + [full_spec(a) for a in w_args],
            out_specs=pl.BlockSpec((T, block_b, HP), lambda i: (0, i, 0)),
            scratch_shapes=[
                pltpu.VMEM((T, block_b, HP), jnp.float32),       # hidden slab
                pltpu.VMEM((T, block_b, 4 * HP), jnp.float32),   # x @ W_ih + b
                pltpu.VMEM((block_b, HP), jnp.float32),          # h_t
                pltpu.VMEM((block_b, HP), jnp.float32),          # c_t
            ]),
        compiler_params=pltpu.CompilerParams(
            dimension_semantics=("parallel",)),
    )(x_pad, *w_args)

    probs = out[:, :B, 0]                                 # (T, B), column 0 is real
    return jnp.transpose(probs, (1, 0))[:, :, None]       # (B, T, 1)


# --------------------------------------------------------------------------
# Pure-JAX reference (mirrors the PyTorch forward) for a correctness check
# --------------------------------------------------------------------------
def reference_forward(x, torch_params):
    P = lax.Precision.HIGHEST
    B, T, _ = x.shape
    h_seq = x.astype(jnp.float32)
    for (w_ih, w_hh, b_ih, b_hh) in torch_params["lstm"]:
        H = w_hh.shape[1]
        h = jnp.zeros((B, H), jnp.float32)
        c = jnp.zeros((B, H), jnp.float32)
        outs = []
        for t in range(T):
            gates = (jnp.dot(h_seq[:, t, :], w_ih.T, precision=P) + b_ih
                     + jnp.dot(h, w_hh.T, precision=P) + b_hh)
            i = jax.nn.sigmoid(gates[:, 0 * H:1 * H])
            f = jax.nn.sigmoid(gates[:, 1 * H:2 * H])
            g = jnp.tanh(gates[:, 2 * H:3 * H])
            o = jax.nn.sigmoid(gates[:, 3 * H:4 * H])
            c = f * c + i * g
            h = o * jnp.tanh(c)
            outs.append(h)
        h_seq = jnp.stack(outs, axis=1)
    y = h_seq
    (w1, b1), (w2, b2), (w3, b3), (w4, b4) = torch_params["mlp"]
    y = jax.nn.relu(jnp.dot(y, w1.T, precision=P) + b1)
    y = jax.nn.relu(jnp.dot(y, w2.T, precision=P) + b2)
    y = jax.nn.relu(jnp.dot(y, w3.T, precision=P) + b3)
    y = jax.nn.sigmoid(jnp.dot(y, w4.T, precision=P) + b4)
    return y


# --------------------------------------------------------------------------
if __name__ == "__main__":
    key = jax.random.PRNGKey(0)
    k_param, k_x = jax.random.split(key)

    B, T = 4, 8
    input_size = hidden_size = 32   # module requires hidden_size == input_size
    num_layers = 2

    torch_params = init_torch_style_params(k_param, input_size, hidden_size,
                                           num_layers)
    packed = pack_params(torch_params, hidden_size)
    x = jax.random.normal(k_x, (B, T, input_size), jnp.float32)

    out = discriminator_forward(x, packed)
    out = jax.block_until_ready(out)

    assert out.shape == (B, T, 1), out.shape
    assert bool(jnp.all((out >= 0.0) & (out <= 1.0)))

    ref = jax.block_until_ready(reference_forward(x, torch_params))
    assert bool(jnp.allclose(out, ref, atol=1e-3)), \
        float(jnp.max(jnp.abs(out - ref)))

    print("KERNEL_OK")
</pallas_src>

<mosaic_0001>
module attributes {stable_mosaic.version = 11 : i64} {
  func.func @disc_kernel(%arg0: i32, %arg1: memref<8x8x128xf32, #tpu.memory_space<vmem>>, %arg2: memref<2x128x512xf32, #tpu.memory_space<vmem>>, %arg3: memref<2x128x512xf32, #tpu.memory_space<vmem>>, %arg4: memref<2x1x512xf32, #tpu.memory_space<vmem>>, %arg5: memref<128x256xf32, #tpu.memory_space<vmem>>, %arg6: memref<1x256xf32, #tpu.memory_space<vmem>>, %arg7: memref<256x128xf32, #tpu.memory_space<vmem>>, %arg8: memref<1x128xf32, #tpu.memory_space<vmem>>, %arg9: memref<128x128xf32, #tpu.memory_space<vmem>>, %arg10: memref<1x128xf32, #tpu.memory_space<vmem>>, %arg11: memref<128x128xf32, #tpu.memory_space<vmem>>, %arg12: memref<1x128xf32, #tpu.memory_space<vmem>>, %arg13: memref<8x8x128xf32, #tpu.memory_space<vmem>>, %arg14: memref<8x8x128xf32, #tpu.memory_space<vmem>>, %arg15: memref<8x8x512xf32, #tpu.memory_space<vmem>>, %arg16: memref<8x128xf32, #tpu.memory_space<vmem>>, %arg17: memref<8x128xf32, #tpu.memory_space<vmem>>) attributes {dimension_semantics = [#tpu.dimension_semantics<parallel>], iteration_bounds = array<i64: 1>, scalar_prefetch = 0 : i64, scratch_operands = 4 : i64, tpu.core_type = #tpu.core_type<tc>, window_params = [{transform_indices = @transform_0, window_bounds = array<i64: 8, 8, 128>}, {pipeline_mode = #tpu.pipeline_mode<synchronous>, transform_indices = @transform_1, window_bounds = array<i64: 2, 128, 512>}, {pipeline_mode = #tpu.pipeline_mode<synchronous>, transform_indices = @transform_2, window_bounds = array<i64: 2, 128, 512>}, {pipeline_mode = #tpu.pipeline_mode<synchronous>, transform_indices = @transform_3, window_bounds = array<i64: 2, 1, 512>}, {pipeline_mode = #tpu.pipeline_mode<synchronous>, transform_indices = @transform_4, window_bounds = array<i64: 128, 256>}, {pipeline_mode = #tpu.pipeline_mode<synchronous>, transform_indices = @transform_5, window_bounds = array<i64: 1, 256>}, {pipeline_mode = #tpu.pipeline_mode<synchronous>, transform_indices = @transform_6, window_bounds = array<i64: 256, 128>}, {pipeline_mode = #tpu.pipeline_mode<synchronous>, transform_indices = @transform_7, window_bounds = array<i64: 1, 128>}, {pipeline_mode = #tpu.pipeline_mode<synchronous>, transform_indices = @transform_8, window_bounds = array<i64: 128, 128>}, {pipeline_mode = #tpu.pipeline_mode<synchronous>, transform_indices = @transform_9, window_bounds = array<i64: 1, 128>}, {pipeline_mode = #tpu.pipeline_mode<synchronous>, transform_indices = @transform_10, window_bounds = array<i64: 128, 128>}, {pipeline_mode = #tpu.pipeline_mode<synchronous>, transform_indices = @transform_11, window_bounds = array<i64: 1, 128>}, {transform_indices = @transform_12, window_bounds = array<i64: 8, 8, 128>}]} {
    %c0 = arith.constant 0 : index
    %c0_0 = arith.constant 0 : index
    %c0_1 = arith.constant 0 : index
    %0 = vector.load %arg1[%c0, %c0_0, %c0_1] : memref<8x8x128xf32, #tpu.memory_space<vmem>>, vector<8x8x128xf32>
    %1 = vector.shape_cast %0 : vector<8x8x128xf32> to vector<64x128xf32>
    %c0_2 = arith.constant 0 : index
    %c0_3 = arith.constant 0 : index
    %c0_4 = arith.constant 0 : index
    %2 = vector.load %arg2[%c0_2, %c0_3, %c0_4] : memref<2x128x512xf32, #tpu.memory_space<vmem>>, vector<1x128x512xf32>
    %3 = vector.shape_cast %2 : vector<1x128x512xf32> to vector<128x512xf32>
    %cst = arith.constant dense<0.000000e+00> : vector<64x512xf32>
    %4 = tpu.matmul %1, %3, %cst {dimension_numbers = #tpu.dot_dimension_numbers<[1], [0], [0], [1], [0, 0, 1, 1], [], []>} : vector<64x128xf32>, vector<128x512xf32>, vector<64x512xf32> -> vector<64x512xf32>
    %c0_5 = arith.constant 0 : index
    %c0_6 = arith.constant 0 : index
    %c0_7 = arith.constant 0 : index
    %5 = vector.load %arg4[%c0_5, %c0_6, %c0_7] : memref<2x1x512xf32, #tpu.memory_space<vmem>>, vector<1x1x512xf32>
    %6 = vector.shape_cast %5 : vector<1x1x512xf32> to vector<1x512xf32>
    %7 = vector.broadcast %6 : vector<1x512xf32> to vector<64x512xf32>
    %8 = arith.addf %4, %7 : vector<64x512xf32>
    %9 = vector.shape_cast %8 : vector<64x512xf32> to vector<8x8x512xf32>
    %c0_8 = arith.constant 0 : index
    %c0_9 = arith.constant 0 : index
    %c0_10 = arith.constant 0 : index
    %10 = vector.load %arg15[%c0_8, %c0_9, %c0_10] : memref<8x8x512xf32, #tpu.memory_space<vmem>>, vector<8x8x512xf32>
    tpu.vector_store %arg15[%c0_8, %c0_9, %c0_10], %9 {strides = array<i32>} : memref<8x8x512xf32, #tpu.memory_space<vmem>>, vector<8x8x512xf32>,
    %cst_11 = arith.constant 0.000000e+00 : f32
    %11 = vector.broadcast %cst_11 : f32 to vector<8x128xf32>
    %c0_12 = arith.constant 0 : index
    %c0_13 = arith.constant 0 : index
    %12 = vector.load %arg16[%c0_12, %c0_13] : memref<8x128xf32, #tpu.memory_space<vmem>>, vector<8x128xf32>
    tpu.vector_store %arg16[%c0_12, %c0_13], %11 {strides = array<i32>} : memref<8x128xf32, #tpu.memory_space<vmem>>, vector<8x128xf32>,
    %cst_14 = arith.constant 0.000000e+00 : f32
    %13 = vector.broadcast %cst_14 : f32 to vector<8x128xf32>
    %c0_15 = arith.constant 0 : index
    %c0_16 = arith.constant 0 : index
    %14 = vector.load %arg17[%c0_15, %c0_16] : memref<8x128xf32, #tpu.memory_space<vmem>>, vector<8x128xf32>
    tpu.vector_store %arg17[%c0_15, %c0_16], %13 {strides = array<i32>} : memref<8x128xf32, #tpu.memory_space<vmem>>, vector<8x128xf32>,
    %c0_i32 = arith.constant 0 : i32
    %c0_i32_17 = arith.constant 0 : i32
    %15 = arith.index_cast %c0_i32_17 : i32 to index
    %c0_18 = arith.constant 0 : index
    %c0_19 = arith.constant 0 : index
    %16 = vector.load %arg15[%15, %c0_18, %c0_19] : memref<8x8x512xf32, #tpu.memory_space<vmem>>, vector<1x8x512xf32>
    %17 = vector.shape_cast %16 : vector<1x8x512xf32> to vector<8x512xf32>
    %c0_20 = arith.constant 0 : index
    %c0_21 = arith.constant 0 : index
    %18 = vector.load %arg16[%c0_20, %c0_21] : memref<8x128xf32, #tpu.memory_space<vmem>>, vector<8x128xf32>
    %19 = arith.index_cast %c0_i32 : i32 to index
    %c0_22 = arith.constant 0 : index
    %c0_23 = arith.constant 0 : index
    %20 = vector.load %arg3[%19, %c0_22, %c0_23] : memref<2x128x512xf32, #tpu.memory_space<vmem>>, vector<1x128x512xf32>
    %21 = vector.shape_cast %20 : vector<1x128x512xf32> to vector<128x512xf32>
    %cst_24 = arith.constant dense<0.000000e+00> : vector<8x512xf32>
    %22 = tpu.matmul %18, %21, %cst_24 {dimension_numbers = #tpu.dot_dimension_numbers<[1], [0], [0], [1], [0, 0, 1, 1], [], []>} : vector<8x128xf32>, vector<128x512xf32>, vector<8x512xf32> -> vector<8x512xf32>
    %23 = arith.addf %17, %22 : vector<8x512xf32>
    %24 = vector.extract_strided_slice %23 {offsets = [0, 0], sizes = [8, 128], strides = [1, 1]} : vector<8x512xf32> to vector<8x128xf32>
    %25 = arith.negf %24 : vector<8x128xf32>
    %26 = math.exp %25 : vector<8x128xf32>
    %cst_25 = arith.constant 1.000000e+00 : f32
    %27 = vector.broadcast %cst_25 : f32 to vector<8x128xf32>
    %28 = arith.addf %27, %26 : vector<8x128xf32>
    %29 = arith.divf %27, %28 : vector<8x128xf32>
    %30 = vector.extract_strided_slice %23 {offsets = [0, 128], sizes = [8, 128], strides = [1, 1]} : vector<8x512xf32> to vector<8x128xf32>
    %31 = arith.negf %30 : vector<8x128xf32>
    %32 = math.exp %31 : vector<8x128xf32>
    %cst_26 = arith.constant 1.000000e+00 : f32
    %33 = vector.broadcast %cst_26 : f32 to vector<8x128xf32>
    %34 = arith.addf %33, %32 : vector<8x128xf32>
    %35 = arith.divf %33, %34 : vector<8x128xf32>
    %36 = vector.extract_strided_slice %23 {offsets = [0, 256], sizes = [8, 128], strides = [1, 1]} : vector<8x512xf32> to vector<8x128xf32>
    %37 = math.tanh %36 : vector<8x128xf32>
    %38 = vector.extract_strided_slice %23 {offsets = [0, 384], sizes = [8, 128], strides = [1, 1]} : vector<8x512xf32> to vector<8x128xf32>
    %39 = arith.negf %38 : vector<8x128xf32>
    %40 = math.exp %39 : vector<8x128xf32>
    %cst_27 = arith.constant 1.000000e+00 : f32
    %41 = vector.broadcast %cst_27 : f32 to vector<8x128xf32>
    %42 = arith.addf %41, %40 : vector<8x128xf32>
    %43 = arith.divf %41, %42 : vector<8x128xf32>
    %c0_28 = arith.constant 0 : index
    %c0_29 = arith.constant 0 : index
    %44 = vector.load %arg17[%c0_28, %c0_29] : memref<8x128xf32, #tpu.memory_space<vmem>>, vector<8x128xf32>
    %45 = arith.mulf %35, %44 : vector<8x128xf32>
    %46 = arith.mulf %29, %37 : vector<8x128xf32>
    %47 = arith.addf %45, %46 : vector<8x128xf32>
    %48 = math.tanh %47 : vector<8x128xf32>
    %49 = arith.mulf %43, %48 : vector<8x128xf32>
    %c0_30 = arith.constant 0 : index
    %c0_31 = arith.constant 0 : index
    %50 = vector.load %arg17[%c0_30, %c0_31] : memref<8x128xf32, #tpu.memory_space<vmem>>, vector<8x128xf32>
    tpu.vector_store %arg17[%c0_30, %c0_31], %47 {strides = array<i32>} : memref<8x128xf32, #tpu.memory_space<vmem>>, vector<8x128xf32>,
    %c0_32 = arith.constant 0 : index
    %c0_33 = arith.constant 0 : index
    %51 = vector.load %arg16[%c0_32, %c0_33] : memref<8x128xf32, #tpu.memory_space<vmem>>, vector<8x128xf32>
    tpu.vector_store %arg16[%c0_32, %c0_33], %49 {strides = array<i32>} : memref<8x128xf32, #tpu.memory_space<vmem>>, vector<8x128xf32>,
    %52 = arith.index_cast %c0_i32_17 : i32 to index
    %c0_34 = arith.constant 0 : index
    %c0_35 = arith.constant 0 : index
    %53 = vector.load %arg14[%52, %c0_34, %c0_35] : memref<8x8x128xf32, #tpu.memory_space<vmem>>, vector<1x8x128xf32>
    %54 = vector.shape_cast %53 : vector<1x8x128xf32> to vector<8x128xf32>
    %55 = vector.shape_cast %49 : vector<8x128xf32> to vector<1x8x128xf32>
    tpu.vector_store %arg14[%52, %c0_34, %c0_35], %55 {strides = array<i32>} : memref<8x8x128xf32, #tpu.memory_space<vmem>>, vector<1x8x128xf32>,
    %c1_i32 = arith.constant 1 : i32
    %56 = arith.index_cast %c1_i32 : i32 to index
    %c0_36 = arith.constant 0 : index
    %c0_37 = arith.constant 0 : index
    %57 = vector.load %arg15[%56, %c0_36, %c0_37] : memref<8x8x512xf32, #tpu.memory_space<vmem>>, vector<1x8x512xf32>
    %58 = vector.shape_cast %57 : vector<1x8x512xf32> to vector<8x512xf32>
    %c0_38 = arith.constant 0 : index
    %c0_39 = arith.constant 0 : index
    %59 = vector.load %arg16[%c0_38, %c0_39] : memref<8x128xf32, #tpu.memory_space<vmem>>, vector<8x128xf32>
    %60 = arith.index_cast %c0_i32 : i32 to index
    %c0_40 = arith.constant 0 : index
    %c0_41 = arith.constant 0 : index
    %61 = vector.load %arg3[%60, %c0_40, %c0_41] : memref<2x128x512xf32, #tpu.memory_space<vmem>>, vector<1x128x512xf32>
    %62 = vector.shape_cast %61 : vector<1x128x512xf32> to vector<128x512xf32>
    %cst_42 = arith.constant dense<0.000000e+00> : vector<8x512xf32>
    %63 = tpu.matmul %59, %62, %cst_42 {dimension_numbers = #tpu.dot_dimension_numbers<[1], [0], [0], [1], [0, 0, 1, 1], [], []>} : vector<8x128xf32>, vector<128x512xf32>, vector<8x512xf32> -> vector<8x512xf32>
    %64 = arith.addf %58, %63 : vector<8x512xf32>
    %65 = vector.extract_strided_slice %64 {offsets = [0, 0], sizes = [8, 128], strides = [1, 1]} : vector<8x512xf32> to vector<8x128xf32>
    %66 = arith.negf %65 : vector<8x128xf32>
    %67 = math.exp %66 : vector<8x128xf32>
    %cst_43 = arith.constant 1.000000e+00 : f32
    %68 = vector.broadcast %cst_43 : f32 to vector<8x128xf32>
    %69 = arith.addf %68, %67 : vector<8x128xf32>
    %70 = arith.divf %68, %69 : vector<8x128xf32>
    %71 = vector.extract_strided_slice %64 {offsets = [0, 128], sizes = [8, 128], strides = [1, 1]} : vector<8x512xf32> to vector<8x128xf32>
    %72 = arith.negf %71 : vector<8x128xf32>
    %73 = math.exp %72 : vector<8x128xf32>
    %cst_44 = arith.constant 1.000000e+00 : f32
    %74 = vector.broadcast %cst_44 : f32 to vector<8x128xf32>
    %75 = arith.addf %74, %73 : vector<8x128xf32>
    %76 = arith.divf %74, %75 : vector<8x128xf32>
    %77 = vector.extract_strided_slice %64 {offsets = [0, 256], sizes = [8, 128], strides = [1, 1]} : vector<8x512xf32> to vector<8x128xf32>
    %78 = math.tanh %77 : vector<8x128xf32>
    %79 = vector.extract_strided_slice %64 {offsets = [0, 384], sizes = [8, 128], strides = [1, 1]} : vector<8x512xf32> to vector<8x128xf32>
    %80 = arith.negf %79 : vector<8x128xf32>
    %81 = math.exp %80 : vector<8x128xf32>
    %cst_45 = arith.constant 1.000000e+00 : f32
    %82 = vector.broadcast %cst_45 : f32 to vector<8x128xf32>
    %83 = arith.addf %82, %81 : vector<8x128xf32>
    %84 = arith.divf %82, %83 : vector<8x128xf32>
    %c0_46 = arith.constant 0 : index
    %c0_47 = arith.constant 0 : index
    %85 = vector.load %arg17[%c0_46, %c0_47] : memref<8x128xf32, #tpu.memory_space<vmem>>, vector<8x128xf32>
    %86 = arith.mulf %76, %85 : vector<8x128xf32>
    %87 = arith.mulf %70, %78 : vector<8x128xf32>
    %88 = arith.addf %86, %87 : vector<8x128xf32>
    %89 = math.tanh %88 : vector<8x128xf32>
    %90 = arith.mulf %84, %89 : vector<8x128xf32>
    %c0_48 = arith.constant 0 : index
    %c0_49 = arith.constant 0 : index
    %91 = vector.load %arg17[%c0_48, %c0_49] : memref<8x128xf32, #tpu.memory_space<vmem>>, vector<8x128xf32>
    tpu.vector_store %arg17[%c0_48, %c0_49], %88 {strides = array<i32>} : memref<8x128xf32, #tpu.memory_space<vmem>>, vector<8x128xf32>,
    %c0_50 = arith.constant 0 : index
    %c0_51 = arith.constant 0 : index
    %92 = vector.load %arg16[%c0_50, %c0_51] : memref<8x128xf32, #tpu.memory_space<vmem>>, vector<8x128xf32>
    tpu.vector_store %arg16[%c0_50, %c0_51], %90 {strides = array<i32>} : memref<8x128xf32, #tpu.memory_space<vmem>>, vector<8x128xf32>,
    %93 = arith.index_cast %c1_i32 : i32 to index
    %c0_52 = arith.constant 0 : index
    %c0_53 = arith.constant 0 : index
    %94 = vector.load %arg14[%93, %c0_52, %c0_53] : memref<8x8x128xf32, #tpu.memory_space<vmem>>, vector<1x8x128xf32>
    %95 = vector.shape_cast %94 : vector<1x8x128xf32> to vector<8x128xf32>
    %96 = vector.shape_cast %90 : vector<8x128xf32> to vector<1x8x128xf32>
    tpu.vector_store %arg14[%93, %c0_52, %c0_53], %96 {strides = array<i32>} : memref<8x8x128xf32, #tpu.memory_space<vmem>>, vector<1x8x128xf32>,
    %c2_i32 = arith.constant 2 : i32
    %97 = arith.index_cast %c2_i32 : i32 to index
    %c0_54 = arith.constant 0 : index
    %c0_55 = arith.constant 0 : index
    %98 = vector.load %arg15[%97, %c0_54, %c0_55] : memref<8x8x512xf32, #tpu.memory_space<vmem>>, vector<1x8x512xf32>
    %99 = vector.shape_cast %98 : vector<1x8x512xf32> to vector<8x512xf32>
    %c0_56 = arith.constant 0 : index
    %c0_57 = arith.constant 0 : index
    %100 = vector.load %arg16[%c0_56, %c0_57] : memref<8x128xf32, #tpu.memory_space<vmem>>, vector<8x128xf32>
    %101 = arith.index_cast %c0_i32 : i32 to index
    %c0_58 = arith.constant 0 : index
    %c0_59 = arith.constant 0 : index
    %102 = vector.load %arg3[%101, %c0_58, %c0_59] : memref<2x128x512xf32, #tpu.memory_space<vmem>>, vector<1x128x512xf32>
    %103 = vector.shape_cast %102 : vector<1x128x512xf32> to vector<128x512xf32>
    %cst_60 = arith.constant dense<0.000000e+00> : vector<8x512xf32>
    %104 = tpu.matmul %100, %103, %cst_60 {dimension_numbers = #tpu.dot_dimension_numbers<[1], [0], [0], [1], [0, 0, 1, 1], [], []>} : vector<8x128xf32>, vector<128x512xf32>, vector<8x512xf32> -> vector<8x512xf32>
    %105 = arith.addf %99, %104 : vector<8x512xf32>
    %106 = vector.extract_strided_slice %105 {offsets = [0, 0], sizes = [8, 128], strides = [1, 1]} : vector<8x512xf32> to vector<8x128xf32>
    %107 = arith.negf %106 : vector<8x128xf32>
    %108 = math.exp %107 : vector<8x128xf32>
    %cst_61 = arith.constant 1.000000e+00 : f32
    %109 = vector.broadcast %cst_61 : f32 to vector<8x128xf32>
    %110 = arith.addf %109, %108 : vector<8x128xf32>
    %111 = arith.divf %109, %110 : vector<8x128xf32>
    %112 = vector.extract_strided_slice %105 {offsets = [0, 128], sizes = [8, 128], strides = [1, 1]} : vector<8x512xf32> to vector<8x128xf32>
    %113 = arith.negf %112 : vector<8x128xf32>
    %114 = math.exp %113 : vector<8x128xf32>
    %cst_62 = arith.constant 1.000000e+00 : f32
    %115 = vector.broadcast %cst_62 : f32 to vector<8x128xf32>
    %116 = arith.addf %115, %114 : vector<8x128xf32>
    %117 = arith.divf %115, %116 : vector<8x128xf32>
    %118 = vector.extract_strided_slice %105 {offsets = [0, 256], sizes = [8, 128], strides = [1, 1]} : vector<8x512xf32> to vector<8x128xf32>
    %119 = math.tanh %118 : vector<8x128xf32>
    %120 = vector.extract_strided_slice %105 {offsets = [0, 384], sizes = [8, 128], strides = [1, 1]} : vector<8x512xf32> to vector<8x128xf32>
    %121 = arith.negf %120 : vector<8x128xf32>
    %122 = math.exp %121 : vector<8x128xf32>
    %cst_63 = arith.constant 1.000000e+00 : f32
    %123 = vector.broadcast %cst_63 : f32 to vector<8x128xf32>
    %124 = arith.addf %123, %122 : vector<8x128xf32>
    %125 = arith.divf %123, %124 : vector<8x128xf32>
    %c0_64 = arith.constant 0 : index
    %c0_65 = arith.constant 0 : index
    %126 = vector.load %arg17[%c0_64, %c0_65] : memref<8x128xf32, #tpu.memory_space<vmem>>, vector<8x128xf32>
    %127 = arith.mulf %117, %126 : vector<8x128xf32>
    %128 = arith.mulf %111, %119 : vector<8x128xf32>
    %129 = arith.addf %127, %128 : vector<8x128xf32>
    %130 = math.tanh %129 : vector<8x128xf32>
    %131 = arith.mulf %125, %130 : vector<8x128xf32>
    %c0_66 = arith.constant 0 : index
    %c0_67 = arith.constant 0 : index
    %132 = vector.load %arg17[%c0_66, %c0_67] : memref<8x128xf32, #tpu.memory_space<vmem>>, vector<8x128xf32>
    tpu.vector_store %arg17[%c0_66, %c0_67], %129 {strides = array<i32>} : memref<8x128xf32, #tpu.memory_space<vmem>>, vector<8x128xf32>,
    %c0_68 = arith.constant 0 : index
    %c0_69 = arith.constant 0 : index
    %133 = vector.load %arg16[%c0_68, %c0_69] : memref<8x128xf32, #tpu.memory_space<vmem>>, vector<8x128xf32>
    tpu.vector_store %arg16[%c0_68, %c0_69], %131 {strides = array<i32>} : memref<8x128xf32, #tpu.memory_space<vmem>>, vector<8x128xf32>,
    %134 = arith.index_cast %c2_i32 : i32 to index
    %c0_70 = arith.constant 0 : index
    %c0_71 = arith.constant 0 : index
    %135 = vector.load %arg14[%134, %c0_70, %c0_71] : memref<8x8x128xf32, #tpu.memory_space<vmem>>, vector<1x8x128xf32>
    %136 = vector.shape_cast %135 : vector<1x8x128xf32> to vector<8x128xf32>
    %137 = vector.shape_cast %131 : vector<8x128xf32> to vector<1x8x128xf32>
    tpu.vector_store %arg14[%134, %c0_70, %c0_71], %137 {strides = array<i32>} : memref<8x8x128xf32, #tpu.memory_space<vmem>>, vector<1x8x128xf32>,
    %c3_i32 = arith.constant 3 : i32
    %138 = arith.index_cast %c3_i32 : i32 to index
    %c0_72 = arith.constant 0 : index
    %c0_73 = arith.constant 0 : index
    %139 = vector.load %arg15[%138, %c0_72, %c0_73] : memref<8x8x512xf32, #tpu.memory_space<vmem>>, vector<1x8x512xf32>
    %140 = vector.shape_cast %139 : vector<1x8x512xf32> to vector<8x512xf32>
    %c0_74 = arith.constant 0 : index
    %c0_75 = arith.constant 0 : index
    %141 = vector.load %arg16[%c0_74, %c0_75] : memref<8x128xf32, #tpu.memory_space<vmem>>, vector<8x128xf32>
    %142 = arith.index_cast %c0_i32 : i32 to index
    %c0_76 = arith.constant 0 : index
    %c0_77 = arith.constant 0 : index
    %143 = vector.load %arg3[%142, %c0_76, %c0_77] : memref<2x128x512xf32, #tpu.memory_space<vmem>>, vector<1x128x512xf32>
    %144 = vector.shape_cast %143 : vector<1x128x512xf32> to vector<128x512xf32>
    %cst_78 = arith.constant dense<0.000000e+00> : vector<8x512xf32>
    %145 = tpu.matmul %141, %144, %cst_78 {dimension_numbers = #tpu.dot_dimension_numbers<[1], [0], [0], [1], [0, 0, 1, 1], [], []>} : vector<8x128xf32>, vector<128x512xf32>, vector<8x512xf32> -> vector<8x512xf32>
    %146 = arith.addf %140, %145 : vector<8x512xf32>
    %147 = vector.extract_strided_slice %146 {offsets = [0, 0], sizes = [8, 128], strides = [1, 1]} : vector<8x512xf32> to vector<8x128xf32>
    %148 = arith.negf %147 : vector<8x128xf32>
    %149 = math.exp %148 : vector<8x128xf32>
    %cst_79 = arith.constant 1.000000e+00 : f32
    %150 = vector.broadcast %cst_79 : f32 to vector<8x128xf32>
    %151 = arith.addf %150, %149 : vector<8x128xf32>
    %152 = arith.divf %150, %151 : vector<8x128xf32>
    %153 = vector.extract_strided_slice %146 {offsets = [0, 128], sizes = [8, 128], strides = [1, 1]} : vector<8x512xf32> to vector<8x128xf32>
    %154 = arith.negf %153 : vector<8x128xf32>
    %155 = math.exp %154 : vector<8x128xf32>
    %cst_80 = arith.constant 1.000000e+00 : f32
    %156 = vector.broadcast %cst_80 : f32 to vector<8x128xf32>
    %157 = arith.addf %156, %155 : vector<8x128xf32>
    %158 = arith.divf %156, %157 : vector<8x128xf32>
    %159 = vector.extract_strided_slice %146 {offsets = [0, 256], sizes = [8, 128], strides = [1, 1]} : vector<8x512xf32> to vector<8x128xf32>
    %160 = math.tanh %159 : vector<8x128xf32>
    %161 = vector.extract_strided_slice %146 {offsets = [0, 384], sizes = [8, 128], strides = [1, 1]} : vector<8x512xf32> to vector<8x128xf32>
    %162 = arith.negf %161 : vector<8x128xf32>
    %163 = math.exp %162 : vector<8x128xf32>
    %cst_81 = arith.constant 1.000000e+00 : f32
    %164 = vector.broadcast %cst_81 : f32 to vector<8x128xf32>
    %165 = arith.addf %164, %163 : vector<8x128xf32>
    %166 = arith.divf %164, %165 : vector<8x128xf32>
    %c0_82 = arith.constant 0 : index
    %c0_83 = arith.constant 0 : index
    %167 = vector.load %arg17[%c0_82, %c0_83] : memref<8x128xf32, #tpu.memory_space<vmem>>, vector<8x128xf32>
    %168 = arith.mulf %158, %167 : vector<8x128xf32>
    %169 = arith.mulf %152, %160 : vector<8x128xf32>
    %170 = arith.addf %168, %169 : vector<8x128xf32>
    %171 = math.tanh %170 : vector<8x128xf32>
    %172 = arith.mulf %166, %171 : vector<8x128xf32>
    %c0_84 = arith.constant 0 : index
    %c0_85 = arith.constant 0 : index
    %173 = vector.load %arg17[%c0_84, %c0_85] : memref<8x128xf32, #tpu.memory_space<vmem>>, vector<8x128xf32>
    tpu.vector_store %arg17[%c0_84, %c0_85], %170 {strides = array<i32>} : memref<8x128xf32, #tpu.memory_space<vmem>>, vector<8x128xf32>,
    %c0_86 = arith.constant 0 : index
    %c0_87 = arith.constant 0 : index
    %174 = vector.load %arg16[%c0_86, %c0_87] : memref<8x128xf32, #tpu.memory_space<vmem>>, vector<8x128xf32>
    tpu.vector_store %arg16[%c0_86, %c0_87], %172 {strides = array<i32>} : memref<8x128xf32, #tpu.memory_space<vmem>>, vector<8x128xf32>,
    %175 = arith.index_cast %c3_i32 : i32 to index
    %c0_88 = arith.constant 0 : index
    %c0_89 = arith.constant 0 : index
    %176 = vector.load %arg14[%175, %c0_88, %c0_89] : memref<8x8x128xf32, #tpu.memory_space<vmem>>, vector<1x8x128xf32>
    %177 = vector.shape_cast %176 : vector<1x8x128xf32> to vector<8x128xf32>
    %178 = vector.shape_cast %172 : vector<8x128xf32> to vector<1x8x128xf32>
    tpu.vector_store %arg14[%175, %c0_88, %c0_89], %178 {strides = array<i32>} : memref<8x8x128xf32, #tpu.memory_space<vmem>>, vector<1x8x128xf32>,
    %c4_i32 = arith.constant 4 : i32
    %179 = arith.index_cast %c4_i32 : i32 to index
    %c0_90 = arith.constant 0 : index
    %c0_91 = arith.constant 0 : index
    %180 = vector.load %arg15[%179, %c0_90, %c0_91] : memref<8x8x512xf32, #tpu.memory_space<vmem>>, vector<1x8x512xf32>
    %181 = vector.shape_cast %180 : vector<1x8x512xf32> to vector<8x512xf32>
    %c0_92 = arith.constant 0 : index
    %c0_93 = arith.constant 0 : index
    %182 = vector.load %arg16[%c0_92, %c0_93] : memref<8x128xf32, #tpu.memory_space<vmem>>, vector<8x128xf32>
    %183 = arith.index_cast %c0_i32 : i32 to index
    %c0_94 = arith.constant 0 : index
    %c0_95 = arith.constant 0 : index
    %184 = vector.load %arg3[%183, %c0_94, %c0_95] : memref<2x128x512xf32, #tpu.memory_space<vmem>>, vector<1x128x512xf32>
    %185 = vector.shape_cast %184 : vector<1x128x512xf32> to vector<128x512xf32>
    %cst_96 = arith.constant dense<0.000000e+00> : vector<8x512xf32>
    %186 = tpu.matmul %182, %185, %cst_96 {dimension_numbers = #tpu.dot_dimension_numbers<[1], [0], [0], [1], [0, 0, 1, 1], [], []>} : vector<8x128xf32>, vector<128x512xf32>, vector<8x512xf32> -> vector<8x512xf32>
    %187 = arith.addf %181, %186 : vector<8x512xf32>
    %188 = vector.extract_strided_slice %187 {offsets = [0, 0], sizes = [8, 128], strides = [1, 1]} : vector<8x512xf32> to vector<8x128xf32>
    %189 = arith.negf %188 : vector<8x128xf32>
    %190 = math.exp %189 : vector<8x128xf32>
    %cst_97 = arith.constant 1.000000e+00 : f32
    %191 = vector.broadcast %cst_97 : f32 to vector<8x128xf32>
    %192 = arith.addf %191, %190 : vector<8x128xf32>
    %193 = arith.divf %191, %192 : vector<8x128xf32>
    %194 = vector.extract_strided_slice %187 {offsets = [0, 128], sizes = [8, 128], strides = [1, 1]} : vector<8x512xf32> to vector<8x128xf32>
    %195 = arith.negf %194 : vector<8x128xf32>
    %196 = math.exp %195 : vector<8x128xf32>
    %cst_98 = arith.constant 1.000000e+00 : f32
    %197 = vector.broadcast %cst_98 : f32 to vector<8x128xf32>
    %198 = arith.addf %197, %196 : vector<8x128xf32>
    %199 = arith.divf %197, %198 : vector<8x128xf32>
    %200 = vector.extract_strided_slice %187 {offsets = [0, 256], sizes = [8, 128], strides = [1, 1]} : vector<8x512xf32> to vector<8x128xf32>
    %201 = math.tanh %200 : vector<8x128xf32>
    %202 = vector.extract_strided_slice %187 {offsets = [0, 384], sizes = [8, 128], strides = [1, 1]} : vector<8x512xf32> to vector<8x128xf32>
    %203 = arith.negf %202 : vector<8x128xf32>
    %204 = math.exp %203 : vector<8x128xf32>
    %cst_99 = arith.constant 1.000000e+00 : f32
    %205 = vector.broadcast %cst_99 : f32 to vector<8x128xf32>
    %206 = arith.addf %205, %204 : vector<8x128xf32>
    %207 = arith.divf %205, %206 : vector<8x128xf32>
    %c0_100 = arith.constant 0 : index
    %c0_101 = arith.constant 0 : index
    %208 = vector.load %arg17[%c0_100, %c0_101] : memref<8x128xf32, #tpu.memory_space<vmem>>, vector<8x128xf32>
    %209 = arith.mulf %199, %208 : vector<8x128xf32>
    %210 = arith.mulf %193, %201 : vector<8x128xf32>
    %211 = arith.addf %209, %210 : vector<8x128xf32>
    %212 = math.tanh %211 : vector<8x128xf32>
    %213 = arith.mulf %207, %212 : vector<8x128xf32>
    %c0_102 = arith.constant 0 : index
    %c0_103 = arith.constant 0 : index
    %214 = vector.load %arg17[%c0_102, %c0_103] : memref<8x128xf32, #tpu.memory_space<vmem>>, vector<8x128xf32>
    tpu.vector_store %arg17[%c0_102, %c0_103], %211 {strides = array<i32>} : memref<8x128xf32, #tpu.memory_space<vmem>>, vector<8x128xf32>,
    %c0_104 = arith.constant 0 : index
    %c0_105 = arith.constant 0 : index
    %215 = vector.load %arg16[%c0_104, %c0_105] : memref<8x128xf32, #tpu.memory_space<vmem>>, vector<8x128xf32>
    tpu.vector_store %arg16[%c0_104, %c0_105], %213 {strides = array<i32>} : memref<8x128xf32, #tpu.memory_space<vmem>>, vector<8x128xf32>,
    %216 = arith.index_cast %c4_i32 : i32 to index
    %c0_106 = arith.constant 0 : index
    %c0_107 = arith.constant 0 : index
    %217 = vector.load %arg14[%216, %c0_106, %c0_107] : memref<8x8x128xf32, #tpu.memory_space<vmem>>, vector<1x8x128xf32>
    %218 = vector.shape_cast %217 : vector<1x8x128xf32> to vector<8x128xf32>
    %219 = vector.shape_cast %213 : vector<8x128xf32> to vector<1x8x128xf32>
    tpu.vector_store %arg14[%216, %c0_106, %c0_107], %219 {strides = array<i32>} : memref<8x8x128xf32, #tpu.memory_space<vmem>>, vector<1x8x128xf32>,
    %c5_i32 = arith.constant 5 : i32
    %220 = arith.index_cast %c5_i32 : i32 to index
    %c0_108 = arith.constant 0 : index
    %c0_109 = arith.constant 0 : index
    %221 = vector.load %arg15[%220, %c0_108, %c0_109] : memref<8x8x512xf32, #tpu.memory_space<vmem>>, vector<1x8x512xf32>
    %222 = vector.shape_cast %221 : vector<1x8x512xf32> to vector<8x512xf32>
    %c0_110 = arith.constant 0 : index
    %c0_111 = arith.constant 0 : index
    %223 = vector.load %arg16[%c0_110, %c0_111] : memref<8x128xf32, #tpu.memory_space<vmem>>, vector<8x128xf32>
    %224 = arith.index_cast %c0_i32 : i32 to index
    %c0_112 = arith.constant 0 : index
    %c0_113 = arith.constant 0 : index
    %225 = vector.load %arg3[%224, %c0_112, %c0_113] : memref<2x128x512xf32, #tpu.memory_space<vmem>>, vector<1x128x512xf32>
    %226 = vector.shape_cast %225 : vector<1x128x512xf32> to vector<128x512xf32>
    %cst_114 = arith.constant dense<0.000000e+00> : vector<8x512xf32>
    %227 = tpu.matmul %223, %226, %cst_114 {dimension_numbers = #tpu.dot_dimension_numbers<[1], [0], [0], [1], [0, 0, 1, 1], [], []>} : vector<8x128xf32>, vector<128x512xf32>, vector<8x512xf32> -> vector<8x512xf32>
    %228 = arith.addf %222, %227 : vector<8x512xf32>
    %229 = vector.extract_strided_slice %228 {offsets = [0, 0], sizes = [8, 128], strides = [1, 1]} : vector<8x512xf32> to vector<8x128xf32>
    %230 = arith.negf %229 : vector<8x128xf32>
    %231 = math.exp %230 : vector<8x128xf32>
    %cst_115 = arith.constant 1.000000e+00 : f32
    %232 = vector.broadcast %cst_115 : f32 to vector<8x128xf32>
    %233 = arith.addf %232, %231 : vector<8x128xf32>
    %234 = arith.divf %232, %233 : vector<8x128xf32>
    %235 = vector.extract_strided_slice %228 {offsets = [0, 128], sizes = [8, 128], strides = [1, 1]} : vector<8x512xf32> to vector<8x128xf32>
    %236 = arith.negf %235 : vector<8x128xf32>
    %237 = math.exp %236 : vector<8x128xf32>
    %cst_116 = arith.constant 1.000000e+00 : f32
    %238 = vector.broadcast %cst_116 : f32 to vector<8x128xf32>
    %239 = arith.addf %238, %237 : vector<8x128xf32>
    %240 = arith.divf %238, %239 : vector<8x128xf32>
    %241 = vector.extract_strided_slice %228 {offsets = [0, 256], sizes = [8, 128], strides = [1, 1]} : vector<8x512xf32> to vector<8x128xf32>
    %242 = math.tanh %241 : vector<8x128xf32>
    %243 = vector.extract_strided_slice %228 {offsets = [0, 384], sizes = [8, 128], strides = [1, 1]} : vector<8x512xf32> to vector<8x128xf32>
    %244 = arith.negf %243 : vector<8x128xf32>
    %245 = math.exp %244 : vector<8x128xf32>
    %cst_117 = arith.constant 1.000000e+00 : f32
    %246 = vector.broadcast %cst_117 : f32 to vector<8x128xf32>
    %247 = arith.addf %246, %245 : vector<8x128xf32>
    %248 = arith.divf %246, %247 : vector<8x128xf32>
    %c0_118 = arith.constant 0 : index
    %c0_119 = arith.constant 0 : index
    %249 = vector.load %arg17[%c0_118, %c0_119] : memref<8x128xf32, #tpu.memory_space<vmem>>, vector<8x128xf32>
    %250 = arith.mulf %240, %249 : vector<8x128xf32>
    %251 = arith.mulf %234, %242 : vector<8x128xf32>
    %252 = arith.addf %250, %251 : vector<8x128xf32>
    %253 = math.tanh %252 : vector<8x128xf32>
    %254 = arith.mulf %248, %253 : vector<8x128xf32>
    %c0_120 = arith.constant 0 : index
    %c0_121 = arith.constant 0 : index
    %255 = vector.load %arg17[%c0_120, %c0_121] : memref<8x128xf32, #tpu.memory_space<vmem>>, vector<8x128xf32>
    tpu.vector_store %arg17[%c0_120, %c0_121], %252 {strides = array<i32>} : memref<8x128xf32, #tpu.memory_space<vmem>>, vector<8x128xf32>,
    %c0_122 = arith.constant 0 : index
    %c0_123 = arith.constant 0 : index
    %256 = vector.load %arg16[%c0_122, %c0_123] : memref<8x128xf32, #tpu.memory_space<vmem>>, vector<8x128xf32>
    tpu.vector_store %arg16[%c0_122, %c0_123], %254 {strides = array<i32>} : memref<8x128xf32, #tpu.memory_space<vmem>>, vector<8x128xf32>,
    %257 = arith.index_cast %c5_i32 : i32 to index
    %c0_124 = arith.constant 0 : index
    %c0_125 = arith.constant 0 : index
    %258 = vector.load %arg14[%257, %c0_124, %c0_125] : memref<8x8x128xf32, #tpu.memory_space<vmem>>, vector<1x8x128xf32>
    %259 = vector.shape_cast %258 : vector<1x8x128xf32> to vector<8x128xf32>
    %260 = vector.shape_cast %254 : vector<8x128xf32> to vector<1x8x128xf32>
    tpu.vector_store %arg14[%257, %c0_124, %c0_125], %260 {strides = array<i32>} : memref<8x8x128xf32, #tpu.memory_space<vmem>>, vector<1x8x128xf32>,
    %c6_i32 = arith.constant 6 : i32
    %261 = arith.index_cast %c6_i32 : i32 to index
    %c0_126 = arith.constant 0 : index
    %c0_127 = arith.constant 0 : index
    %262 = vector.load %arg15[%261, %c0_126, %c0_127] : memref<8x8x512xf32, #tpu.memory_space<vmem>>, vector<1x8x512xf32>
    %263 = vector.shape_cast %262 : vector<1x8x512xf32> to vector<8x512xf32>
    %c0_128 = arith.constant 0 : index
    %c0_129 = arith.constant 0 : index
    %264 = vector.load %arg16[%c0_128, %c0_129] : memref<8x128xf32, #tpu.memory_space<vmem>>, vector<8x128xf32>
    %265 = arith.index_cast %c0_i32 : i32 to index
    %c0_130 = arith.constant 0 : index
    %c0_131 = arith.constant 0 : index
    %266 = vector.load %arg3[%265, %c0_130, %c0_131] : memref<2x128x512xf32, #tpu.memory_space<vmem>>, vector<1x128x512xf32>
    %267 = vector.shape_cast %266 : vector<1x128x512xf32> to vector<128x512xf32>
    %cst_132 = arith.constant dense<0.000000e+00> : vector<8x512xf32>
    %268 = tpu.matmul %264, %267, %cst_132 {dimension_numbers = #tpu.dot_dimension_numbers<[1], [0], [0], [1], [0, 0, 1, 1], [], []>} : vector<8x128xf32>, vector<128x512xf32>, vector<8x512xf32> -> vector<8x512xf32>
    %269 = arith.addf %263, %268 : vector<8x512xf32>
    %270 = vector.extract_strided_slice %269 {offsets = [0, 0], sizes = [8, 128], strides = [1, 1]} : vector<8x512xf32> to vector<8x128xf32>
    %271 = arith.negf %270 : vector<8x128xf32>
    %272 = math.exp %271 : vector<8x128xf32>
    %cst_133 = arith.constant 1.000000e+00 : f32
    %273 = vector.broadcast %cst_133 : f32 to vector<8x128xf32>
    %274 = arith.addf %273, %272 : vector<8x128xf32>
    %275 = arith.divf %273, %274 : vector<8x128xf32>
    %276 = vector.extract_strided_slice %269 {offsets = [0, 128], sizes = [8, 128], strides = [1, 1]} : vector<8x512xf32> to vector<8x128xf32>
    %277 = arith.negf %276 : vector<8x128xf32>
    %278 = math.exp %277 : vector<8x128xf32>
    %cst_134 = arith.constant 1.000000e+00 : f32
    %279 = vector.broadcast %cst_134 : f32 to vector<8x128xf32>
    %280 = arith.addf %279, %278 : vector<8x128xf32>
    %281 = arith.divf %279, %280 : vector<8x128xf32>
    %282 = vector.extract_strided_slice %269 {offsets = [0, 256], sizes = [8, 128], strides = [1, 1]} : vector<8x512xf32> to vector<8x128xf32>
    %283 = math.tanh %282 : vector<8x128xf32>
    %284 = vector.extract_strided_slice %269 {offsets = [0, 384], sizes = [8, 128], strides = [1, 1]} : vector<8x512xf32> to vector<8x128xf32>
    %285 = arith.negf %284 : vector<8x128xf32>
    %286 = math.exp %285 : vector<8x128xf32>
    %cst_135 = arith.constant 1.000000e+00 : f32
    %287 = vector.broadcast %cst_135 : f32 to vector<8x128xf32>
    %288 = arith.addf %287, %286 : vector<8x128xf32>
    %289 = arith.divf %287, %288 : vector<8x128xf32>
    %c0_136 = arith.constant 0 : index
    %c0_137 = arith.constant 0 : index
    %290 = vector.load %arg17[%c0_136, %c0_137] : memref<8x128xf32, #tpu.memory_space<vmem>>, vector<8x128xf32>
    %291 = arith.mulf %281, %290 : vector<8x128xf32>
    %292 = arith.mulf %275, %283 : vector<8x128xf32>
    %293 = arith.addf %291, %292 : vector<8x128xf32>
    %294 = math.tanh %293 : vector<8x128xf32>
    %295 = arith.mulf %289, %294 : vector<8x128xf32>
    %c0_138 = arith.constant 0 : index
    %c0_139 = arith.constant 0 : index
    %296 = vector.load %arg17[%c0_138, %c0_139] : memref<8x128xf32, #tpu.memory_space<vmem>>, vector<8x128xf32>
    tpu.vector_store %arg17[%c0_138, %c0_139], %293 {strides = array<i32>} : memref<8x128xf32, #tpu.memory_space<vmem>>, vector<8x128xf32>,
    %c0_140 = arith.constant 0 : index
    %c0_141 = arith.constant 0 : index
    %297 = vector.load %arg16[%c0_140, %c0_141] : memref<8x128xf32, #tpu.memory_space<vmem>>, vector<8x128xf32>
    tpu.vector_store %arg16[%c0_140, %c0_141], %295 {strides = array<i32>} : memref<8x128xf32, #tpu.memory_space<vmem>>, vector<8x128xf32>,
    %298 = arith.index_cast %c6_i32 : i32 to index
    %c0_142 = arith.constant 0 : index
    %c0_143 = arith.constant 0 : index
    %299 = vector.load %arg14[%298, %c0_142, %c0_143] : memref<8x8x128xf32, #tpu.memory_space<vmem>>, vector<1x8x128xf32>
    %300 = vector.shape_cast %299 : vector<1x8x128xf32> to vector<8x128xf32>
    %301 = vector.shape_cast %295 : vector<8x128xf32> to vector<1x8x128xf32>
    tpu.vector_store %arg14[%298, %c0_142, %c0_143], %301 {strides = array<i32>} : memref<8x8x128xf32, #tpu.memory_space<vmem>>, vector<1x8x128xf32>,
    %c7_i32 = arith.constant 7 : i32
    %302 = arith.index_cast %c7_i32 : i32 to index
    %c0_144 = arith.constant 0 : index
    %c0_145 = arith.constant 0 : index
    %303 = vector.load %arg15[%302, %c0_144, %c0_145] : memref<8x8x512xf32, #tpu.memory_space<vmem>>, vector<1x8x512xf32>
    %304 = vector.shape_cast %303 : vector<1x8x512xf32> to vector<8x512xf32>
    %c0_146 = arith.constant 0 : index
    %c0_147 = arith.constant 0 : index
    %305 = vector.load %arg16[%c0_146, %c0_147] : memref<8x128xf32, #tpu.memory_space<vmem>>, vector<8x128xf32>
    %306 = arith.index_cast %c0_i32 : i32 to index
    %c0_148 = arith.constant 0 : index
    %c0_149 = arith.constant 0 : index
    %307 = vector.load %arg3[%306, %c0_148, %c0_149] : memref<2x128x512xf32, #tpu.memory_space<vmem>>, vector<1x128x512xf32>
    %308 = vector.shape_cast %307 : vector<1x128x512xf32> to vector<128x512xf32>
    %cst_150 = arith.constant dense<0.000000e+00> : vector<8x512xf32>
    %309 = tpu.matmul %305, %308, %cst_150 {dimension_numbers = #tpu.dot_dimension_numbers<[1], [0], [0], [1], [0, 0, 1, 1], [], []>} : vector<8x128xf32>, vector<128x512xf32>, vector<8x512xf32> -> vector<8x512xf32>
    %310 = arith.addf %304, %309 : vector<8x512xf32>
    %311 = vector.extract_strided_slice %310 {offsets = [0, 0], sizes = [8, 128], strides = [1, 1]} : vector<8x512xf32> to vector<8x128xf32>
    %312 = arith.negf %311 : vector<8x128xf32>
    %313 = math.exp %312 : vector<8x128xf32>
    %cst_151 = arith.constant 1.000000e+00 : f32
    %314 = vector.broadcast %cst_151 : f32 to vector<8x128xf32>
    %315 = arith.addf %314, %313 : vector<8x128xf32>
    %316 = arith.divf %314, %315 : vector<8x128xf32>
    %317 = vector.extract_strided_slice %310 {offsets = [0, 128], sizes = [8, 128], strides = [1, 1]} : vector<8x512xf32> to vector<8x128xf32>
    %318 = arith.negf %317 : vector<8x128xf32>
    %319 = math.exp %318 : vector<8x128xf32>
    %cst_152 = arith.constant 1.000000e+00 : f32
    %320 = vector.broadcast %cst_152 : f32 to vector<8x128xf32>
    %321 = arith.addf %320, %319 : vector<8x128xf32>
    %322 = arith.divf %320, %321 : vector<8x128xf32>
    %323 = vector.extract_strided_slice %310 {offsets = [0, 256], sizes = [8, 128], strides = [1, 1]} : vector<8x512xf32> to vector<8x128xf32>
    %324 = math.tanh %323 : vector<8x128xf32>
    %325 = vector.extract_strided_slice %310 {offsets = [0, 384], sizes = [8, 128], strides = [1, 1]} : vector<8x512xf32> to vector<8x128xf32>
    %326 = arith.negf %325 : vector<8x128xf32>
    %327 = math.exp %326 : vector<8x128xf32>
    %cst_153 = arith.constant 1.000000e+00 : f32
    %328 = vector.broadcast %cst_153 : f32 to vector<8x128xf32>
    %329 = arith.addf %328, %327 : vector<8x128xf32>
    %330 = arith.divf %328, %329 : vector<8x128xf32>
    %c0_154 = arith.constant 0 : index
    %c0_155 = arith.constant 0 : index
    %331 = vector.load %arg17[%c0_154, %c0_155] : memref<8x128xf32, #tpu.memory_space<vmem>>, vector<8x128xf32>
    %332 = arith.mulf %322, %331 : vector<8x128xf32>
    %333 = arith.mulf %316, %324 : vector<8x128xf32>
    %334 = arith.addf %332, %333 : vector<8x128xf32>
    %335 = math.tanh %334 : vector<8x128xf32>
    %336 = arith.mulf %330, %335 : vector<8x128xf32>
    %c0_156 = arith.constant 0 : index
    %c0_157 = arith.constant 0 : index
    %337 = vector.load %arg17[%c0_156, %c0_157] : memref<8x128xf32, #tpu.memory_space<vmem>>, vector<8x128xf32>
    tpu.vector_store %arg17[%c0_156, %c0_157], %334 {strides = array<i32>} : memref<8x128xf32, #tpu.memory_space<vmem>>, vector<8x128xf32>,
    %c0_158 = arith.constant 0 : index
    %c0_159 = arith.constant 0 : index
    %338 = vector.load %arg16[%c0_158, %c0_159] : memref<8x128xf32, #tpu.memory_space<vmem>>, vector<8x128xf32>
    tpu.vector_store %arg16[%c0_158, %c0_159], %336 {strides = array<i32>} : memref<8x128xf32, #tpu.memory_space<vmem>>, vector<8x128xf32>,
    %339 = arith.index_cast %c7_i32 : i32 to index
    %c0_160 = arith.constant 0 : index
    %c0_161 = arith.constant 0 : index
    %340 = vector.load %arg14[%339, %c0_160, %c0_161] : memref<8x8x128xf32, #tpu.memory_space<vmem>>, vector<1x8x128xf32>
    %341 = vector.shape_cast %340 : vector<1x8x128xf32> to vector<8x128xf32>
    %342 = vector.shape_cast %336 : vector<8x128xf32> to vector<1x8x128xf32>
    tpu.vector_store %arg14[%339, %c0_160, %c0_161], %342 {strides = array<i32>} : memref<8x8x128xf32, #tpu.memory_space<vmem>>, vector<1x8x128xf32>,
    %c8_i32 = arith.constant 8 : i32
    %c0_162 = arith.constant 0 : index
    %c0_163 = arith.constant 0 : index
    %c0_164 = arith.constant 0 : index
    %343 = vector.load %arg14[%c0_162, %c0_163, %c0_164] : memref<8x8x128xf32, #tpu.memory_space<vmem>>, vector<8x8x128xf32>
    %344 = vector.shape_cast %343 : vector<8x8x128xf32> to vector<64x128xf32>
    %c1 = arith.constant 1 : index
    %c0_165 = arith.constant 0 : index
    %c0_166 = arith.constant 0 : index
    %345 = vector.load %arg2[%c1, %c0_165, %c0_166] : memref<2x128x512xf32, #tpu.memory_space<vmem>>, vector<1x128x512xf32>
    %346 = vector.shape_cast %345 : vector<1x128x512xf32> to vector<128x512xf32>
    %cst_167 = arith.constant dense<0.000000e+00> : vector<64x512xf32>
    %347 = tpu.matmul %344, %346, %cst_167 {dimension_numbers = #tpu.dot_dimension_numbers<[1], [0], [0], [1], [0, 0, 1, 1], [], []>} : vector<64x128xf32>, vector<128x512xf32>, vector<64x512xf32> -> vector<64x512xf32>
    %c1_168 = arith.constant 1 : index
    %c0_169 = arith.constant 0 : index
    %c0_170 = arith.constant 0 : index
    %348 = vector.load %arg4[%c1_168, %c0_169, %c0_170] : memref<2x1x512xf32, #tpu.memory_space<vmem>>, vector<1x1x512xf32>
    %349 = vector.shape_cast %348 : vector<1x1x512xf32> to vector<1x512xf32>
    %350 = vector.broadcast %349 : vector<1x512xf32> to vector<64x512xf32>
    %351 = arith.addf %347, %350 : vector<64x512xf32>
    %352 = vector.shape_cast %351 : vector<64x512xf32> to vector<8x8x512xf32>
    %c0_171 = arith.constant 0 : index
    %c0_172 = arith.constant 0 : index
    %c0_173 = arith.constant 0 : index
    %353 = vector.load %arg15[%c0_171, %c0_172, %c0_173] : memref<8x8x512xf32, #tpu.memory_space<vmem>>, vector<8x8x512xf32>
    tpu.vector_store %arg15[%c0_171, %c0_172, %c0_173], %352 {strides = array<i32>} : memref<8x8x512xf32, #tpu.memory_space<vmem>>, vector<8x8x512xf32>,
    %cst_174 = arith.constant 0.000000e+00 : f32
    %354 = vector.broadcast %cst_174 : f32 to vector<8x128xf32>
    %c0_175 = arith.constant 0 : index
    %c0_176 = arith.constant 0 : index
    %355 = vector.load %arg16[%c0_175, %c0_176] : memref<8x128xf32, #tpu.memory_space<vmem>>, vector<8x128xf32>
    tpu.vector_store %arg16[%c0_175, %c0_176], %354 {strides = array<i32>} : memref<8x128xf32, #tpu.memory_space<vmem>>, vector<8x128xf32>,
    %cst_177 = arith.constant 0.000000e+00 : f32
    %356 = vector.broadcast %cst_177 : f32 to vector<8x128xf32>
    %c0_178 = arith.constant 0 : index
    %c0_179 = arith.constant 0 : index
    %357 = vector.load %arg17[%c0_178, %c0_179] : memref<8x128xf32, #tpu.memory_space<vmem>>, vector<8x128xf32>
    tpu.vector_store %arg17[%c0_178, %c0_179], %356 {strides = array<i32>} : memref<8x128xf32, #tpu.memory_space<vmem>>, vector<8x128xf32>,
    %c1_i32_180 = arith.constant 1 : i32
    %c0_i32_181 = arith.constant 0 : i32
    %358 = arith.index_cast %c0_i32_181 : i32 to index
    %c0_182 = arith.constant 0 : index
    %c0_183 = arith.constant 0 : index
    %359 = vector.load %arg15[%358, %c0_182, %c0_183] : memref<8x8x512xf32, #tpu.memory_space<vmem>>, vector<1x8x512xf32>
    %360 = vector.shape_cast %359 : vector<1x8x512xf32> to vector<8x512xf32>
    %c0_184 = arith.constant 0 : index
    %c0_185 = arith.constant 0 : index
    %361 = vector.load %arg16[%c0_184, %c0_185] : memref<8x128xf32, #tpu.memory_space<vmem>>, vector<8x128xf32>
    %362 = arith.index_cast %c1_i32_180 : i32 to index
    %c0_186 = arith.constant 0 : index
    %c0_187 = arith.constant 0 : index
    %363 = vector.load %arg3[%362, %c0_186, %c0_187] : memref<2x128x512xf32, #tpu.memory_space<vmem>>, vector<1x128x512xf32>
    %364 = vector.shape_cast %363 : vector<1x128x512xf32> to vector<128x512xf32>
    %cst_188 = arith.constant dense<0.000000e+00> : vector<8x512xf32>
    %365 = tpu.matmul %361, %364, %cst_188 {dimension_numbers = #tpu.dot_dimension_numbers<[1], [0], [0], [1], [0, 0, 1, 1], [], []>} : vector<8x128xf32>, vector<128x512xf32>, vector<8x512xf32> -> vector<8x512xf32>
    %366 = arith.addf %360, %365 : vector<8x512xf32>
    %367 = vector.extract_strided_slice %366 {offsets = [0, 0], sizes = [8, 128], strides = [1, 1]} : vector<8x512xf32> to vector<8x128xf32>
    %368 = arith.negf %367 : vector<8x128xf32>
    %369 = math.exp %368 : vector<8x128xf32>
    %cst_189 = arith.constant 1.000000e+00 : f32
    %370 = vector.broadcast %cst_189 : f32 to vector<8x128xf32>
    %371 = arith.addf %370, %369 : vector<8x128xf32>
    %372 = arith.divf %370, %371 : vector<8x128xf32>
    %373 = vector.extract_strided_slice %366 {offsets = [0, 128], sizes = [8, 128], strides = [1, 1]} : vector<8x512xf32> to vector<8x128xf32>
    %374 = arith.negf %373 : vector<8x128xf32>
    %375 = math.exp %374 : vector<8x128xf32>
    %cst_190 = arith.constant 1.000000e+00 : f32
    %376 = vector.broadcast %cst_190 : f32 to vector<8x128xf32>
    %377 = arith.addf %376, %375 : vector<8x128xf32>
    %378 = arith.divf %376, %377 : vector<8x128xf32>
    %379 = vector.extract_strided_slice %366 {offsets = [0, 256], sizes = [8, 128], strides = [1, 1]} : vector<8x512xf32> to vector<8x128xf32>
    %380 = math.tanh %379 : vector<8x128xf32>
    %381 = vector.extract_strided_slice %366 {offsets = [0, 384], sizes = [8, 128], strides = [1, 1]} : vector<8x512xf32> to vector<8x128xf32>
    %382 = arith.negf %381 : vector<8x128xf32>
    %383 = math.exp %382 : vector<8x128xf32>
    %cst_191 = arith.constant 1.000000e+00 : f32
    %384 = vector.broadcast %cst_191 : f32 to vector<8x128xf32>
    %385 = arith.addf %384, %383 : vector<8x128xf32>
    %386 = arith.divf %384, %385 : vector<8x128xf32>
    %c0_192 = arith.constant 0 : index
    %c0_193 = arith.constant 0 : index
    %387 = vector.load %arg17[%c0_192, %c0_193] : memref<8x128xf32, #tpu.memory_space<vmem>>, vector<8x128xf32>
    %388 = arith.mulf %378, %387 : vector<8x128xf32>
    %389 = arith.mulf %372, %380 : vector<8x128xf32>
    %390 = arith.addf %388, %389 : vector<8x128xf32>
    %391 = math.tanh %390 : vector<8x128xf32>
    %392 = arith.mulf %386, %391 : vector<8x128xf32>
    %c0_194 = arith.constant 0 : index
    %c0_195 = arith.constant 0 : index
    %393 = vector.load %arg17[%c0_194, %c0_195] : memref<8x128xf32, #tpu.memory_space<vmem>>, vector<8x128xf32>
    tpu.vector_store %arg17[%c0_194, %c0_195], %390 {strides = array<i32>} : memref<8x128xf32, #tpu.memory_space<vmem>>, vector<8x128xf32>,
    %c0_196 = arith.constant 0 : index
    %c0_197 = arith.constant 0 : index
    %394 = vector.load %arg16[%c0_196, %c0_197] : memref<8x128xf32, #tpu.memory_space<vmem>>, vector<8x128xf32>
    tpu.vector_store %arg16[%c0_196, %c0_197], %392 {strides = array<i32>} : memref<8x128xf32, #tpu.memory_space<vmem>>, vector<8x128xf32>,
    %395 = arith.index_cast %c0_i32_181 : i32 to index
    %c0_198 = arith.constant 0 : index
    %c0_199 = arith.constant 0 : index
    %396 = vector.load %arg14[%395, %c0_198, %c0_199] : memref<8x8x128xf32, #tpu.memory_space<vmem>>, vector<1x8x128xf32>
    %397 = vector.shape_cast %396 : vector<1x8x128xf32> to vector<8x128xf32>
    %398 = vector.shape_cast %392 : vector<8x128xf32> to vector<1x8x128xf32>
    tpu.vector_store %arg14[%395, %c0_198, %c0_199], %398 {strides = array<i32>} : memref<8x8x128xf32, #tpu.memory_space<vmem>>, vector<1x8x128xf32>,
    %c1_i32_200 = arith.constant 1 : i32
    %399 = arith.index_cast %c1_i32_200 : i32 to index
    %c0_201 = arith.constant 0 : index
    %c0_202 = arith.constant 0 : index
    %400 = vector.load %arg15[%399, %c0_201, %c0_202] : memref<8x8x512xf32, #tpu.memory_space<vmem>>, vector<1x8x512xf32>
    %401 = vector.shape_cast %400 : vector<1x8x512xf32> to vector<8x512xf32>
    %c0_203 = arith.constant 0 : index
    %c0_204 = arith.constant 0 : index
    %402 = vector.load %arg16[%c0_203, %c0_204] : memref<8x128xf32, #tpu.memory_space<vmem>>, vector<8x128xf32>
    %403 = arith.index_cast %c1_i32_180 : i32 to index
    %c0_205 = arith.constant 0 : index
    %c0_206 = arith.constant 0 : index
    %404 = vector.load %arg3[%403, %c0_205, %c0_206] : memref<2x128x512xf32, #tpu.memory_space<vmem>>, vector<1x128x512xf32>
    %405 = vector.shape_cast %404 : vector<1x128x512xf32> to vector<128x512xf32>
    %cst_207 = arith.constant dense<0.000000e+00> : vector<8x512xf32>
    %406 = tpu.matmul %402, %405, %cst_207 {dimension_numbers = #tpu.dot_dimension_numbers<[1], [0], [0], [1], [0, 0, 1, 1], [], []>} : vector<8x128xf32>, vector<128x512xf32>, vector<8x512xf32> -> vector<8x512xf32>
    %407 = arith.addf %401, %406 : vector<8x512xf32>
    %408 = vector.extract_strided_slice %407 {offsets = [0, 0], sizes = [8, 128], strides = [1, 1]} : vector<8x512xf32> to vector<8x128xf32>
    %409 = arith.negf %408 : vector<8x128xf32>
    %410 = math.exp %409 : vector<8x128xf32>
    %cst_208 = arith.constant 1.000000e+00 : f32
    %411 = vector.broadcast %cst_208 : f32 to vector<8x128xf32>
    %412 = arith.addf %411, %410 : vector<8x128xf32>
    %413 = arith.divf %411, %412 : vector<8x128xf32>
    %414 = vector.extract_strided_slice %407 {offsets = [0, 128], sizes = [8, 128], strides = [1, 1]} : vector<8x512xf32> to vector<8x128xf32>
    %415 = arith.negf %414 : vector<8x128xf32>
    %416 = math.exp %415 : vector<8x128xf32>
    %cst_209 = arith.constant 1.000000e+00 : f32
    %417 = vector.broadcast %cst_209 : f32 to vector<8x128xf32>
    %418 = arith.addf %417, %416 : vector<8x128xf32>
    %419 = arith.divf %417, %418 : vector<8x128xf32>
    %420 = vector.extract_strided_slice %407 {offsets = [0, 256], sizes = [8, 128], strides = [1, 1]} : vector<8x512xf32> to vector<8x128xf32>
    %421 = math.tanh %420 : vector<8x128xf32>
    %422 = vector.extract_strided_slice %407 {offsets = [0, 384], sizes = [8, 128], strides = [1, 1]} : vector<8x512xf32> to vector<8x128xf32>
    %423 = arith.negf %422 : vector<8x128xf32>
    %424 = math.exp %423 : vector<8x128xf32>
    %cst_210 = arith.constant 1.000000e+00 : f32
    %425 = vector.broadcast %cst_210 : f32 to vector<8x128xf32>
    %426 = arith.addf %425, %424 : vector<8x128xf32>
    %427 = arith.divf %425, %426 : vector<8x128xf32>
    %c0_211 = arith.constant 0 : index
    %c0_212 = arith.constant 0 : index
    %428 = vector.load %arg17[%c0_211, %c0_212] : memref<8x128xf32, #tpu.memory_space<vmem>>, vector<8x128xf32>
    %429 = arith.mulf %419, %428 : vector<8x128xf32>
    %430 = arith.mulf %413, %421 : vector<8x128xf32>
    %431 = arith.addf %429, %430 : vector<8x128xf32>
    %432 = math.tanh %431 : vector<8x128xf32>
    %433 = arith.mulf %427, %432 : vector<8x128xf32>
    %c0_213 = arith.constant 0 : index
    %c0_214 = arith.constant 0 : index
    %434 = vector.load %arg17[%c0_213, %c0_214] : memref<8x128xf32, #tpu.memory_space<vmem>>, vector<8x128xf32>
    tpu.vector_store %arg17[%c0_213, %c0_214], %431 {strides = array<i32>} : memref<8x128xf32, #tpu.memory_space<vmem>>, vector<8x128xf32>,
    %c0_215 = arith.constant 0 : index
    %c0_216 = arith.constant 0 : index
    %435 = vector.load %arg16[%c0_215, %c0_216] : memref<8x128xf32, #tpu.memory_space<vmem>>, vector<8x128xf32>
    tpu.vector_store %arg16[%c0_215, %c0_216], %433 {strides = array<i32>} : memref<8x128xf32, #tpu.memory_space<vmem>>, vector<8x128xf32>,
    %436 = arith.index_cast %c1_i32_200 : i32 to index
    %c0_217 = arith.constant 0 : index
    %c0_218 = arith.constant 0 : index
    %437 = vector.load %arg14[%436, %c0_217, %c0_218] : memref<8x8x128xf32, #tpu.memory_space<vmem>>, vector<1x8x128xf32>
    %438 = vector.shape_cast %437 : vector<1x8x128xf32> to vector<8x128xf32>
    %439 = vector.shape_cast %433 : vector<8x128xf32> to vector<1x8x128xf32>
    tpu.vector_store %arg14[%436, %c0_217, %c0_218], %439 {strides = array<i32>} : memref<8x8x128xf32, #tpu.memory_space<vmem>>, vector<1x8x128xf32>,
    %c2_i32_219 = arith.constant 2 : i32
    %440 = arith.index_cast %c2_i32_219 : i32 to index
    %c0_220 = arith.constant 0 : index
    %c0_221 = arith.constant 0 : index
    %441 = vector.load %arg15[%440, %c0_220, %c0_221] : memref<8x8x512xf32, #tpu.memory_space<vmem>>, vector<1x8x512xf32>
    %442 = vector.shape_cast %441 : vector<1x8x512xf32> to vector<8x512xf32>
    %c0_222 = arith.constant 0 : index
    %c0_223 = arith.constant 0 : index
    %443 = vector.load %arg16[%c0_222, %c0_223] : memref<8x128xf32, #tpu.memory_space<vmem>>, vector<8x128xf32>
    %444 = arith.index_cast %c1_i32_180 : i32 to index
    %c0_224 = arith.constant 0 : index
    %c0_225 = arith.constant 0 : index
    %445 = vector.load %arg3[%444, %c0_224, %c0_225] : memref<2x128x512xf32, #tpu.memory_space<vmem>>, vector<1x128x512xf32>
    %446 = vector.shape_cast %445 : vector<1x128x512xf32> to vector<128x512xf32>
    %cst_226 = arith.constant dense<0.000000e+00> : vector<8x512xf32>
    %447 = tpu.matmul %443, %446, %cst_226 {dimension_numbers = #tpu.dot_dimension_numbers<[1], [0], [0], [1], [0, 0, 1, 1], [], []>} : vector<8x128xf32>, vector<128x512xf32>, vector<8x512xf32> -> vector<8x512xf32>
    %448 = arith.addf %442, %447 : vector<8x512xf32>
    %449 = vector.extract_strided_slice %448 {offsets = [0, 0], sizes = [8, 128], strides = [1, 1]} : vector<8x512xf32> to vector<8x128xf32>
    %450 = arith.negf %449 : vector<8x128xf32>
    %451 = math.exp %450 : vector<8x128xf32>
    %cst_227 = arith.constant 1.000000e+00 : f32
    %452 = vector.broadcast %cst_227 : f32 to vector<8x128xf32>
    %453 = arith.addf %452, %451 : vector<8x128xf32>
    %454 = arith.divf %452, %453 : vector<8x128xf32>
    %455 = vector.extract_strided_slice %448 {offsets = [0, 128], sizes = [8, 128], strides = [1, 1]} : vector<8x512xf32> to vector<8x128xf32>
    %456 = arith.negf %455 : vector<8x128xf32>
    %457 = math.exp %456 : vector<8x128xf32>
    %cst_228 = arith.constant 1.000000e+00 : f32
    %458 = vector.broadcast %cst_228 : f32 to vector<8x128xf32>
    %459 = arith.addf %458, %457 : vector<8x128xf32>
    %460 = arith.divf %458, %459 : vector<8x128xf32>
    %461 = vector.extract_strided_slice %448 {offsets = [0, 256], sizes = [8, 128], strides = [1, 1]} : vector<8x512xf32> to vector<8x128xf32>
    %462 = math.tanh %461 : vector<8x128xf32>
    %463 = vector.extract_strided_slice %448 {offsets = [0, 384], sizes = [8, 128], strides = [1, 1]} : vector<8x512xf32> to vector<8x128xf32>
    %464 = arith.negf %463 : vector<8x128xf32>
    %465 = math.exp %464 : vector<8x128xf32>
    %cst_229 = arith.constant 1.000000e+00 : f32
    %466 = vector.broadcast %cst_229 : f32 to vector<8x128xf32>
    %467 = arith.addf %466, %465 : vector<8x128xf32>
    %468 = arith.divf %466, %467 : vector<8x128xf32>
    %c0_230 = arith.constant 0 : index
    %c0_231 = arith.constant 0 : index
    %469 = vector.load %arg17[%c0_230, %c0_231] : memref<8x128xf32, #tpu.memory_space<vmem>>, vector<8x128xf32>
    %470 = arith.mulf %460, %469 : vector<8x128xf32>
    %471 = arith.mulf %454, %462 : vector<8x128xf32>
    %472 = arith.addf %470, %471 : vector<8x128xf32>
    %473 = math.tanh %472 : vector<8x128xf32>
    %474 = arith.mulf %468, %473 : vector<8x128xf32>
    %c0_232 = arith.constant 0 : index
    %c0_233 = arith.constant 0 : index
    %475 = vector.load %arg17[%c0_232, %c0_233] : memref<8x128xf32, #tpu.memory_space<vmem>>, vector<8x128xf32>
    tpu.vector_store %arg17[%c0_232, %c0_233], %472 {strides = array<i32>} : memref<8x128xf32, #tpu.memory_space<vmem>>, vector<8x128xf32>,
    %c0_234 = arith.constant 0 : index
    %c0_235 = arith.constant 0 : index
    %476 = vector.load %arg16[%c0_234, %c0_235] : memref<8x128xf32, #tpu.memory_space<vmem>>, vector<8x128xf32>
    tpu.vector_store %arg16[%c0_234, %c0_235], %474 {strides = array<i32>} : memref<8x128xf32, #tpu.memory_space<vmem>>, vector<8x128xf32>,
    %477 = arith.index_cast %c2_i32_219 : i32 to index
    %c0_236 = arith.constant 0 : index
    %c0_237 = arith.constant 0 : index
    %478 = vector.load %arg14[%477, %c0_236, %c0_237] : memref<8x8x128xf32, #tpu.memory_space<vmem>>, vector<1x8x128xf32>
    %479 = vector.shape_cast %478 : vector<1x8x128xf32> to vector<8x128xf32>
    %480 = vector.shape_cast %474 : vector<8x128xf32> to vector<1x8x128xf32>
    tpu.vector_store %arg14[%477, %c0_236, %c0_237], %480 {strides = array<i32>} : memref<8x8x128xf32, #tpu.memory_space<vmem>>, vector<1x8x128xf32>,
    %c3_i32_238 = arith.constant 3 : i32
    %481 = arith.index_cast %c3_i32_238 : i32 to index
    %c0_239 = arith.constant 0 : index
    %c0_240 = arith.constant 0 : index
    %482 = vector.load %arg15[%481, %c0_239, %c0_240] : memref<8x8x512xf32, #tpu.memory_space<vmem>>, vector<1x8x512xf32>
    %483 = vector.shape_cast %482 : vector<1x8x512xf32> to vector<8x512xf32>
    %c0_241 = arith.constant 0 : index
    %c0_242 = arith.constant 0 : index
    %484 = vector.load %arg16[%c0_241, %c0_242] : memref<8x128xf32, #tpu.memory_space<vmem>>, vector<8x128xf32>
    %485 = arith.index_cast %c1_i32_180 : i32 to index
    %c0_243 = arith.constant 0 : index
    %c0_244 = arith.constant 0 : index
    %486 = vector.load %arg3[%485, %c0_243, %c0_244] : memref<2x128x512xf32, #tpu.memory_space<vmem>>, vector<1x128x512xf32>
    %487 = vector.shape_cast %486 : vector<1x128x512xf32> to vector<128x512xf32>
    %cst_245 = arith.constant dense<0.000000e+00> : vector<8x512xf32>
    %488 = tpu.matmul %484, %487, %cst_245 {dimension_numbers = #tpu.dot_dimension_numbers<[1], [0], [0], [1], [0, 0, 1, 1], [], []>} : vector<8x128xf32>, vector<128x512xf32>, vector<8x512xf32> -> vector<8x512xf32>
    %489 = arith.addf %483, %488 : vector<8x512xf32>
    %490 = vector.extract_strided_slice %489 {offsets = [0, 0], sizes = [8, 128], strides = [1, 1]} : vector<8x512xf32> to vector<8x128xf32>
    %491 = arith.negf %490 : vector<8x128xf32>
    %492 = math.exp %491 : vector<8x128xf32>
    %cst_246 = arith.constant 1.000000e+00 : f32
    %493 = vector.broadcast %cst_246 : f32 to vector<8x128xf32>
    %494 = arith.addf %493, %492 : vector<8x128xf32>
    %495 = arith.divf %493, %494 : vector<8x128xf32>
    %496 = vector.extract_strided_slice %489 {offsets = [0, 128], sizes = [8, 128], strides = [1, 1]} : vector<8x512xf32> to vector<8x128xf32>
    %497 = arith.negf %496 : vector<8x128xf32>
    %498 = math.exp %497 : vector<8x128xf32>
    %cst_247 = arith.constant 1.000000e+00 : f32
    %499 = vector.broadcast %cst_247 : f32 to vector<8x128xf32>
    %500 = arith.addf %499, %498 : vector<8x128xf32>
    %501 = arith.divf %499, %500 : vector<8x128xf32>
    %502 = vector.extract_strided_slice %489 {offsets = [0, 256], sizes = [8, 128], strides = [1, 1]} : vector<8x512xf32> to vector<8x128xf32>
    %503 = math.tanh %502 : vector<8x128xf32>
    %504 = vector.extract_strided_slice %489 {offsets = [0, 384], sizes = [8, 128], strides = [1, 1]} : vector<8x512xf32> to vector<8x128xf32>
    %505 = arith.negf %504 : vector<8x128xf32>
    %506 = math.exp %505 : vector<8x128xf32>
    %cst_248 = arith.constant 1.000000e+00 : f32
    %507 = vector.broadcast %cst_248 : f32 to vector<8x128xf32>
    %508 = arith.addf %507, %506 : vector<8x128xf32>
    %509 = arith.divf %507, %508 : vector<8x128xf32>
    %c0_249 = arith.constant 0 : index
    %c0_250 = arith.constant 0 : index
    %510 = vector.load %arg17[%c0_249, %c0_250] : memref<8x128xf32, #tpu.memory_space<vmem>>, vector<8x128xf32>
    %511 = arith.mulf %501, %510 : vector<8x128xf32>
    %512 = arith.mulf %495, %503 : vector<8x128xf32>
    %513 = arith.addf %511, %512 : vector<8x128xf32>
    %514 = math.tanh %513 : vector<8x128xf32>
    %515 = arith.mulf %509, %514 : vector<8x128xf32>
    %c0_251 = arith.constant 0 : index
    %c0_252 = arith.constant 0 : index
    %516 = vector.load %arg17[%c0_251, %c0_252] : memref<8x128xf32, #tpu.memory_space<vmem>>, vector<8x128xf32>
    tpu.vector_store %arg17[%c0_251, %c0_252], %513 {strides = array<i32>} : memref<8x128xf32, #tpu.memory_space<vmem>>, vector<8x128xf32>,
    %c0_253 = arith.constant 0 : index
    %c0_254 = arith.constant 0 : index
    %517 = vector.load %arg16[%c0_253, %c0_254] : memref<8x128xf32, #tpu.memory_space<vmem>>, vector<8x128xf32>
    tpu.vector_store %arg16[%c0_253, %c0_254], %515 {strides = array<i32>} : memref<8x128xf32, #tpu.memory_space<vmem>>, vector<8x128xf32>,
    %518 = arith.index_cast %c3_i32_238 : i32 to index
    %c0_255 = arith.constant 0 : index
    %c0_256 = arith.constant 0 : index
    %519 = vector.load %arg14[%518, %c0_255, %c0_256] : memref<8x8x128xf32, #tpu.memory_space<vmem>>, vector<1x8x128xf32>
    %520 = vector.shape_cast %519 : vector<1x8x128xf32> to vector<8x128xf32>
    %521 = vector.shape_cast %515 : vector<8x128xf32> to vector<1x8x128xf32>
    tpu.vector_store %arg14[%518, %c0_255, %c0_256], %521 {strides = array<i32>} : memref<8x8x128xf32, #tpu.memory_space<vmem>>, vector<1x8x128xf32>,
    %c4_i32_257 = arith.constant 4 : i32
    %522 = arith.index_cast %c4_i32_257 : i32 to index
    %c0_258 = arith.constant 0 : index
    %c0_259 = arith.constant 0 : index
    %523 = vector.load %arg15[%522, %c0_258, %c0_259] : memref<8x8x512xf32, #tpu.memory_space<vmem>>, vector<1x8x512xf32>
    %524 = vector.shape_cast %523 : vector<1x8x512xf32> to vector<8x512xf32>
    %c0_260 = arith.constant 0 : index
    %c0_261 = arith.constant 0 : index
    %525 = vector.load %arg16[%c0_260, %c0_261] : memref<8x128xf32, #tpu.memory_space<vmem>>, vector<8x128xf32>
    %526 = arith.index_cast %c1_i32_180 : i32 to index
    %c0_262 = arith.constant 0 : index
    %c0_263 = arith.constant 0 : index
    %527 = vector.load %arg3[%526, %c0_262, %c0_263] : memref<2x128x512xf32, #tpu.memory_space<vmem>>, vector<1x128x512xf32>
    %528 = vector.shape_cast %527 : vector<1x128x512xf32> to vector<128x512xf32>
    %cst_264 = arith.constant dense<0.000000e+00> : vector<8x512xf32>
    %529 = tpu.matmul %525, %528, %cst_264 {dimension_numbers = #tpu.dot_dimension_numbers<[1], [0], [0], [1], [0, 0, 1, 1], [], []>} : vector<8x128xf32>, vector<128x512xf32>, vector<8x512xf32> -> vector<8x512xf32>
    %530 = arith.addf %524, %529 : vector<8x512xf32>
    %531 = vector.extract_strided_slice %530 {offsets = [0, 0], sizes = [8, 128], strides = [1, 1]} : vector<8x512xf32> to vector<8x128xf32>
    %532 = arith.negf %531 : vector<8x128xf32>
    %533 = math.exp %532 : vector<8x128xf32>
    %cst_265 = arith.constant 1.000000e+00 : f32
    %534 = vector.broadcast %cst_265 : f32 to vector<8x128xf32>
    %535 = arith.addf %534, %533 : vector<8x128xf32>
    %536 = arith.divf %534, %535 : vector<8x128xf32>
    %537 = vector.extract_strided_slice %530 {offsets = [0, 128], sizes = [8, 128], strides = [1, 1]} : vector<8x512xf32> to vector<8x128xf32>
    %538 = arith.negf %537 : vector<8x128xf32>
    %539 = math.exp %538 : vector<8x128xf32>
    %cst_266 = arith.constant 1.000000e+00 : f32
    %540 = vector.broadcast %cst_266 : f32 to vector<8x128xf32>
    %541 = arith.addf %540, %539 : vector<8x128xf32>
    %542 = arith.divf %540, %541 : vector<8x128xf32>
    %543 = vector.extract_strided_slice %530 {offsets = [0, 256], sizes = [8, 128], strides = [1, 1]} : vector<8x512xf32> to vector<8x128xf32>
    %544 = math.tanh %543 : vector<8x128xf32>
    %545 = vector.extract_strided_slice %530 {offsets = [0, 384], sizes = [8, 128], strides = [1, 1]} : vector<8x512xf32> to vector<8x128xf32>
    %546 = arith.negf %545 : vector<8x128xf32>
    %547 = math.exp %546 : vector<8x128xf32>
    %cst_267 = arith.constant 1.000000e+00 : f32
    %548 = vector.broadcast %cst_267 : f32 to vector<8x128xf32>
    %549 = arith.addf %548, %547 : vector<8x128xf32>
    %550 = arith.divf %548, %549 : vector<8x128xf32>
    %c0_268 = arith.constant 0 : index
    %c0_269 = arith.constant 0 : index
    %551 = vector.load %arg17[%c0_268, %c0_269] : memref<8x128xf32, #tpu.memory_space<vmem>>, vector<8x128xf32>
    %552 = arith.mulf %542, %551 : vector<8x128xf32>
    %553 = arith.mulf %536, %544 : vector<8x128xf32>
    %554 = arith.addf %552, %553 : vector<8x128xf32>
    %555 = math.tanh %554 : vector<8x128xf32>
    %556 = arith.mulf %550, %555 : vector<8x128xf32>
    %c0_270 = arith.constant 0 : index
    %c0_271 = arith.constant 0 : index
    %557 = vector.load %arg17[%c0_270, %c0_271] : memref<8x128xf32, #tpu.memory_space<vmem>>, vector<8x128xf32>
    tpu.vector_store %arg17[%c0_270, %c0_271], %554 {strides = array<i32>} : memref<8x128xf32, #tpu.memory_space<vmem>>, vector<8x128xf32>,
    %c0_272 = arith.constant 0 : index
    %c0_273 = arith.constant 0 : index
    %558 = vector.load %arg16[%c0_272, %c0_273] : memref<8x128xf32, #tpu.memory_space<vmem>>, vector<8x128xf32>
    tpu.vector_store %arg16[%c0_272, %c0_273], %556 {strides = array<i32>} : memref<8x128xf32, #tpu.memory_space<vmem>>, vector<8x128xf32>,
    %559 = arith.index_cast %c4_i32_257 : i32 to index
    %c0_274 = arith.constant 0 : index
    %c0_275 = arith.constant 0 : index
    %560 = vector.load %arg14[%559, %c0_274, %c0_275] : memref<8x8x128xf32, #tpu.memory_space<vmem>>, vector<1x8x128xf32>
    %561 = vector.shape_cast %560 : vector<1x8x128xf32> to vector<8x128xf32>
    %562 = vector.shape_cast %556 : vector<8x128xf32> to vector<1x8x128xf32>
    tpu.vector_store %arg14[%559, %c0_274, %c0_275], %562 {strides = array<i32>} : memref<8x8x128xf32, #tpu.memory_space<vmem>>, vector<1x8x128xf32>,
    %c5_i32_276 = arith.constant 5 : i32
    %563 = arith.index_cast %c5_i32_276 : i32 to index
    %c0_277 = arith.constant 0 : index
    %c0_278 = arith.constant 0 : index
    %564 = vector.load %arg15[%563, %c0_277, %c0_278] : memref<8x8x512xf32, #tpu.memory_space<vmem>>, vector<1x8x512xf32>
    %565 = vector.shape_cast %564 : vector<1x8x512xf32> to vector<8x512xf32>
    %c0_279 = arith.constant 0 : index
    %c0_280 = arith.constant 0 : index
    %566 = vector.load %arg16[%c0_279, %c0_280] : memref<8x128xf32, #tpu.memory_space<vmem>>, vector<8x128xf32>
    %567 = arith.index_cast %c1_i32_180 : i32 to index
    %c0_281 = arith.constant 0 : index
    %c0_282 = arith.constant 0 : index
    %568 = vector.load %arg3[%567, %c0_281, %c0_282] : memref<2x128x512xf32, #tpu.memory_space<vmem>>, vector<1x128x512xf32>
    %569 = vector.shape_cast %568 : vector<1x128x512xf32> to vector<128x512xf32>
    %cst_283 = arith.constant dense<0.000000e+00> : vector<8x512xf32>
    %570 = tpu.matmul %566, %569, %cst_283 {dimension_numbers = #tpu.dot_dimension_numbers<[1], [0], [0], [1], [0, 0, 1, 1], [], []>} : vector<8x128xf32>, vector<128x512xf32>, vector<8x512xf32> -> vector<8x512xf32>
    %571 = arith.addf %565, %570 : vector<8x512xf32>
    %572 = vector.extract_strided_slice %571 {offsets = [0, 0], sizes = [8, 128], strides = [1, 1]} : vector<8x512xf32> to vector<8x128xf32>
    %573 = arith.negf %572 : vector<8x128xf32>
    %574 = math.exp %573 : vector<8x128xf32>
    %cst_284 = arith.constant 1.000000e+00 : f32
    %575 = vector.broadcast %cst_284 : f32 to vector<8x128xf32>
    %576 = arith.addf %575, %574 : vector<8x128xf32>
    %577 = arith.divf %575, %576 : vector<8x128xf32>
    %578 = vector.extract_strided_slice %571 {offsets = [0, 128], sizes = [8, 128], strides = [1, 1]} : vector<8x512xf32> to vector<8x128xf32>
    %579 = arith.negf %578 : vector<8x128xf32>
    %580 = math.exp %579 : vector<8x128xf32>
    %cst_285 = arith.constant 1.000000e+00 : f32
    %581 = vector.broadcast %cst_285 : f32 to vector<8x128xf32>
    %582 = arith.addf %581, %580 : vector<8x128xf32>
    %583 = arith.divf %581, %582 : vector<8x128xf32>
    %584 = vector.extract_strided_slice %571 {offsets = [0, 256], sizes = [8, 128], strides = [1, 1]} : vector<8x512xf32> to vector<8x128xf32>
    %585 = math.tanh %584 : vector<8x128xf32>
    %586 = vector.extract_strided_slice %571 {offsets = [0, 384], sizes = [8, 128], strides = [1, 1]} : vector<8x512xf32> to vector<8x128xf32>
    %587 = arith.negf %586 : vector<8x128xf32>
    %588 = math.exp %587 : vector<8x128xf32>
    %cst_286 = arith.constant 1.000000e+00 : f32
    %589 = vector.broadcast %cst_286 : f32 to vector<8x128xf32>
    %590 = arith.addf %589, %588 : vector<8x128xf32>
    %591 = arith.divf %589, %590 : vector<8x128xf32>
    %c0_287 = arith.constant 0 : index
    %c0_288 = arith.constant 0 : index
    %592 = vector.load %arg17[%c0_287, %c0_288] : memref<8x128xf32, #tpu.memory_space<vmem>>, vector<8x128xf32>
    %593 = arith.mulf %583, %592 : vector<8x128xf32>
    %594 = arith.mulf %577, %585 : vector<8x128xf32>
    %595 = arith.addf %593, %594 : vector<8x128xf32>
    %596 = math.tanh %595 : vector<8x128xf32>
    %597 = arith.mulf %591, %596 : vector<8x128xf32>
    %c0_289 = arith.constant 0 : index
    %c0_290 = arith.constant 0 : index
    %598 = vector.load %arg17[%c0_289, %c0_290] : memref<8x128xf32, #tpu.memory_space<vmem>>, vector<8x128xf32>
    tpu.vector_store %arg17[%c0_289, %c0_290], %595 {strides = array<i32>} : memref<8x128xf32, #tpu.memory_space<vmem>>, vector<8x128xf32>,
    %c0_291 = arith.constant 0 : index
    %c0_292 = arith.constant 0 : index
    %599 = vector.load %arg16[%c0_291, %c0_292] : memref<8x128xf32, #tpu.memory_space<vmem>>, vector<8x128xf32>
    tpu.vector_store %arg16[%c0_291, %c0_292], %597 {strides = array<i32>} : memref<8x128xf32, #tpu.memory_space<vmem>>, vector<8x128xf32>,
    %600 = arith.index_cast %c5_i32_276 : i32 to index
    %c0_293 = arith.constant 0 : index
    %c0_294 = arith.constant 0 : index
    %601 = vector.load %arg14[%600, %c0_293, %c0_294] : memref<8x8x128xf32, #tpu.memory_space<vmem>>, vector<1x8x128xf32>
    %602 = vector.shape_cast %601 : vector<1x8x128xf32> to vector<8x128xf32>
    %603 = vector.shape_cast %597 : vector<8x128xf32> to vector<1x8x128xf32>
    tpu.vector_store %arg14[%600, %c0_293, %c0_294], %603 {strides = array<i32>} : memref<8x8x128xf32, #tpu.memory_space<vmem>>, vector<1x8x128xf32>,
    %c6_i32_295 = arith.constant 6 : i32
    %604 = arith.index_cast %c6_i32_295 : i32 to index
    %c0_296 = arith.constant 0 : index
    %c0_297 = arith.constant 0 : index
    %605 = vector.load %arg15[%604, %c0_296, %c0_297] : memref<8x8x512xf32, #tpu.memory_space<vmem>>, vector<1x8x512xf32>
    %606 = vector.shape_cast %605 : vector<1x8x512xf32> to vector<8x512xf32>
    %c0_298 = arith.constant 0 : index
    %c0_299 = arith.constant 0 : index
    %607 = vector.load %arg16[%c0_298, %c0_299] : memref<8x128xf32, #tpu.memory_space<vmem>>, vector<8x128xf32>
    %608 = arith.index_cast %c1_i32_180 : i32 to index
    %c0_300 = arith.constant 0 : index
    %c0_301 = arith.constant 0 : index
    %609 = vector.load %arg3[%608, %c0_300, %c0_301] : memref<2x128x512xf32, #tpu.memory_space<vmem>>, vector<1x128x512xf32>
    %610 = vector.shape_cast %609 : vector<1x128x512xf32> to vector<128x512xf32>
    %cst_302 = arith.constant dense<0.000000e+00> : vector<8x512xf32>
    %611 = tpu.matmul %607, %610, %cst_302 {dimension_numbers = #tpu.dot_dimension_numbers<[1], [0], [0], [1], [0, 0, 1, 1], [], []>} : vector<8x128xf32>, vector<128x512xf32>, vector<8x512xf32> -> vector<8x512xf32>
    %612 = arith.addf %606, %611 : vector<8x512xf32>
    %613 = vector.extract_strided_slice %612 {offsets = [0, 0], sizes = [8, 128], strides = [1, 1]} : vector<8x512xf32> to vector<8x128xf32>
    %614 = arith.negf %613 : vector<8x128xf32>
    %615 = math.exp %614 : vector<8x128xf32>
    %cst_303 = arith.constant 1.000000e+00 : f32
    %616 = vector.broadcast %cst_303 : f32 to vector<8x128xf32>
    %617 = arith.addf %616, %615 : vector<8x128xf32>
    %618 = arith.divf %616, %617 : vector<8x128xf32>
    %619 = vector.extract_strided_slice %612 {offsets = [0, 128], sizes = [8, 128], strides = [1, 1]} : vector<8x512xf32> to vector<8x128xf32>
    %620 = arith.negf %619 : vector<8x128xf32>
    %621 = math.exp %620 : vector<8x128xf32>
    %cst_304 = arith.constant 1.000000e+00 : f32
    %622 = vector.broadcast %cst_304 : f32 to vector<8x128xf32>
    %623 = arith.addf %622, %621 : vector<8x128xf32>
    %624 = arith.divf %622, %623 : vector<8x128xf32>
    %625 = vector.extract_strided_slice %612 {offsets = [0, 256], sizes = [8, 128], strides = [1, 1]} : vector<8x512xf32> to vector<8x128xf32>
    %626 = math.tanh %625 : vector<8x128xf32>
    %627 = vector.extract_strided_slice %612 {offsets = [0, 384], sizes = [8, 128], strides = [1, 1]} : vector<8x512xf32> to vector<8x128xf32>
    %628 = arith.negf %627 : vector<8x128xf32>
    %629 = math.exp %628 : vector<8x128xf32>
    %cst_305 = arith.constant 1.000000e+00 : f32
    %630 = vector.broadcast %cst_305 : f32 to vector<8x128xf32>
    %631 = arith.addf %630, %629 : vector<8x128xf32>
    %632 = arith.divf %630, %631 : vector<8x128xf32>
    %c0_306 = arith.constant 0 : index
    %c0_307 = arith.constant 0 : index
    %633 = vector.load %arg17[%c0_306, %c0_307] : memref<8x128xf32, #tpu.memory_space<vmem>>, vector<8x128xf32>
    %634 = arith.mulf %624, %633 : vector<8x128xf32>
    %635 = arith.mulf %618, %626 : vector<8x128xf32>
    %636 = arith.addf %634, %635 : vector<8x128xf32>
    %637 = math.tanh %636 : vector<8x128xf32>
    %638 = arith.mulf %632, %637 : vector<8x128xf32>
    %c0_308 = arith.constant 0 : index
    %c0_309 = arith.constant 0 : index
    %639 = vector.load %arg17[%c0_308, %c0_309] : memref<8x128xf32, #tpu.memory_space<vmem>>, vector<8x128xf32>
    tpu.vector_store %arg17[%c0_308, %c0_309], %636 {strides = array<i32>} : memref<8x128xf32, #tpu.memory_space<vmem>>, vector<8x128xf32>,
    %c0_310 = arith.constant 0 : index
    %c0_311 = arith.constant 0 : index
    %640 = vector.load %arg16[%c0_310, %c0_311] : memref<8x128xf32, #tpu.memory_space<vmem>>, vector<8x128xf32>
    tpu.vector_store %arg16[%c0_310, %c0_311], %638 {strides = array<i32>} : memref<8x128xf32, #tpu.memory_space<vmem>>, vector<8x128xf32>,
    %641 = arith.index_cast %c6_i32_295 : i32 to index
    %c0_312 = arith.constant 0 : index
    %c0_313 = arith.constant 0 : index
    %642 = vector.load %arg14[%641, %c0_312, %c0_313] : memref<8x8x128xf32, #tpu.memory_space<vmem>>, vector<1x8x128xf32>
    %643 = vector.shape_cast %642 : vector<1x8x128xf32> to vector<8x128xf32>
    %644 = vector.shape_cast %638 : vector<8x128xf32> to vector<1x8x128xf32>
    tpu.vector_store %arg14[%641, %c0_312, %c0_313], %644 {strides = array<i32>} : memref<8x8x128xf32, #tpu.memory_space<vmem>>, vector<1x8x128xf32>,
    %c7_i32_314 = arith.constant 7 : i32
    %645 = arith.index_cast %c7_i32_314 : i32 to index
    %c0_315 = arith.constant 0 : index
    %c0_316 = arith.constant 0 : index
    %646 = vector.load %arg15[%645, %c0_315, %c0_316] : memref<8x8x512xf32, #tpu.memory_space<vmem>>, vector<1x8x512xf32>
    %647 = vector.shape_cast %646 : vector<1x8x512xf32> to vector<8x512xf32>
    %c0_317 = arith.constant 0 : index
    %c0_318 = arith.constant 0 : index
    %648 = vector.load %arg16[%c0_317, %c0_318] : memref<8x128xf32, #tpu.memory_space<vmem>>, vector<8x128xf32>
    %649 = arith.index_cast %c1_i32_180 : i32 to index
    %c0_319 = arith.constant 0 : index
    %c0_320 = arith.constant 0 : index
    %650 = vector.load %arg3[%649, %c0_319, %c0_320] : memref<2x128x512xf32, #tpu.memory_space<vmem>>, vector<1x128x512xf32>
    %651 = vector.shape_cast %650 : vector<1x128x512xf32> to vector<128x512xf32>
    %cst_321 = arith.constant dense<0.000000e+00> : vector<8x512xf32>
    %652 = tpu.matmul %648, %651, %cst_321 {dimension_numbers = #tpu.dot_dimension_numbers<[1], [0], [0], [1], [0, 0, 1, 1], [], []>} : vector<8x128xf32>, vector<128x512xf32>, vector<8x512xf32> -> vector<8x512xf32>
    %653 = arith.addf %647, %652 : vector<8x512xf32>
    %654 = vector.extract_strided_slice %653 {offsets = [0, 0], sizes = [8, 128], strides = [1, 1]} : vector<8x512xf32> to vector<8x128xf32>
    %655 = arith.negf %654 : vector<8x128xf32>
    %656 = math.exp %655 : vector<8x128xf32>
    %cst_322 = arith.constant 1.000000e+00 : f32
    %657 = vector.broadcast %cst_322 : f32 to vector<8x128xf32>
    %658 = arith.addf %657, %656 : vector<8x128xf32>
    %659 = arith.divf %657, %658 : vector<8x128xf32>
    %660 = vector.extract_strided_slice %653 {offsets = [0, 128], sizes = [8, 128], strides = [1, 1]} : vector<8x512xf32> to vector<8x128xf32>
    %661 = arith.negf %660 : vector<8x128xf32>
    %662 = math.exp %661 : vector<8x128xf32>
    %cst_323 = arith.constant 1.000000e+00 : f32
    %663 = vector.broadcast %cst_323 : f32 to vector<8x128xf32>
    %664 = arith.addf %663, %662 : vector<8x128xf32>
    %665 = arith.divf %663, %664 : vector<8x128xf32>
    %666 = vector.extract_strided_slice %653 {offsets = [0, 256], sizes = [8, 128], strides = [1, 1]} : vector<8x512xf32> to vector<8x128xf32>
    %667 = math.tanh %666 : vector<8x128xf32>
    %668 = vector.extract_strided_slice %653 {offsets = [0, 384], sizes = [8, 128], strides = [1, 1]} : vector<8x512xf32> to vector<8x128xf32>
    %669 = arith.negf %668 : vector<8x128xf32>
    %670 = math.exp %669 : vector<8x128xf32>
    %cst_324 = arith.constant 1.000000e+00 : f32
    %671 = vector.broadcast %cst_324 : f32 to vector<8x128xf32>
    %672 = arith.addf %671, %670 : vector<8x128xf32>
    %673 = arith.divf %671, %672 : vector<8x128xf32>
    %c0_325 = arith.constant 0 : index
    %c0_326 = arith.constant 0 : index
    %674 = vector.load %arg17[%c0_325, %c0_326] : memref<8x128xf32, #tpu.memory_space<vmem>>, vector<8x128xf32>
    %675 = arith.mulf %665, %674 : vector<8x128xf32>
    %676 = arith.mulf %659, %667 : vector<8x128xf32>
    %677 = arith.addf %675, %676 : vector<8x128xf32>
    %678 = math.tanh %677 : vector<8x128xf32>
    %679 = arith.mulf %673, %678 : vector<8x128xf32>
    %c0_327 = arith.constant 0 : index
    %c0_328 = arith.constant 0 : index
    %680 = vector.load %arg17[%c0_327, %c0_328] : memref<8x128xf32, #tpu.memory_space<vmem>>, vector<8x128xf32>
    tpu.vector_store %arg17[%c0_327, %c0_328], %677 {strides = array<i32>} : memref<8x128xf32, #tpu.memory_space<vmem>>, vector<8x128xf32>,
    %c0_329 = arith.constant 0 : index
    %c0_330 = arith.constant 0 : index
    %681 = vector.load %arg16[%c0_329, %c0_330] : memref<8x128xf32, #tpu.memory_space<vmem>>, vector<8x128xf32>
    tpu.vector_store %arg16[%c0_329, %c0_330], %679 {strides = array<i32>} : memref<8x128xf32, #tpu.memory_space<vmem>>, vector<8x128xf32>,
    %682 = arith.index_cast %c7_i32_314 : i32 to index
    %c0_331 = arith.constant 0 : index
    %c0_332 = arith.constant 0 : index
    %683 = vector.load %arg14[%682, %c0_331, %c0_332] : memref<8x8x128xf32, #tpu.memory_space<vmem>>, vector<1x8x128xf32>
    %684 = vector.shape_cast %683 : vector<1x8x128xf32> to vector<8x128xf32>
    %685 = vector.shape_cast %679 : vector<8x128xf32> to vector<1x8x128xf32>
    tpu.vector_store %arg14[%682, %c0_331, %c0_332], %685 {strides = array<i32>} : memref<8x8x128xf32, #tpu.memory_space<vmem>>, vector<1x8x128xf32>,
    %c8_i32_333 = arith.constant 8 : i32
    %c0_334 = arith.constant 0 : index
    %c0_335 = arith.constant 0 : index
    %c0_336 = arith.constant 0 : index
    %686 = vector.load %arg14[%c0_334, %c0_335, %c0_336] : memref<8x8x128xf32, #tpu.memory_space<vmem>>, vector<8x8x128xf32>
    %687 = vector.shape_cast %686 : vector<8x8x128xf32> to vector<64x128xf32>
    %c0_337 = arith.constant 0 : index
    %c0_338 = arith.constant 0 : index
    %688 = vector.load %arg5[%c0_337, %c0_338] : memref<128x256xf32, #tpu.memory_space<vmem>>, vector<128x256xf32>
    %cst_339 = arith.constant dense<0.000000e+00> : vector<64x256xf32>
    %689 = tpu.matmul %687, %688, %cst_339 {dimension_numbers = #tpu.dot_dimension_numbers<[1], [0], [0], [1], [0, 0, 1, 1], [], []>} : vector<64x128xf32>, vector<128x256xf32>, vector<64x256xf32> -> vector<64x256xf32>
    %c0_340 = arith.constant 0 : index
    %c0_341 = arith.constant 0 : index
    %690 = vector.load %arg6[%c0_340, %c0_341] : memref<1x256xf32, #tpu.memory_space<vmem>>, vector<1x256xf32>
    %691 = vector.broadcast %690 : vector<1x256xf32> to vector<64x256xf32>
    %692 = arith.addf %689, %691 : vector<64x256xf32>
    %cst_342 = arith.constant 0.000000e+00 : f32
    %693 = vector.broadcast %cst_342 : f32 to vector<64x256xf32>
    %694 = arith.maximumf %692, %693 : vector<64x256xf32>
    %c0_343 = arith.constant 0 : index
    %c0_344 = arith.constant 0 : index
    %695 = vector.load %arg7[%c0_343, %c0_344] : memref<256x128xf32, #tpu.memory_space<vmem>>, vector<256x128xf32>
    %cst_345 = arith.constant dense<0.000000e+00> : vector<64x128xf32>
    %696 = tpu.matmul %694, %695, %cst_345 {dimension_numbers = #tpu.dot_dimension_numbers<[1], [0], [0], [1], [0, 0, 1, 1], [], []>} : vector<64x256xf32>, vector<256x128xf32>, vector<64x128xf32> -> vector<64x128xf32>
    %c0_346 = arith.constant 0 : index
    %c0_347 = arith.constant 0 : index
    %697 = vector.load %arg8[%c0_346, %c0_347] : memref<1x128xf32, #tpu.memory_space<vmem>>, vector<1x128xf32>
    %698 = vector.broadcast %697 : vector<1x128xf32> to vector<64x128xf32>
    %699 = arith.addf %696, %698 : vector<64x128xf32>
    %cst_348 = arith.constant 0.000000e+00 : f32
    %700 = vector.broadcast %cst_348 : f32 to vector<64x128xf32>
    %701 = arith.maximumf %699, %700 : vector<64x128xf32>
    %c0_349 = arith.constant 0 : index
    %c0_350 = arith.constant 0 : index
    %702 = vector.load %arg9[%c0_349, %c0_350] : memref<128x128xf32, #tpu.memory_space<vmem>>, vector<128x128xf32>
    %cst_351 = arith.constant dense<0.000000e+00> : vector<64x128xf32>
    %703 = tpu.matmul %701, %702, %cst_351 {dimension_numbers = #tpu.dot_dimension_numbers<[1], [0], [0], [1], [0, 0, 1, 1], [], []>} : vector<64x128xf32>, vector<128x128xf32>, vector<64x128xf32> -> vector<64x128xf32>
    %c0_352 = arith.constant 0 : index
    %c0_353 = arith.constant 0 : index
    %704 = vector.load %arg10[%c0_352, %c0_353] : memref<1x128xf32, #tpu.memory_space<vmem>>, vector<1x128xf32>
    %705 = vector.broadcast %704 : vector<1x128xf32> to vector<64x128xf32>
    %706 = arith.addf %703, %705 : vector<64x128xf32>
    %cst_354 = arith.constant 0.000000e+00 : f32
    %707 = vector.broadcast %cst_354 : f32 to vector<64x128xf32>
    %708 = arith.maximumf %706, %707 : vector<64x128xf32>
    %c0_355 = arith.constant 0 : index
    %c0_356 = arith.constant 0 : index
    %709 = vector.load %arg11[%c0_355, %c0_356] : memref<128x128xf32, #tpu.memory_space<vmem>>, vector<128x128xf32>
    %cst_357 = arith.constant dense<0.000000e+00> : vector<64x128xf32>
    %710 = tpu.matmul %708, %709, %cst_357 {dimension_numbers = #tpu.dot_dimension_numbers<[1], [0], [0], [1], [0, 0, 1, 1], [], []>} : vector<64x128xf32>, vector<128x128xf32>, vector<64x128xf32> -> vector<64x128xf32>
    %c0_358 = arith.constant 0 : index
    %c0_359 = arith.constant 0 : index
    %711 = vector.load %arg12[%c0_358, %c0_359] : memref<1x128xf32, #tpu.memory_space<vmem>>, vector<1x128xf32>
    %712 = vector.broadcast %711 : vector<1x128xf32> to vector<64x128xf32>
    %713 = arith.addf %710, %712 : vector<64x128xf32>
    %714 = arith.negf %713 : vector<64x128xf32>
    %715 = math.exp %714 : vector<64x128xf32>
    %cst_360 = arith.constant 1.000000e+00 : f32
    %716 = vector.broadcast %cst_360 : f32 to vector<64x128xf32>
    %717 = arith.addf %716, %715 : vector<64x128xf32>
    %718 = arith.divf %716, %717 : vector<64x128xf32>
    %719 = vector.shape_cast %718 : vector<64x128xf32> to vector<8x8x128xf32>
    %c0_361 = arith.constant 0 : index
    %c0_362 = arith.constant 0 : index
    %c0_363 = arith.constant 0 : index
    %720 = vector.load %arg13[%c0_361, %c0_362, %c0_363] : memref<8x8x128xf32, #tpu.memory_space<vmem>>, vector<8x8x128xf32>
    tpu.vector_store %arg13[%c0_361, %c0_362, %c0_363], %719 {strides = array<i32>} : memref<8x8x128xf32, #tpu.memory_space<vmem>>, vector<8x8x128xf32>,
    return
  }
  func.func @transform_0(%arg0: i32) -> (i32, i32, i32) {
    %c0_i32 = arith.constant 0 : i32
    %c0_i32_0 = arith.constant 0 : i32
    %c0_i32_1 = arith.constant 0 : i32
    return %c0_i32, %arg0, %c0_i32_0 : i32, i32, i32
  }
  func.func @transform_1(%arg0: i32) -> (i32, i32, i32) {
    %c0_i32 = arith.constant 0 : i32
    %c0_i32_0 = arith.constant 0 : i32
    %c0_i32_1 = arith.constant 0 : i32
    %c0_i32_2 = arith.constant 0 : i32
    return %c0_i32, %c0_i32_0, %c0_i32_1 : i32, i32, i32
  }
  func.func @transform_2(%arg0: i32) -> (i32, i32, i32) {
    %c0_i32 = arith.constant 0 : i32
    %c0_i32_0 = arith.constant 0 : i32
    %c0_i32_1 = arith.constant 0 : i32
    %c0_i32_2 = arith.constant 0 : i32
    return %c0_i32, %c0_i32_0, %c0_i32_1 : i32, i32, i32
  }
  func.func @transform_3(%arg0: i32) -> (i32, i32, i32) {
    %c0_i32 = arith.constant 0 : i32
    %c0_i32_0 = arith.constant 0 : i32
    %c0_i32_1 = arith.constant 0 : i32
    %c0_i32_2 = arith.constant 0 : i32
    return %c0_i32, %c0_i32_0, %c0_i32_1 : i32, i32, i32
  }
  func.func @transform_4(%arg0: i32) -> (i32, i32) {
    %c0_i32 = arith.constant 0 : i32
    %c0_i32_0 = arith.constant 0 : i32
    %c0_i32_1 = arith.constant 0 : i32
    return %c0_i32, %c0_i32_0 : i32, i32
  }
  func.func @transform_5(%arg0: i32) -> (i32, i32) {
    %c0_i32 = arith.constant 0 : i32
    %c0_i32_0 = arith.constant 0 : i32
    %c0_i32_1 = arith.constant 0 : i32
    return %c0_i32, %c0_i32_0 : i32, i32
  }
  func.func @transform_6(%arg0: i32) -> (i32, i32) {
    %c0_i32 = arith.constant 0 : i32
    %c0_i32_0 = arith.constant 0 : i32
    %c0_i32_1 = arith.constant 0 : i32
    return %c0_i32, %c0_i32_0 : i32, i32
  }
  func.func @transform_7(%arg0: i32) -> (i32, i32) {
    %c0_i32 = arith.constant 0 : i32
    %c0_i32_0 = arith.constant 0 : i32
    %c0_i32_1 = arith.constant 0 : i32
    return %c0_i32, %c0_i32_0 : i32, i32
  }
  func.func @transform_8(%arg0: i32) -> (i32, i32) {
    %c0_i32 = arith.constant 0 : i32
    %c0_i32_0 = arith.constant 0 : i32
    %c0_i32_1 = arith.constant 0 : i32
    return %c0_i32, %c0_i32_0 : i32, i32
  }
  func.func @transform_9(%arg0: i32) -> (i32, i32) {
    %c0_i32 = arith.constant 0 : i32
    %c0_i32_0 = arith.constant 0 : i32
    %c0_i32_1 = arith.constant 0 : i32
    return %c0_i32, %c0_i32_0 : i32, i32
  }
  func.func @transform_10(%arg0: i32) -> (i32, i32) {
    %c0_i32 = arith.constant 0 : i32
    %c0_i32_0 = arith.constant 0 : i32
    %c0_i32_1 = arith.constant 0 : i32
    return %c0_i32, %c0_i32_0 : i32, i32
  }
  func.func @transform_11(%arg0: i32) -> (i32, i32) {
    %c0_i32 = arith.constant 0 : i32
    %c0_i32_0 = arith.constant 0 : i32
    %c0_i32_1 = arith.constant 0 : i32
    return %c0_i32, %c0_i32_0 : i32, i32
  }
  func.func @transform_12(%arg0: i32) -> (i32, i32, i32) {
    %c0_i32 = arith.constant 0 : i32
    %c0_i32_0 = arith.constant 0 : i32
    %c0_i32_1 = arith.constant 0 : i32
    return %c0_i32, %arg0, %c0_i32_0 : i32, i32, i32
  }
}

</mosaic_0001>

<llo_original>
// kernel: tpu_custom_call.1
$region0: #{tpu_custom_call.1}
  #allocation0 [shape = 'u32[]', space=smem, size = 0x4, offset = 0x4, fixed_abs, tag = 'smem constant byte address 0x4 - core index']
  #allocation1 [shape = 'u32[144,128]{1,0:T(1,128)}', space=vmem, size = 0x12000, scoped, tag = 'internal scratch']
  #allocation2 [shape = 'f32[8,8,128]{2,1,0:T(8,128)}', space=vmem, size = 0x8000, scoped, tag = 'scratch operand']
  #allocation3 [shape = 'f32[8,8,512]{2,1,0:T(8,128)}', space=vmem, size = 0x20000, scoped, tag = 'scratch operand']
  #allocation4 [shape = 'f32[8,128]{1,0:T(8,128)}', space=vmem, size = 0x1000, scoped, tag = 'scratch operand']
  #allocation5 [shape = 'f32[8,128]{1,0:T(8,128)}', space=vmem, size = 0x1000, scoped, tag = 'scratch operand']
  %s0 = inlined_call_operand.hbm [shape: f32[8,8,128], index: 0, kind: input, shape index: {}]
  %s1 = inlined_call_operand.hbm [shape: f32[2,128,512], index: 1, kind: input, shape index: {}]
  %s2 = inlined_call_operand.hbm [shape: f32[2,128,512], index: 2, kind: input, shape index: {}]
  %s3 = inlined_call_operand.vmem [shape: f32[2,1,512], index: 3, kind: input, shape index: {}]
  %s4 = inlined_call_operand.hbm [shape: f32[128,256], index: 4, kind: input, shape index: {}]
  %s5 = inlined_call_operand.vmem [shape: f32[1,256], index: 5, kind: input, shape index: {}]
  %s6 = inlined_call_operand.hbm [shape: f32[256,128], index: 6, kind: input, shape index: {}]
  %s7 = inlined_call_operand.vmem [shape: f32[1,128], index: 7, kind: input, shape index: {}]
  %s8 = inlined_call_operand.hbm [shape: f32[128,128], index: 8, kind: input, shape index: {}]
  %s9 = inlined_call_operand.vmem [shape: f32[1,128], index: 9, kind: input, shape index: {}]
  %s10 = inlined_call_operand.hbm [shape: f32[128,128], index: 10, kind: input, shape index: {}]
  %s11 = inlined_call_operand.vmem [shape: f32[1,128], index: 11, kind: input, shape index: {}]
  %s12 = inlined_call_operand.hbm [shape: f32[8,8,128], index: 12, kind: output, shape index: {}]
  %s13 = sld [smem:[#allocation0]]
  $region86: #{tpu_custom_call.1} parent=0
    _
  %s15 = ssub.s32 1, %s13
  %s16 = scalar_select 0, %s15, %s13
  $region1: #{tpu_custom_call.1} parent=0
    #allocation6 [shape = 'u8[32768]{0}', space=vmem, size = 0x8000, scoped, tag = 'input window, operand 0, single buffered']
    #allocation7 [shape = 's32[1]{0}', space=sflag, size = 0x4, scoped, tag = 'scoped memory for tpu_custom_call.1']
    #allocation8 [shape = 's32[1]{0}', space=sflag, size = 0x4, scoped, tag = 'scoped memory for tpu_custom_call.1']
    #allocation9 [shape = 'u8[524288]{0}', space=vmem, size = 0x80000, scoped, tag = 'input window, operand 1, single buffered']
    #allocation10 [shape = 's32[1]{0}', space=sflag, size = 0x4, scoped, tag = 'scoped memory for tpu_custom_call.1']
    #allocation11 [shape = 'u8[524288]{0}', space=vmem, size = 0x80000, scoped, tag = 'input window, operand 2, single buffered']
    #allocation12 [shape = 'u8[131072]{0}', space=vmem, size = 0x20000, scoped, tag = 'input window, operand 4, single buffered']
    #allocation13 [shape = 's32[1]{0}', space=sflag, size = 0x4, scoped, tag = 'scoped memory for tpu_custom_call.1']
    #allocation14 [shape = 'u8[131072]{0}', space=vmem, size = 0x20000, scoped, tag = 'input window, operand 6, single buffered']
    #allocation15 [shape = 'u8[65536]{0}', space=vmem, size = 0x10000, scoped, tag = 'input window, operand 8, single buffered']
    #allocation16 [shape = 's32[1]{0}', space=sflag, size = 0x4, scoped, tag = 'scoped memory for tpu_custom_call.1']
    #allocation17 [shape = 'u8[65536]{0}', space=vmem, size = 0x10000, scoped, tag = 'input window, operand 10, single buffered']
    #allocation18 [shape = 'u8[32768]{0}', space=vmem, size = 0x8000, scoped, tag = 'output window, operand 0, single buffered']
    %17 = vsyncpa [#allocation7], 0
    %18 = vsyncpa [#allocation10], 0
    %19 = vsyncpa [#allocation13], 0
    %20 = vsyncpa [#allocation16], 0
    %21 = vsyncpa [#allocation8], 0
    // Predicated region
    $region2: #{tpu_custom_call.1} parent=1 // pred_check
      _
    $region3: #{tpu_custom_call.1} parent=1 // pred_check_branch
      %23 = sbr.rel (0) target = $region5
    $region4: #{tpu_custom_call.1} parent=1 // pred_region
      %s25 = ssub.s32 1024, 1024
      %26 = vsyncadd [#allocation7], %s25
      %s27 = sshll.u32 [#allocation6], 4
      %s28 = int_to_ptr.vmem [resolvable:$true] %s27
      %33 = dma.hbm_to_vmem [thread:$0]  %s0, 1024, %s28, [#allocation7], 128, 128, 8
    $region5: #{tpu_custom_call.1} parent=1 // pred_fallthru
      _
    // Predicated region
    $region6: #{tpu_custom_call.1} parent=1 // pred_check
      _
    $region7: #{tpu_custom_call.1} parent=1 // pred_check_branch
      %35 = sbr.rel (0) target = $region9
    $region8: #{tpu_custom_call.1} parent=1 // pred_region
      %s37 = ssub.s32 16384, 16384
      %38 = vsyncadd [#allocation10], %s37
      %s39 = sshll.u32 [#allocation9], 4
      %s40 = int_to_ptr.vmem [resolvable:$true] %s39
      %45 = dma.hbm_to_vmem [thread:$0]  %s1, 16384, %s40, [#allocation10], 512, 512, 32
    $region9: #{tpu_custom_call.1} parent=1 // pred_fallthru
      _
    // Predicated region
    $region10: #{tpu_custom_call.1} parent=1 // pred_check
      _
    $region11: #{tpu_custom_call.1} parent=1 // pred_check_branch
      %47 = sbr.rel (0) target = $region13
    $region12: #{tpu_custom_call.1} parent=1 // pred_region
      %s49 = ssub.s32 16384, 16384
      %50 = vsyncadd [#allocation10], %s49
      %s51 = sshll.u32 [#allocation11], 4
      %s52 = int_to_ptr.vmem [resolvable:$true] %s51
      %57 = dma.hbm_to_vmem [thread:$0]  %s2, 16384, %s52, [#allocation10], 512, 512, 32
    $region13: #{tpu_custom_call.1} parent=1 // pred_fallthru
      _
    // Predicated region
    $region14: #{tpu_custom_call.1} parent=1 // pred_check
      _
    $region15: #{tpu_custom_call.1} parent=1 // pred_check_branch
      %59 = sbr.rel (0) target = $region17
    $region16: #{tpu_custom_call.1} parent=1 // pred_region
      _
    $region17: #{tpu_custom_call.1} parent=1 // pred_fallthru
      _
    // Predicated region
    $region18: #{tpu_custom_call.1} parent=1 // pred_check
      _
    $region19: #{tpu_custom_call.1} parent=1 // pred_check_branch
      %61 = sbr.rel (0) target = $region21
    $region20: #{tpu_custom_call.1} parent=1 // pred_region
      %s63 = ssub.s32 4096, 4096
      %64 = vsyncadd [#allocation13], %s63
      %s65 = sshll.u32 [#allocation12], 4
      %s66 = int_to_ptr.vmem [resolvable:$true] %s65
      %71 = dma.hbm_to_vmem [thread:$0]  %s4, 4096, %s66, [#allocation13], 256, 256, 16
    $region21: #{tpu_custom_call.1} parent=1 // pred_fallthru
      _
    // Predicated region
    $region22: #{tpu_custom_call.1} parent=1 // pred_check
      _
    $region23: #{tpu_custom_call.1} parent=1 // pred_check_branch
      %73 = sbr.rel (0) target = $region25
    $region24: #{tpu_custom_call.1} parent=1 // pred_region
      _
    $region25: #{tpu_custom_call.1} parent=1 // pred_fallthru
      _
    // Predicated region
    $region26: #{tpu_custom_call.1} parent=1 // pred_check
      _
    $region27: #{tpu_custom_call.1} parent=1 // pred_check_branch
      %75 = sbr.rel (0) target = $region29
    $region28: #{tpu_custom_call.1} parent=1 // pred_region
      %s77 = ssub.s32 4096, 4096
      %78 = vsyncadd [#allocation13], %s77
      %s79 = sshll.u32 [#allocation14], 4
      %s80 = int_to_ptr.vmem [resolvable:$true] %s79
      %85 = dma.hbm_to_vmem [thread:$0]  %s6, 4096, %s80, [#allocation13], 128, 128, 8
    $region29: #{tpu_custom_call.1} parent=1 // pred_fallthru
      _
    // Predicated region
    $region30: #{tpu_custom_call.1} parent=1 // pred_check
      _
    $region31: #{tpu_custom_call.1} parent=1 // pred_check_branch
      %87 = sbr.rel (0) target = $region33
    $region32: #{tpu_custom_call.1} parent=1 // pred_region
      _
    $region33: #{tpu_custom_call.1} parent=1 // pred_fallthru
      _
    // Predicated region
    $region34: #{tpu_custom_call.1} parent=1 // pred_check
      _
    $region35: #{tpu_custom_call.1} parent=1 // pred_check_branch
      %89 = sbr.rel (0) target = $region37
    $region36: #{tpu_custom_call.1} parent=1 // pred_region
      %s91 = ssub.s32 2048, 2048
      %92 = vsyncadd [#allocation16], %s91
      %s93 = sshll.u32 [#allocation15], 4
      %s94 = int_to_ptr.vmem [resolvable:$true] %s93
      %99 = dma.hbm_to_vmem [thread:$0]  %s8, 2048, %s94, [#allocation16], 128, 128, 8
    $region37: #{tpu_custom_call.1} parent=1 // pred_fallthru
      _
    // Predicated region
    $region38: #{tpu_custom_call.1} parent=1 // pred_check
      _
    $region39: #{tpu_custom_call.1} parent=1 // pred_check_branch
      %101 = sbr.rel (0) target = $region41
    $region40: #{tpu_custom_call.1} parent=1 // pred_region
      _
    $region41: #{tpu_custom_call.1} parent=1 // pred_fallthru
      _
    // Predicated region
    $region42: #{tpu_custom_call.1} parent=1 // pred_check
      _
    $region43: #{tpu_custom_call.1} parent=1 // pred_check_branch
      %103 = sbr.rel (0) target = $region45
    $region44: #{tpu_custom_call.1} parent=1 // pred_region
      %s105 = ssub.s32 2048, 2048
      %106 = vsyncadd [#allocation16], %s105
      %s107 = sshll.u32 [#allocation17], 4
      %s108 = int_to_ptr.vmem [resolvable:$true] %s107
      %113 = dma.hbm_to_vmem [thread:$0]  %s10, 2048, %s108, [#allocation16], 128, 128, 8
    $region45: #{tpu_custom_call.1} parent=1 // pred_fallthru
      _
    // Predicated region
    $region46: #{tpu_custom_call.1} parent=1 // pred_check
      _
    $region47: #{tpu_custom_call.1} parent=1 // pred_check_branch
      %115 = sbr.rel (0) target = $region49
    $region48: #{tpu_custom_call.1} parent=1 // pred_region
      _
    $region49: #{tpu_custom_call.1} parent=1 // pred_fallthru
      _
    // Predicated region
    $region50: #{tpu_custom_call.1} parent=1 // pred_check
      _
    $region51: #{tpu_custom_call.1} parent=1 // pred_check_branch
      %117 = sbr.rel (0) target = $region53
    $region52: #{tpu_custom_call.1} parent=1 // pred_region
      %118 = dma.done [#allocation7], 1024
    $region53: #{tpu_custom_call.1} parent=1 // pred_fallthru
      _
    // Predicated region
    $region54: #{tpu_custom_call.1} parent=1 // pred_check
      _
    $region55: #{tpu_custom_call.1} parent=1 // pred_check_branch
      %120 = sbr.rel (0) target = $region57
    $region56: #{tpu_custom_call.1} parent=1 // pred_region
      %121 = dma.done [#allocation10], 16384
    $region57: #{tpu_custom_call.1} parent=1 // pred_fallthru
      _
    // Predicated region
    $region58: #{tpu_custom_call.1} parent=1 // pred_check
      _
    $region59: #{tpu_custom_call.1} parent=1 // pred_check_branch
      %123 = sbr.rel (0) target = $region61
    $region60: #{tpu_custom_call.1} parent=1 // pred_region
      %124 = dma.done [#allocation10], 16384
    $region61: #{tpu_custom_call.1} parent=1 // pred_fallthru
      _
    // Predicated region
    $region62: #{tpu_custom_call.1} parent=1 // pred_check
      _
    $region63: #{tpu_custom_call.1} parent=1 // pred_check_branch
      %126 = sbr.rel (0) target = $region65
    $region64: #{tpu_custom_call.1} parent=1 // pred_region
      %127 = dma.done [#allocation13], 4096
    $region65: #{tpu_custom_call.1} parent=1 // pred_fallthru
      _
    // Predicated region
    $region66: #{tpu_custom_call.1} parent=1 // pred_check
      _
    $region67: #{tpu_custom_call.1} parent=1 // pred_check_branch
      %129 = sbr.rel (0) target = $region69
    $region68: #{tpu_custom_call.1} parent=1 // pred_region
      %130 = dma.done [#allocation13], 4096
    $region69: #{tpu_custom_call.1} parent=1 // pred_fallthru
      _
    // Predicated region
    $region70: #{tpu_custom_call.1} parent=1 // pred_check
      _
    $region71: #{tpu_custom_call.1} parent=1 // pred_check_branch
      %132 = sbr.rel (0) target = $region73
    $region72: #{tpu_custom_call.1} parent=1 // pred_region
      %133 = dma.done [#allocation16], 2048
    $region73: #{tpu_custom_call.1} parent=1 // pred_fallthru
      _
    // Predicated region
    $region74: #{tpu_custom_call.1} parent=1 // pred_check
      _
    $region75: #{tpu_custom_call.1} parent=1 // pred_check_branch
      %135 = sbr.rel (0) target = $region77
    $region76: #{tpu_custom_call.1} parent=1 // pred_region
      %136 = dma.done [#allocation16], 2048
    $region77: #{tpu_custom_call.1} parent=1 // pred_fallthru
      _
    %v137 = vld [vmem:[#allocation6] sm:$0xff]
    %v138 = vld [vmem:[#allocation6 + $0x8] sm:$0xff]
    %v139 = vld [vmem:[#allocation6 + $0x10] sm:$0xff]
    %v140 = vld [vmem:[#allocation6 + $0x18] sm:$0xff]
    %v141 = vld [vmem:[#allocation6 + $0x20] sm:$0xff]
    %v142 = vld [vmem:[#allocation6 + $0x28] sm:$0xff]
    %v143 = vld [vmem:[#allocation6 + $0x30] sm:$0xff]
    %v144 = vld [vmem:[#allocation6 + $0x38] sm:$0xff]
    %v145 = vld [vmem:[#allocation9] sm:$0xff]
    %v146 = vld [vmem:[#allocation9 + $0x8] sm:$0xff]
    %v147 = vld [vmem:[#allocation9 + $0x10] sm:$0xff]
    %v148 = vld [vmem:[#allocation9 + $0x18] sm:$0xff]
    %v149 = vld [vmem:[#allocation9 + $0x20] sm:$0xff]
    %v150 = vld [vmem:[#allocation9 + $0x28] sm:$0xff]
    %v151 = vld [vmem:[#allocation9 + $0x30] sm:$0xff]
    %v152 = vld [vmem:[#allocation9 + $0x38] sm:$0xff]
    %v153 = vld [vmem:[#allocation9 + $0x40] sm:$0xff]
    %v154 = vld [vmem:[#allocation9 + $0x48] sm:$0xff]
    %v155 = vld [vmem:[#allocation9 + $0x50] sm:$0xff]
    %v156 = vld [vmem:[#allocation9 + $0x58] sm:$0xff]
    %v157 = vld [vmem:[#allocation9 + $0x60] sm:$0xff]
    %v158 = vld [vmem:[#allocation9 + $0x68] sm:$0xff]
    %v159 = vld [vmem:[#allocation9 + $0x70] sm:$0xff]
    %v160 = vld [vmem:[#allocation9 + $0x78] sm:$0xff]
    %v161 = vld [vmem:[#allocation9 + $0x80] sm:$0xff]
    %v162 = vld [vmem:[#allocation9 + $0x88] sm:$0xff]
    %v163 = vld [vmem:[#allocation9 + $0x90] sm:$0xff]
    %v164 = vld [vmem:[#allocation9 + $0x98] sm:$0xff]
    %v165 = vld [vmem:[#allocation9 + $0xa0] sm:$0xff]
    %v166 = vld [vmem:[#allocation9 + $0xa8] sm:$0xff]
    %v167 = vld [vmem:[#allocation9 + $0xb0] sm:$0xff]
    %v168 = vld [vmem:[#allocation9 + $0xb8] sm:$0xff]
    %v169 = vld [vmem:[#allocation9 + $0xc0] sm:$0xff]
    %v170 = vld [vmem:[#allocation9 + $0xc8] sm:$0xff]
    %v171 = vld [vmem:[#allocation9 + $0xd0] sm:$0xff]
    %v172 = vld [vmem:[#allocation9 + $0xd8] sm:$0xff]
    %v173 = vld [vmem:[#allocation9 + $0xe0] sm:$0xff]
    %v174 = vld [vmem:[#allocation9 + $0xe8] sm:$0xff]
    %v175 = vld [vmem:[#allocation9 + $0xf0] sm:$0xff]
    %v176 = vld [vmem:[#allocation9 + $0xf8] sm:$0xff]
    %v177 = vld [vmem:[#allocation9 + $0x100] sm:$0xff]
    %v178 = vld [vmem:[#allocation9 + $0x108] sm:$0xff]
    %v179 = vld [vmem:[#allocation9 + $0x110] sm:$0xff]
    %v180 = vld [vmem:[#allocation9 + $0x118] sm:$0xff]
    %v181 = vld [vmem:[#allocation9 + $0x120] sm:$0xff]
    %v182 = vld [vmem:[#allocation9 + $0x128] sm:$0xff]
    %v183 = vld [vmem:[#allocation9 + $0x130] sm:$0xff]
    %v184 = vld [vmem:[#allocation9 + $0x138] sm:$0xff]
    %v185 = vld [vmem:[#allocation9 + $0x140] sm:$0xff]
    %v186 = vld [vmem:[#allocation9 + $0x148] sm:$0xff]
    %v187 = vld [vmem:[#allocation9 + $0x150] sm:$0xff]
    %v188 = vld [vmem:[#allocation9 + $0x158] sm:$0xff]
    %v189 = vld [vmem:[#allocation9 + $0x160] sm:$0xff]
    %v190 = vld [vmem:[#allocation9 + $0x168] sm:$0xff]
    %v191 = vld [vmem:[#allocation9 + $0x170] sm:$0xff]
    %v192 = vld [vmem:[#allocation9 + $0x178] sm:$0xff]
    %v193 = vld [vmem:[#allocation9 + $0x180] sm:$0xff]
    %v194 = vld [vmem:[#allocation9 + $0x188] sm:$0xff]
    %v195 = vld [vmem:[#allocation9 + $0x190] sm:$0xff]
    %v196 = vld [vmem:[#allocation9 + $0x198] sm:$0xff]
    %v197 = vld [vmem:[#allocation9 + $0x1a0] sm:$0xff]
    %v198 = vld [vmem:[#allocation9 + $0x1a8] sm:$0xff]
    %v199 = vld [vmem:[#allocation9 + $0x1b0] sm:$0xff]
    %v200 = vld [vmem:[#allocation9 + $0x1b8] sm:$0xff]
    %v201 = vld [vmem:[#allocation9 + $0x1c0] sm:$0xff]
    %v202 = vld [vmem:[#allocation9 + $0x1c8] sm:$0xff]
    %v203 = vld [vmem:[#allocation9 + $0x1d0] sm:$0xff]
    %v204 = vld [vmem:[#allocation9 + $0x1d8] sm:$0xff]
    %v205 = vld [vmem:[#allocation9 + $0x1e0] sm:$0xff]
    %v206 = vld [vmem:[#allocation9 + $0x1e8] sm:$0xff]
    %v207 = vld [vmem:[#allocation9 + $0x1f0] sm:$0xff]
    %v208 = vld [vmem:[#allocation9 + $0x1f8] sm:$0xff]
    %v209 = vld [vmem:[%s3] sm:$0xf]
    %v211 = vlaneseq
    %v212 = vshrl.u32 %v211, 7
    %v213 = vsub.s32 0, %v212
    %v214 = vrot.slane %v209, %v213
    %v215 = vlaneseq
    %v216 = vshrl.u32 %v215, 7
    %v217 = vsub.s32 1, %v216
    %v218 = vrot.slane %v209, %v217
    %v219 = vlaneseq
    %v220 = vshrl.u32 %v219, 7
    %v221 = vsub.s32 2, %v220
    %v222 = vrot.slane %v209, %v221
    %v223 = vlaneseq
    %v224 = vshrl.u32 %v223, 7
    %v225 = vsub.s32 3, %v224
    %v226 = vrot.slane %v209, %v225
    %231 = vmatprep.subr.mxu0 %v146
    %232 = vmatpush1.msra.mxu0 %v145
    %233 = vmatprep.subr.mxu0 %v150
    %234 = vmatpush1.msra.mxu0 %v149
    %235 = vmatprep.subr.mxu0 %v154
    %236 = vmatpush1.msra.mxu0 %v153
    %237 = vmatprep.subr.mxu0 %v158
    %238 = vmatpush1.msra.mxu0 %v157
    %239 = vmatprep.subr.mxu0 %v162
    %240 = vmatpush1.msra.mxu0 %v161
    %241 = vmatprep.subr.mxu0 %v166
    %242 = vmatpush1.msra.mxu0 %v165
    %243 = vmatprep.subr.mxu0 %v170
    %244 = vmatpush1.msra.mxu0 %v169
    %245 = vmatprep.subr.mxu0 %v174
    %246 = vmatpush1.msra.mxu0 %v173
    %247 = vmatprep.subr.mxu0 %v178
    %248 = vmatpush1.msra.mxu0 %v177
    %249 = vmatprep.subr.mxu0 %v182
    %250 = vmatpush1.msra.mxu0 %v181
    %251 = vmatprep.subr.mxu0 %v186
    %252 = vmatpush1.msra.mxu0 %v185
    %253 = vmatprep.subr.mxu0 %v190
    %254 = vmatpush1.msra.mxu0 %v189
    %255 = vmatprep.subr.mxu0 %v194
    %256 = vmatpush1.msra.mxu0 %v193
    %257 = vmatprep.subr.mxu0 %v198
    %258 = vmatpush1.msra.mxu0 %v197
    %259 = vmatprep.subr.mxu0 %v202
    %260 = vmatpush1.msra.mxu0 %v201
    %261 = vmatprep.subr.mxu0 %v206
    %262 = vmatpush1.msra.mxu0 %v205
    %263 = vmatprep.subr.mxu0 0.0
    %264 = vmatpush1.msra.mxu0 0.0
    %265 = vmatprep.subr.mxu0 0.0
    %266 = vmatpush1.msra.mxu0 0.0
    %267 = vmatprep.subr.mxu0 0.0
    %268 = vmatpush1.msra.mxu0 0.0
    %269 = vmatprep.subr.mxu0 0.0
    %270 = vmatpush1.msra.mxu0 0.0
    %271 = vmatprep.subr.mxu0 0.0
    %272 = vmatpush1.msra.mxu0 0.0
    %273 = vmatprep.subr.mxu0 0.0
    %274 = vmatpush1.msra.mxu0 0.0
    %275 = vmatprep.subr.mxu0 0.0
    %276 = vmatpush1.msra.mxu0 0.0
    %277 = vmatprep.subr.mxu0 0.0
    %278 = vmatpush1.msra.mxu0 0.0
    %279 = vmatprep.subr.mxu0 0.0
    %280 = vmatpush1.msra.mxu0 0.0
    %281 = vmatprep.subr.mxu0 0.0
    %282 = vmatpush1.msra.mxu0 0.0
    %283 = vmatprep.subr.mxu0 0.0
    %284 = vmatpush1.msra.mxu0 0.0
    %285 = vmatprep.subr.mxu0 0.0
    %286 = vmatpush1.msra.mxu0 0.0
    %287 = vmatprep.subr.mxu0 0.0
    %288 = vmatpush1.msra.mxu0 0.0
    %289 = vmatprep.subr.mxu0 0.0
    %290 = vmatpush1.msra.mxu0 0.0
    %291 = vmatprep.subr.mxu0 0.0
    %292 = vmatpush1.msra.mxu0 0.0
    %293 = vmatprep.subr.mxu0 0.0
    %294 = vmatpush1.msra.mxu0 0.0
    %295 = vmatprep.mubr.f32.mxu0 0.0
    %296 = vmatmul.mubr.f32.gmra.mrb[0].mxu0 %v137
    %v297 = vpop.f32.mrb[0].mxu0
    %v298 = vadd.f32 %v214, %v297
    %v299 = vpop.f32.mrb[0].mxu0
    %v300 = vadd.f32 %v218, %v299
    %301 = vmatprep.mubr.f32.mxu0 0.0
    %302 = vmatmul.mubr.f32.gmra.mrb[0].mxu0 %v138
    %v303 = vpop.f32.mrb[0].mxu0
    %v304 = vadd.f32 %v214, %v303
    %v305 = vpop.f32.mrb[0].mxu0
    %v306 = vadd.f32 %v218, %v305
    %307 = vmatprep.mubr.f32.mxu0 0.0
    %308 = vmatmul.mubr.f32.gmra.mrb[0].mxu0 %v139
    %v309 = vpop.f32.mrb[0].mxu0
    %v310 = vadd.f32 %v214, %v309
    %v311 = vpop.f32.mrb[0].mxu0
    %v312 = vadd.f32 %v218, %v311
    %313 = vmatprep.mubr.f32.mxu0 0.0
    %314 = vmatmul.mubr.f32.gmra.mrb[0].mxu0 %v140
    %v315 = vpop.f32.mrb[0].mxu0
    %v316 = vadd.f32 %v214, %v315
    %v317 = vpop.f32.mrb[0].mxu0
    %v318 = vadd.f32 %v218, %v317
    %319 = vmatprep.mubr.f32.mxu0 0.0
    %320 = vmatmul.mubr.f32.gmra.mrb[0].mxu0 %v141
    %v321 = vpop.f32.mrb[0].mxu0
    %v322 = vadd.f32 %v214, %v321
    %v323 = vpop.f32.mrb[0].mxu0
    %v324 = vadd.f32 %v218, %v323
    %325 = vmatprep.mubr.f32.mxu0 0.0
    %326 = vmatmul.mubr.f32.gmra.mrb[0].mxu0 %v142
    %v327 = vpop.f32.mrb[0].mxu0
    %v328 = vadd.f32 %v214, %v327
    %v329 = vpop.f32.mrb[0].mxu0
    %v330 = vadd.f32 %v218, %v329
    %331 = vmatprep.mubr.f32.mxu0 0.0
    %332 = vmatmul.mubr.f32.gmra.mrb[0].mxu0 %v143
    %v333 = vpop.f32.mrb[0].mxu0
    %v334 = vadd.f32 %v214, %v333
    %v335 = vpop.f32.mrb[0].mxu0
    %v336 = vadd.f32 %v218, %v335
    %337 = vmatprep.mubr.f32.mxu0 0.0
    %338 = vmatmul.mubr.f32.gmra.mrb[0].mxu0 %v144
    %v339 = vpop.f32.mrb[0].mxu0
    %v340 = vadd.f32 %v214, %v339
    %v341 = vpop.f32.mrb[0].mxu0
    %v342 = vadd.f32 %v218, %v341
    %343 = vdwg.mxu0
    %344 = vmatprep.subr.mxu0 %v148
    %345 = vmatpush1.msra.mxu0 %v147
    %346 = vmatprep.subr.mxu0 %v152
    %347 = vmatpush1.msra.mxu0 %v151
    %348 = vmatprep.subr.mxu0 %v156
    %349 = vmatpush1.msra.mxu0 %v155
    %350 = vmatprep.subr.mxu0 %v160
    %351 = vmatpush1.msra.mxu0 %v159
    %352 = vmatprep.subr.mxu0 %v164
    %353 = vmatpush1.msra.mxu0 %v163
    %354 = vmatprep.subr.mxu0 %v168
    %355 = vmatpush1.msra.mxu0 %v167
    %356 = vmatprep.subr.mxu0 %v172
    %357 = vmatpush1.msra.mxu0 %v171
    %358 = vmatprep.subr.mxu0 %v176
    %359 = vmatpush1.msra.mxu0 %v175
    %360 = vmatprep.subr.mxu0 %v180
    %361 = vmatpush1.msra.mxu0 %v179
    %362 = vmatprep.subr.mxu0 %v184
    %363 = vmatpush1.msra.mxu0 %v183
    %364 = vmatprep.subr.mxu0 %v188
    %365 = vmatpush1.msra.mxu0 %v187
    %366 = vmatprep.subr.mxu0 %v192
    %367 = vmatpush1.msra.mxu0 %v191
    %368 = vmatprep.subr.mxu0 %v196
    %369 = vmatpush1.msra.mxu0 %v195
    %370 = vmatprep.subr.mxu0 %v200
    %371 = vmatpush1.msra.mxu0 %v199
    %372 = vmatprep.subr.mxu0 %v204
    %373 = vmatpush1.msra.mxu0 %v203
    %374 = vmatprep.subr.mxu0 %v208
    %375 = vmatpush1.msra.mxu0 %v207
    %376 = vmatprep.subr.mxu0 0.0
    %377 = vmatpush1.msra.mxu0 0.0
    %378 = vmatprep.subr.mxu0 0.0
    %379 = vmatpush1.msra.mxu0 0.0
    %380 = vmatprep.subr.mxu0 0.0
    %381 = vmatpush1.msra.mxu0 0.0
    %382 = vmatprep.subr.mxu0 0.0
    %383 = vmatpush1.msra.mxu0 0.0
    %384 = vmatprep.subr.mxu0 0.0
    %385 = vmatpush1.msra.mxu0 0.0
    %386 = vmatprep.subr.mxu0 0.0
    %387 = vmatpush1.msra.mxu0 0.0
    %388 = vmatprep.subr.mxu0 0.0
    %389 = vmatpush1.msra.mxu0 0.0
    %390 = vmatprep.subr.mxu0 0.0
    %391 = vmatpush1.msra.mxu0 0.0
    %392 = vmatprep.subr.mxu0 0.0
    %393 = vmatpush1.msra.mxu0 0.0
    %394 = vmatprep.subr.mxu0 0.0
    %395 = vmatpush1.msra.mxu0 0.0
    %396 = vmatprep.subr.mxu0 0.0
    %397 = vmatpush1.msra.mxu0 0.0
    %398 = vmatprep.subr.mxu0 0.0
    %399 = vmatpush1.msra.mxu0 0.0
    %400 = vmatprep.subr.mxu0 0.0
    %401 = vmatpush1.msra.mxu0 0.0
    %402 = vmatprep.subr.mxu0 0.0
    %403 = vmatpush1.msra.mxu0 0.0
    %404 = vmatprep.subr.mxu0 0.0
    %405 = vmatpush1.msra.mxu0 0.0
    %406 = vmatprep.subr.mxu0 0.0
    %407 = vmatpush1.msra.mxu0 0.0
    %408 = vmatprep.mubr.f32.mxu0 0.0
    %409 = vmatmul.mubr.f32.gmra.mrb[0].mxu0 %v137
    %v410 = vpop.f32.mrb[0].mxu0
    %v411 = vadd.f32 %v222, %v410
    %v412 = vpop.f32.mrb[0].mxu0
    %v413 = vadd.f32 %v226, %v412
    %414 = vmatprep.mubr.f32.mxu0 0.0
    %415 = vmatmul.mubr.f32.gmra.mrb[0].mxu0 %v138
    %v416 = vpop.f32.mrb[0].mxu0
    %v417 = vadd.f32 %v222, %v416
    %v418 = vpop.f32.mrb[0].mxu0
    %v419 = vadd.f32 %v226, %v418
    %420 = vmatprep.mubr.f32.mxu0 0.0
    %421 = vmatmul.mubr.f32.gmra.mrb[0].mxu0 %v139
    %v422 = vpop.f32.mrb[0].mxu0
    %v423 = vadd.f32 %v222, %v422
    %v424 = vpop.f32.mrb[0].mxu0
    %v425 = vadd.f32 %v226, %v424
    %426 = vmatprep.mubr.f32.mxu0 0.0
    %427 = vmatmul.mubr.f32.gmra.mrb[0].mxu0 %v140
    %v428 = vpop.f32.mrb[0].mxu0
    %v429 = vadd.f32 %v222, %v428
    %v430 = vpop.f32.mrb[0].mxu0
    %v431 = vadd.f32 %v226, %v430
    %432 = vmatprep.mubr.f32.mxu0 0.0
    %433 = vmatmul.mubr.f32.gmra.mrb[0].mxu0 %v141
    %v434 = vpop.f32.mrb[0].mxu0
    %v435 = vadd.f32 %v222, %v434
    %v436 = vpop.f32.mrb[0].mxu0
    %v437 = vadd.f32 %v226, %v436
    %438 = vmatprep.mubr.f32.mxu0 0.0
    %439 = vmatmul.mubr.f32.gmra.mrb[0].mxu0 %v142
    %v440 = vpop.f32.mrb[0].mxu0
    %v441 = vadd.f32 %v222, %v440
    %v442 = vpop.f32.mrb[0].mxu0
    %v443 = vadd.f32 %v226, %v442
    %444 = vmatprep.mubr.f32.mxu0 0.0
    %445 = vmatmul.mubr.f32.gmra.mrb[0].mxu0 %v143
    %v446 = vpop.f32.mrb[0].mxu0
    %v447 = vadd.f32 %v222, %v446
    %v448 = vpop.f32.mrb[0].mxu0
    %v449 = vadd.f32 %v226, %v448
    %450 = vmatprep.mubr.f32.mxu0 0.0
    %451 = vmatmul.mubr.f32.gmra.mrb[0].mxu0 %v144
    %v452 = vpop.f32.mrb[0].mxu0
    %v453 = vadd.f32 %v222, %v452
    %v454 = vpop.f32.mrb[0].mxu0
    %v455 = vadd.f32 %v226, %v454
    %456 = vdwg.mxu0
    %457 = vst [vmem:[#allocation3] sm:$0xff] %v298
    %458 = vst [vmem:[#allocation3 + $0x8] sm:$0xff] %v300
    %459 = vst [vmem:[#allocation3 + $0x10] sm:$0xff] %v411
    %460 = vst [vmem:[#allocation3 + $0x18] sm:$0xff] %v413
    %461 = vst [vmem:[#allocation3 + $0x20] sm:$0xff] %v304
    %462 = vst [vmem:[#allocation3 + $0x28] sm:$0xff] %v306
    %463 = vst [vmem:[#allocation3 + $0x30] sm:$0xff] %v417
    %464 = vst [vmem:[#allocation3 + $0x38] sm:$0xff] %v419
    %465 = vst [vmem:[#allocation3 + $0x40] sm:$0xff] %v310
    %466 = vst [vmem:[#allocation3 + $0x48] sm:$0xff] %v312
    %467 = vst [vmem:[#allocation3 + $0x50] sm:$0xff] %v423
    %468 = vst [vmem:[#allocation3 + $0x58] sm:$0xff] %v425
    %469 = vst [vmem:[#allocation3 + $0x60] sm:$0xff] %v316
    %470 = vst [vmem:[#allocation3 + $0x68] sm:$0xff] %v318
    %471 = vst [vmem:[#allocation3 + $0x70] sm:$0xff] %v429
    %472 = vst [vmem:[#allocation3 + $0x78] sm:$0xff] %v431
    %473 = vst [vmem:[#allocation3 + $0x80] sm:$0xff] %v322
    %474 = vst [vmem:[#allocation3 + $0x88] sm:$0xff] %v324
    %475 = vst [vmem:[#allocation3 + $0x90] sm:$0xff] %v435
    %476 = vst [vmem:[#allocation3 + $0x98] sm:$0xff] %v437
    %477 = vst [vmem:[#allocation3 + $0xa0] sm:$0xff] %v328
    %478 = vst [vmem:[#allocation3 + $0xa8] sm:$0xff] %v330
    %479 = vst [vmem:[#allocation3 + $0xb0] sm:$0xff] %v441
    %480 = vst [vmem:[#allocation3 + $0xb8] sm:$0xff] %v443
    %481 = vst [vmem:[#allocation3 + $0xc0] sm:$0xff] %v334
    %482 = vst [vmem:[#allocation3 + $0xc8] sm:$0xff] %v336
    %483 = vst [vmem:[#allocation3 + $0xd0] sm:$0xff] %v447
    %484 = vst [vmem:[#allocation3 + $0xd8] sm:$0xff] %v449
    %485 = vst [vmem:[#allocation3 + $0xe0] sm:$0xff] %v340
    %486 = vst [vmem:[#allocation3 + $0xe8] sm:$0xff] %v342
    %487 = vst [vmem:[#allocation3 + $0xf0] sm:$0xff] %v453
    %488 = vst [vmem:[#allocation3 + $0xf8] sm:$0xff] %v455
    %489 = vst [vmem:[#allocation4] sm:$0xff] 0.0
    %490 = vst [vmem:[#allocation5] sm:$0xff] 0.0
    %v491 = vld [vmem:[#allocation3] sm:$0xff]
    %v492 = vld [vmem:[#allocation3 + $0x8] sm:$0xff]
    %v493 = vld [vmem:[#allocation3 + $0x10] sm:$0xff]
    %v494 = vld [vmem:[#allocation3 + $0x18] sm:$0xff]
    %v495 = vld [vmem:[#allocation4] sm:$0xff]
    %v496 = vld [vmem:[#allocation11] sm:$0xff]
    %v497 = vld [vmem:[#allocation11 + $0x8] sm:$0xff]
    %v498 = vld [vmem:[#allocation11 + $0x10] sm:$0xff]
    %v499 = vld [vmem:[#allocation11 + $0x18] sm:$0xff]
    %v500 = vld [vmem:[#allocation11 + $0x20] sm:$0xff]
    %v501 = vld [vmem:[#allocation11 + $0x28] sm:$0xff]
    %v502 = vld [vmem:[#allocation11 + $0x30] sm:$0xff]
    %v503 = vld [vmem:[#allocation11 + $0x38] sm:$0xff]
    %v504 = vld [vmem:[#allocation11 + $0x40] sm:$0xff]
    %v505 = vld [vmem:[#allocation11 + $0x48] sm:$0xff]
    %v506 = vld [vmem:[#allocation11 + $0x50] sm:$0xff]
    %v507 = vld [vmem:[#allocation11 + $0x58] sm:$0xff]
    %v508 = vld [vmem:[#allocation11 + $0x60] sm:$0xff]
    %v509 = vld [vmem:[#allocation11 + $0x68] sm:$0xff]
    %v510 = vld [vmem:[#allocation11 + $0x70] sm:$0xff]
    %v511 = vld [vmem:[#allocation11 + $0x78] sm:$0xff]
    %v512 = vld [vmem:[#allocation11 + $0x80] sm:$0xff]
    %v513 = vld [vmem:[#allocation11 + $0x88] sm:$0xff]
    %v514 = vld [vmem:[#allocation11 + $0x90] sm:$0xff]
    %v515 = vld [vmem:[#allocation11 + $0x98] sm:$0xff]
    %v516 = vld [vmem:[#allocation11 + $0xa0] sm:$0xff]
    %v517 = vld [vmem:[#allocation11 + $0xa8] sm:$0xff]
    %v518 = vld [vmem:[#allocation11 + $0xb0] sm:$0xff]
    %v519 = vld [vmem:[#allocation11 + $0xb8] sm:$0xff]
    %v520 = vld [vmem:[#allocation11 + $0xc0] sm:$0xff]
    %v521 = vld [vmem:[#allocation11 + $0xc8] sm:$0xff]
    %v522 = vld [vmem:[#allocation11 + $0xd0] sm:$0xff]
    %v523 = vld [vmem:[#allocation11 + $0xd8] sm:$0xff]
    %v524 = vld [vmem:[#allocation11 + $0xe0] sm:$0xff]
    %v525 = vld [vmem:[#allocation11 + $0xe8] sm:$0xff]
    %v526 = vld [vmem:[#allocation11 + $0xf0] sm:$0xff]
    %v527 = vld [vmem:[#allocation11 + $0xf8] sm:$0xff]
    %v528 = vld [vmem:[#allocation11 + $0x100] sm:$0xff]
    %v529 = vld [vmem:[#allocation11 + $0x108] sm:$0xff]
    %v530 = vld [vmem:[#allocation11 + $0x110] sm:$0xff]
    %v531 = vld [vmem:[#allocation11 + $0x118] sm:$0xff]
    %v532 = vld [vmem:[#allocation11 + $0x120] sm:$0xff]
    %v533 = vld [vmem:[#allocation11 + $0x128] sm:$0xff]
    %v534 = vld [vmem:[#allocation11 + $0x130] sm:$0xff]
    %v535 = vld [vmem:[#allocation11 + $0x138] sm:$0xff]
    %v536 = vld [vmem:[#allocation11 + $0x140] sm:$0xff]
    %v537 = vld [vmem:[#allocation11 + $0x148] sm:$0xff]
    %v538 = vld [vmem:[#allocation11 + $0x150] sm:$0xff]
    %v539 = vld [vmem:[#allocation11 + $0x158] sm:$0xff]
    %v540 = vld [vmem:[#allocation11 + $0x160] sm:$0xff]
    %v541 = vld [vmem:[#allocation11 + $0x168] sm:$0xff]
    %v542 = vld [vmem:[#allocation11 + $0x170] sm:$0xff]
    %v543 = vld [vmem:[#allocation11 + $0x178] sm:$0xff]
    %v544 = vld [vmem:[#allocation11 + $0x180] sm:$0xff]
    %v545 = vld [vmem:[#allocation11 + $0x188] sm:$0xff]
    %v546 = vld [vmem:[#allocation11 + $0x190] sm:$0xff]
    %v547 = vld [vmem:[#allocation11 + $0x198] sm:$0xff]
    %v548 = vld [vmem:[#allocation11 + $0x1a0] sm:$0xff]
    %v549 = vld [vmem:[#allocation11 + $0x1a8] sm:$0xff]
    %v550 = vld [vmem:[#allocation11 + $0x1b0] sm:$0xff]
    %v551 = vld [vmem:[#allocation11 + $0x1b8] sm:$0xff]
    %v552 = vld [vmem:[#allocation11 + $0x1c0] sm:$0xff]
    %v553 = vld [vmem:[#allocation11 + $0x1c8] sm:$0xff]
    %v554 = vld [vmem:[#allocation11 + $0x1d0] sm:$0xff]
    %v555 = vld [vmem:[#allocation11 + $0x1d8] sm:$0xff]
    %v556 = vld [vmem:[#allocation11 + $0x1e0] sm:$0xff]
    %v557 = vld [vmem:[#allocation11 + $0x1e8] sm:$0xff]
    %v558 = vld [vmem:[#allocation11 + $0x1f0] sm:$0xff]
    %v559 = vld [vmem:[#allocation11 + $0x1f8] sm:$0xff]
    %560 = vmatprep.subr.mxu0 %v497
    %561 = vmatpush1.msra.mxu0 %v496
    %562 = vmatprep.subr.mxu0 %v501
    %563 = vmatpush1.msra.mxu0 %v500
    %564 = vmatprep.subr.mxu0 %v505
    %565 = vmatpush1.msra.mxu0 %v504
    %566 = vmatprep.subr.mxu0 %v509
    %567 = vmatpush1.msra.mxu0 %v508
    %568 = vmatprep.subr.mxu0 %v513
    %569 = vmatpush1.msra.mxu0 %v512
    %570 = vmatprep.subr.mxu0 %v517
    %571 = vmatpush1.msra.mxu0 %v516
    %572 = vmatprep.subr.mxu0 %v521
    %573 = vmatpush1.msra.mxu0 %v520
    %574 = vmatprep.subr.mxu0 %v525
    %575 = vmatpush1.msra.mxu0 %v524
    %576 = vmatprep.subr.mxu0 %v529
    %577 = vmatpush1.msra.mxu0 %v528
    %578 = vmatprep.subr.mxu0 %v533
    %579 = vmatpush1.msra.mxu0 %v532
    %580 = vmatprep.subr.mxu0 %v537
    %581 = vmatpush1.msra.mxu0 %v536
    %582 = vmatprep.subr.mxu0 %v541
    %583 = vmatpush1.msra.mxu0 %v540
    %584 = vmatprep.subr.mxu0 %v545
    %585 = vmatpush1.msra.mxu0 %v544
    %586 = vmatprep.subr.mxu0 %v549
    %587 = vmatpush1.msra.mxu0 %v548
    %588 = vmatprep.subr.mxu0 %v553
    %589 = vmatpush1.msra.mxu0 %v552
    %590 = vmatprep.subr.mxu0 %v557
    %591 = vmatpush1.msra.mxu0 %v556
    %592 = vmatprep.subr.mxu0 0.0
    %593 = vmatpush1.msra.mxu0 0.0
    %594 = vmatprep.subr.mxu0 0.0
    %595 = vmatpush1.msra.mxu0 0.0
    %596 = vmatprep.subr.mxu0 0.0
    %597 = vmatpush1.msra.mxu0 0.0
    %598 = vmatprep.subr.mxu0 0.0
    %599 = vmatpush1.msra.mxu0 0.0
    %600 = vmatprep.subr.mxu0 0.0
    %601 = vmatpush1.msra.mxu0 0.0
    %602 = vmatprep.subr.mxu0 0.0
    %603 = vmatpush1.msra.mxu0 0.0
    %604 = vmatprep.subr.mxu0 0.0
    %605 = vmatpush1.msra.mxu0 0.0
    %606 = vmatprep.subr.mxu0 0.0
    %607 = vmatpush1.msra.mxu0 0.0
    %608 = vmatprep.subr.mxu0 0.0
    %609 = vmatpush1.msra.mxu0 0.0
    %610 = vmatprep.subr.mxu0 0.0
    %611 = vmatpush1.msra.mxu0 0.0
    %612 = vmatprep.subr.mxu0 0.0
    %613 = vmatpush1.msra.mxu0 0.0
    %614 = vmatprep.subr.mxu0 0.0
    %615 = vmatpush1.msra.mxu0 0.0
    %616 = vmatprep.subr.mxu0 0.0
    %617 = vmatpush1.msra.mxu0 0.0
    %618 = vmatprep.subr.mxu0 0.0
    %619 = vmatpush1.msra.mxu0 0.0
    %620 = vmatprep.subr.mxu0 0.0
    %621 = vmatpush1.msra.mxu0 0.0
    %622 = vmatprep.subr.mxu0 0.0
    %623 = vmatpush1.msra.mxu0 0.0
    %624 = vmatprep.mubr.f32.mxu0 0.0
    %625 = vmatmul.mubr.f32.gmra.mrb[0].mxu0 %v495
    %v626 = vpop.f32.mrb[0].mxu0
    %v627 = vadd.f32 0.0, %v626
    %v628 = vpop.f32.mrb[0].mxu0
    %v629 = vadd.f32 0.0, %v628
    %630 = vdwg.mxu0
    %631 = vmatprep.subr.mxu0 %v499
    %632 = vmatpush1.msra.mxu0 %v498
    %633 = vmatprep.subr.mxu0 %v503
    %634 = vmatpush1.msra.mxu0 %v502
    %635 = vmatprep.subr.mxu0 %v507
    %636 = vmatpush1.msra.mxu0 %v506
    %637 = vmatprep.subr.mxu0 %v511
    %638 = vmatpush1.msra.mxu0 %v510
    %639 = vmatprep.subr.mxu0 %v515
    %640 = vmatpush1.msra.mxu0 %v514
    %641 = vmatprep.subr.mxu0 %v519
    %642 = vmatpush1.msra.mxu0 %v518
    %643 = vmatprep.subr.mxu0 %v523
    %644 = vmatpush1.msra.mxu0 %v522
    %645 = vmatprep.subr.mxu0 %v527
    %646 = vmatpush1.msra.mxu0 %v526
    %647 = vmatprep.subr.mxu0 %v531
    %648 = vmatpush1.msra.mxu0 %v530
    %649 = vmatprep.subr.mxu0 %v535
    %650 = vmatpush1.msra.mxu0 %v534
    %651 = vmatprep.subr.mxu0 %v539
    %652 = vmatpush1.msra.mxu0 %v538
    %653 = vmatprep.subr.mxu0 %v543
    %654 = vmatpush1.msra.mxu0 %v542
    %655 = vmatprep.subr.mxu0 %v547
    %656 = vmatpush1.msra.mxu0 %v546
    %657 = vmatprep.subr.mxu0 %v551
    %658 = vmatpush1.msra.mxu0 %v550
    %659 = vmatprep.subr.mxu0 %v555
    %660 = vmatpush1.msra.mxu0 %v554
    %661 = vmatprep.subr.mxu0 %v559
    %662 = vmatpush1.msra.mxu0 %v558
    %663 = vmatprep.subr.mxu0 0.0
    %664 = vmatpush1.msra.mxu0 0.0
    %665 = vmatprep.subr.mxu0 0.0
    %666 = vmatpush1.msra.mxu0 0.0
    %667 = vmatprep.subr.mxu0 0.0
    %668 = vmatpush1.msra.mxu0 0.0
    %669 = vmatprep.subr.mxu0 0.0
    %670 = vmatpush1.msra.mxu0 0.0
    %671 = vmatprep.subr.mxu0 0.0
    %672 = vmatpush1.msra.mxu0 0.0
    %673 = vmatprep.subr.mxu0 0.0
    %674 = vmatpush1.msra.mxu0 0.0
    %675 = vmatprep.subr.mxu0 0.0
    %676 = vmatpush1.msra.mxu0 0.0
    %677 = vmatprep.subr.mxu0 0.0
    %678 = vmatpush1.msra.mxu0 0.0
    %679 = vmatprep.subr.mxu0 0.0
    %680 = vmatpush1.msra.mxu0 0.0
    %681 = vmatprep.subr.mxu0 0.0
    %682 = vmatpush1.msra.mxu0 0.0
    %683 = vmatprep.subr.mxu0 0.0
    %684 = vmatpush1.msra.mxu0 0.0
    %685 = vmatprep.subr.mxu0 0.0
    %686 = vmatpush1.msra.mxu0 0.0
    %687 = vmatprep.subr.mxu0 0.0
    %688 = vmatpush1.msra.mxu0 0.0
    %689 = vmatprep.subr.mxu0 0.0
    %690 = vmatpush1.msra.mxu0 0.0
    %691 = vmatprep.subr.mxu0 0.0
    %692 = vmatpush1.msra.mxu0 0.0
    %693 = vmatprep.subr.mxu0 0.0
    %694 = vmatpush1.msra.mxu0 0.0
    %695 = vmatprep.mubr.f32.mxu0 0.0
    %696 = vmatmul.mubr.f32.gmra.mrb[0].mxu0 %v495
    %v697 = vpop.f32.mrb[0].mxu0
    %v698 = vadd.f32 0.0, %v697
    %v699 = vpop.f32.mrb[0].mxu0
    %v700 = vadd.f32 0.0, %v699
    %701 = vdwg.mxu0
    %v702 = vadd.f32 %v491, %v627
    %v703 = vadd.f32 %v492, %v629
    %v704 = vadd.f32 %v493, %v698
    %v705 = vadd.f32 %v494, %v700
    %v706 = vxor.u32 %v702, 2147483648
    %v707 = vmul.f32 %v706, 1.442695
    %v708 = vpow.pop %v707
    %v709 = vadd.f32 %v708, 1.0
    %v710 = vrcp.pop %v709
    %v711 = vmul.f32 1.0, %v710
    %v712 = vxor.u32 %v703, 2147483648
    %v713 = vmul.f32 %v712, 1.442695
    %v714 = vpow.pop %v713
    %v715 = vadd.f32 %v714, 1.0
    %v716 = vrcp.pop %v715
    %v717 = vmul.f32 1.0, %v716
    %v718 = vtanh.pop %v704
    %v719 = vxor.u32 %v705, 2147483648
    %v720 = vmul.f32 %v719, 1.442695
    %v721 = vpow.pop %v720
    %v722 = vadd.f32 %v721, 1.0
    %v723 = vrcp.pop %v722
    %v724 = vmul.f32 1.0, %v723
    %v725 = vld [vmem:[#allocation5] sm:$0xff]
    %v726 = vmul.f32 %v717, %v725
    %v727 = vmul.f32 %v711, %v718
    %v728 = vadd.f32 %v726, %v727
    %v729 = vtanh.pop %v728
    %v730 = vmul.f32 %v724, %v729
    %731 = vst [vmem:[#allocation5] sm:$0xff] %v728
    %732 = vst [vmem:[#allocation4] sm:$0xff] %v730
    %733 = vst [vmem:[#allocation2] sm:$0xff] %v730
    %s734 = scalar_lea.vmem [#allocation3], 32
    %v735 = vld [vmem:[%s734] sm:$0xff]
    %v736 = vld [vmem:[%s734 + $0x8] sm:$0xff]
    %v737 = vld [vmem:[%s734 + $0x10] sm:$0xff]
    %v738 = vld [vmem:[%s734 + $0x18] sm:$0xff]
    %v739 = vld [vmem:[#allocation4] sm:$0xff]
    %v740 = vld [vmem:[#allocation11] sm:$0xff]
    %v741 = vld [vmem:[#allocation11 + $0x8] sm:$0xff]
    %v742 = vld [vmem:[#allocation11 + $0x10] sm:$0xff]
    %v743 = vld [vmem:[#allocation11 + $0x18] sm:$0xff]
    %v744 = vld [vmem:[#allocation11 + $0x20] sm:$0xff]
    %v745 = vld [vmem:[#allocation11 + $0x28] sm:$0xff]
    %v746 = vld [vmem:[#allocation11 + $0x30] sm:$0xff]
    %v747 = vld [vmem:[#allocation11 + $0x38] sm:$0xff]
    %v748 = vld [vmem:[#allocation11 + $0x40] sm:$0xff]
    %v749 = vld [vmem:[#allocation11 + $0x48] sm:$0xff]
    %v750 = vld [vmem:[#allocation11 + $0x50] sm:$0xff]
    %v751 = vld [vmem:[#allocation11 + $0x58] sm:$0xff]
    %v752 = vld [vmem:[#allocation11 + $0x60] sm:$0xff]
    %v753 = vld [vmem:[#allocation11 + $0x68] sm:$0xff]
    %v754 = vld [vmem:[#allocation11 + $0x70] sm:$0xff]
    %v755 = vld [vmem:[#allocation11 + $0x78] sm:$0xff]
    %v756 = vld [vmem:[#allocation11 + $0x80] sm:$0xff]
    %v757 = vld [vmem:[#allocation11 + $0x88] sm:$0xff]
    %v758 = vld [vmem:[#allocation11 + $0x90] sm:$0xff]
    %v759 = vld [vmem:[#allocation11 + $0x98] sm:$0xff]
    %v760 = vld [vmem:[#allocation11 + $0xa0] sm:$0xff]
    %v761 = vld [vmem:[#allocation11 + $0xa8] sm:$0xff]
    %v762 = vld [vmem:[#allocation11 + $0xb0] sm:$0xff]
    %v763 = vld [vmem:[#allocation11 + $0xb8] sm:$0xff]
    %v764 = vld [vmem:[#allocation11 + $0xc0] sm:$0xff]
    %v765 = vld [vmem:[#allocation11 + $0xc8] sm:$0xff]
    %v766 = vld [vmem:[#allocation11 + $0xd0] sm:$0xff]
    %v767 = vld [vmem:[#allocation11 + $0xd8] sm:$0xff]
    %v768 = vld [vmem:[#allocation11 + $0xe0] sm:$0xff]
    %v769 = vld [vmem:[#allocation11 + $0xe8] sm:$0xff]
    %v770 = vld [vmem:[#allocation11 + $0xf0] sm:$0xff]
    %v771 = vld [vmem:[#allocation11 + $0xf8] sm:$0xff]
    %v772 = vld [vmem:[#allocation11 + $0x100] sm:$0xff]
    %v773 = vld [vmem:[#allocation11 + $0x108] sm:$0xff]
    %v774 = vld [vmem:[#allocation11 + $0x110] sm:$0xff]
    %v775 = vld [vmem:[#allocation11 + $0x118] sm:$0xff]
    %v776 = vld [vmem:[#allocation11 + $0x120] sm:$0xff]
    %v777 = vld [vmem:[#allocation11 + $0x128] sm:$0xff]
    %v778 = vld [vmem:[#allocation11 + $0x130] sm:$0xff]
    %v779 = vld [vmem:[#allocation11 + $0x138] sm:$0xff]
    %v780 = vld [vmem:[#allocation11 + $0x140] sm:$0xff]
    %v781 = vld [vmem:[#allocation11 + $0x148] sm:$0xff]
    %v782 = vld [vmem:[#allocation11 + $0x150] sm:$0xff]
    %v783 = vld [vmem:[#allocation11 + $0x158] sm:$0xff]
    %v784 = vld [vmem:[#allocation11 + $0x160] sm:$0xff]
    %v785 = vld [vmem:[#allocation11 + $0x168] sm:$0xff]
    %v786 = vld [vmem:[#allocation11 + $0x170] sm:$0xff]
    %v787 = vld [vmem:[#allocation11 + $0x178] sm:$0xff]
    %v788 = vld [vmem:[#allocation11 + $0x180] sm:$0xff]
    %v789 = vld [vmem:[#allocation11 + $0x188] sm:$0xff]
    %v790 = vld [vmem:[#allocation11 + $0x190] sm:$0xff]
    %v791 = vld [vmem:[#allocation11 + $0x198] sm:$0xff]
    %v792 = vld [vmem:[#allocation11 + $0x1a0] sm:$0xff]
    %v793 = vld [vmem:[#allocation11 + $0x1a8] sm:$0xff]
    %v794 = vld [vmem:[#allocation11 + $0x1b0] sm:$0xff]
    %v795 = vld [vmem:[#allocation11 + $0x1b8] sm:$0xff]
    %v796 = vld [vmem:[#allocation11 + $0x1c0] sm:$0xff]
    %v797 = vld [vmem:[#allocation11 + $0x1c8] sm:$0xff]
    %v798 = vld [vmem:[#allocation11 + $0x1d0] sm:$0xff]
    %v799 = vld [vmem:[#allocation11 + $0x1d8] sm:$0xff]
    %v800 = vld [vmem:[#allocation11 + $0x1e0] sm:$0xff]
    %v801 = vld [vmem:[#allocation11 + $0x1e8] sm:$0xff]
    %v802 = vld [vmem:[#allocation11 + $0x1f0] sm:$0xff]
    %v803 = vld [vmem:[#allocation11 + $0x1f8] sm:$0xff]
    %804 = vmatprep.subr.mxu0 %v741
    %805 = vmatpush1.msra.mxu0 %v740
    %806 = vmatprep.subr.mxu0 %v745
    %807 = vmatpush1.msra.mxu0 %v744
    %808 = vmatprep.subr.mxu0 %v749
    %809 = vmatpush1.msra.mxu0 %v748
    %810 = vmatprep.subr.mxu0 %v753
    %811 = vmatpush1.msra.mxu0 %v752
    %812 = vmatprep.subr.mxu0 %v757
    %813 = vmatpush1.msra.mxu0 %v756
    %814 = vmatprep.subr.mxu0 %v761
    %815 = vmatpush1.msra.mxu0 %v760
    %816 = vmatprep.subr.mxu0 %v765
    %817 = vmatpush1.msra.mxu0 %v764
    %818 = vmatprep.subr.mxu0 %v769
    %819 = vmatpush1.msra.mxu0 %v768
    %820 = vmatprep.subr.mxu0 %v773
    %821 = vmatpush1.msra.mxu0 %v772
    %822 = vmatprep.subr.mxu0 %v777
    %823 = vmatpush1.msra.mxu0 %v776
    %824 = vmatprep.subr.mxu0 %v781
    %825 = vmatpush1.msra.mxu0 %v780
    %826 = vmatprep.subr.mxu0 %v785
    %827 = vmatpush1.msra.mxu0 %v784
    %828 = vmatprep.subr.mxu0 %v789
    %829 = vmatpush1.msra.mxu0 %v788
    %830 = vmatprep.subr.mxu0 %v793
    %831 = vmatpush1.msra.mxu0 %v792
    %832 = vmatprep.subr.mxu0 %v797
    %833 = vmatpush1.msra.mxu0 %v796
    %834 = vmatprep.subr.mxu0 %v801
    %835 = vmatpush1.msra.mxu0 %v800
    %836 = vmatprep.subr.mxu0 0.0
    %837 = vmatpush1.msra.mxu0 0.0
    %838 = vmatprep.subr.mxu0 0.0
    %839 = vmatpush1.msra.mxu0 0.0
    %840 = vmatprep.subr.mxu0 0.0
    %841 = vmatpush1.msra.mxu0 0.0
    %842 = vmatprep.subr.mxu0 0.0
    %843 = vmatpush1.msra.mxu0 0.0
    %844 = vmatprep.subr.mxu0 0.0
    %845 = vmatpush1.msra.mxu0 0.0
    %846 = vmatprep.subr.mxu0 0.0
    %847 = vmatpush1.msra.mxu0 0.0
    %848 = vmatprep.subr.mxu0 0.0
    %849 = vmatpush1.msra.mxu0 0.0
    %850 = vmatprep.subr.mxu0 0.0
    %851 = vmatpush1.msra.mxu0 0.0
    %852 = vmatprep.subr.mxu0 0.0
    %853 = vmatpush1.msra.mxu0 0.0
    %854 = vmatprep.subr.mxu0 0.0
    %855 = vmatpush1.msra.mxu0 0.0
    %856 = vmatprep.subr.mxu0 0.0
    %857 = vmatpush1.msra.mxu0 0.0
    %858 = vmatprep.subr.mxu0 0.0
    %859 = vmatpush1.msra.mxu0 0.0
    %860 = vmatprep.subr.mxu0 0.0
    %861 = vmatpush1.msra.mxu0 0.0
    %862 = vmatprep.subr.mxu0 0.0
    %863 = vmatpush1.msra.mxu0 0.0
    %864 = vmatprep.subr.mxu0 0.0
    %865 = vmatpush1.msra.mxu0 0.0
    %866 = vmatprep.subr.mxu0 0.0
    %867 = vmatpush1.msra.mxu0 0.0
    %868 = vmatprep.mubr.f32.mxu0 0.0
    %869 = vmatmul.mubr.f32.gmra.mrb[0].mxu0 %v739
    %v870 = vpop.f32.mrb[0].mxu0
    %v871 = vadd.f32 0.0, %v870
    %v872 = vpop.f32.mrb[0].mxu0
    %v873 = vadd.f32 0.0, %v872
    %874 = vdwg.mxu0
    %875 = vmatprep.subr.mxu0 %v743
    %876 = vmatpush1.msra.mxu0 %v742
    %877 = vmatprep.subr.mxu0 %v747
    %878 = vmatpush1.msra.mxu0 %v746
    %879 = vmatprep.subr.mxu0 %v751
    %880 = vmatpush1.msra.mxu0 %v750
    %881 = vmatprep.subr.mxu0 %v755
    %882 = vmatpush1.msra.mxu0 %v754
    %883 = vmatprep.subr.mxu0 %v759
    %884 = vmatpush1.msra.mxu0 %v758
    %885 = vmatprep.subr.mxu0 %v763
    %886 = vmatpush1.msra.mxu0 %v762
    %887 = vmatprep.subr.mxu0 %v767
    %888 = vmatpush1.msra.mxu0 %v766
    %889 = vmatprep.subr.mxu0 %v771
    %890 = vmatpush1.msra.mxu0 %v770
    %891 = vmatprep.subr.mxu0 %v775
    %892 = vmatpush1.msra.mxu0 %v774
    %893 = vmatprep.subr.mxu0 %v779
    %894 = vmatpush1.msra.mxu0 %v778
    %895 = vmatprep.subr.mxu0 %v783
    %896 = vmatpush1.msra.mxu0 %v782
    %897 = vmatprep.subr.mxu0 %v787
    %898 = vmatpush1.msra.mxu0 %v786
    %899 = vmatprep.subr.mxu0 %v791
    %900 = vmatpush1.msra.mxu0 %v790
    %901 = vmatprep.subr.mxu0 %v795
    %902 = vmatpush1.msra.mxu0 %v794
    %903 = vmatprep.subr.mxu0 %v799
    %904 = vmatpush1.msra.mxu0 %v798
    %905 = vmatprep.subr.mxu0 %v803
    %906 = vmatpush1.msra.mxu0 %v802
    %907 = vmatprep.subr.mxu0 0.0
    %908 = vmatpush1.msra.mxu0 0.0
    %909 = vmatprep.subr.mxu0 0.0
    %910 = vmatpush1.msra.mxu0 0.0
    %911 = vmatprep.subr.mxu0 0.0
    %912 = vmatpush1.msra.mxu0 0.0
    %913 = vmatprep.subr.mxu0 0.0
    %914 = vmatpush1.msra.mxu0 0.0
    %915 = vmatprep.subr.mxu0 0.0
    %916 = vmatpush1.msra.mxu0 0.0
    %917 = vmatprep.subr.mxu0 0.0
    %918 = vmatpush1.msra.mxu0 0.0
    %919 = vmatprep.subr.mxu0 0.0
    %920 = vmatpush1.msra.mxu0 0.0
    %921 = vmatprep.subr.mxu0 0.0
    %922 = vmatpush1.msra.mxu0 0.0
    %923 = vmatprep.subr.mxu0 0.0
    %924 = vmatpush1.msra.mxu0 0.0
    %925 = vmatprep.subr.mxu0 0.0
    %926 = vmatpush1.msra.mxu0 0.0
    %927 = vmatprep.subr.mxu0 0.0
    %928 = vmatpush1.msra.mxu0 0.0
    %929 = vmatprep.subr.mxu0 0.0
    %930 = vmatpush1.msra.mxu0 0.0
    %931 = vmatprep.subr.mxu0 0.0
    %932 = vmatpush1.msra.mxu0 0.0
    %933 = vmatprep.subr.mxu0 0.0
    %934 = vmatpush1.msra.mxu0 0.0
    %935 = vmatprep.subr.mxu0 0.0
    %936 = vmatpush1.msra.mxu0 0.0
    %937 = vmatprep.subr.mxu0 0.0
    %938 = vmatpush1.msra.mxu0 0.0
    %939 = vmatprep.mubr.f32.mxu0 0.0
    %940 = vmatmul.mubr.f32.gmra.mrb[0].mxu0 %v739
    %v941 = vpop.f32.mrb[0].mxu0
    %v942 = vadd.f32 0.0, %v941
    %v943 = vpop.f32.mrb[0].mxu0
    %v944 = vadd.f32 0.0, %v943
    %945 = vdwg.mxu0
    %v946 = vadd.f32 %v735, %v871
    %v947 = vadd.f32 %v736, %v873
    %v948 = vadd.f32 %v737, %v942
    %v949 = vadd.f32 %v738, %v944
    %v950 = vxor.u32 %v946, 2147483648
    %v951 = vmul.f32 %v950, 1.442695
    %v952 = vpow.pop %v951
    %v953 = vadd.f32 %v952, 1.0
    %v954 = vrcp.pop %v953
    %v955 = vmul.f32 1.0, %v954
    %v956 = vxor.u32 %v947, 2147483648
    %v957 = vmul.f32 %v956, 1.442695
    %v958 = vpow.pop %v957
    %v959 = vadd.f32 %v958, 1.0
    %v960 = vrcp.pop %v959
    %v961 = vmul.f32 1.0, %v960
    %v962 = vtanh.pop %v948
    %v963 = vxor.u32 %v949, 2147483648
    %v964 = vmul.f32 %v963, 1.442695
    %v965 = vpow.pop %v964
    %v966 = vadd.f32 %v965, 1.0
    %v967 = vrcp.pop %v966
    %v968 = vmul.f32 1.0, %v967
    %v969 = vld [vmem:[#allocation5] sm:$0xff]
    %v970 = vmul.f32 %v961, %v969
    %v971 = vmul.f32 %v955, %v962
    %v972 = vadd.f32 %v970, %v971
    %v973 = vtanh.pop %v972
    %v974 = vmul.f32 %v968, %v973
    %975 = vst [vmem:[#allocation5] sm:$0xff] %v972
    %976 = vst [vmem:[#allocation4] sm:$0xff] %v974
    %s977 = scalar_lea.vmem [#allocation2], 8
    %978 = vst [vmem:[%s977] sm:$0xff] %v974
    %s979 = scalar_lea.vmem [#allocation3], 64
    %v980 = vld [vmem:[%s979] sm:$0xff]
    %v981 = vld [vmem:[%s979 + $0x8] sm:$0xff]
    %v982 = vld [vmem:[%s979 + $0x10] sm:$0xff]
    %v983 = vld [vmem:[%s979 + $0x18] sm:$0xff]
    %v984 = vld [vmem:[#allocation4] sm:$0xff]
    %v985 = vld [vmem:[#allocation11] sm:$0xff]
    %v986 = vld [vmem:[#allocation11 + $0x8] sm:$0xff]
    %v987 = vld [vmem:[#allocation11 + $0x10] sm:$0xff]
    %v988 = vld [vmem:[#allocation11 + $0x18] sm:$0xff]
    %v989 = vld [vmem:[#allocation11 + $0x20] sm:$0xff]
    %v990 = vld [vmem:[#allocation11 + $0x28] sm:$0xff]
    %v991 = vld [vmem:[#allocation11 + $0x30] sm:$0xff]
    %v992 = vld [vmem:[#allocation11 + $0x38] sm:$0xff]
    %v993 = vld [vmem:[#allocation11 + $0x40] sm:$0xff]
    %v994 = vld [vmem:[#allocation11 + $0x48] sm:$0xff]
    %v995 = vld [vmem:[#allocation11 + $0x50] sm:$0xff]
    %v996 = vld [vmem:[#allocation11 + $0x58] sm:$0xff]
    %v997 = vld [vmem:[#allocation11 + $0x60] sm:$0xff]
    %v998 = vld [vmem:[#allocation11 + $0x68] sm:$0xff]
    %v999 = vld [vmem:[#allocation11 + $0x70] sm:$0xff]
    %v1000 = vld [vmem:[#allocation11 + $0x78] sm:$0xff]
    %v1001 = vld [vmem:[#allocation11 + $0x80] sm:$0xff]
    %v1002 = vld [vmem:[#allocation11 + $0x88] sm:$0xff]
    %v1003 = vld [vmem:[#allocation11 + $0x90] sm:$0xff]
    %v1004 = vld [vmem:[#allocation11 + $0x98] sm:$0xff]
    %v1005 = vld [vmem:[#allocation11 + $0xa0] sm:$0xff]
    %v1006 = vld [vmem:[#allocation11 + $0xa8] sm:$0xff]
    %v1007 = vld [vmem:[#allocation11 + $0xb0] sm:$0xff]
    %v1008 = vld [vmem:[#allocation11 + $0xb8] sm:$0xff]
    %v1009 = vld [vmem:[#allocation11 + $0xc0] sm:$0xff]
    %v1010 = vld [vmem:[#allocation11 + $0xc8] sm:$0xff]
    %v1011 = vld [vmem:[#allocation11 + $0xd0] sm:$0xff]
    %v1012 = vld [vmem:[#allocation11 + $0xd8] sm:$0xff]
    %v1013 = vld [vmem:[#allocation11 + $0xe0] sm:$0xff]
    %v1014 = vld [vmem:[#allocation11 + $0xe8] sm:$0xff]
    %v1015 = vld [vmem:[#allocation11 + $0xf0] sm:$0xff]
    %v1016 = vld [vmem:[#allocation11 + $0xf8] sm:$0xff]
    %v1017 = vld [vmem:[#allocation11 + $0x100] sm:$0xff]
    %v1018 = vld [vmem:[#allocation11 + $0x108] sm:$0xff]
    %v1019 = vld [vmem:[#allocation11 + $0x110] sm:$0xff]
    %v1020 = vld [vmem:[#allocation11 + $0x118] sm:$0xff]
    %v1021 = vld [vmem:[#allocation11 + $0x120] sm:$0xff]
    %v1022 = vld [vmem:[#allocation11 + $0x128] sm:$0xff]
    %v1023 = vld [vmem:[#allocation11 + $0x130] sm:$0xff]
    %v1024 = vld [vmem:[#allocation11 + $0x138] sm:$0xff]
    %v1025 = vld [vmem:[#allocation11 + $0x140] sm:$0xff]
    %v1026 = vld [vmem:[#allocation11 + $0x148] sm:$0xff]
    %v1027 = vld [vmem:[#allocation11 + $0x150] sm:$0xff]
    %v1028 = vld [vmem:[#allocation11 + $0x158] sm:$0xff]
    %v1029 = vld [vmem:[#allocation11 + $0x160] sm:$0xff]
    %v1030 = vld [vmem:[#allocation11 + $0x168] sm:$0xff]
    %v1031 = vld [vmem:[#allocation11 + $0x170] sm:$0xff]
    %v1032 = vld [vmem:[#allocation11 + $0x178] sm:$0xff]
    %v1033 = vld [vmem:[#allocation11 + $0x180] sm:$0xff]
    %v1034 = vld [vmem:[#allocation11 + $0x188] sm:$0xff]
    %v1035 = vld [vmem:[#allocation11 + $0x190] sm:$0xff]
    %v1036 = vld [vmem:[#allocation11 + $0x198] sm:$0xff]
    %v1037 = vld [vmem:[#allocation11 + $0x1a0] sm:$0xff]
    %v1038 = vld [vmem:[#allocation11 + $0x1a8] sm:$0xff]
    %v1039 = vld [vmem:[#allocation11 + $0x1b0] sm:$0xff]
    %v1040 = vld [vmem:[#allocation11 + $0x1b8] sm:$0xff]
    %v1041 = vld [vmem:[#allocation11 + $0x1c0] sm:$0xff]
    %v1042 = vld [vmem:[#allocation11 + $0x1c8] sm:$0xff]
    %v1043 = vld [vmem:[#allocation11 + $0x1d0] sm:$0xff]
    %v1044 = vld [vmem:[#allocation11 + $0x1d8] sm:$0xff]
    %v1045 = vld [vmem:[#allocation11 + $0x1e0] sm:$0xff]
    %v1046 = vld [vmem:[#allocation11 + $0x1e8] sm:$0xff]
    %v1047 = vld [vmem:[#allocation11 + $0x1f0] sm:$0xff]
    %v1048 = vld [vmem:[#allocation11 + $0x1f8] sm:$0xff]
    %1049 = vmatprep.subr.mxu0 %v986
    %1050 = vmatpush1.msra.mxu0 %v985
    %1051 = vmatprep.subr.mxu0 %v990
    %1052 = vmatpush1.msra.mxu0 %v989
    %1053 = vmatprep.subr.mxu0 %v994
    %1054 = vmatpush1.msra.mxu0 %v993
    %1055 = vmatprep.subr.mxu0 %v998
    %1056 = vmatpush1.msra.mxu0 %v997
    %1057 = vmatprep.subr.mxu0 %v1002
    %1058 = vmatpush1.msra.mxu0 %v1001
    %1059 = vmatprep.subr.mxu0 %v1006
    %1060 = vmatpush1.msra.mxu0 %v1005
    %1061 = vmatprep.subr.mxu0 %v1010
    %1062 = vmatpush1.msra.mxu0 %v1009
    %1063 = vmatprep.subr.mxu0 %v1014
    %1064 = vmatpush1.msra.mxu0 %v1013
    %1065 = vmatprep.subr.mxu0 %v1018
    %1066 = vmatpush1.msra.mxu0 %v1017
    %1067 = vmatprep.subr.mxu0 %v1022
    %1068 = vmatpush1.msra.mxu0 %v1021
    %1069 = vmatprep.subr.mxu0 %v1026
    %1070 = vmatpush1.msra.mxu0 %v1025
    %1071 = vmatprep.subr.mxu0 %v1030
    %1072 = vmatpush1.msra.mxu0 %v1029
    %1073 = vmatprep.subr.mxu0 %v1034
    %1074 = vmatpush1.msra.mxu0 %v1033
    %1075 = vmatprep.subr.mxu0 %v1038
    %1076 = vmatpush1.msra.mxu0 %v1037
    %1077 = vmatprep.subr.mxu0 %v1042
    %1078 = vmatpush1.msra.mxu0 %v1041
    %1079 = vmatprep.subr.mxu0 %v1046
    %1080 = vmatpush1.msra.mxu0 %v1045
    %1081 = vmatprep.subr.mxu0 0.0
    %1082 = vmatpush1.msra.mxu0 0.0
    %1083 = vmatprep.subr.mxu0 0.0
    %1084 = vmatpush1.msra.mxu0 0.0
    %1085 = vmatprep.subr.mxu0 0.0
    %1086 = vmatpush1.msra.mxu0 0.0
    %1087 = vmatprep.subr.mxu0 0.0
    %1088 = vmatpush1.msra.mxu0 0.0
    %1089 = vmatprep.subr.mxu0 0.0
    %1090 = vmatpush1.msra.mxu0 0.0
    %1091 = vmatprep.subr.mxu0 0.0
    %1092 = vmatpush1.msra.mxu0 0.0
    %1093 = vmatprep.subr.mxu0 0.0
    %1094 = vmatpush1.msra.mxu0 0.0
    %1095 = vmatprep.subr.mxu0 0.0
    %1096 = vmatpush1.msra.mxu0 0.0
    %1097 = vmatprep.subr.mxu0 0.0
    %1098 = vmatpush1.msra.mxu0 0.0
    %1099 = vmatprep.subr.mxu0 0.0
    %1100 = vmatpush1.msra.mxu0 0.0
    %1101 = vmatprep.subr.mxu0 0.0
    %1102 = vmatpush1.msra.mxu0 0.0
    %1103 = vmatprep.subr.mxu0 0.0
    %1104 = vmatpush1.msra.mxu0 0.0
    %1105 = vmatprep.subr.mxu0 0.0
    %1106 = vmatpush1.msra.mxu0 0.0
    %1107 = vmatprep.subr.mxu0 0.0
    %1108 = vmatpush1.msra.mxu0 0.0
    %1109 = vmatprep.subr.mxu0 0.0
    %1110 = vmatpush1.msra.mxu0 0.0
    %1111 = vmatprep.subr.mxu0 0.0
    %1112 = vmatpush1.msra.mxu0 0.0
    %1113 = vmatprep.mubr.f32.mxu0 0.0
    %1114 = vmatmul.mubr.f32.gmra.mrb[0].mxu0 %v984
    %v1115 = vpop.f32.mrb[0].mxu0
    %v1116 = vadd.f32 0.0, %v1115
    %v1117 = vpop.f32.mrb[0].mxu0
    %v1118 = vadd.f32 0.0, %v1117
    %1119 = vdwg.mxu0
    %1120 = vmatprep.subr.mxu0 %v988
    %1121 = vmatpush1.msra.mxu0 %v987
    %1122 = vmatprep.subr.mxu0 %v992
    %1123 = vmatpush1.msra.mxu0 %v991
    %1124 = vmatprep.subr.mxu0 %v996
    %1125 = vmatpush1.msra.mxu0 %v995
    %1126 = vmatprep.subr.mxu0 %v1000
    %1127 = vmatpush1.msra.mxu0 %v999
    %1128 = vmatprep.subr.mxu0 %v1004
    %1129 = vmatpush1.msra.mxu0 %v1003
    %1130 = vmatprep.subr.mxu0 %v1008
    %1131 = vmatpush1.msra.mxu0 %v1007
    %1132 = vmatprep.subr.mxu0 %v1012
    %1133 = vmatpush1.msra.mxu0 %v1011
    %1134 = vmatprep.subr.mxu0 %v1016
    %1135 = vmatpush1.msra.mxu0 %v1015
    %1136 = vmatprep.subr.mxu0 %v1020
    %1137 = vmatpush1.msra.mxu0 %v1019
    %1138 = vmatprep.subr.mxu0 %v1024
    %1139 = vmatpush1.msra.mxu0 %v1023
    %1140 = vmatprep.subr.mxu0 %v1028
    %1141 = vmatpush1.msra.mxu0 %v1027
    %1142 = vmatprep.subr.mxu0 %v1032
    %1143 = vmatpush1.msra.mxu0 %v1031
    %1144 = vmatprep.subr.mxu0 %v1036
    %1145 = vmatpush1.msra.mxu0 %v1035
    %1146 = vmatprep.subr.mxu0 %v1040
    %1147 = vmatpush1.msra.mxu0 %v1039
    %1148 = vmatprep.subr.mxu0 %v1044
    %1149 = vmatpush1.msra.mxu0 %v1043
    %1150 = vmatprep.subr.mxu0 %v1048
    %1151 = vmatpush1.msra.mxu0 %v1047
    %1152 = vmatprep.subr.mxu0 0.0
    %1153 = vmatpush1.msra.mxu0 0.0
    %1154 = vmatprep.subr.mxu0 0.0
    %1155 = vmatpush1.msra.mxu0 0.0
    %1156 = vmatprep.subr.mxu0 0.0
    %1157 = vmatpush1.msra.mxu0 0.0
    %1158 = vmatprep.subr.mxu0 0.0
    %1159 = vmatpush1.msra.mxu0 0.0
    %1160 = vmatprep.subr.mxu0 0.0
    %1161 = vmatpush1.msra.mxu0 0.0
    %1162 = vmatprep.subr.mxu0 0.0
    %1163 = vmatpush1.msra.mxu0 0.0
    %1164 = vmatprep.subr.mxu0 0.0
    %1165 = vmatpush1.msra.mxu0 0.0
    %1166 = vmatprep.subr.mxu0 0.0
    %1167 = vmatpush1.msra.mxu0 0.0
    %1168 = vmatprep.subr.mxu0 0.0
    %1169 = vmatpush1.msra.mxu0 0.0
    %1170 = vmatprep.subr.mxu0 0.0
    %1171 = vmatpush1.msra.mxu0 0.0
    %1172 = vmatprep.subr.mxu0 0.0
    %1173 = vmatpush1.msra.mxu0 0.0
    %1174 = vmatprep.subr.mxu0 0.0
    %1175 = vmatpush1.msra.mxu0 0.0
    %1176 = vmatprep.subr.mxu0 0.0
    %1177 = vmatpush1.msra.mxu0 0.0
    %1178 = vmatprep.subr.mxu0 0.0
    %1179 = vmatpush1.msra.mxu0 0.0
    %1180 = vmatprep.subr.mxu0 0.0
    %1181 = vmatpush1.msra.mxu0 0.0
    %1182 = vmatprep.subr.mxu0 0.0
    %1183 = vmatpush1.msra.mxu0 0.0
    %1184 = vmatprep.mubr.f32.mxu0 0.0
    %1185 = vmatmul.mubr.f32.gmra.mrb[0].mxu0 %v984
    %v1186 = vpop.f32.mrb[0].mxu0
    %v1187 = vadd.f32 0.0, %v1186
    %v1188 = vpop.f32.mrb[0].mxu0
    %v1189 = vadd.f32 0.0, %v1188
    %1190 = vdwg.mxu0
    %v1191 = vadd.f32 %v980, %v1116
    %v1192 = vadd.f32 %v981, %v1118
    %v1193 = vadd.f32 %v982, %v1187
    %v1194 = vadd.f32 %v983, %v1189
    %v1195 = vxor.u32 %v1191, 2147483648
    %v1196 = vmul.f32 %v1195, 1.442695
    %v1197 = vpow.pop %v1196
    %v1198 = vadd.f32 %v1197, 1.0
    %v1199 = vrcp.pop %v1198
    %v1200 = vmul.f32 1.0, %v1199
    %v1201 = vxor.u32 %v1192, 2147483648
    %v1202 = vmul.f32 %v1201, 1.442695
    %v1203 = vpow.pop %v1202
    %v1204 = vadd.f32 %v1203, 1.0
    %v1205 = vrcp.pop %v1204
    %v1206 = vmul.f32 1.0, %v1205
    %v1207 = vtanh.pop %v1193
    %v1208 = vxor.u32 %v1194, 2147483648
    %v1209 = vmul.f32 %v1208, 1.442695
    %v1210 = vpow.pop %v1209
    %v1211 = vadd.f32 %v1210, 1.0
    %v1212 = vrcp.pop %v1211
    %v1213 = vmul.f32 1.0, %v1212
    %v1214 = vld [vmem:[#allocation5] sm:$0xff]
    %v1215 = vmul.f32 %v1206, %v1214
    %v1216 = vmul.f32 %v1200, %v1207
    %v1217 = vadd.f32 %v1215, %v1216
    %v1218 = vtanh.pop %v1217
    %v1219 = vmul.f32 %v1213, %v1218
    %1220 = vst [vmem:[#allocation5] sm:$0xff] %v1217
    %1221 = vst [vmem:[#allocation4] sm:$0xff] %v1219
    %s1222 = scalar_lea.vmem [#allocation2], 16
    %1223 = vst [vmem:[%s1222] sm:$0xff] %v1219
    %s1224 = scalar_lea.vmem [#allocation3], 96
    %v1225 = vld [vmem:[%s1224] sm:$0xff]
    %v1226 = vld [vmem:[%s1224 + $0x8] sm:$0xff]
    %v1227 = vld [vmem:[%s1224 + $0x10] sm:$0xff]
    %v1228 = vld [vmem:[%s1224 + $0x18] sm:$0xff]
    %v1229 = vld [vmem:[#allocation4] sm:$0xff]
    %v1230 = vld [vmem:[#allocation11] sm:$0xff]
    %v1231 = vld [vmem:[#allocation11 + $0x8] sm:$0xff]
    %v1232 = vld [vmem:[#allocation11 + $0x10] sm:$0xff]
    %v1233 = vld [vmem:[#allocation11 + $0x18] sm:$0xff]
    %v1234 = vld [vmem:[#allocation11 + $0x20] sm:$0xff]
    %v1235 = vld [vmem:[#allocation11 + $0x28] sm:$0xff]
    %v1236 = vld [vmem:[#allocation11 + $0x30] sm:$0xff]
    %v1237 = vld [vmem:[#allocation11 + $0x38] sm:$0xff]
    %v1238 = vld [vmem:[#allocation11 + $0x40] sm:$0xff]
    %v1239 = vld [vmem:[#allocation11 + $0x48] sm:$0xff]
    %v1240 = vld [vmem:[#allocation11 + $0x50] sm:$0xff]
    %v1241 = vld [vmem:[#allocation11 + $0x58] sm:$0xff]
    %v1242 = vld [vmem:[#allocation11 + $0x60] sm:$0xff]
    %v1243 = vld [vmem:[#allocation11 + $0x68] sm:$0xff]
    %v1244 = vld [vmem:[#allocation11 + $0x70] sm:$0xff]
    %v1245 = vld [vmem:[#allocation11 + $0x78] sm:$0xff]
    %v1246 = vld [vmem:[#allocation11 + $0x80] sm:$0xff]
    %v1247 = vld [vmem:[#allocation11 + $0x88] sm:$0xff]
    %v1248 = vld [vmem:[#allocation11 + $0x90] sm:$0xff]
    %v1249 = vld [vmem:[#allocation11 + $0x98] sm:$0xff]
    %v1250 = vld [vmem:[#allocation11 + $0xa0] sm:$0xff]
    %v1251 = vld [vmem:[#allocation11 + $0xa8] sm:$0xff]
    %v1252 = vld [vmem:[#allocation11 + $0xb0] sm:$0xff]
    %v1253 = vld [vmem:[#allocation11 + $0xb8] sm:$0xff]
    %v1254 = vld [vmem:[#allocation11 + $0xc0] sm:$0xff]
    %v1255 = vld [vmem:[#allocation11 + $0xc8] sm:$0xff]
    %v1256 = vld [vmem:[#allocation11 + $0xd0] sm:$0xff]
    %v1257 = vld [vmem:[#allocation11 + $0xd8] sm:$0xff]
    %v1258 = vld [vmem:[#allocation11 + $0xe0] sm:$0xff]
    %v1259 = vld [vmem:[#allocation11 + $0xe8] sm:$0xff]
    %v1260 = vld [vmem:[#allocation11 + $0xf0] sm:$0xff]
    %v1261 = vld [vmem:[#allocation11 + $0xf8] sm:$0xff]
    %v1262 = vld [vmem:[#allocation11 + $0x100] sm:$0xff]
    %v1263 = vld [vmem:[#allocation11 + $0x108] sm:$0xff]
    %v1264 = vld [vmem:[#allocation11 + $0x110] sm:$0xff]
    %v1265 = vld [vmem:[#allocation11 + $0x118] sm:$0xff]
    %v1266 = vld [vmem:[#allocation11 + $0x120] sm:$0xff]
    %v1267 = vld [vmem:[#allocation11 + $0x128] sm:$0xff]
    %v1268 = vld [vmem:[#allocation11 + $0x130] sm:$0xff]
    %v1269 = vld [vmem:[#allocation11 + $0x138] sm:$0xff]
    %v1270 = vld [vmem:[#allocation11 + $0x140] sm:$0xff]
    %v1271 = vld [vmem:[#allocation11 + $0x148] sm:$0xff]
    %v1272 = vld [vmem:[#allocation11 + $0x150] sm:$0xff]
    %v1273 = vld [vmem:[#allocation11 + $0x158] sm:$0xff]
    %v1274 = vld [vmem:[#allocation11 + $0x160] sm:$0xff]
    %v1275 = vld [vmem:[#allocation11 + $0x168] sm:$0xff]
    %v1276 = vld [vmem:[#allocation11 + $0x170] sm:$0xff]
    %v1277 = vld [vmem:[#allocation11 + $0x178] sm:$0xff]
    %v1278 = vld [vmem:[#allocation11 + $0x180] sm:$0xff]
    %v1279 = vld [vmem:[#allocation11 + $0x188] sm:$0xff]
    %v1280 = vld [vmem:[#allocation11 + $0x190] sm:$0xff]
    %v1281 = vld [vmem:[#allocation11 + $0x198] sm:$0xff]
    %v1282 = vld [vmem:[#allocation11 + $0x1a0] sm:$0xff]
    %v1283 = vld [vmem:[#allocation11 + $0x1a8] sm:$0xff]
    %v1284 = vld [vmem:[#allocation11 + $0x1b0] sm:$0xff]
    %v1285 = vld [vmem:[#allocation11 + $0x1b8] sm:$0xff]
    %v1286 = vld [vmem:[#allocation11 + $0x1c0] sm:$0xff]
    %v1287 = vld [vmem:[#allocation11 + $0x1c8] sm:$0xff]
    %v1288 = vld [vmem:[#allocation11 + $0x1d0] sm:$0xff]
    %v1289 = vld [vmem:[#allocation11 + $0x1d8] sm:$0xff]
    %v1290 = vld [vmem:[#allocation11 + $0x1e0] sm:$0xff]
    %v1291 = vld [vmem:[#allocation11 + $0x1e8] sm:$0xff]
    %v1292 = vld [vmem:[#allocation11 + $0x1f0] sm:$0xff]
    %v1293 = vld [vmem:[#allocation11 + $0x1f8] sm:$0xff]
    %1294 = vmatprep.subr.mxu0 %v1231
    %1295 = vmatpush1.msra.mxu0 %v1230
    %1296 = vmatprep.subr.mxu0 %v1235
    %1297 = vmatpush1.msra.mxu0 %v1234
    %1298 = vmatprep.subr.mxu0 %v1239
    %1299 = vmatpush1.msra.mxu0 %v1238
    %1300 = vmatprep.subr.mxu0 %v1243
    %1301 = vmatpush1.msra.mxu0 %v1242
    %1302 = vmatprep.subr.mxu0 %v1247
    %1303 = vmatpush1.msra.mxu0 %v1246
    %1304 = vmatprep.subr.mxu0 %v1251
    %1305 = vmatpush1.msra.mxu0 %v1250
    %1306 = vmatprep.subr.mxu0 %v1255
    %1307 = vmatpush1.msra.mxu0 %v1254
    %1308 = vmatprep.subr.mxu0 %v1259
    %1309 = vmatpush1.msra.mxu0 %v1258
    %1310 = vmatprep.subr.mxu0 %v1263
    %1311 = vmatpush1.msra.mxu0 %v1262
    %1312 = vmatprep.subr.mxu0 %v1267
    %1313 = vmatpush1.msra.mxu0 %v1266
    %1314 = vmatprep.subr.mxu0 %v1271
    %1315 = vmatpush1.msra.mxu0 %v1270
    %1316 = vmatprep.subr.mxu0 %v1275
    %1317 = vmatpush1.msra.mxu0 %v1274
    %1318 = vmatprep.subr.mxu0 %v1279
    %1319 = vmatpush1.msra.mxu0 %v1278
    %1320 = vmatprep.subr.mxu0 %v1283
    %1321 = vmatpush1.msra.mxu0 %v1282
    %1322 = vmatprep.subr.mxu0 %v1287
    %1323 = vmatpush1.msra.mxu0 %v1286
    %1324 = vmatprep.subr.mxu0 %v1291
    %1325 = vmatpush1.msra.mxu0 %v1290
    %1326 = vmatprep.subr.mxu0 0.0
    %1327 = vmatpush1.msra.mxu0 0.0
    %1328 = vmatprep.subr.mxu0 0.0
    %1329 = vmatpush1.msra.mxu0 0.0
    %1330 = vmatprep.subr.mxu0 0.0
    %1331 = vmatpush1.msra.mxu0 0.0
    %1332 = vmatprep.subr.mxu0 0.0
    %1333 = vmatpush1.msra.mxu0 0.0
    %1334 = vmatprep.subr.mxu0 0.0
    %1335 = vmatpush1.msra.mxu0 0.0
    %1336 = vmatprep.subr.mxu0 0.0
    %1337 = vmatpush1.msra.mxu0 0.0
    %1338 = vmatprep.subr.mxu0 0.0
    %1339 = vmatpush1.msra.mxu0 0.0
    %1340 = vmatprep.subr.mxu0 0.0
    %1341 = vmatpush1.msra.mxu0 0.0
    %1342 = vmatprep.subr.mxu0 0.0
    %1343 = vmatpush1.msra.mxu0 0.0
    %1344 = vmatprep.subr.mxu0 0.0
    %1345 = vmatpush1.msra.mxu0 0.0
    %1346 = vmatprep.subr.mxu0 0.0
    %1347 = vmatpush1.msra.mxu0 0.0
    %1348 = vmatprep.subr.mxu0 0.0
    %1349 = vmatpush1.msra.mxu0 0.0
    %1350 = vmatprep.subr.mxu0 0.0
    %1351 = vmatpush1.msra.mxu0 0.0
    %1352 = vmatprep.subr.mxu0 0.0
    %1353 = vmatpush1.msra.mxu0 0.0
    %1354 = vmatprep.subr.mxu0 0.0
    %1355 = vmatpush1.msra.mxu0 0.0
    %1356 = vmatprep.subr.mxu0 0.0
    %1357 = vmatpush1.msra.mxu0 0.0
    %1358 = vmatprep.mubr.f32.mxu0 0.0
    %1359 = vmatmul.mubr.f32.gmra.mrb[0].mxu0 %v1229
    %v1360 = vpop.f32.mrb[0].mxu0
    %v1361 = vadd.f32 0.0, %v1360
    %v1362 = vpop.f32.mrb[0].mxu0
    %v1363 = vadd.f32 0.0, %v1362
    %1364 = vdwg.mxu0
    %1365 = vmatprep.subr.mxu0 %v1233
    %1366 = vmatpush1.msra.mxu0 %v1232
    %1367 = vmatprep.subr.mxu0 %v1237
    %1368 = vmatpush1.msra.mxu0 %v1236
    %1369 = vmatprep.subr.mxu0 %v1241
    %1370 = vmatpush1.msra.mxu0 %v1240
    %1371 = vmatprep.subr.mxu0 %v1245
    %1372 = vmatpush1.msra.mxu0 %v1244
    %1373 = vmatprep.subr.mxu0 %v1249
    %1374 = vmatpush1.msra.mxu0 %v1248
    %1375 = vmatprep.subr.mxu0 %v1253
    %1376 = vmatpush1.msra.mxu0 %v1252
    %1377 = vmatprep.subr.mxu0 %v1257
    %1378 = vmatpush1.msra.mxu0 %v1256
    %1379 = vmatprep.subr.mxu0 %v1261
    %1380 = vmatpush1.msra.mxu0 %v1260
    %1381 = vmatprep.subr.mxu0 %v1265
    %1382 = vmatpush1.msra.mxu0 %v1264
    %1383 = vmatprep.subr.mxu0 %v1269
    %1384 = vmatpush1.msra.mxu0 %v1268
    %1385 = vmatprep.subr.mxu0 %v1273
    %1386 = vmatpush1.msra.mxu0 %v1272
    %1387 = vmatprep.subr.mxu0 %v1277
    %1388 = vmatpush1.msra.mxu0 %v1276
    %1389 = vmatprep.subr.mxu0 %v1281
    %1390 = vmatpush1.msra.mxu0 %v1280
    %1391 = vmatprep.subr.mxu0 %v1285
    %1392 = vmatpush1.msra.mxu0 %v1284
    %1393 = vmatprep.subr.mxu0 %v1289
    %1394 = vmatpush1.msra.mxu0 %v1288
    %1395 = vmatprep.subr.mxu0 %v1293
    %1396 = vmatpush1.msra.mxu0 %v1292
    %1397 = vmatprep.subr.mxu0 0.0
    %1398 = vmatpush1.msra.mxu0 0.0
    %1399 = vmatprep.subr.mxu0 0.0
    %1400 = vmatpush1.msra.mxu0 0.0
    %1401 = vmatprep.subr.mxu0 0.0
    %1402 = vmatpush1.msra.mxu0 0.0
    %1403 = vmatprep.subr.mxu0 0.0
    %1404 = vmatpush1.msra.mxu0 0.0
    %1405 = vmatprep.subr.mxu0 0.0
    %1406 = vmatpush1.msra.mxu0 0.0
    %1407 = vmatprep.subr.mxu0 0.0
    %1408 = vmatpush1.msra.mxu0 0.0
    %1409 = vmatprep.subr.mxu0 0.0
    %1410 = vmatpush1.msra.mxu0 0.0
    %1411 = vmatprep.subr.mxu0 0.0
    %1412 = vmatpush1.msra.mxu0 0.0
    %1413 = vmatprep.subr.mxu0 0.0
    %1414 = vmatpush1.msra.mxu0 0.0
    %1415 = vmatprep.subr.mxu0 0.0
    %1416 = vmatpush1.msra.mxu0 0.0
    %1417 = vmatprep.subr.mxu0 0.0
    %1418 = vmatpush1.msra.mxu0 0.0
    %1419 = vmatprep.subr.mxu0 0.0
    %1420 = vmatpush1.msra.mxu0 0.0
    %1421 = vmatprep.subr.mxu0 0.0
    %1422 = vmatpush1.msra.mxu0 0.0
    %1423 = vmatprep.subr.mxu0 0.0
    %1424 = vmatpush1.msra.mxu0 0.0
    %1425 = vmatprep.subr.mxu0 0.0
    %1426 = vmatpush1.msra.mxu0 0.0
    %1427 = vmatprep.subr.mxu0 0.0
    %1428 = vmatpush1.msra.mxu0 0.0
    %1429 = vmatprep.mubr.f32.mxu0 0.0
    %1430 = vmatmul.mubr.f32.gmra.mrb[0].mxu0 %v1229
    %v1431 = vpop.f32.mrb[0].mxu0
    %v1432 = vadd.f32 0.0, %v1431
    %v1433 = vpop.f32.mrb[0].mxu0
    %v1434 = vadd.f32 0.0, %v1433
    %1435 = vdwg.mxu0
    %v1436 = vadd.f32 %v1225, %v1361
    %v1437 = vadd.f32 %v1226, %v1363
    %v1438 = vadd.f32 %v1227, %v1432
    %v1439 = vadd.f32 %v1228, %v1434
    %v1440 = vxor.u32 %v1436, 2147483648
    %v1441 = vmul.f32 %v1440, 1.442695
    %v1442 = vpow.pop %v1441
    %v1443 = vadd.f32 %v1442, 1.0
    %v1444 = vrcp.pop %v1443
    %v1445 = vmul.f32 1.0, %v1444
    %v1446 = vxor.u32 %v1437, 2147483648
    %v1447 = vmul.f32 %v1446, 1.442695
    %v1448 = vpow.pop %v1447
    %v1449 = vadd.f32 %v1448, 1.0
    %v1450 = vrcp.pop %v1449
    %v1451 = vmul.f32 1.0, %v1450
    %v1452 = vtanh.pop %v1438
    %v1453 = vxor.u32 %v1439, 2147483648
    %v1454 = vmul.f32 %v1453, 1.442695
    %v1455 = vpow.pop %v1454
    %v1456 = vadd.f32 %v1455, 1.0
    %v1457 = vrcp.pop %v1456
    %v1458 = vmul.f32 1.0, %v1457
    %v1459 = vld [vmem:[#allocation5] sm:$0xff]
    %v1460 = vmul.f32 %v1451, %v1459
    %v1461 = vmul.f32 %v1445, %v1452
    %v1462 = vadd.f32 %v1460, %v1461
    %v1463 = vtanh.pop %v1462
    %v1464 = vmul.f32 %v1458, %v1463
    %1465 = vst [vmem:[#allocation5] sm:$0xff] %v1462
    %1466 = vst [vmem:[#allocation4] sm:$0xff] %v1464
    %s1467 = scalar_lea.vmem [#allocation2], 24
    %1468 = vst [vmem:[%s1467] sm:$0xff] %v1464
    %s1469 = scalar_lea.vmem [#allocation3], 128
    %v1470 = vld [vmem:[%s1469] sm:$0xff]
    %v1471 = vld [vmem:[%s1469 + $0x8] sm:$0xff]
    %v1472 = vld [vmem:[%s1469 + $0x10] sm:$0xff]
    %v1473 = vld [vmem:[%s1469 + $0x18] sm:$0xff]
    %v1474 = vld [vmem:[#allocation4] sm:$0xff]
    %v1475 = vld [vmem:[#allocation11] sm:$0xff]
    %v1476 = vld [vmem:[#allocation11 + $0x8] sm:$0xff]
    %v1477 = vld [vmem:[#allocation11 + $0x10] sm:$0xff]
    %v1478 = vld [vmem:[#allocation11 + $0x18] sm:$0xff]
    %v1479 = vld [vmem:[#allocation11 + $0x20] sm:$0xff]
    %v1480 = vld [vmem:[#allocation11 + $0x28] sm:$0xff]
    %v1481 = vld [vmem:[#allocation11 + $0x30] sm:$0xff]
    %v1482 = vld [vmem:[#allocation11 + $0x38] sm:$0xff]
    %v1483 = vld [vmem:[#allocation11 + $0x40] sm:$0xff]
    %v1484 = vld [vmem:[#allocation11 + $0x48] sm:$0xff]
    %v1485 = vld [vmem:[#allocation11 + $0x50] sm:$0xff]
    %v1486 = vld [vmem:[#allocation11 + $0x58] sm:$0xff]
    %v1487 = vld [vmem:[#allocation11 + $0x60] sm:$0xff]
    %v1488 = vld [vmem:[#allocation11 + $0x68] sm:$0xff]
    %v1489 = vld [vmem:[#allocation11 + $0x70] sm:$0xff]
    %v1490 = vld [vmem:[#allocation11 + $0x78] sm:$0xff]
    %v1491 = vld [vmem:[#allocation11 + $0x80] sm:$0xff]
    %v1492 = vld [vmem:[#allocation11 + $0x88] sm:$0xff]
    %v1493 = vld [vmem:[#allocation11 + $0x90] sm:$0xff]
    %v1494 = vld [vmem:[#allocation11 + $0x98] sm:$0xff]
    %v1495 = vld [vmem:[#allocation11 + $0xa0] sm:$0xff]
    %v1496 = vld [vmem:[#allocation11 + $0xa8] sm:$0xff]
    %v1497 = vld [vmem:[#allocation11 + $0xb0] sm:$0xff]
    %v1498 = vld [vmem:[#allocation11 + $0xb8] sm:$0xff]
    %v1499 = vld [vmem:[#allocation11 + $0xc0] sm:$0xff]
    %v1500 = vld [vmem:[#allocation11 + $0xc8] sm:$0xff]
    %v1501 = vld [vmem:[#allocation11 + $0xd0] sm:$0xff]
    %v1502 = vld [vmem:[#allocation11 + $0xd8] sm:$0xff]
    %v1503 = vld [vmem:[#allocation11 + $0xe0] sm:$0xff]
    %v1504 = vld [vmem:[#allocation11 + $0xe8] sm:$0xff]
    %v1505 = vld [vmem:[#allocation11 + $0xf0] sm:$0xff]
    %v1506 = vld [vmem:[#allocation11 + $0xf8] sm:$0xff]
    %v1507 = vld [vmem:[#allocation11 + $0x100] sm:$0xff]
    %v1508 = vld [vmem:[#allocation11 + $0x108] sm:$0xff]
    %v1509 = vld [vmem:[#allocation11 + $0x110] sm:$0xff]
    %v1510 = vld [vmem:[#allocation11 + $0x118] sm:$0xff]
    %v1511 = vld [vmem:[#allocation11 + $0x120] sm:$0xff]
    %v1512 = vld [vmem:[#allocation11 + $0x128] sm:$0xff]
    %v1513 = vld [vmem:[#allocation11 + $0x130] sm:$0xff]
    %v1514 = vld [vmem:[#allocation11 + $0x138] sm:$0xff]
    %v1515 = vld [vmem:[#allocation11 + $0x140] sm:$0xff]
    %v1516 = vld [vmem:[#allocation11 + $0x148] sm:$0xff]
    %v1517 = vld [vmem:[#allocation11 + $0x150] sm:$0xff]
    %v1518 = vld [vmem:[#allocation11 + $0x158] sm:$0xff]
    %v1519 = vld [vmem:[#allocation11 + $0x160] sm:$0xff]
    %v1520 = vld [vmem:[#allocation11 + $0x168] sm:$0xff]
    %v1521 = vld [vmem:[#allocation11 + $0x170] sm:$0xff]
    %v1522 = vld [vmem:[#allocation11 + $0x178] sm:$0xff]
    %v1523 = vld [vmem:[#allocation11 + $0x180] sm:$0xff]
    %v1524 = vld [vmem:[#allocation11 + $0x188] sm:$0xff]
    %v1525 = vld [vmem:[#allocation11 + $0x190] sm:$0xff]
    %v1526 = vld [vmem:[#allocation11 + $0x198] sm:$0xff]
    %v1527 = vld [vmem:[#allocation11 + $0x1a0] sm:$0xff]
    %v1528 = vld [vmem:[#allocation11 + $0x1a8] sm:$0xff]
    %v1529 = vld [vmem:[#allocation11 + $0x1b0] sm:$0xff]
    %v1530 = vld [vmem:[#allocation11 + $0x1b8] sm:$0xff]
    %v1531 = vld [vmem:[#allocation11 + $0x1c0] sm:$0xff]
    %v1532 = vld [vmem:[#allocation11 + $0x1c8] sm:$0xff]
    %v1533 = vld [vmem:[#allocation11 + $0x1d0] sm:$0xff]
    %v1534 = vld [vmem:[#allocation11 + $0x1d8] sm:$0xff]
    %v1535 = vld [vmem:[#allocation11 + $0x1e0] sm:$0xff]
    %v1536 = vld [vmem:[#allocation11 + $0x1e8] sm:$0xff]
    %v1537 = vld [vmem:[#allocation11 + $0x1f0] sm:$0xff]
    %v1538 = vld [vmem:[#allocation11 + $0x1f8] sm:$0xff]
    %1539 = vmatprep.subr.mxu0 %v1476
    %1540 = vmatpush1.msra.mxu0 %v1475
    %1541 = vmatprep.subr.mxu0 %v1480
    %1542 = vmatpush1.msra.mxu0 %v1479
    %1543 = vmatprep.subr.mxu0 %v1484
    %1544 = vmatpush1.msra.mxu0 %v1483
    %1545 = vmatprep.subr.mxu0 %v1488
    %1546 = vmatpush1.msra.mxu0 %v1487
    %1547 = vmatprep.subr.mxu0 %v1492
    %1548 = vmatpush1.msra.mxu0 %v1491
    %1549 = vmatprep.subr.mxu0 %v1496
    %1550 = vmatpush1.msra.mxu0 %v1495
    %1551 = vmatprep.subr.mxu0 %v1500
    %1552 = vmatpush1.msra.mxu0 %v1499
    %1553 = vmatprep.subr.mxu0 %v1504
    %1554 = vmatpush1.msra.mxu0 %v1503
    %1555 = vmatprep.subr.mxu0 %v1508
    %1556 = vmatpush1.msra.mxu0 %v1507
    %1557 = vmatprep.subr.mxu0 %v1512
    %1558 = vmatpush1.msra.mxu0 %v1511
    %1559 = vmatprep.subr.mxu0 %v1516
    %1560 = vmatpush1.msra.mxu0 %v1515
    %1561 = vmatprep.subr.mxu0 %v1520
    %1562 = vmatpush1.msra.mxu0 %v1519
    %1563 = vmatprep.subr.mxu0 %v1524
    %1564 = vmatpush1.msra.mxu0 %v1523
    %1565 = vmatprep.subr.mxu0 %v1528
    %1566 = vmatpush1.msra.mxu0 %v1527
    %1567 = vmatprep.subr.mxu0 %v1532
    %1568 = vmatpush1.msra.mxu0 %v1531
    %1569 = vmatprep.subr.mxu0 %v1536
    %1570 = vmatpush1.msra.mxu0 %v1535
    %1571 = vmatprep.subr.mxu0 0.0
    %1572 = vmatpush1.msra.mxu0 0.0
    %1573 = vmatprep.subr.mxu0 0.0
    %1574 = vmatpush1.msra.mxu0 0.0
    %1575 = vmatprep.subr.mxu0 0.0
    %1576 = vmatpush1.msra.mxu0 0.0
    %1577 = vmatprep.subr.mxu0 0.0
    %1578 = vmatpush1.msra.mxu0 0.0
    %1579 = vmatprep.subr.mxu0 0.0
    %1580 = vmatpush1.msra.mxu0 0.0
    %1581 = vmatprep.subr.mxu0 0.0
    %1582 = vmatpush1.msra.mxu0 0.0
    %1583 = vmatprep.subr.mxu0 0.0
    %1584 = vmatpush1.msra.mxu0 0.0
    %1585 = vmatprep.subr.mxu0 0.0
    %1586 = vmatpush1.msra.mxu0 0.0
    %1587 = vmatprep.subr.mxu0 0.0
    %1588 = vmatpush1.msra.mxu0 0.0
    %1589 = vmatprep.subr.mxu0 0.0
    %1590 = vmatpush1.msra.mxu0 0.0
    %1591 = vmatprep.subr.mxu0 0.0
    %1592 = vmatpush1.msra.mxu0 0.0
    %1593 = vmatprep.subr.mxu0 0.0
    %1594 = vmatpush1.msra.mxu0 0.0
    %1595 = vmatprep.subr.mxu0 0.0
    %1596 = vmatpush1.msra.mxu0 0.0
    %1597 = vmatprep.subr.mxu0 0.0
    %1598 = vmatpush1.msra.mxu0 0.0
    %1599 = vmatprep.subr.mxu0 0.0
    %1600 = vmatpush1.msra.mxu0 0.0
    %1601 = vmatprep.subr.mxu0 0.0
    %1602 = vmatpush1.msra.mxu0 0.0
    %1603 = vmatprep.mubr.f32.mxu0 0.0
    %1604 = vmatmul.mubr.f32.gmra.mrb[0].mxu0 %v1474
    %v1605 = vpop.f32.mrb[0].mxu0
    %v1606 = vadd.f32 0.0, %v1605
    %v1607 = vpop.f32.mrb[0].mxu0
    %v1608 = vadd.f32 0.0, %v1607
    %1609 = vdwg.mxu0
    %1610 = vmatprep.subr.mxu0 %v1478
    %1611 = vmatpush1.msra.mxu0 %v1477
    %1612 = vmatprep.subr.mxu0 %v1482
    %1613 = vmatpush1.msra.mxu0 %v1481
    %1614 = vmatprep.subr.mxu0 %v1486
    %1615 = vmatpush1.msra.mxu0 %v1485
    %1616 = vmatprep.subr.mxu0 %v1490
    %1617 = vmatpush1.msra.mxu0 %v1489
    %1618 = vmatprep.subr.mxu0 %v1494
    %1619 = vmatpush1.msra.mxu0 %v1493
    %1620 = vmatprep.subr.mxu0 %v1498
    %1621 = vmatpush1.msra.mxu0 %v1497
    %1622 = vmatprep.subr.mxu0 %v1502
    %1623 = vmatpush1.msra.mxu0 %v1501
    %1624 = vmatprep.subr.mxu0 %v1506
    %1625 = vmatpush1.msra.mxu0 %v1505
    %1626 = vmatprep.subr.mxu0 %v1510
    %1627 = vmatpush1.msra.mxu0 %v1509
    %1628 = vmatprep.subr.mxu0 %v1514
    %1629 = vmatpush1.msra.mxu0 %v1513
    %1630 = vmatprep.subr.mxu0 %v1518
    %1631 = vmatpush1.msra.mxu0 %v1517
    %1632 = vmatprep.subr.mxu0 %v1522
    %1633 = vmatpush1.msra.mxu0 %v1521
    %1634 = vmatprep.subr.mxu0 %v1526
    %1635 = vmatpush1.msra.mxu0 %v1525
    %1636 = vmatprep.subr.mxu0 %v1530
    %1637 = vmatpush1.msra.mxu0 %v1529
    %1638 = vmatprep.subr.mxu0 %v1534
    %1639 = vmatpush1.msra.mxu0 %v1533
    %1640 = vmatprep.subr.mxu0 %v1538
    %1641 = vmatpush1.msra.mxu0 %v1537
    %1642 = vmatprep.subr.mxu0 0.0
    %1643 = vmatpush1.msra.mxu0 0.0
    %1644 = vmatprep.subr.mxu0 0.0
    %1645 = vmatpush1.msra.mxu0 0.0
    %1646 = vmatprep.subr.mxu0 0.0
    %1647 = vmatpush1.msra.mxu0 0.0
    %1648 = vmatprep.subr.mxu0 0.0
    %1649 = vmatpush1.msra.mxu0 0.0
    %1650 = vmatprep.subr.mxu0 0.0
    %1651 = vmatpush1.msra.mxu0 0.0
    %1652 = vmatprep.subr.mxu0 0.0
    %1653 = vmatpush1.msra.mxu0 0.0
    %1654 = vmatprep.subr.mxu0 0.0
    %1655 = vmatpush1.msra.mxu0 0.0
    %1656 = vmatprep.subr.mxu0 0.0
    %1657 = vmatpush1.msra.mxu0 0.0
    %1658 = vmatprep.subr.mxu0 0.0
    %1659 = vmatpush1.msra.mxu0 0.0
    %1660 = vmatprep.subr.mxu0 0.0
    %1661 = vmatpush1.msra.mxu0 0.0
    %1662 = vmatprep.subr.mxu0 0.0
    %1663 = vmatpush1.msra.mxu0 0.0
    %1664 = vmatprep.subr.mxu0 0.0
    %1665 = vmatpush1.msra.mxu0 0.0
    %1666 = vmatprep.subr.mxu0 0.0
    %1667 = vmatpush1.msra.mxu0 0.0
    %1668 = vmatprep.subr.mxu0 0.0
    %1669 = vmatpush1.msra.mxu0 0.0
    %1670 = vmatprep.subr.mxu0 0.0
    %1671 = vmatpush1.msra.mxu0 0.0
    %1672 = vmatprep.subr.mxu0 0.0
    %1673 = vmatpush1.msra.mxu0 0.0
    %1674 = vmatprep.mubr.f32.mxu0 0.0
    %1675 = vmatmul.mubr.f32.gmra.mrb[0].mxu0 %v1474
    %v1676 = vpop.f32.mrb[0].mxu0
    %v1677 = vadd.f32 0.0, %v1676
    %v1678 = vpop.f32.mrb[0].mxu0
    %v1679 = vadd.f32 0.0, %v1678
    %1680 = vdwg.mxu0
    %v1681 = vadd.f32 %v1470, %v1606
    %v1682 = vadd.f32 %v1471, %v1608
    %v1683 = vadd.f32 %v1472, %v1677
    %v1684 = vadd.f32 %v1473, %v1679
    %v1685 = vxor.u32 %v1681, 2147483648
    %v1686 = vmul.f32 %v1685, 1.442695
    %v1687 = vpow.pop %v1686
    %v1688 = vadd.f32 %v1687, 1.0
    %v1689 = vrcp.pop %v1688
    %v1690 = vmul.f32 1.0, %v1689
    %v1691 = vxor.u32 %v1682, 2147483648
    %v1692 = vmul.f32 %v1691, 1.442695
    %v1693 = vpow.pop %v1692
    %v1694 = vadd.f32 %v1693, 1.0
    %v1695 = vrcp.pop %v1694
    %v1696 = vmul.f32 1.0, %v1695
    %v1697 = vtanh.pop %v1683
    %v1698 = vxor.u32 %v1684, 2147483648
    %v1699 = vmul.f32 %v1698, 1.442695
    %v1700 = vpow.pop %v1699
    %v1701 = vadd.f32 %v1700, 1.0
    %v1702 = vrcp.pop %v1701
    %v1703 = vmul.f32 1.0, %v1702
    %v1704 = vld [vmem:[#allocation5] sm:$0xff]
    %v1705 = vmul.f32 %v1696, %v1704
    %v1706 = vmul.f32 %v1690, %v1697
    %v1707 = vadd.f32 %v1705, %v1706
    %v1708 = vtanh.pop %v1707
    %v1709 = vmul.f32 %v1703, %v1708
    %1710 = vst [vmem:[#allocation5] sm:$0xff] %v1707
    %1711 = vst [vmem:[#allocation4] sm:$0xff] %v1709
    %s1712 = scalar_lea.vmem [#allocation2], 32
    %1713 = vst [vmem:[%s1712] sm:$0xff] %v1709
    %s1714 = scalar_lea.vmem [#allocation3], 160
    %v1715 = vld [vmem:[%s1714] sm:$0xff]
    %v1716 = vld [vmem:[%s1714 + $0x8] sm:$0xff]
    %v1717 = vld [vmem:[%s1714 + $0x10] sm:$0xff]
    %v1718 = vld [vmem:[%s1714 + $0x18] sm:$0xff]
    %v1719 = vld [vmem:[#allocation4] sm:$0xff]
    %v1720 = vld [vmem:[#allocation11] sm:$0xff]
    %v1721 = vld [vmem:[#allocation11 + $0x8] sm:$0xff]
    %v1722 = vld [vmem:[#allocation11 + $0x10] sm:$0xff]
    %v1723 = vld [vmem:[#allocation11 + $0x18] sm:$0xff]
    %v1724 = vld [vmem:[#allocation11 + $0x20] sm:$0xff]
    %v1725 = vld [vmem:[#allocation11 + $0x28] sm:$0xff]
    %v1726 = vld [vmem:[#allocation11 + $0x30] sm:$0xff]
    %v1727 = vld [vmem:[#allocation11 + $0x38] sm:$0xff]
    %v1728 = vld [vmem:[#allocation11 + $0x40] sm:$0xff]
    %v1729 = vld [vmem:[#allocation11 + $0x48] sm:$0xff]
    %v1730 = vld [vmem:[#allocation11 + $0x50] sm:$0xff]
    %v1731 = vld [vmem:[#allocation11 + $0x58] sm:$0xff]
    %v1732 = vld [vmem:[#allocation11 + $0x60] sm:$0xff]
    %v1733 = vld [vmem:[#allocation11 + $0x68] sm:$0xff]
    %v1734 = vld [vmem:[#allocation11 + $0x70] sm:$0xff]
    %v1735 = vld [vmem:[#allocation11 + $0x78] sm:$0xff]
    %v1736 = vld [vmem:[#allocation11 + $0x80] sm:$0xff]
    %v1737 = vld [vmem:[#allocation11 + $0x88] sm:$0xff]
    %v1738 = vld [vmem:[#allocation11 + $0x90] sm:$0xff]
    %v1739 = vld [vmem:[#allocation11 + $0x98] sm:$0xff]
    %v1740 = vld [vmem:[#allocation11 + $0xa0] sm:$0xff]
    %v1741 = vld [vmem:[#allocation11 + $0xa8] sm:$0xff]
    %v1742 = vld [vmem:[#allocation11 + $0xb0] sm:$0xff]
    %v1743 = vld [vmem:[#allocation11 + $0xb8] sm:$0xff]
    %v1744 = vld [vmem:[#allocation11 + $0xc0] sm:$0xff]
    %v1745 = vld [vmem:[#allocation11 + $0xc8] sm:$0xff]
    %v1746 = vld [vmem:[#allocation11 + $0xd0] sm:$0xff]
    %v1747 = vld [vmem:[#allocation11 + $0xd8] sm:$0xff]
    %v1748 = vld [vmem:[#allocation11 + $0xe0] sm:$0xff]
    %v1749 = vld [vmem:[#allocation11 + $0xe8] sm:$0xff]
    %v1750 = vld [vmem:[#allocation11 + $0xf0] sm:$0xff]
    %v1751 = vld [vmem:[#allocation11 + $0xf8] sm:$0xff]
    %v1752 = vld [vmem:[#allocation11 + $0x100] sm:$0xff]
    %v1753 = vld [vmem:[#allocation11 + $0x108] sm:$0xff]
    %v1754 = vld [vmem:[#allocation11 + $0x110] sm:$0xff]
    %v1755 = vld [vmem:[#allocation11 + $0x118] sm:$0xff]
    %v1756 = vld [vmem:[#allocation11 + $0x120] sm:$0xff]
    %v1757 = vld [vmem:[#allocation11 + $0x128] sm:$0xff]
    %v1758 = vld [vmem:[#allocation11 + $0x130] sm:$0xff]
    %v1759 = vld [vmem:[#allocation11 + $0x138] sm:$0xff]
    %v1760 = vld [vmem:[#allocation11 + $0x140] sm:$0xff]
    %v1761 = vld [vmem:[#allocation11 + $0x148] sm:$0xff]
    %v1762 = vld [vmem:[#allocation11 + $0x150] sm:$0xff]
    %v1763 = vld [vmem:[#allocation11 + $0x158] sm:$0xff]
    %v1764 = vld [vmem:[#allocation11 + $0x160] sm:$0xff]
    %v1765 = vld [vmem:[#allocation11 + $0x168] sm:$0xff]
    %v1766 = vld [vmem:[#allocation11 + $0x170] sm:$0xff]
    %v1767 = vld [vmem:[#allocation11 + $0x178] sm:$0xff]
    %v1768 = vld [vmem:[#allocation11 + $0x180] sm:$0xff]
    %v1769 = vld [vmem:[#allocation11 + $0x188] sm:$0xff]
    %v1770 = vld [vmem:[#allocation11 + $0x190] sm:$0xff]
    %v1771 = vld [vmem:[#allocation11 + $0x198] sm:$0xff]
    %v1772 = vld [vmem:[#allocation11 + $0x1a0] sm:$0xff]
    %v1773 = vld [vmem:[#allocation11 + $0x1a8] sm:$0xff]
    %v1774 = vld [vmem:[#allocation11 + $0x1b0] sm:$0xff]
    %v1775 = vld [vmem:[#allocation11 + $0x1b8] sm:$0xff]
    %v1776 = vld [vmem:[#allocation11 + $0x1c0] sm:$0xff]
    %v1777 = vld [vmem:[#allocation11 + $0x1c8] sm:$0xff]
    %v1778 = vld [vmem:[#allocation11 + $0x1d0] sm:$0xff]
    %v1779 = vld [vmem:[#allocation11 + $0x1d8] sm:$0xff]
    %v1780 = vld [vmem:[#allocation11 + $0x1e0] sm:$0xff]
    %v1781 = vld [vmem:[#allocation11 + $0x1e8] sm:$0xff]
    %v1782 = vld [vmem:[#allocation11 + $0x1f0] sm:$0xff]
    %v1783 = vld [vmem:[#allocation11 + $0x1f8] sm:$0xff]
    %1784 = vmatprep.subr.mxu0 %v1721
    %1785 = vmatpush1.msra.mxu0 %v1720
    %1786 = vmatprep.subr.mxu0 %v1725
    %1787 = vmatpush1.msra.mxu0 %v1724
    %1788 = vmatprep.subr.mxu0 %v1729
    %1789 = vmatpush1.msra.mxu0 %v1728
    %1790 = vmatprep.subr.mxu0 %v1733
    %1791 = vmatpush1.msra.mxu0 %v1732
    %1792 = vmatprep.subr.mxu0 %v1737
    %1793 = vmatpush1.msra.mxu0 %v1736
    %1794 = vmatprep.subr.mxu0 %v1741
    %1795 = vmatpush1.msra.mxu0 %v1740
    %1796 = vmatprep.subr.mxu0 %v1745
    %1797 = vmatpush1.msra.mxu0 %v1744
    %1798 = vmatprep.subr.mxu0 %v1749
    %1799 = vmatpush1.msra.mxu0 %v1748
    %1800 = vmatprep.subr.mxu0 %v1753
    %1801 = vmatpush1.msra.mxu0 %v1752
    %1802 = vmatprep.subr.mxu0 %v1757
    %1803 = vmatpush1.msra.mxu0 %v1756
    %1804 = vmatprep.subr.mxu0 %v1761
    %1805 = vmatpush1.msra.mxu0 %v1760
    %1806 = vmatprep.subr.mxu0 %v1765
    %1807 = vmatpush1.msra.mxu0 %v1764
    %1808 = vmatprep.subr.mxu0 %v1769
    %1809 = vmatpush1.msra.mxu0 %v1768
    %1810 = vmatprep.subr.mxu0 %v1773
    %1811 = vmatpush1.msra.mxu0 %v1772
    %1812 = vmatprep.subr.mxu0 %v1777
    %1813 = vmatpush1.msra.mxu0 %v1776
    %1814 = vmatprep.subr.mxu0 %v1781
    %1815 = vmatpush1.msra.mxu0 %v1780
    %1816 = vmatprep.subr.mxu0 0.0
    %1817 = vmatpush1.msra.mxu0 0.0
    %1818 = vmatprep.subr.mxu0 0.0
    %1819 = vmatpush1.msra.mxu0 0.0
    %1820 = vmatprep.subr.mxu0 0.0
    %1821 = vmatpush1.msra.mxu0 0.0
    %1822 = vmatprep.subr.mxu0 0.0
    %1823 = vmatpush1.msra.mxu0 0.0
    %1824 = vmatprep.subr.mxu0 0.0
    %1825 = vmatpush1.msra.mxu0 0.0
    %1826 = vmatprep.subr.mxu0 0.0
    %1827 = vmatpush1.msra.mxu0 0.0
    %1828 = vmatprep.subr.mxu0 0.0
    %1829 = vmatpush1.msra.mxu0 0.0
    %1830 = vmatprep.subr.mxu0 0.0
    %1831 = vmatpush1.msra.mxu0 0.0
    %1832 = vmatprep.subr.mxu0 0.0
    %1833 = vmatpush1.msra.mxu0 0.0
    %1834 = vmatprep.subr.mxu0 0.0
    %1835 = vmatpush1.msra.mxu0 0.0
    %1836 = vmatprep.subr.mxu0 0.0
    %1837 = vmatpush1.msra.mxu0 0.0
    %1838 = vmatprep.subr.mxu0 0.0
    %1839 = vmatpush1.msra.mxu0 0.0
    %1840 = vmatprep.subr.mxu0 0.0
    %1841 = vmatpush1.msra.mxu0 0.0
    %1842 = vmatprep.subr.mxu0 0.0
    %1843 = vmatpush1.msra.mxu0 0.0
    %1844 = vmatprep.subr.mxu0 0.0
    %1845 = vmatpush1.msra.mxu0 0.0
    %1846 = vmatprep.subr.mxu0 0.0
    %1847 = vmatpush1.msra.mxu0 0.0
    %1848 = vmatprep.mubr.f32.mxu0 0.0
    %1849 = vmatmul.mubr.f32.gmra.mrb[0].mxu0 %v1719
    %v1850 = vpop.f32.mrb[0].mxu0
    %v1851 = vadd.f32 0.0, %v1850
    %v1852 = vpop.f32.mrb[0].mxu0
    %v1853 = vadd.f32 0.0, %v1852
    %1854 = vdwg.mxu0
    %1855 = vmatprep.subr.mxu0 %v1723
    %1856 = vmatpush1.msra.mxu0 %v1722
    %1857 = vmatprep.subr.mxu0 %v1727
    %1858 = vmatpush1.msra.mxu0 %v1726
    %1859 = vmatprep.subr.mxu0 %v1731
    %1860 = vmatpush1.msra.mxu0 %v1730
    %1861 = vmatprep.subr.mxu0 %v1735
    %1862 = vmatpush1.msra.mxu0 %v1734
    %1863 = vmatprep.subr.mxu0 %v1739
    %1864 = vmatpush1.msra.mxu0 %v1738
    %1865 = vmatprep.subr.mxu0 %v1743
    %1866 = vmatpush1.msra.mxu0 %v1742
    %1867 = vmatprep.subr.mxu0 %v1747
    %1868 = vmatpush1.msra.mxu0 %v1746
    %1869 = vmatprep.subr.mxu0 %v1751
    %1870 = vmatpush1.msra.mxu0 %v1750
    %1871 = vmatprep.subr.mxu0 %v1755
    %1872 = vmatpush1.msra.mxu0 %v1754
    %1873 = vmatprep.subr.mxu0 %v1759
    %1874 = vmatpush1.msra.mxu0 %v1758
    %1875 = vmatprep.subr.mxu0 %v1763
    %1876 = vmatpush1.msra.mxu0 %v1762
    %1877 = vmatprep.subr.mxu0 %v1767
    %1878 = vmatpush1.msra.mxu0 %v1766
    %1879 = vmatprep.subr.mxu0 %v1771
    %1880 = vmatpush1.msra.mxu0 %v1770
    %1881 = vmatprep.subr.mxu0 %v1775
    %1882 = vmatpush1.msra.mxu0 %v1774
    %1883 = vmatprep.subr.mxu0 %v1779
    %1884 = vmatpush1.msra.mxu0 %v1778
    %1885 = vmatprep.subr.mxu0 %v1783
    %1886 = vmatpush1.msra.mxu0 %v1782
    %1887 = vmatprep.subr.mxu0 0.0
    %1888 = vmatpush1.msra.mxu0 0.0
    %1889 = vmatprep.subr.mxu0 0.0
    %1890 = vmatpush1.msra.mxu0 0.0
    %1891 = vmatprep.subr.mxu0 0.0
    %1892 = vmatpush1.msra.mxu0 0.0
    %1893 = vmatprep.subr.mxu0 0.0
    %1894 = vmatpush1.msra.mxu0 0.0
    %1895 = vmatprep.subr.mxu0 0.0
    %1896 = vmatpush1.msra.mxu0 0.0
    %1897 = vmatprep.subr.mxu0 0.0
    %1898 = vmatpush1.msra.mxu0 0.0
    %1899 = vmatprep.subr.mxu0 0.0
    %1900 = vmatpush1.msra.mxu0 0.0
    %1901 = vmatprep.subr.mxu0 0.0
    %1902 = vmatpush1.msra.mxu0 0.0
    %1903 = vmatprep.subr.mxu0 0.0
    %1904 = vmatpush1.msra.mxu0 0.0
    %1905 = vmatprep.subr.mxu0 0.0
    %1906 = vmatpush1.msra.mxu0 0.0
    %1907 = vmatprep.subr.mxu0 0.0
    %1908 = vmatpush1.msra.mxu0 0.0
    %1909 = vmatprep.subr.mxu0 0.0
    %1910 = vmatpush1.msra.mxu0 0.0
    %1911 = vmatprep.subr.mxu0 0.0
    %1912 = vmatpush1.msra.mxu0 0.0
    %1913 = vmatprep.subr.mxu0 0.0
    %1914 = vmatpush1.msra.mxu0 0.0
    %1915 = vmatprep.subr.mxu0 0.0
    %1916 = vmatpush1.msra.mxu0 0.0
    %1917 = vmatprep.subr.mxu0 0.0
    %1918 = vmatpush1.msra.mxu0 0.0
    %1919 = vmatprep.mubr.f32.mxu0 0.0
    %1920 = vmatmul.mubr.f32.gmra.mrb[0].mxu0 %v1719
    %v1921 = vpop.f32.mrb[0].mxu0
    %v1922 = vadd.f32 0.0, %v1921
    %v1923 = vpop.f32.mrb[0].mxu0
    %v1924 = vadd.f32 0.0, %v1923
    %1925 = vdwg.mxu0
    %v1926 = vadd.f32 %v1715, %v1851
    %v1927 = vadd.f32 %v1716, %v1853
    %v1928 = vadd.f32 %v1717, %v1922
    %v1929 = vadd.f32 %v1718, %v1924
    %v1930 = vxor.u32 %v1926, 2147483648
    %v1931 = vmul.f32 %v1930, 1.442695
    %v1932 = vpow.pop %v1931
    %v1933 = vadd.f32 %v1932, 1.0
    %v1934 = vrcp.pop %v1933
    %v1935 = vmul.f32 1.0, %v1934
    %v1936 = vxor.u32 %v1927, 2147483648
    %v1937 = vmul.f32 %v1936, 1.442695
    %v1938 = vpow.pop %v1937
    %v1939 = vadd.f32 %v1938, 1.0
    %v1940 = vrcp.pop %v1939
    %v1941 = vmul.f32 1.0, %v1940
    %v1942 = vtanh.pop %v1928
    %v1943 = vxor.u32 %v1929, 2147483648
    %v1944 = vmul.f32 %v1943, 1.442695
    %v1945 = vpow.pop %v1944
    %v1946 = vadd.f32 %v1945, 1.0
    %v1947 = vrcp.pop %v1946
    %v1948 = vmul.f32 1.0, %v1947
    %v1949 = vld [vmem:[#allocation5] sm:$0xff]
    %v1950 = vmul.f32 %v1941, %v1949
    %v1951 = vmul.f32 %v1935, %v1942
    %v1952 = vadd.f32 %v1950, %v1951
    %v1953 = vtanh.pop %v1952
    %v1954 = vmul.f32 %v1948, %v1953
    %1955 = vst [vmem:[#allocation5] sm:$0xff] %v1952
    %1956 = vst [vmem:[#allocation4] sm:$0xff] %v1954
    %s1957 = scalar_lea.vmem [#allocation2], 40
    %1958 = vst [vmem:[%s1957] sm:$0xff] %v1954
    %s1959 = scalar_lea.vmem [#allocation3], 192
    %v1960 = vld [vmem:[%s1959] sm:$0xff]
    %v1961 = vld [vmem:[%s1959 + $0x8] sm:$0xff]
    %v1962 = vld [vmem:[%s1959 + $0x10] sm:$0xff]
    %v1963 = vld [vmem:[%s1959 + $0x18] sm:$0xff]
    %v1964 = vld [vmem:[#allocation4] sm:$0xff]
    %v1965 = vld [vmem:[#allocation11] sm:$0xff]
    %v1966 = vld [vmem:[#allocation11 + $0x8] sm:$0xff]
    %v1967 = vld [vmem:[#allocation11 + $0x10] sm:$0xff]
    %v1968 = vld [vmem:[#allocation11 + $0x18] sm:$0xff]
    %v1969 = vld [vmem:[#allocation11 + $0x20] sm:$0xff]
    %v1970 = vld [vmem:[#allocation11 + $0x28] sm:$0xff]
    %v1971 = vld [vmem:[#allocation11 + $0x30] sm:$0xff]
    %v1972 = vld [vmem:[#allocation11 + $0x38] sm:$0xff]
    %v1973 = vld [vmem:[#allocation11 + $0x40] sm:$0xff]
    %v1974 = vld [vmem:[#allocation11 + $0x48] sm:$0xff]
    %v1975 = vld [vmem:[#allocation11 + $0x50] sm:$0xff]
    %v1976 = vld [vmem:[#allocation11 + $0x58] sm:$0xff]
    %v1977 = vld [vmem:[#allocation11 + $0x60] sm:$0xff]
    %v1978 = vld [vmem:[#allocation11 + $0x68] sm:$0xff]
    %v1979 = vld [vmem:[#allocation11 + $0x70] sm:$0xff]
    %v1980 = vld [vmem:[#allocation11 + $0x78] sm:$0xff]
    %v1981 = vld [vmem:[#allocation11 + $0x80] sm:$0xff]
    %v1982 = vld [vmem:[#allocation11 + $0x88] sm:$0xff]
    %v1983 = vld [vmem:[#allocation11 + $0x90] sm:$0xff]
    %v1984 = vld [vmem:[#allocation11 + $0x98] sm:$0xff]
    %v1985 = vld [vmem:[#allocation11 + $0xa0] sm:$0xff]
    %v1986 = vld [vmem:[#allocation11 + $0xa8] sm:$0xff]
    %v1987 = vld [vmem:[#allocation11 + $0xb0] sm:$0xff]
    %v1988 = vld [vmem:[#allocation11 + $0xb8] sm:$0xff]
    %v1989 = vld [vmem:[#allocation11 + $0xc0] sm:$0xff]
    %v1990 = vld [vmem:[#allocation11 + $0xc8] sm:$0xff]
    %v1991 = vld [vmem:[#allocation11 + $0xd0] sm:$0xff]
    %v1992 = vld [vmem:[#allocation11 + $0xd8] sm:$0xff]
    %v1993 = vld [vmem:[#allocation11 + $0xe0] sm:$0xff]
    %v1994 = vld [vmem:[#allocation11 + $0xe8] sm:$0xff]
    %v1995 = vld [vmem:[#allocation11 + $0xf0] sm:$0xff]
    %v1996 = vld [vmem:[#allocation11 + $0xf8] sm:$0xff]
    %v1997 = vld [vmem:[#allocation11 + $0x100] sm:$0xff]
    %v1998 = vld [vmem:[#allocation11 + $0x108] sm:$0xff]
    %v1999 = vld [vmem:[#allocation11 + $0x110] sm:$0xff]
    %v2000 = vld [vmem:[#allocation11 + $0x118] sm:$0xff]
    %v2001 = vld [vmem:[#allocation11 + $0x120] sm:$0xff]
    %v2002 = vld [vmem:[#allocation11 + $0x128] sm:$0xff]
    %v2003 = vld [vmem:[#allocation11 + $0x130] sm:$0xff]
    %v2004 = vld [vmem:[#allocation11 + $0x138] sm:$0xff]
    %v2005 = vld [vmem:[#allocation11 + $0x140] sm:$0xff]
    %v2006 = vld [vmem:[#allocation11 + $0x148] sm:$0xff]
    %v2007 = vld [vmem:[#allocation11 + $0x150] sm:$0xff]
    %v2008 = vld [vmem:[#allocation11 + $0x158] sm:$0xff]
    %v2009 = vld [vmem:[#allocation11 + $0x160] sm:$0xff]
    %v2010 = vld [vmem:[#allocation11 + $0x168] sm:$0xff]
    %v2011 = vld [vmem:[#allocation11 + $0x170] sm:$0xff]
    %v2012 = vld [vmem:[#allocation11 + $0x178] sm:$0xff]
    %v2013 = vld [vmem:[#allocation11 + $0x180] sm:$0xff]
    %v2014 = vld [vmem:[#allocation11 + $0x188] sm:$0xff]
    %v2015 = vld [vmem:[#allocation11 + $0x190] sm:$0xff]
    %v2016 = vld [vmem:[#allocation11 + $0x198] sm:$0xff]
    %v2017 = vld [vmem:[#allocation11 + $0x1a0] sm:$0xff]
    %v2018 = vld [vmem:[#allocation11 + $0x1a8] sm:$0xff]
    %v2019 = vld [vmem:[#allocation11 + $0x1b0] sm:$0xff]
    %v2020 = vld [vmem:[#allocation11 + $0x1b8] sm:$0xff]
    %v2021 = vld [vmem:[#allocation11 + $0x1c0] sm:$0xff]
    %v2022 = vld [vmem:[#allocation11 + $0x1c8] sm:$0xff]
    %v2023 = vld [vmem:[#allocation11 + $0x1d0] sm:$0xff]
    %v2024 = vld [vmem:[#allocation11 + $0x1d8] sm:$0xff]
    %v2025 = vld [vmem:[#allocation11 + $0x1e0] sm:$0xff]
    %v2026 = vld [vmem:[#allocation11 + $0x1e8] sm:$0xff]
    %v2027 = vld [vmem:[#allocation11 + $0x1f0] sm:$0xff]
    %v2028 = vld [vmem:[#allocation11 + $0x1f8] sm:$0xff]
    %2029 = vmatprep.subr.mxu0 %v1966
    %2030 = vmatpush1.msra.mxu0 %v1965
    %2031 = vmatprep.subr.mxu0 %v1970
    %2032 = vmatpush1.msra.mxu0 %v1969
    %2033 = vmatprep.subr.mxu0 %v1974
    %2034 = vmatpush1.msra.mxu0 %v1973
    %2035 = vmatprep.subr.mxu0 %v1978
    %2036 = vmatpush1.msra.mxu0 %v1977
    %2037 = vmatprep.subr.mxu0 %v1982
    %2038 = vmatpush1.msra.mxu0 %v1981
    %2039 = vmatprep.subr.mxu0 %v1986
    %2040 = vmatpush1.msra.mxu0 %v1985
    %2041 = vmatprep.subr.mxu0 %v1990
    %2042 = vmatpush1.msra.mxu0 %v1989
    %2043 = vmatprep.subr.mxu0 %v1994
    %2044 = vmatpush1.msra.mxu0 %v1993
    %2045 = vmatprep.subr.mxu0 %v1998
    %2046 = vmatpush1.msra.mxu0 %v1997
    %2047 = vmatprep.subr.mxu0 %v2002
    %2048 = vmatpush1.msra.mxu0 %v2001
    %2049 = vmatprep.subr.mxu0 %v2006
    %2050 = vmatpush1.msra.mxu0 %v2005
    %2051 = vmatprep.subr.mxu0 %v2010
    %2052 = vmatpush1.msra.mxu0 %v2009
    %2053 = vmatprep.subr.mxu0 %v2014
    %2054 = vmatpush1.msra.mxu0 %v2013
    %2055 = vmatprep.subr.mxu0 %v2018
    %2056 = vmatpush1.msra.mxu0 %v2017
    %2057 = vmatprep.subr.mxu0 %v2022
    %2058 = vmatpush1.msra.mxu0 %v2021
    %2059 = vmatprep.subr.mxu0 %v2026
    %2060 = vmatpush1.msra.mxu0 %v2025
    %2061 = vmatprep.subr.mxu0 0.0
    %2062 = vmatpush1.msra.mxu0 0.0
    %2063 = vmatprep.subr.mxu0 0.0
    %2064 = vmatpush1.msra.mxu0 0.0
    %2065 = vmatprep.subr.mxu0 0.0
    %2066 = vmatpush1.msra.mxu0 0.0
    %2067 = vmatprep.subr.mxu0 0.0
    %2068 = vmatpush1.msra.mxu0 0.0
    %2069 = vmatprep.subr.mxu0 0.0
    %2070 = vmatpush1.msra.mxu0 0.0
    %2071 = vmatprep.subr.mxu0 0.0
    %2072 = vmatpush1.msra.mxu0 0.0
    %2073 = vmatprep.subr.mxu0 0.0
    %2074 = vmatpush1.msra.mxu0 0.0
    %2075 = vmatprep.subr.mxu0 0.0
    %2076 = vmatpush1.msra.mxu0 0.0
    %2077 = vmatprep.subr.mxu0 0.0
    %2078 = vmatpush1.msra.mxu0 0.0
    %2079 = vmatprep.subr.mxu0 0.0
    %2080 = vmatpush1.msra.mxu0 0.0
    %2081 = vmatprep.subr.mxu0 0.0
    %2082 = vmatpush1.msra.mxu0 0.0
    %2083 = vmatprep.subr.mxu0 0.0
    %2084 = vmatpush1.msra.mxu0 0.0
    %2085 = vmatprep.subr.mxu0 0.0
    %2086 = vmatpush1.msra.mxu0 0.0
    %2087 = vmatprep.subr.mxu0 0.0
    %2088 = vmatpush1.msra.mxu0 0.0
    %2089 = vmatprep.subr.mxu0 0.0
    %2090 = vmatpush1.msra.mxu0 0.0
    %2091 = vmatprep.subr.mxu0 0.0
    %2092 = vmatpush1.msra.mxu0 0.0
    %2093 = vmatprep.mubr.f32.mxu0 0.0
    %2094 = vmatmul.mubr.f32.gmra.mrb[0].mxu0 %v1964
    %v2095 = vpop.f32.mrb[0].mxu0
    %v2096 = vadd.f32 0.0, %v2095
    %v2097 = vpop.f32.mrb[0].mxu0
    %v2098 = vadd.f32 0.0, %v2097
    %2099 = vdwg.mxu0
    %2100 = vmatprep.subr.mxu0 %v1968
    %2101 = vmatpush1.msra.mxu0 %v1967
    %2102 = vmatprep.subr.mxu0 %v1972
    %2103 = vmatpush1.msra.mxu0 %v1971
    %2104 = vmatprep.subr.mxu0 %v1976
    %2105 = vmatpush1.msra.mxu0 %v1975
    %2106 = vmatprep.subr.mxu0 %v1980
    %2107 = vmatpush1.msra.mxu0 %v1979
    %2108 = vmatprep.subr.mxu0 %v1984
    %2109 = vmatpush1.msra.mxu0 %v1983
    %2110 = vmatprep.subr.mxu0 %v1988
    %2111 = vmatpush1.msra.mxu0 %v1987
    %2112 = vmatprep.subr.mxu0 %v1992
    %2113 = vmatpush1.msra.mxu0 %v1991
    %2114 = vmatprep.subr.mxu0 %v1996
    %2115 = vmatpush1.msra.mxu0 %v1995
    %2116 = vmatprep.subr.mxu0 %v2000
    %2117 = vmatpush1.msra.mxu0 %v1999
    %2118 = vmatprep.subr.mxu0 %v2004
    %2119 = vmatpush1.msra.mxu0 %v2003
    %2120 = vmatprep.subr.mxu0 %v2008
    %2121 = vmatpush1.msra.mxu0 %v2007
    %2122 = vmatprep.subr.mxu0 %v2012
    %2123 = vmatpush1.msra.mxu0 %v2011
    %2124 = vmatprep.subr.mxu0 %v2016
    %2125 = vmatpush1.msra.mxu0 %v2015
    %2126 = vmatprep.subr.mxu0 %v2020
    %2127 = vmatpush1.msra.mxu0 %v2019
    %2128 = vmatprep.subr.mxu0 %v2024
    %2129 = vmatpush1.msra.mxu0 %v2023
    %2130 = vmatprep.subr.mxu0 %v2028
    %2131 = vmatpush1.msra.mxu0 %v2027
    %2132 = vmatprep.subr.mxu0 0.0
    %2133 = vmatpush1.msra.mxu0 0.0
    %2134 = vmatprep.subr.mxu0 0.0
    %2135 = vmatpush1.msra.mxu0 0.0
    %2136 = vmatprep.subr.mxu0 0.0
    %2137 = vmatpush1.msra.mxu0 0.0
    %2138 = vmatprep.subr.mxu0 0.0
    %2139 = vmatpush1.msra.mxu0 0.0
    %2140 = vmatprep.subr.mxu0 0.0
    %2141 = vmatpush1.msra.mxu0 0.0
    %2142 = vmatprep.subr.mxu0 0.0
    %2143 = vmatpush1.msra.mxu0 0.0
    %2144 = vmatprep.subr.mxu0 0.0
    %2145 = vmatpush1.msra.mxu0 0.0
    %2146 = vmatprep.subr.mxu0 0.0
    %2147 = vmatpush1.msra.mxu0 0.0
    %2148 = vmatprep.subr.mxu0 0.0
    %2149 = vmatpush1.msra.mxu0 0.0
    %2150 = vmatprep.subr.mxu0 0.0
    %2151 = vmatpush1.msra.mxu0 0.0
    %2152 = vmatprep.subr.mxu0 0.0
    %2153 = vmatpush1.msra.mxu0 0.0
    %2154 = vmatprep.subr.mxu0 0.0
    %2155 = vmatpush1.msra.mxu0 0.0
    %2156 = vmatprep.subr.mxu0 0.0
    %2157 = vmatpush1.msra.mxu0 0.0
    %2158 = vmatprep.subr.mxu0 0.0
    %2159 = vmatpush1.msra.mxu0 0.0
    %2160 = vmatprep.subr.mxu0 0.0
    %2161 = vmatpush1.msra.mxu0 0.0
    %2162 = vmatprep.subr.mxu0 0.0
    %2163 = vmatpush1.msra.mxu0 0.0
    %2164 = vmatprep.mubr.f32.mxu0 0.0
    %2165 = vmatmul.mubr.f32.gmra.mrb[0].mxu0 %v1964
    %v2166 = vpop.f32.mrb[0].mxu0
    %v2167 = vadd.f32 0.0, %v2166
    %v2168 = vpop.f32.mrb[0].mxu0
    %v2169 = vadd.f32 0.0, %v2168
    %2170 = vdwg.mxu0
    %v2171 = vadd.f32 %v1960, %v2096
    %v2172 = vadd.f32 %v1961, %v2098
    %v2173 = vadd.f32 %v1962, %v2167
    %v2174 = vadd.f32 %v1963, %v2169
    %v2175 = vxor.u32 %v2171, 2147483648
    %v2176 = vmul.f32 %v2175, 1.442695
    %v2177 = vpow.pop %v2176
    %v2178 = vadd.f32 %v2177, 1.0
    %v2179 = vrcp.pop %v2178
    %v2180 = vmul.f32 1.0, %v2179
    %v2181 = vxor.u32 %v2172, 2147483648
    %v2182 = vmul.f32 %v2181, 1.442695
    %v2183 = vpow.pop %v2182
    %v2184 = vadd.f32 %v2183, 1.0
    %v2185 = vrcp.pop %v2184
    %v2186 = vmul.f32 1.0, %v2185
    %v2187 = vtanh.pop %v2173
    %v2188 = vxor.u32 %v2174, 2147483648
    %v2189 = vmul.f32 %v2188, 1.442695
    %v2190 = vpow.pop %v2189
    %v2191 = vadd.f32 %v2190, 1.0
    %v2192 = vrcp.pop %v2191
    %v2193 = vmul.f32 1.0, %v2192
    %v2194 = vld [vmem:[#allocation5] sm:$0xff]
    %v2195 = vmul.f32 %v2186, %v2194
    %v2196 = vmul.f32 %v2180, %v2187
    %v2197 = vadd.f32 %v2195, %v2196
    %v2198 = vtanh.pop %v2197
    %v2199 = vmul.f32 %v2193, %v2198
    %2200 = vst [vmem:[#allocation5] sm:$0xff] %v2197
    %2201 = vst [vmem:[#allocation4] sm:$0xff] %v2199
    %s2202 = scalar_lea.vmem [#allocation2], 48
    %2203 = vst [vmem:[%s2202] sm:$0xff] %v2199
    %s2204 = scalar_lea.vmem [#allocation3], 224
    %v2205 = vld [vmem:[%s2204] sm:$0xff]
    %v2206 = vld [vmem:[%s2204 + $0x8] sm:$0xff]
    %v2207 = vld [vmem:[%s2204 + $0x10] sm:$0xff]
    %v2208 = vld [vmem:[%s2204 + $0x18] sm:$0xff]
    %v2209 = vld [vmem:[#allocation4] sm:$0xff]
    %v2210 = vld [vmem:[#allocation11] sm:$0xff]
    %v2211 = vld [vmem:[#allocation11 + $0x8] sm:$0xff]
    %v2212 = vld [vmem:[#allocation11 + $0x10] sm:$0xff]
    %v2213 = vld [vmem:[#allocation11 + $0x18] sm:$0xff]
    %v2214 = vld [vmem:[#allocation11 + $0x20] sm:$0xff]
    %v2215 = vld [vmem:[#allocation11 + $0x28] sm:$0xff]
    %v2216 = vld [vmem:[#allocation11 + $0x30] sm:$0xff]
    %v2217 = vld [vmem:[#allocation11 + $0x38] sm:$0xff]
    %v2218 = vld [vmem:[#allocation11 + $0x40] sm:$0xff]
    %v2219 = vld [vmem:[#allocation11 + $0x48] sm:$0xff]
    %v2220 = vld [vmem:[#allocation11 + $0x50] sm:$0xff]
    %v2221 = vld [vmem:[#allocation11 + $0x58] sm:$0xff]
    %v2222 = vld [vmem:[#allocation11 + $0x60] sm:$0xff]
    %v2223 = vld [vmem:[#allocation11 + $0x68] sm:$0xff]
    %v2224 = vld [vmem:[#allocation11 + $0x70] sm:$0xff]
    %v2225 = vld [vmem:[#allocation11 + $0x78] sm:$0xff]
    %v2226 = vld [vmem:[#allocation11 + $0x80] sm:$0xff]
    %v2227 = vld [vmem:[#allocation11 + $0x88] sm:$0xff]
    %v2228 = vld [vmem:[#allocation11 + $0x90] sm:$0xff]
    %v2229 = vld [vmem:[#allocation11 + $0x98] sm:$0xff]
    %v2230 = vld [vmem:[#allocation11 + $0xa0] sm:$0xff]
    %v2231 = vld [vmem:[#allocation11 + $0xa8] sm:$0xff]
    %v2232 = vld [vmem:[#allocation11 + $0xb0] sm:$0xff]
    %v2233 = vld [vmem:[#allocation11 + $0xb8] sm:$0xff]
    %v2234 = vld [vmem:[#allocation11 + $0xc0] sm:$0xff]
    %v2235 = vld [vmem:[#allocation11 + $0xc8] sm:$0xff]
    %v2236 = vld [vmem:[#allocation11 + $0xd0] sm:$0xff]
    %v2237 = vld [vmem:[#allocation11 + $0xd8] sm:$0xff]
    %v2238 = vld [vmem:[#allocation11 + $0xe0] sm:$0xff]
    %v2239 = vld [vmem:[#allocation11 + $0xe8] sm:$0xff]
    %v2240 = vld [vmem:[#allocation11 + $0xf0] sm:$0xff]
    %v2241 = vld [vmem:[#allocation11 + $0xf8] sm:$0xff]
    %v2242 = vld [vmem:[#allocation11 + $0x100] sm:$0xff]
    %v2243 = vld [vmem:[#allocation11 + $0x108] sm:$0xff]
    %v2244 = vld [vmem:[#allocation11 + $0x110] sm:$0xff]
    %v2245 = vld [vmem:[#allocation11 + $0x118] sm:$0xff]
    %v2246 = vld [vmem:[#allocation11 + $0x120] sm:$0xff]
    %v2247 = vld [vmem:[#allocation11 + $0x128] sm:$0xff]
    %v2248 = vld [vmem:[#allocation11 + $0x130] sm:$0xff]
    %v2249 = vld [vmem:[#allocation11 + $0x138] sm:$0xff]
    %v2250 = vld [vmem:[#allocation11 + $0x140] sm:$0xff]
    %v2251 = vld [vmem:[#allocation11 + $0x148] sm:$0xff]
    %v2252 = vld [vmem:[#allocation11 + $0x150] sm:$0xff]
    %v2253 = vld [vmem:[#allocation11 + $0x158] sm:$0xff]
    %v2254 = vld [vmem:[#allocation11 + $0x160] sm:$0xff]
    %v2255 = vld [vmem:[#allocation11 + $0x168] sm:$0xff]
    %v2256 = vld [vmem:[#allocation11 + $0x170] sm:$0xff]
    %v2257 = vld [vmem:[#allocation11 + $0x178] sm:$0xff]
    %v2258 = vld [vmem:[#allocation11 + $0x180] sm:$0xff]
    %v2259 = vld [vmem:[#allocation11 + $0x188] sm:$0xff]
    %v2260 = vld [vmem:[#allocation11 + $0x190] sm:$0xff]
    %v2261 = vld [vmem:[#allocation11 + $0x198] sm:$0xff]
    %v2262 = vld [vmem:[#allocation11 + $0x1a0] sm:$0xff]
    %v2263 = vld [vmem:[#allocation11 + $0x1a8] sm:$0xff]
    %v2264 = vld [vmem:[#allocation11 + $0x1b0] sm:$0xff]
    %v2265 = vld [vmem:[#allocation11 + $0x1b8] sm:$0xff]
    %v2266 = vld [vmem:[#allocation11 + $0x1c0] sm:$0xff]
    %v2267 = vld [vmem:[#allocation11 + $0x1c8] sm:$0xff]
    %v2268 = vld [vmem:[#allocation11 + $0x1d0] sm:$0xff]
    %v2269 = vld [vmem:[#allocation11 + $0x1d8] sm:$0xff]
    %v2270 = vld [vmem:[#allocation11 + $0x1e0] sm:$0xff]
    %v2271 = vld [vmem:[#allocation11 + $0x1e8] sm:$0xff]
    %v2272 = vld [vmem:[#allocation11 + $0x1f0] sm:$0xff]
    %v2273 = vld [vmem:[#allocation11 + $0x1f8] sm:$0xff]
    %2274 = vmatprep.subr.mxu0 %v2211
    %2275 = vmatpush1.msra.mxu0 %v2210
    %2276 = vmatprep.subr.mxu0 %v2215
    %2277 = vmatpush1.msra.mxu0 %v2214
    %2278 = vmatprep.subr.mxu0 %v2219
    %2279 = vmatpush1.msra.mxu0 %v2218
    %2280 = vmatprep.subr.mxu0 %v2223
    %2281 = vmatpush1.msra.mxu0 %v2222
    %2282 = vmatprep.subr.mxu0 %v2227
    %2283 = vmatpush1.msra.mxu0 %v2226
    %2284 = vmatprep.subr.mxu0 %v2231
    %2285 = vmatpush1.msra.mxu0 %v2230
    %2286 = vmatprep.subr.mxu0 %v2235
    %2287 = vmatpush1.msra.mxu0 %v2234
    %2288 = vmatprep.subr.mxu0 %v2239
    %2289 = vmatpush1.msra.mxu0 %v2238
    %2290 = vmatprep.subr.mxu0 %v2243
    %2291 = vmatpush1.msra.mxu0 %v2242
    %2292 = vmatprep.subr.mxu0 %v2247
    %2293 = vmatpush1.msra.mxu0 %v2246
    %2294 = vmatprep.subr.mxu0 %v2251
    %2295 = vmatpush1.msra.mxu0 %v2250
    %2296 = vmatprep.subr.mxu0 %v2255
    %2297 = vmatpush1.msra.mxu0 %v2254
    %2298 = vmatprep.subr.mxu0 %v2259
    %2299 = vmatpush1.msra.mxu0 %v2258
    %2300 = vmatprep.subr.mxu0 %v2263
    %2301 = vmatpush1.msra.mxu0 %v2262
    %2302 = vmatprep.subr.mxu0 %v2267
    %2303 = vmatpush1.msra.mxu0 %v2266
    %2304 = vmatprep.subr.mxu0 %v2271
    %2305 = vmatpush1.msra.mxu0 %v2270
    %2306 = vmatprep.subr.mxu0 0.0
    %2307 = vmatpush1.msra.mxu0 0.0
    %2308 = vmatprep.subr.mxu0 0.0
    %2309 = vmatpush1.msra.mxu0 0.0
    %2310 = vmatprep.subr.mxu0 0.0
    %2311 = vmatpush1.msra.mxu0 0.0
    %2312 = vmatprep.subr.mxu0 0.0
    %2313 = vmatpush1.msra.mxu0 0.0
    %2314 = vmatprep.subr.mxu0 0.0
    %2315 = vmatpush1.msra.mxu0 0.0
    %2316 = vmatprep.subr.mxu0 0.0
    %2317 = vmatpush1.msra.mxu0 0.0
    %2318 = vmatprep.subr.mxu0 0.0
    %2319 = vmatpush1.msra.mxu0 0.0
    %2320 = vmatprep.subr.mxu0 0.0
    %2321 = vmatpush1.msra.mxu0 0.0
    %2322 = vmatprep.subr.mxu0 0.0
    %2323 = vmatpush1.msra.mxu0 0.0
    %2324 = vmatprep.subr.mxu0 0.0
    %2325 = vmatpush1.msra.mxu0 0.0
    %2326 = vmatprep.subr.mxu0 0.0
    %2327 = vmatpush1.msra.mxu0 0.0
    %2328 = vmatprep.subr.mxu0 0.0
    %2329 = vmatpush1.msra.mxu0 0.0
    %2330 = vmatprep.subr.mxu0 0.0
    %2331 = vmatpush1.msra.mxu0 0.0
    %2332 = vmatprep.subr.mxu0 0.0
    %2333 = vmatpush1.msra.mxu0 0.0
    %2334 = vmatprep.subr.mxu0 0.0
    %2335 = vmatpush1.msra.mxu0 0.0
    %2336 = vmatprep.subr.mxu0 0.0
    %2337 = vmatpush1.msra.mxu0 0.0
    %2338 = vmatprep.mubr.f32.mxu0 0.0
    %2339 = vmatmul.mubr.f32.gmra.mrb[0].mxu0 %v2209
    %v2340 = vpop.f32.mrb[0].mxu0
    %v2341 = vadd.f32 0.0, %v2340
    %v2342 = vpop.f32.mrb[0].mxu0
    %v2343 = vadd.f32 0.0, %v2342
    %2344 = vdwg.mxu0
    %2345 = vmatprep.subr.mxu0 %v2213
    %2346 = vmatpush1.msra.mxu0 %v2212
    %2347 = vmatprep.subr.mxu0 %v2217
    %2348 = vmatpush1.msra.mxu0 %v2216
    %2349 = vmatprep.subr.mxu0 %v2221
    %2350 = vmatpush1.msra.mxu0 %v2220
    %2351 = vmatprep.subr.mxu0 %v2225
    %2352 = vmatpush1.msra.mxu0 %v2224
    %2353 = vmatprep.subr.mxu0 %v2229
    %2354 = vmatpush1.msra.mxu0 %v2228
    %2355 = vmatprep.subr.mxu0 %v2233
    %2356 = vmatpush1.msra.mxu0 %v2232
    %2357 = vmatprep.subr.mxu0 %v2237
    %2358 = vmatpush1.msra.mxu0 %v2236
    %2359 = vmatprep.subr.mxu0 %v2241
    %2360 = vmatpush1.msra.mxu0 %v2240
    %2361 = vmatprep.subr.mxu0 %v2245
    %2362 = vmatpush1.msra.mxu0 %v2244
    %2363 = vmatprep.subr.mxu0 %v2249
    %2364 = vmatpush1.msra.mxu0 %v2248
    %2365 = vmatprep.subr.mxu0 %v2253
    %2366 = vmatpush1.msra.mxu0 %v2252
    %2367 = vmatprep.subr.mxu0 %v2257
    %2368 = vmatpush1.msra.mxu0 %v2256
    %2369 = vmatprep.subr.mxu0 %v2261
    %2370 = vmatpush1.msra.mxu0 %v2260
    %2371 = vmatprep.subr.mxu0 %v2265
    %2372 = vmatpush1.msra.mxu0 %v2264
    %2373 = vmatprep.subr.mxu0 %v2269
    %2374 = vmatpush1.msra.mxu0 %v2268
    %2375 = vmatprep.subr.mxu0 %v2273
    %2376 = vmatpush1.msra.mxu0 %v2272
    %2377 = vmatprep.subr.mxu0 0.0
    %2378 = vmatpush1.msra.mxu0 0.0
    %2379 = vmatprep.subr.mxu0 0.0
    %2380 = vmatpush1.msra.mxu0 0.0
    %2381 = vmatprep.subr.mxu0 0.0
    %2382 = vmatpush1.msra.mxu0 0.0
    %2383 = vmatprep.subr.mxu0 0.0
    %2384 = vmatpush1.msra.mxu0 0.0
    %2385 = vmatprep.subr.mxu0 0.0
    %2386 = vmatpush1.msra.mxu0 0.0
    %2387 = vmatprep.subr.mxu0 0.0
    %2388 = vmatpush1.msra.mxu0 0.0
    %2389 = vmatprep.subr.mxu0 0.0
    %2390 = vmatpush1.msra.mxu0 0.0
    %2391 = vmatprep.subr.mxu0 0.0
    %2392 = vmatpush1.msra.mxu0 0.0
    %2393 = vmatprep.subr.mxu0 0.0
    %2394 = vmatpush1.msra.mxu0 0.0
    %2395 = vmatprep.subr.mxu0 0.0
    %2396 = vmatpush1.msra.mxu0 0.0
    %2397 = vmatprep.subr.mxu0 0.0
    %2398 = vmatpush1.msra.mxu0 0.0
    %2399 = vmatprep.subr.mxu0 0.0
    %2400 = vmatpush1.msra.mxu0 0.0
    %2401 = vmatprep.subr.mxu0 0.0
    %2402 = vmatpush1.msra.mxu0 0.0
    %2403 = vmatprep.subr.mxu0 0.0
    %2404 = vmatpush1.msra.mxu0 0.0
    %2405 = vmatprep.subr.mxu0 0.0
    %2406 = vmatpush1.msra.mxu0 0.0
    %2407 = vmatprep.subr.mxu0 0.0
    %2408 = vmatpush1.msra.mxu0 0.0
    %2409 = vmatprep.mubr.f32.mxu0 0.0
    %2410 = vmatmul.mubr.f32.gmra.mrb[0].mxu0 %v2209
    %v2411 = vpop.f32.mrb[0].mxu0
    %v2412 = vadd.f32 0.0, %v2411
    %v2413 = vpop.f32.mrb[0].mxu0
    %v2414 = vadd.f32 0.0, %v2413
    %2415 = vdwg.mxu0
    %v2416 = vadd.f32 %v2205, %v2341
    %v2417 = vadd.f32 %v2206, %v2343
    %v2418 = vadd.f32 %v2207, %v2412
    %v2419 = vadd.f32 %v2208, %v2414
    %v2420 = vxor.u32 %v2416, 2147483648
    %v2421 = vmul.f32 %v2420, 1.442695
    %v2422 = vpow.pop %v2421
    %v2423 = vadd.f32 %v2422, 1.0
    %v2424 = vrcp.pop %v2423
    %v2425 = vmul.f32 1.0, %v2424
    %v2426 = vxor.u32 %v2417, 2147483648
    %v2427 = vmul.f32 %v2426, 1.442695
    %v2428 = vpow.pop %v2427
    %v2429 = vadd.f32 %v2428, 1.0
    %v2430 = vrcp.pop %v2429
    %v2431 = vmul.f32 1.0, %v2430
    %v2432 = vtanh.pop %v2418
    %v2433 = vxor.u32 %v2419, 2147483648
    %v2434 = vmul.f32 %v2433, 1.442695
    %v2435 = vpow.pop %v2434
    %v2436 = vadd.f32 %v2435, 1.0
    %v2437 = vrcp.pop %v2436
    %v2438 = vmul.f32 1.0, %v2437
    %v2439 = vld [vmem:[#allocation5] sm:$0xff]
    %v2440 = vmul.f32 %v2431, %v2439
    %v2441 = vmul.f32 %v2425, %v2432
    %v2442 = vadd.f32 %v2440, %v2441
    %v2443 = vtanh.pop %v2442
    %v2444 = vmul.f32 %v2438, %v2443
    %2445 = vst [vmem:[#allocation5] sm:$0xff] %v2442
    %2446 = vst [vmem:[#allocation4] sm:$0xff] %v2444
    %s2447 = scalar_lea.vmem [#allocation2], 56
    %2448 = vst [vmem:[%s2447] sm:$0xff] %v2444
    %v2449 = vld [vmem:[#allocation2] sm:$0xff]
    %v2450 = vld [vmem:[#allocation2 + $0x8] sm:$0xff]
    %v2451 = vld [vmem:[#allocation2 + $0x10] sm:$0xff]
    %v2452 = vld [vmem:[#allocation2 + $0x18] sm:$0xff]
    %v2453 = vld [vmem:[#allocation2 + $0x20] sm:$0xff]
    %v2454 = vld [vmem:[#allocation2 + $0x28] sm:$0xff]
    %v2455 = vld [vmem:[#allocation2 + $0x30] sm:$0xff]
    %v2456 = vld [vmem:[#allocation2 + $0x38] sm:$0xff]
    %s2457 = scalar_lea.vmem [#allocation9], 512
    %v2458 = vld [vmem:[%s2457] sm:$0xff]
    %v2459 = vld [vmem:[%s2457 + $0x8] sm:$0xff]
    %v2460 = vld [vmem:[%s2457 + $0x10] sm:$0xff]
    %v2461 = vld [vmem:[%s2457 + $0x18] sm:$0xff]
    %v2462 = vld [vmem:[%s2457 + $0x20] sm:$0xff]
    %v2463 = vld [vmem:[%s2457 + $0x28] sm:$0xff]
    %v2464 = vld [vmem:[%s2457 + $0x30] sm:$0xff]
    %v2465 = vld [vmem:[%s2457 + $0x38] sm:$0xff]
    %v2466 = vld [vmem:[%s2457 + $0x40] sm:$0xff]
    %v2467 = vld [vmem:[%s2457 + $0x48] sm:$0xff]
    %v2468 = vld [vmem:[%s2457 + $0x50] sm:$0xff]
    %v2469 = vld [vmem:[%s2457 + $0x58] sm:$0xff]
    %v2470 = vld [vmem:[%s2457 + $0x60] sm:$0xff]
    %v2471 = vld [vmem:[%s2457 + $0x68] sm:$0xff]
    %v2472 = vld [vmem:[%s2457 + $0x70] sm:$0xff]
    %v2473 = vld [vmem:[%s2457 + $0x78] sm:$0xff]
    %v2474 = vld [vmem:[%s2457 + $0x80] sm:$0xff]
    %v2475 = vld [vmem:[%s2457 + $0x88] sm:$0xff]
    %v2476 = vld [vmem:[%s2457 + $0x90] sm:$0xff]
    %v2477 = vld [vmem:[%s2457 + $0x98] sm:$0xff]
    %v2478 = vld [vmem:[%s2457 + $0xa0] sm:$0xff]
    %v2479 = vld [vmem:[%s2457 + $0xa8] sm:$0xff]
    %v2480 = vld [vmem:[%s2457 + $0xb0] sm:$0xff]
    %v2481 = vld [vmem:[%s2457 + $0xb8] sm:$0xff]
    %v2482 = vld [vmem:[%s2457 + $0xc0] sm:$0xff]
    %v2483 = vld [vmem:[%s2457 + $0xc8] sm:$0xff]
    %v2484 = vld [vmem:[%s2457 + $0xd0] sm:$0xff]
    %v2485 = vld [vmem:[%s2457 + $0xd8] sm:$0xff]
    %v2486 = vld [vmem:[%s2457 + $0xe0] sm:$0xff]
    %v2487 = vld [vmem:[%s2457 + $0xe8] sm:$0xff]
    %v2488 = vld [vmem:[%s2457 + $0xf0] sm:$0xff]
    %v2489 = vld [vmem:[%s2457 + $0xf8] sm:$0xff]
    %v2490 = vld [vmem:[%s2457 + $0x100] sm:$0xff]
    %v2491 = vld [vmem:[%s2457 + $0x108] sm:$0xff]
    %v2492 = vld [vmem:[%s2457 + $0x110] sm:$0xff]
    %v2493 = vld [vmem:[%s2457 + $0x118] sm:$0xff]
    %v2494 = vld [vmem:[%s2457 + $0x120] sm:$0xff]
    %v2495 = vld [vmem:[%s2457 + $0x128] sm:$0xff]
    %v2496 = vld [vmem:[%s2457 + $0x130] sm:$0xff]
    %v2497 = vld [vmem:[%s2457 + $0x138] sm:$0xff]
    %v2498 = vld [vmem:[%s2457 + $0x140] sm:$0xff]
    %v2499 = vld [vmem:[%s2457 + $0x148] sm:$0xff]
    %v2500 = vld [vmem:[%s2457 + $0x150] sm:$0xff]
    %v2501 = vld [vmem:[%s2457 + $0x158] sm:$0xff]
    %v2502 = vld [vmem:[%s2457 + $0x160] sm:$0xff]
    %v2503 = vld [vmem:[%s2457 + $0x168] sm:$0xff]
    %v2504 = vld [vmem:[%s2457 + $0x170] sm:$0xff]
    %v2505 = vld [vmem:[%s2457 + $0x178] sm:$0xff]
    %v2506 = vld [vmem:[%s2457 + $0x180] sm:$0xff]
    %v2507 = vld [vmem:[%s2457 + $0x188] sm:$0xff]
    %v2508 = vld [vmem:[%s2457 + $0x190] sm:$0xff]
    %v2509 = vld [vmem:[%s2457 + $0x198] sm:$0xff]
    %v2510 = vld [vmem:[%s2457 + $0x1a0] sm:$0xff]
    %v2511 = vld [vmem:[%s2457 + $0x1a8] sm:$0xff]
    %v2512 = vld [vmem:[%s2457 + $0x1b0] sm:$0xff]
    %v2513 = vld [vmem:[%s2457 + $0x1b8] sm:$0xff]
    %v2514 = vld [vmem:[%s2457 + $0x1c0] sm:$0xff]
    %v2515 = vld [vmem:[%s2457 + $0x1c8] sm:$0xff]
    %v2516 = vld [vmem:[%s2457 + $0x1d0] sm:$0xff]
    %v2517 = vld [vmem:[%s2457 + $0x1d8] sm:$0xff]
    %v2518 = vld [vmem:[%s2457 + $0x1e0] sm:$0xff]
    %v2519 = vld [vmem:[%s2457 + $0x1e8] sm:$0xff]
    %v2520 = vld [vmem:[%s2457 + $0x1f0] sm:$0xff]
    %v2521 = vld [vmem:[%s2457 + $0x1f8] sm:$0xff]
    %s2522 = scalar_lea.vmem %s3, 4
    %v2523 = vld [vmem:[%s2522] sm:$0xf]
    %v2525 = vlaneseq
    %v2526 = vshrl.u32 %v2525, 7
    %v2527 = vsub.s32 0, %v2526
    %v2528 = vrot.slane %v2523, %v2527
    %v2529 = vlaneseq
    %v2530 = vshrl.u32 %v2529, 7
    %v2531 = vsub.s32 1, %v2530
    %v2532 = vrot.slane %v2523, %v2531
    %v2533 = vlaneseq
    %v2534 = vshrl.u32 %v2533, 7
    %v2535 = vsub.s32 2, %v2534
    %v2536 = vrot.slane %v2523, %v2535
    %v2537 = vlaneseq
    %v2538 = vshrl.u32 %v2537, 7
    %v2539 = vsub.s32 3, %v2538
    %v2540 = vrot.slane %v2523, %v2539
    %2545 = vmatprep.subr.mxu0 %v2459
    %2546 = vmatpush1.msra.mxu0 %v2458
    %2547 = vmatprep.subr.mxu0 %v2463
    %2548 = vmatpush1.msra.mxu0 %v2462
    %2549 = vmatprep.subr.mxu0 %v2467
    %2550 = vmatpush1.msra.mxu0 %v2466
    %2551 = vmatprep.subr.mxu0 %v2471
    %2552 = vmatpush1.msra.mxu0 %v2470
    %2553 = vmatprep.subr.mxu0 %v2475
    %2554 = vmatpush1.msra.mxu0 %v2474
    %2555 = vmatprep.subr.mxu0 %v2479
    %2556 = vmatpush1.msra.mxu0 %v2478
    %2557 = vmatprep.subr.mxu0 %v2483
    %2558 = vmatpush1.msra.mxu0 %v2482
    %2559 = vmatprep.subr.mxu0 %v2487
    %2560 = vmatpush1.msra.mxu0 %v2486
    %2561 = vmatprep.subr.mxu0 %v2491
    %2562 = vmatpush1.msra.mxu0 %v2490
    %2563 = vmatprep.subr.mxu0 %v2495
    %2564 = vmatpush1.msra.mxu0 %v2494
    %2565 = vmatprep.subr.mxu0 %v2499
    %2566 = vmatpush1.msra.mxu0 %v2498
    %2567 = vmatprep.subr.mxu0 %v2503
    %2568 = vmatpush1.msra.mxu0 %v2502
    %2569 = vmatprep.subr.mxu0 %v2507
    %2570 = vmatpush1.msra.mxu0 %v2506
    %2571 = vmatprep.subr.mxu0 %v2511
    %2572 = vmatpush1.msra.mxu0 %v2510
    %2573 = vmatprep.subr.mxu0 %v2515
    %2574 = vmatpush1.msra.mxu0 %v2514
    %2575 = vmatprep.subr.mxu0 %v2519
    %2576 = vmatpush1.msra.mxu0 %v2518
    %2577 = vmatprep.subr.mxu0 0.0
    %2578 = vmatpush1.msra.mxu0 0.0
    %2579 = vmatprep.subr.mxu0 0.0
    %2580 = vmatpush1.msra.mxu0 0.0
    %2581 = vmatprep.subr.mxu0 0.0
    %2582 = vmatpush1.msra.mxu0 0.0
    %2583 = vmatprep.subr.mxu0 0.0
    %2584 = vmatpush1.msra.mxu0 0.0
    %2585 = vmatprep.subr.mxu0 0.0
    %2586 = vmatpush1.msra.mxu0 0.0
    %2587 = vmatprep.subr.mxu0 0.0
    %2588 = vmatpush1.msra.mxu0 0.0
    %2589 = vmatprep.subr.mxu0 0.0
    %2590 = vmatpush1.msra.mxu0 0.0
    %2591 = vmatprep.subr.mxu0 0.0
    %2592 = vmatpush1.msra.mxu0 0.0
    %2593 = vmatprep.subr.mxu0 0.0
    %2594 = vmatpush1.msra.mxu0 0.0
    %2595 = vmatprep.subr.mxu0 0.0
    %2596 = vmatpush1.msra.mxu0 0.0
    %2597 = vmatprep.subr.mxu0 0.0
    %2598 = vmatpush1.msra.mxu0 0.0
    %2599 = vmatprep.subr.mxu0 0.0
    %2600 = vmatpush1.msra.mxu0 0.0
    %2601 = vmatprep.subr.mxu0 0.0
    %2602 = vmatpush1.msra.mxu0 0.0
    %2603 = vmatprep.subr.mxu0 0.0
    %2604 = vmatpush1.msra.mxu0 0.0
    %2605 = vmatprep.subr.mxu0 0.0
    %2606 = vmatpush1.msra.mxu0 0.0
    %2607 = vmatprep.subr.mxu0 0.0
    %2608 = vmatpush1.msra.mxu0 0.0
    %2609 = vmatprep.mubr.f32.mxu0 0.0
    %2610 = vmatmul.mubr.f32.gmra.mrb[0].mxu0 %v2449
    %v2611 = vpop.f32.mrb[0].mxu0
    %v2612 = vadd.f32 %v2528, %v2611
    %v2613 = vpop.f32.mrb[0].mxu0
    %v2614 = vadd.f32 %v2532, %v2613
    %2615 = vmatprep.mubr.f32.mxu0 0.0
    %2616 = vmatmul.mubr.f32.gmra.mrb[0].mxu0 %v2450
    %v2617 = vpop.f32.mrb[0].mxu0
    %v2618 = vadd.f32 %v2528, %v2617
    %v2619 = vpop.f32.mrb[0].mxu0
    %v2620 = vadd.f32 %v2532, %v2619
    %2621 = vmatprep.mubr.f32.mxu0 0.0
    %2622 = vmatmul.mubr.f32.gmra.mrb[0].mxu0 %v2451
    %v2623 = vpop.f32.mrb[0].mxu0
    %v2624 = vadd.f32 %v2528, %v2623
    %v2625 = vpop.f32.mrb[0].mxu0
    %v2626 = vadd.f32 %v2532, %v2625
    %2627 = vmatprep.mubr.f32.mxu0 0.0
    %2628 = vmatmul.mubr.f32.gmra.mrb[0].mxu0 %v2452
    %v2629 = vpop.f32.mrb[0].mxu0
    %v2630 = vadd.f32 %v2528, %v2629
    %v2631 = vpop.f32.mrb[0].mxu0
    %v2632 = vadd.f32 %v2532, %v2631
    %2633 = vmatprep.mubr.f32.mxu0 0.0
    %2634 = vmatmul.mubr.f32.gmra.mrb[0].mxu0 %v2453
    %v2635 = vpop.f32.mrb[0].mxu0
    %v2636 = vadd.f32 %v2528, %v2635
    %v2637 = vpop.f32.mrb[0].mxu0
    %v2638 = vadd.f32 %v2532, %v2637
    %2639 = vmatprep.mubr.f32.mxu0 0.0
    %2640 = vmatmul.mubr.f32.gmra.mrb[0].mxu0 %v2454
    %v2641 = vpop.f32.mrb[0].mxu0
    %v2642 = vadd.f32 %v2528, %v2641
    %v2643 = vpop.f32.mrb[0].mxu0
    %v2644 = vadd.f32 %v2532, %v2643
    %2645 = vmatprep.mubr.f32.mxu0 0.0
    %2646 = vmatmul.mubr.f32.gmra.mrb[0].mxu0 %v2455
    %v2647 = vpop.f32.mrb[0].mxu0
    %v2648 = vadd.f32 %v2528, %v2647
    %v2649 = vpop.f32.mrb[0].mxu0
    %v2650 = vadd.f32 %v2532, %v2649
    %2651 = vmatprep.mubr.f32.mxu0 0.0
    %2652 = vmatmul.mubr.f32.gmra.mrb[0].mxu0 %v2456
    %v2653 = vpop.f32.mrb[0].mxu0
    %v2654 = vadd.f32 %v2528, %v2653
    %v2655 = vpop.f32.mrb[0].mxu0
    %v2656 = vadd.f32 %v2532, %v2655
    %2657 = vdwg.mxu0
    %2658 = vmatprep.subr.mxu0 %v2461
    %2659 = vmatpush1.msra.mxu0 %v2460
    %2660 = vmatprep.subr.mxu0 %v2465
    %2661 = vmatpush1.msra.mxu0 %v2464
    %2662 = vmatprep.subr.mxu0 %v2469
    %2663 = vmatpush1.msra.mxu0 %v2468
    %2664 = vmatprep.subr.mxu0 %v2473
    %2665 = vmatpush1.msra.mxu0 %v2472
    %2666 = vmatprep.subr.mxu0 %v2477
    %2667 = vmatpush1.msra.mxu0 %v2476
    %2668 = vmatprep.subr.mxu0 %v2481
    %2669 = vmatpush1.msra.mxu0 %v2480
    %2670 = vmatprep.subr.mxu0 %v2485
    %2671 = vmatpush1.msra.mxu0 %v2484
    %2672 = vmatprep.subr.mxu0 %v2489
    %2673 = vmatpush1.msra.mxu0 %v2488
    %2674 = vmatprep.subr.mxu0 %v2493
    %2675 = vmatpush1.msra.mxu0 %v2492
    %2676 = vmatprep.subr.mxu0 %v2497
    %2677 = vmatpush1.msra.mxu0 %v2496
    %2678 = vmatprep.subr.mxu0 %v2501
    %2679 = vmatpush1.msra.mxu0 %v2500
    %2680 = vmatprep.subr.mxu0 %v2505
    %2681 = vmatpush1.msra.mxu0 %v2504
    %2682 = vmatprep.subr.mxu0 %v2509
    %2683 = vmatpush1.msra.mxu0 %v2508
    %2684 = vmatprep.subr.mxu0 %v2513
    %2685 = vmatpush1.msra.mxu0 %v2512
    %2686 = vmatprep.subr.mxu0 %v2517
    %2687 = vmatpush1.msra.mxu0 %v2516
    %2688 = vmatprep.subr.mxu0 %v2521
    %2689 = vmatpush1.msra.mxu0 %v2520
    %2690 = vmatprep.subr.mxu0 0.0
    %2691 = vmatpush1.msra.mxu0 0.0
    %2692 = vmatprep.subr.mxu0 0.0
    %2693 = vmatpush1.msra.mxu0 0.0
    %2694 = vmatprep.subr.mxu0 0.0
    %2695 = vmatpush1.msra.mxu0 0.0
    %2696 = vmatprep.subr.mxu0 0.0
    %2697 = vmatpush1.msra.mxu0 0.0
    %2698 = vmatprep.subr.mxu0 0.0
    %2699 = vmatpush1.msra.mxu0 0.0
    %2700 = vmatprep.subr.mxu0 0.0
    %2701 = vmatpush1.msra.mxu0 0.0
    %2702 = vmatprep.subr.mxu0 0.0
    %2703 = vmatpush1.msra.mxu0 0.0
    %2704 = vmatprep.subr.mxu0 0.0
    %2705 = vmatpush1.msra.mxu0 0.0
    %2706 = vmatprep.subr.mxu0 0.0
    %2707 = vmatpush1.msra.mxu0 0.0
    %2708 = vmatprep.subr.mxu0 0.0
    %2709 = vmatpush1.msra.mxu0 0.0
    %2710 = vmatprep.subr.mxu0 0.0
    %2711 = vmatpush1.msra.mxu0 0.0
    %2712 = vmatprep.subr.mxu0 0.0
    %2713 = vmatpush1.msra.mxu0 0.0
    %2714 = vmatprep.subr.mxu0 0.0
    %2715 = vmatpush1.msra.mxu0 0.0
    %2716 = vmatprep.subr.mxu0 0.0
    %2717 = vmatpush1.msra.mxu0 0.0
    %2718 = vmatprep.subr.mxu0 0.0
    %2719 = vmatpush1.msra.mxu0 0.0
    %2720 = vmatprep.subr.mxu0 0.0
    %2721 = vmatpush1.msra.mxu0 0.0
    %2722 = vmatprep.mubr.f32.mxu0 0.0
    %2723 = vmatmul.mubr.f32.gmra.mrb[0].mxu0 %v2449
    %v2724 = vpop.f32.mrb[0].mxu0
    %v2725 = vadd.f32 %v2536, %v2724
    %v2726 = vpop.f32.mrb[0].mxu0
    %v2727 = vadd.f32 %v2540, %v2726
    %2728 = vmatprep.mubr.f32.mxu0 0.0
    %2729 = vmatmul.mubr.f32.gmra.mrb[0].mxu0 %v2450
    %v2730 = vpop.f32.mrb[0].mxu0
    %v2731 = vadd.f32 %v2536, %v2730
    %v2732 = vpop.f32.mrb[0].mxu0
    %v2733 = vadd.f32 %v2540, %v2732
    %2734 = vmatprep.mubr.f32.mxu0 0.0
    %2735 = vmatmul.mubr.f32.gmra.mrb[0].mxu0 %v2451
    %v2736 = vpop.f32.mrb[0].mxu0
    %v2737 = vadd.f32 %v2536, %v2736
    %v2738 = vpop.f32.mrb[0].mxu0
    %v2739 = vadd.f32 %v2540, %v2738
    %2740 = vmatprep.mubr.f32.mxu0 0.0
    %2741 = vmatmul.mubr.f32.gmra.mrb[0].mxu0 %v2452
    %v2742 = vpop.f32.mrb[0].mxu0
    %v2743 = vadd.f32 %v2536, %v2742
    %v2744 = vpop.f32.mrb[0].mxu0
    %v2745 = vadd.f32 %v2540, %v2744
    %2746 = vmatprep.mubr.f32.mxu0 0.0
    %2747 = vmatmul.mubr.f32.gmra.mrb[0].mxu0 %v2453
    %v2748 = vpop.f32.mrb[0].mxu0
    %v2749 = vadd.f32 %v2536, %v2748
    %v2750 = vpop.f32.mrb[0].mxu0
    %v2751 = vadd.f32 %v2540, %v2750
    %2752 = vmatprep.mubr.f32.mxu0 0.0
    %2753 = vmatmul.mubr.f32.gmra.mrb[0].mxu0 %v2454
    %v2754 = vpop.f32.mrb[0].mxu0
    %v2755 = vadd.f32 %v2536, %v2754
    %v2756 = vpop.f32.mrb[0].mxu0
    %v2757 = vadd.f32 %v2540, %v2756
    %2758 = vmatprep.mubr.f32.mxu0 0.0
    %2759 = vmatmul.mubr.f32.gmra.mrb[0].mxu0 %v2455
    %v2760 = vpop.f32.mrb[0].mxu0
    %v2761 = vadd.f32 %v2536, %v2760
    %v2762 = vpop.f32.mrb[0].mxu0
    %v2763 = vadd.f32 %v2540, %v2762
    %2764 = vmatprep.mubr.f32.mxu0 0.0
    %2765 = vmatmul.mubr.f32.gmra.mrb[0].mxu0 %v2456
    %v2766 = vpop.f32.mrb[0].mxu0
    %v2767 = vadd.f32 %v2536, %v2766
    %v2768 = vpop.f32.mrb[0].mxu0
    %v2769 = vadd.f32 %v2540, %v2768
    %2770 = vdwg.mxu0
    %2771 = vst [vmem:[#allocation3] sm:$0xff] %v2612
    %2772 = vst [vmem:[#allocation3 + $0x8] sm:$0xff] %v2614
    %2773 = vst [vmem:[#allocation3 + $0x10] sm:$0xff] %v2725
    %2774 = vst [vmem:[#allocation3 + $0x18] sm:$0xff] %v2727
    %2775 = vst [vmem:[#allocation3 + $0x20] sm:$0xff] %v2618
    %2776 = vst [vmem:[#allocation3 + $0x28] sm:$0xff] %v2620
    %2777 = vst [vmem:[#allocation3 + $0x30] sm:$0xff] %v2731
    %2778 = vst [vmem:[#allocation3 + $0x38] sm:$0xff] %v2733
    %2779 = vst [vmem:[#allocation3 + $0x40] sm:$0xff] %v2624
    %2780 = vst [vmem:[#allocation3 + $0x48] sm:$0xff] %v2626
    %2781 = vst [vmem:[#allocation3 + $0x50] sm:$0xff] %v2737
    %2782 = vst [vmem:[#allocation3 + $0x58] sm:$0xff] %v2739
    %2783 = vst [vmem:[#allocation3 + $0x60] sm:$0xff] %v2630
    %2784 = vst [vmem:[#allocation3 + $0x68] sm:$0xff] %v2632
    %2785 = vst [vmem:[#allocation3 + $0x70] sm:$0xff] %v2743
    %2786 = vst [vmem:[#allocation3 + $0x78] sm:$0xff] %v2745
    %2787 = vst [vmem:[#allocation3 + $0x80] sm:$0xff] %v2636
    %2788 = vst [vmem:[#allocation3 + $0x88] sm:$0xff] %v2638
    %2789 = vst [vmem:[#allocation3 + $0x90] sm:$0xff] %v2749
    %2790 = vst [vmem:[#allocation3 + $0x98] sm:$0xff] %v2751
    %2791 = vst [vmem:[#allocation3 + $0xa0] sm:$0xff] %v2642
    %2792 = vst [vmem:[#allocation3 + $0xa8] sm:$0xff] %v2644
    %2793 = vst [vmem:[#allocation3 + $0xb0] sm:$0xff] %v2755
    %2794 = vst [vmem:[#allocation3 + $0xb8] sm:$0xff] %v2757
    %2795 = vst [vmem:[#allocation3 + $0xc0] sm:$0xff] %v2648
    %2796 = vst [vmem:[#allocation3 + $0xc8] sm:$0xff] %v2650
    %2797 = vst [vmem:[#allocation3 + $0xd0] sm:$0xff] %v2761
    %2798 = vst [vmem:[#allocation3 + $0xd8] sm:$0xff] %v2763
    %2799 = vst [vmem:[#allocation3 + $0xe0] sm:$0xff] %v2654
    %2800 = vst [vmem:[#allocation3 + $0xe8] sm:$0xff] %v2656
    %2801 = vst [vmem:[#allocation3 + $0xf0] sm:$0xff] %v2767
    %2802 = vst [vmem:[#allocation3 + $0xf8] sm:$0xff] %v2769
    %2803 = vst [vmem:[#allocation4] sm:$0xff] 0.0
    %2804 = vst [vmem:[#allocation5] sm:$0xff] 0.0
    %v2805 = vld [vmem:[#allocation3] sm:$0xff]
    %v2806 = vld [vmem:[#allocation3 + $0x8] sm:$0xff]
    %v2807 = vld [vmem:[#allocation3 + $0x10] sm:$0xff]
    %v2808 = vld [vmem:[#allocation3 + $0x18] sm:$0xff]
    %v2809 = vld [vmem:[#allocation4] sm:$0xff]
    %s2810 = scalar_lea.vmem [#allocation11], 512
    %v2811 = vld [vmem:[%s2810] sm:$0xff]
    %v2812 = vld [vmem:[%s2810 + $0x8] sm:$0xff]
    %v2813 = vld [vmem:[%s2810 + $0x10] sm:$0xff]
    %v2814 = vld [vmem:[%s2810 + $0x18] sm:$0xff]
    %v2815 = vld [vmem:[%s2810 + $0x20] sm:$0xff]
    %v2816 = vld [vmem:[%s2810 + $0x28] sm:$0xff]
    %v2817 = vld [vmem:[%s2810 + $0x30] sm:$0xff]
    %v2818 = vld [vmem:[%s2810 + $0x38] sm:$0xff]
    %v2819 = vld [vmem:[%s2810 + $0x40] sm:$0xff]
    %v2820 = vld [vmem:[%s2810 + $0x48] sm:$0xff]
    %v2821 = vld [vmem:[%s2810 + $0x50] sm:$0xff]
    %v2822 = vld [vmem:[%s2810 + $0x58] sm:$0xff]
    %v2823 = vld [vmem:[%s2810 + $0x60] sm:$0xff]
    %v2824 = vld [vmem:[%s2810 + $0x68] sm:$0xff]
    %v2825 = vld [vmem:[%s2810 + $0x70] sm:$0xff]
    %v2826 = vld [vmem:[%s2810 + $0x78] sm:$0xff]
    %v2827 = vld [vmem:[%s2810 + $0x80] sm:$0xff]
    %v2828 = vld [vmem:[%s2810 + $0x88] sm:$0xff]
    %v2829 = vld [vmem:[%s2810 + $0x90] sm:$0xff]
    %v2830 = vld [vmem:[%s2810 + $0x98] sm:$0xff]
    %v2831 = vld [vmem:[%s2810 + $0xa0] sm:$0xff]
    %v2832 = vld [vmem:[%s2810 + $0xa8] sm:$0xff]
    %v2833 = vld [vmem:[%s2810 + $0xb0] sm:$0xff]
    %v2834 = vld [vmem:[%s2810 + $0xb8] sm:$0xff]
    %v2835 = vld [vmem:[%s2810 + $0xc0] sm:$0xff]
    %v2836 = vld [vmem:[%s2810 + $0xc8] sm:$0xff]
    %v2837 = vld [vmem:[%s2810 + $0xd0] sm:$0xff]
    %v2838 = vld [vmem:[%s2810 + $0xd8] sm:$0xff]
    %v2839 = vld [vmem:[%s2810 + $0xe0] sm:$0xff]
    %v2840 = vld [vmem:[%s2810 + $0xe8] sm:$0xff]
    %v2841 = vld [vmem:[%s2810 + $0xf0] sm:$0xff]
    %v2842 = vld [vmem:[%s2810 + $0xf8] sm:$0xff]
    %v2843 = vld [vmem:[%s2810 + $0x100] sm:$0xff]
    %v2844 = vld [vmem:[%s2810 + $0x108] sm:$0xff]
    %v2845 = vld [vmem:[%s2810 + $0x110] sm:$0xff]
    %v2846 = vld [vmem:[%s2810 + $0x118] sm:$0xff]
    %v2847 = vld [vmem:[%s2810 + $0x120] sm:$0xff]
    %v2848 = vld [vmem:[%s2810 + $0x128] sm:$0xff]
    %v2849 = vld [vmem:[%s2810 + $0x130] sm:$0xff]
    %v2850 = vld [vmem:[%s2810 + $0x138] sm:$0xff]
    %v2851 = vld [vmem:[%s2810 + $0x140] sm:$0xff]
    %v2852 = vld [vmem:[%s2810 + $0x148] sm:$0xff]
    %v2853 = vld [vmem:[%s2810 + $0x150] sm:$0xff]
    %v2854 = vld [vmem:[%s2810 + $0x158] sm:$0xff]
    %v2855 = vld [vmem:[%s2810 + $0x160] sm:$0xff]
    %v2856 = vld [vmem:[%s2810 + $0x168] sm:$0xff]
    %v2857 = vld [vmem:[%s2810 + $0x170] sm:$0xff]
    %v2858 = vld [vmem:[%s2810 + $0x178] sm:$0xff]
    %v2859 = vld [vmem:[%s2810 + $0x180] sm:$0xff]
    %v2860 = vld [vmem:[%s2810 + $0x188] sm:$0xff]
    %v2861 = vld [vmem:[%s2810 + $0x190] sm:$0xff]
    %v2862 = vld [vmem:[%s2810 + $0x198] sm:$0xff]
    %v2863 = vld [vmem:[%s2810 + $0x1a0] sm:$0xff]
    %v2864 = vld [vmem:[%s2810 + $0x1a8] sm:$0xff]
    %v2865 = vld [vmem:[%s2810 + $0x1b0] sm:$0xff]
    %v2866 = vld [vmem:[%s2810 + $0x1b8] sm:$0xff]
    %v2867 = vld [vmem:[%s2810 + $0x1c0] sm:$0xff]
    %v2868 = vld [vmem:[%s2810 + $0x1c8] sm:$0xff]
    %v2869 = vld [vmem:[%s2810 + $0x1d0] sm:$0xff]
    %v2870 = vld [vmem:[%s2810 + $0x1d8] sm:$0xff]
    %v2871 = vld [vmem:[%s2810 + $0x1e0] sm:$0xff]
    %v2872 = vld [vmem:[%s2810 + $0x1e8] sm:$0xff]
    %v2873 = vld [vmem:[%s2810 + $0x1f0] sm:$0xff]
    %v2874 = vld [vmem:[%s2810 + $0x1f8] sm:$0xff]
    %2875 = vmatprep.subr.mxu0 %v2812
    %2876 = vmatpush1.msra.mxu0 %v2811
    %2877 = vmatprep.subr.mxu0 %v2816
    %2878 = vmatpush1.msra.mxu0 %v2815
    %2879 = vmatprep.subr.mxu0 %v2820
    %2880 = vmatpush1.msra.mxu0 %v2819
    %2881 = vmatprep.subr.mxu0 %v2824
    %2882 = vmatpush1.msra.mxu0 %v2823
    %2883 = vmatprep.subr.mxu0 %v2828
    %2884 = vmatpush1.msra.mxu0 %v2827
    %2885 = vmatprep.subr.mxu0 %v2832
    %2886 = vmatpush1.msra.mxu0 %v2831
    %2887 = vmatprep.subr.mxu0 %v2836
    %2888 = vmatpush1.msra.mxu0 %v2835
    %2889 = vmatprep.subr.mxu0 %v2840
    %2890 = vmatpush1.msra.mxu0 %v2839
    %2891 = vmatprep.subr.mxu0 %v2844
    %2892 = vmatpush1.msra.mxu0 %v2843
    %2893 = vmatprep.subr.mxu0 %v2848
    %2894 = vmatpush1.msra.mxu0 %v2847
    %2895 = vmatprep.subr.mxu0 %v2852
    %2896 = vmatpush1.msra.mxu0 %v2851
    %2897 = vmatprep.subr.mxu0 %v2856
    %2898 = vmatpush1.msra.mxu0 %v2855
    %2899 = vmatprep.subr.mxu0 %v2860
    %2900 = vmatpush1.msra.mxu0 %v2859
    %2901 = vmatprep.subr.mxu0 %v2864
    %2902 = vmatpush1.msra.mxu0 %v2863
    %2903 = vmatprep.subr.mxu0 %v2868
    %2904 = vmatpush1.msra.mxu0 %v2867
    %2905 = vmatprep.subr.mxu0 %v2872
    %2906 = vmatpush1.msra.mxu0 %v2871
    %2907 = vmatprep.subr.mxu0 0.0
    %2908 = vmatpush1.msra.mxu0 0.0
    %2909 = vmatprep.subr.mxu0 0.0
    %2910 = vmatpush1.msra.mxu0 0.0
    %2911 = vmatprep.subr.mxu0 0.0
    %2912 = vmatpush1.msra.mxu0 0.0
    %2913 = vmatprep.subr.mxu0 0.0
    %2914 = vmatpush1.msra.mxu0 0.0
    %2915 = vmatprep.subr.mxu0 0.0
    %2916 = vmatpush1.msra.mxu0 0.0
    %2917 = vmatprep.subr.mxu0 0.0
    %2918 = vmatpush1.msra.mxu0 0.0
    %2919 = vmatprep.subr.mxu0 0.0
    %2920 = vmatpush1.msra.mxu0 0.0
    %2921 = vmatprep.subr.mxu0 0.0
    %2922 = vmatpush1.msra.mxu0 0.0
    %2923 = vmatprep.subr.mxu0 0.0
    %2924 = vmatpush1.msra.mxu0 0.0
    %2925 = vmatprep.subr.mxu0 0.0
    %2926 = vmatpush1.msra.mxu0 0.0
    %2927 = vmatprep.subr.mxu0 0.0
    %2928 = vmatpush1.msra.mxu0 0.0
    %2929 = vmatprep.subr.mxu0 0.0
    %2930 = vmatpush1.msra.mxu0 0.0
    %2931 = vmatprep.subr.mxu0 0.0
    %2932 = vmatpush1.msra.mxu0 0.0
    %2933 = vmatprep.subr.mxu0 0.0
    %2934 = vmatpush1.msra.mxu0 0.0
    %2935 = vmatprep.subr.mxu0 0.0
    %2936 = vmatpush1.msra.mxu0 0.0
    %2937 = vmatprep.subr.mxu0 0.0
    %2938 = vmatpush1.msra.mxu0 0.0
    %2939 = vmatprep.mubr.f32.mxu0 0.0
    %2940 = vmatmul.mubr.f32.gmra.mrb[0].mxu0 %v2809
    %v2941 = vpop.f32.mrb[0].mxu0
    %v2942 = vadd.f32 0.0, %v2941
    %v2943 = vpop.f32.mrb[0].mxu0
    %v2944 = vadd.f32 0.0, %v2943
    %2945 = vdwg.mxu0
    %2946 = vmatprep.subr.mxu0 %v2814
    %2947 = vmatpush1.msra.mxu0 %v2813
    %2948 = vmatprep.subr.mxu0 %v2818
    %2949 = vmatpush1.msra.mxu0 %v2817
    %2950 = vmatprep.subr.mxu0 %v2822
    %2951 = vmatpush1.msra.mxu0 %v2821
    %2952 = vmatprep.subr.mxu0 %v2826
    %2953 = vmatpush1.msra.mxu0 %v2825
    %2954 = vmatprep.subr.mxu0 %v2830
    %2955 = vmatpush1.msra.mxu0 %v2829
    %2956 = vmatprep.subr.mxu0 %v2834
    %2957 = vmatpush1.msra.mxu0 %v2833
    %2958 = vmatprep.subr.mxu0 %v2838
    %2959 = vmatpush1.msra.mxu0 %v2837
    %2960 = vmatprep.subr.mxu0 %v2842
    %2961 = vmatpush1.msra.mxu0 %v2841
    %2962 = vmatprep.subr.mxu0 %v2846
    %2963 = vmatpush1.msra.mxu0 %v2845
    %2964 = vmatprep.subr.mxu0 %v2850
    %2965 = vmatpush1.msra.mxu0 %v2849
    %2966 = vmatprep.subr.mxu0 %v2854
    %2967 = vmatpush1.msra.mxu0 %v2853
    %2968 = vmatprep.subr.mxu0 %v2858
    %2969 = vmatpush1.msra.mxu0 %v2857
    %2970 = vmatprep.subr.mxu0 %v2862
    %2971 = vmatpush1.msra.mxu0 %v2861
    %2972 = vmatprep.subr.mxu0 %v2866
    %2973 = vmatpush1.msra.mxu0 %v2865
    %2974 = vmatprep.subr.mxu0 %v2870
    %2975 = vmatpush1.msra.mxu0 %v2869
    %2976 = vmatprep.subr.mxu0 %v2874
    %2977 = vmatpush1.msra.mxu0 %v2873
    %2978 = vmatprep.subr.mxu0 0.0
    %2979 = vmatpush1.msra.mxu0 0.0
    %2980 = vmatprep.subr.mxu0 0.0
    %2981 = vmatpush1.msra.mxu0 0.0
    %2982 = vmatprep.subr.mxu0 0.0
    %2983 = vmatpush1.msra.mxu0 0.0
    %2984 = vmatprep.subr.mxu0 0.0
    %2985 = vmatpush1.msra.mxu0 0.0
    %2986 = vmatprep.subr.mxu0 0.0
    %2987 = vmatpush1.msra.mxu0 0.0
    %2988 = vmatprep.subr.mxu0 0.0
    %2989 = vmatpush1.msra.mxu0 0.0
    %2990 = vmatprep.subr.mxu0 0.0
    %2991 = vmatpush1.msra.mxu0 0.0
    %2992 = vmatprep.subr.mxu0 0.0
    %2993 = vmatpush1.msra.mxu0 0.0
    %2994 = vmatprep.subr.mxu0 0.0
    %2995 = vmatpush1.msra.mxu0 0.0
    %2996 = vmatprep.subr.mxu0 0.0
    %2997 = vmatpush1.msra.mxu0 0.0
    %2998 = vmatprep.subr.mxu0 0.0
    %2999 = vmatpush1.msra.mxu0 0.0
    %3000 = vmatprep.subr.mxu0 0.0
    %3001 = vmatpush1.msra.mxu0 0.0
    %3002 = vmatprep.subr.mxu0 0.0
    %3003 = vmatpush1.msra.mxu0 0.0
    %3004 = vmatprep.subr.mxu0 0.0
    %3005 = vmatpush1.msra.mxu0 0.0
    %3006 = vmatprep.subr.mxu0 0.0
    %3007 = vmatpush1.msra.mxu0 0.0
    %3008 = vmatprep.subr.mxu0 0.0
    %3009 = vmatpush1.msra.mxu0 0.0
    %3010 = vmatprep.mubr.f32.mxu0 0.0
    %3011 = vmatmul.mubr.f32.gmra.mrb[0].mxu0 %v2809
    %v3012 = vpop.f32.mrb[0].mxu0
    %v3013 = vadd.f32 0.0, %v3012
    %v3014 = vpop.f32.mrb[0].mxu0
    %v3015 = vadd.f32 0.0, %v3014
    %3016 = vdwg.mxu0
    %v3017 = vadd.f32 %v2805, %v2942
    %v3018 = vadd.f32 %v2806, %v2944
    %v3019 = vadd.f32 %v2807, %v3013
    %v3020 = vadd.f32 %v2808, %v3015
    %v3021 = vxor.u32 %v3017, 2147483648
    %v3022 = vmul.f32 %v3021, 1.442695
    %v3023 = vpow.pop %v3022
    %v3024 = vadd.f32 %v3023, 1.0
    %v3025 = vrcp.pop %v3024
    %v3026 = vmul.f32 1.0, %v3025
    %v3027 = vxor.u32 %v3018, 2147483648
    %v3028 = vmul.f32 %v3027, 1.442695
    %v3029 = vpow.pop %v3028
    %v3030 = vadd.f32 %v3029, 1.0
    %v3031 = vrcp.pop %v3030
    %v3032 = vmul.f32 1.0, %v3031
    %v3033 = vtanh.pop %v3019
    %v3034 = vxor.u32 %v3020, 2147483648
    %v3035 = vmul.f32 %v3034, 1.442695
    %v3036 = vpow.pop %v3035
    %v3037 = vadd.f32 %v3036, 1.0
    %v3038 = vrcp.pop %v3037
    %v3039 = vmul.f32 1.0, %v3038
    %v3040 = vld [vmem:[#allocation5] sm:$0xff]
    %v3041 = vmul.f32 %v3032, %v3040
    %v3042 = vmul.f32 %v3026, %v3033
    %v3043 = vadd.f32 %v3041, %v3042
    %v3044 = vtanh.pop %v3043
    %v3045 = vmul.f32 %v3039, %v3044
    %3046 = vst [vmem:[#allocation5] sm:$0xff] %v3043
    %3047 = vst [vmem:[#allocation4] sm:$0xff] %v3045
    %3048 = vst [vmem:[#allocation2] sm:$0xff] %v3045
    %v3049 = vld [vmem:[%s734] sm:$0xff]
    %v3050 = vld [vmem:[%s734 + $0x8] sm:$0xff]
    %v3051 = vld [vmem:[%s734 + $0x10] sm:$0xff]
    %v3052 = vld [vmem:[%s734 + $0x18] sm:$0xff]
    %v3053 = vld [vmem:[#allocation4] sm:$0xff]
    %v3054 = vld [vmem:[%s2810] sm:$0xff]
    %v3055 = vld [vmem:[%s2810 + $0x8] sm:$0xff]
    %v3056 = vld [vmem:[%s2810 + $0x10] sm:$0xff]
    %v3057 = vld [vmem:[%s2810 + $0x18] sm:$0xff]
    %v3058 = vld [vmem:[%s2810 + $0x20] sm:$0xff]
    %v3059 = vld [vmem:[%s2810 + $0x28] sm:$0xff]
    %v3060 = vld [vmem:[%s2810 + $0x30] sm:$0xff]
    %v3061 = vld [vmem:[%s2810 + $0x38] sm:$0xff]
    %v3062 = vld [vmem:[%s2810 + $0x40] sm:$0xff]
    %v3063 = vld [vmem:[%s2810 + $0x48] sm:$0xff]
    %v3064 = vld [vmem:[%s2810 + $0x50] sm:$0xff]
    %v3065 = vld [vmem:[%s2810 + $0x58] sm:$0xff]
    %v3066 = vld [vmem:[%s2810 + $0x60] sm:$0xff]
    %v3067 = vld [vmem:[%s2810 + $0x68] sm:$0xff]
    %v3068 = vld [vmem:[%s2810 + $0x70] sm:$0xff]
    %v3069 = vld [vmem:[%s2810 + $0x78] sm:$0xff]
    %v3070 = vld [vmem:[%s2810 + $0x80] sm:$0xff]
    %v3071 = vld [vmem:[%s2810 + $0x88] sm:$0xff]
    %v3072 = vld [vmem:[%s2810 + $0x90] sm:$0xff]
    %v3073 = vld [vmem:[%s2810 + $0x98] sm:$0xff]
    %v3074 = vld [vmem:[%s2810 + $0xa0] sm:$0xff]
    %v3075 = vld [vmem:[%s2810 + $0xa8] sm:$0xff]
    %v3076 = vld [vmem:[%s2810 + $0xb0] sm:$0xff]
    %v3077 = vld [vmem:[%s2810 + $0xb8] sm:$0xff]
    %v3078 = vld [vmem:[%s2810 + $0xc0] sm:$0xff]
    %v3079 = vld [vmem:[%s2810 + $0xc8] sm:$0xff]
    %v3080 = vld [vmem:[%s2810 + $0xd0] sm:$0xff]
    %v3081 = vld [vmem:[%s2810 + $0xd8] sm:$0xff]
    %v3082 = vld [vmem:[%s2810 + $0xe0] sm:$0xff]
    %v3083 = vld [vmem:[%s2810 + $0xe8] sm:$0xff]
    %v3084 = vld [vmem:[%s2810 + $0xf0] sm:$0xff]
    %v3085 = vld [vmem:[%s2810 + $0xf8] sm:$0xff]
    %v3086 = vld [vmem:[%s2810 + $0x100] sm:$0xff]
    %v3087 = vld [vmem:[%s2810 + $0x108] sm:$0xff]
    %v3088 = vld [vmem:[%s2810 + $0x110] sm:$0xff]
    %v3089 = vld [vmem:[%s2810 + $0x118] sm:$0xff]
    %v3090 = vld [vmem:[%s2810 + $0x120] sm:$0xff]
    %v3091 = vld [vmem:[%s2810 + $0x128] sm:$0xff]
    %v3092 = vld [vmem:[%s2810 + $0x130] sm:$0xff]
    %v3093 = vld [vmem:[%s2810 + $0x138] sm:$0xff]
    %v3094 = vld [vmem:[%s2810 + $0x140] sm:$0xff]
    %v3095 = vld [vmem:[%s2810 + $0x148] sm:$0xff]
    %v3096 = vld [vmem:[%s2810 + $0x150] sm:$0xff]
    %v3097 = vld [vmem:[%s2810 + $0x158] sm:$0xff]
    %v3098 = vld [vmem:[%s2810 + $0x160] sm:$0xff]
    %v3099 = vld [vmem:[%s2810 + $0x168] sm:$0xff]
    %v3100 = vld [vmem:[%s2810 + $0x170] sm:$0xff]
    %v3101 = vld [vmem:[%s2810 + $0x178] sm:$0xff]
    %v3102 = vld [vmem:[%s2810 + $0x180] sm:$0xff]
    %v3103 = vld [vmem:[%s2810 + $0x188] sm:$0xff]
    %v3104 = vld [vmem:[%s2810 + $0x190] sm:$0xff]
    %v3105 = vld [vmem:[%s2810 + $0x198] sm:$0xff]
    %v3106 = vld [vmem:[%s2810 + $0x1a0] sm:$0xff]
    %v3107 = vld [vmem:[%s2810 + $0x1a8] sm:$0xff]
    %v3108 = vld [vmem:[%s2810 + $0x1b0] sm:$0xff]
    %v3109 = vld [vmem:[%s2810 + $0x1b8] sm:$0xff]
    %v3110 = vld [vmem:[%s2810 + $0x1c0] sm:$0xff]
    %v3111 = vld [vmem:[%s2810 + $0x1c8] sm:$0xff]
    %v3112 = vld [vmem:[%s2810 + $0x1d0] sm:$0xff]
    %v3113 = vld [vmem:[%s2810 + $0x1d8] sm:$0xff]
    %v3114 = vld [vmem:[%s2810 + $0x1e0] sm:$0xff]
    %v3115 = vld [vmem:[%s2810 + $0x1e8] sm:$0xff]
    %v3116 = vld [vmem:[%s2810 + $0x1f0] sm:$0xff]
    %v3117 = vld [vmem:[%s2810 + $0x1f8] sm:$0xff]
    %3118 = vmatprep.subr.mxu0 %v3055
    %3119 = vmatpush1.msra.mxu0 %v3054
    %3120 = vmatprep.subr.mxu0 %v3059
    %3121 = vmatpush1.msra.mxu0 %v3058
    %3122 = vmatprep.subr.mxu0 %v3063
    %3123 = vmatpush1.msra.mxu0 %v3062
    %3124 = vmatprep.subr.mxu0 %v3067
    %3125 = vmatpush1.msra.mxu0 %v3066
    %3126 = vmatprep.subr.mxu0 %v3071
    %3127 = vmatpush1.msra.mxu0 %v3070
    %3128 = vmatprep.subr.mxu0 %v3075
    %3129 = vmatpush1.msra.mxu0 %v3074
    %3130 = vmatprep.subr.mxu0 %v3079
    %3131 = vmatpush1.msra.mxu0 %v3078
    %3132 = vmatprep.subr.mxu0 %v3083
    %3133 = vmatpush1.msra.mxu0 %v3082
    %3134 = vmatprep.subr.mxu0 %v3087
    %3135 = vmatpush1.msra.mxu0 %v3086
    %3136 = vmatprep.subr.mxu0 %v3091
    %3137 = vmatpush1.msra.mxu0 %v3090
    %3138 = vmatprep.subr.mxu0 %v3095
    %3139 = vmatpush1.msra.mxu0 %v3094
    %3140 = vmatprep.subr.mxu0 %v3099
    %3141 = vmatpush1.msra.mxu0 %v3098
    %3142 = vmatprep.subr.mxu0 %v3103
    %3143 = vmatpush1.msra.mxu0 %v3102
    %3144 = vmatprep.subr.mxu0 %v3107
    %3145 = vmatpush1.msra.mxu0 %v3106
    %3146 = vmatprep.subr.mxu0 %v3111
    %3147 = vmatpush1.msra.mxu0 %v3110
    %3148 = vmatprep.subr.mxu0 %v3115
    %3149 = vmatpush1.msra.mxu0 %v3114
    %3150 = vmatprep.subr.mxu0 0.0
    %3151 = vmatpush1.msra.mxu0 0.0
    %3152 = vmatprep.subr.mxu0 0.0
    %3153 = vmatpush1.msra.mxu0 0.0
    %3154 = vmatprep.subr.mxu0 0.0
    %3155 = vmatpush1.msra.mxu0 0.0
    %3156 = vmatprep.subr.mxu0 0.0
    %3157 = vmatpush1.msra.mxu0 0.0
    %3158 = vmatprep.subr.mxu0 0.0
    %3159 = vmatpush1.msra.mxu0 0.0
    %3160 = vmatprep.subr.mxu0 0.0
    %3161 = vmatpush1.msra.mxu0 0.0
    %3162 = vmatprep.subr.mxu0 0.0
    %3163 = vmatpush1.msra.mxu0 0.0
    %3164 = vmatprep.subr.mxu0 0.0
    %3165 = vmatpush1.msra.mxu0 0.0
    %3166 = vmatprep.subr.mxu0 0.0
    %3167 = vmatpush1.msra.mxu0 0.0
    %3168 = vmatprep.subr.mxu0 0.0
    %3169 = vmatpush1.msra.mxu0 0.0
    %3170 = vmatprep.subr.mxu0 0.0
    %3171 = vmatpush1.msra.mxu0 0.0
    %3172 = vmatprep.subr.mxu0 0.0
    %3173 = vmatpush1.msra.mxu0 0.0
    %3174 = vmatprep.subr.mxu0 0.0
    %3175 = vmatpush1.msra.mxu0 0.0
    %3176 = vmatprep.subr.mxu0 0.0
    %3177 = vmatpush1.msra.mxu0 0.0
    %3178 = vmatprep.subr.mxu0 0.0
    %3179 = vmatpush1.msra.mxu0 0.0
    %3180 = vmatprep.subr.mxu0 0.0
    %3181 = vmatpush1.msra.mxu0 0.0
    %3182 = vmatprep.mubr.f32.mxu0 0.0
    %3183 = vmatmul.mubr.f32.gmra.mrb[0].mxu0 %v3053
    %v3184 = vpop.f32.mrb[0].mxu0
    %v3185 = vadd.f32 0.0, %v3184
    %v3186 = vpop.f32.mrb[0].mxu0
    %v3187 = vadd.f32 0.0, %v3186
    %3188 = vdwg.mxu0
    %3189 = vmatprep.subr.mxu0 %v3057
    %3190 = vmatpush1.msra.mxu0 %v3056
    %3191 = vmatprep.subr.mxu0 %v3061
    %3192 = vmatpush1.msra.mxu0 %v3060
    %3193 = vmatprep.subr.mxu0 %v3065
    %3194 = vmatpush1.msra.mxu0 %v3064
    %3195 = vmatprep.subr.mxu0 %v3069
    %3196 = vmatpush1.msra.mxu0 %v3068
    %3197 = vmatprep.subr.mxu0 %v3073
    %3198 = vmatpush1.msra.mxu0 %v3072
    %3199 = vmatprep.subr.mxu0 %v3077
    %3200 = vmatpush1.msra.mxu0 %v3076
    %3201 = vmatprep.subr.mxu0 %v3081
    %3202 = vmatpush1.msra.mxu0 %v3080
    %3203 = vmatprep.subr.mxu0 %v3085
    %3204 = vmatpush1.msra.mxu0 %v3084
    %3205 = vmatprep.subr.mxu0 %v3089
    %3206 = vmatpush1.msra.mxu0 %v3088
    %3207 = vmatprep.subr.mxu0 %v3093
    %3208 = vmatpush1.msra.mxu0 %v3092
    %3209 = vmatprep.subr.mxu0 %v3097
    %3210 = vmatpush1.msra.mxu0 %v3096
    %3211 = vmatprep.subr.mxu0 %v3101
    %3212 = vmatpush1.msra.mxu0 %v3100
    %3213 = vmatprep.subr.mxu0 %v3105
    %3214 = vmatpush1.msra.mxu0 %v3104
    %3215 = vmatprep.subr.mxu0 %v3109
    %3216 = vmatpush1.msra.mxu0 %v3108
    %3217 = vmatprep.subr.mxu0 %v3113
    %3218 = vmatpush1.msra.mxu0 %v3112
    %3219 = vmatprep.subr.mxu0 %v3117
    %3220 = vmatpush1.msra.mxu0 %v3116
    %3221 = vmatprep.subr.mxu0 0.0
    %3222 = vmatpush1.msra.mxu0 0.0
    %3223 = vmatprep.subr.mxu0 0.0
    %3224 = vmatpush1.msra.mxu0 0.0
    %3225 = vmatprep.subr.mxu0 0.0
    %3226 = vmatpush1.msra.mxu0 0.0
    %3227 = vmatprep.subr.mxu0 0.0
    %3228 = vmatpush1.msra.mxu0 0.0
    %3229 = vmatprep.subr.mxu0 0.0
    %3230 = vmatpush1.msra.mxu0 0.0
    %3231 = vmatprep.subr.mxu0 0.0
    %3232 = vmatpush1.msra.mxu0 0.0
    %3233 = vmatprep.subr.mxu0 0.0
    %3234 = vmatpush1.msra.mxu0 0.0
    %3235 = vmatprep.subr.mxu0 0.0
    %3236 = vmatpush1.msra.mxu0 0.0
    %3237 = vmatprep.subr.mxu0 0.0
    %3238 = vmatpush1.msra.mxu0 0.0
    %3239 = vmatprep.subr.mxu0 0.0
    %3240 = vmatpush1.msra.mxu0 0.0
    %3241 = vmatprep.subr.mxu0 0.0
    %3242 = vmatpush1.msra.mxu0 0.0
    %3243 = vmatprep.subr.mxu0 0.0
    %3244 = vmatpush1.msra.mxu0 0.0
    %3245 = vmatprep.subr.mxu0 0.0
    %3246 = vmatpush1.msra.mxu0 0.0
    %3247 = vmatprep.subr.mxu0 0.0
    %3248 = vmatpush1.msra.mxu0 0.0
    %3249 = vmatprep.subr.mxu0 0.0
    %3250 = vmatpush1.msra.mxu0 0.0
    %3251 = vmatprep.subr.mxu0 0.0
    %3252 = vmatpush1.msra.mxu0 0.0
    %3253 = vmatprep.mubr.f32.mxu0 0.0
    %3254 = vmatmul.mubr.f32.gmra.mrb[0].mxu0 %v3053
    %v3255 = vpop.f32.mrb[0].mxu0
    %v3256 = vadd.f32 0.0, %v3255
    %v3257 = vpop.f32.mrb[0].mxu0
    %v3258 = vadd.f32 0.0, %v3257
    %3259 = vdwg.mxu0
    %v3260 = vadd.f32 %v3049, %v3185
    %v3261 = vadd.f32 %v3050, %v3187
    %v3262 = vadd.f32 %v3051, %v3256
    %v3263 = vadd.f32 %v3052, %v3258
    %v3264 = vxor.u32 %v3260, 2147483648
    %v3265 = vmul.f32 %v3264, 1.442695
    %v3266 = vpow.pop %v3265
    %v3267 = vadd.f32 %v3266, 1.0
    %v3268 = vrcp.pop %v3267
    %v3269 = vmul.f32 1.0, %v3268
    %v3270 = vxor.u32 %v3261, 2147483648
    %v3271 = vmul.f32 %v3270, 1.442695
    %v3272 = vpow.pop %v3271
    %v3273 = vadd.f32 %v3272, 1.0
    %v3274 = vrcp.pop %v3273
    %v3275 = vmul.f32 1.0, %v3274
    %v3276 = vtanh.pop %v3262
    %v3277 = vxor.u32 %v3263, 2147483648
    %v3278 = vmul.f32 %v3277, 1.442695
    %v3279 = vpow.pop %v3278
    %v3280 = vadd.f32 %v3279, 1.0
    %v3281 = vrcp.pop %v3280
    %v3282 = vmul.f32 1.0, %v3281
    %v3283 = vld [vmem:[#allocation5] sm:$0xff]
    %v3284 = vmul.f32 %v3275, %v3283
    %v3285 = vmul.f32 %v3269, %v3276
    %v3286 = vadd.f32 %v3284, %v3285
    %v3287 = vtanh.pop %v3286
    %v3288 = vmul.f32 %v3282, %v3287
    %3289 = vst [vmem:[#allocation5] sm:$0xff] %v3286
    %3290 = vst [vmem:[#allocation4] sm:$0xff] %v3288
    %3291 = vst [vmem:[%s977] sm:$0xff] %v3288
    %v3292 = vld [vmem:[%s979] sm:$0xff]
    %v3293 = vld [vmem:[%s979 + $0x8] sm:$0xff]
    %v3294 = vld [vmem:[%s979 + $0x10] sm:$0xff]
    %v3295 = vld [vmem:[%s979 + $0x18] sm:$0xff]
    %v3296 = vld [vmem:[#allocation4] sm:$0xff]
    %v3297 = vld [vmem:[%s2810] sm:$0xff]
    %v3298 = vld [vmem:[%s2810 + $0x8] sm:$0xff]
    %v3299 = vld [vmem:[%s2810 + $0x10] sm:$0xff]
    %v3300 = vld [vmem:[%s2810 + $0x18] sm:$0xff]
    %v3301 = vld [vmem:[%s2810 + $0x20] sm:$0xff]
    %v3302 = vld [vmem:[%s2810 + $0x28] sm:$0xff]
    %v3303 = vld [vmem:[%s2810 + $0x30] sm:$0xff]
    %v3304 = vld [vmem:[%s2810 + $0x38] sm:$0xff]
    %v3305 = vld [vmem:[%s2810 + $0x40] sm:$0xff]
    %v3306 = vld [vmem:[%s2810 + $0x48] sm:$0xff]
    %v3307 = vld [vmem:[%s2810 + $0x50] sm:$0xff]
    %v3308 = vld [vmem:[%s2810 + $0x58] sm:$0xff]
    %v3309 = vld [vmem:[%s2810 + $0x60] sm:$0xff]
    %v3310 = vld [vmem:[%s2810 + $0x68] sm:$0xff]
    %v3311 = vld [vmem:[%s2810 + $0x70] sm:$0xff]
    %v3312 = vld [vmem:[%s2810 + $0x78] sm:$0xff]
    %v3313 = vld [vmem:[%s2810 + $0x80] sm:$0xff]
    %v3314 = vld [vmem:[%s2810 + $0x88] sm:$0xff]
    %v3315 = vld [vmem:[%s2810 + $0x90] sm:$0xff]
    %v3316 = vld [vmem:[%s2810 + $0x98] sm:$0xff]
    %v3317 = vld [vmem:[%s2810 + $0xa0] sm:$0xff]
    %v3318 = vld [vmem:[%s2810 + $0xa8] sm:$0xff]
    %v3319 = vld [vmem:[%s2810 + $0xb0] sm:$0xff]
    %v3320 = vld [vmem:[%s2810 + $0xb8] sm:$0xff]
    %v3321 = vld [vmem:[%s2810 + $0xc0] sm:$0xff]
    %v3322 = vld [vmem:[%s2810 + $0xc8] sm:$0xff]
    %v3323 = vld [vmem:[%s2810 + $0xd0] sm:$0xff]
    %v3324 = vld [vmem:[%s2810 + $0xd8] sm:$0xff]
    %v3325 = vld [vmem:[%s2810 + $0xe0] sm:$0xff]
    %v3326 = vld [vmem:[%s2810 + $0xe8] sm:$0xff]
    %v3327 = vld [vmem:[%s2810 + $0xf0] sm:$0xff]
    %v3328 = vld [vmem:[%s2810 + $0xf8] sm:$0xff]
    %v3329 = vld [vmem:[%s2810 + $0x100] sm:$0xff]
    %v3330 = vld [vmem:[%s2810 + $0x108] sm:$0xff]
    %v3331 = vld [vmem:[%s2810 + $0x110] sm:$0xff]
    %v3332 = vld [vmem:[%s2810 + $0x118] sm:$0xff]
    %v3333 = vld [vmem:[%s2810 + $0x120] sm:$0xff]
    %v3334 = vld [vmem:[%s2810 + $0x128] sm:$0xff]
    %v3335 = vld [vmem:[%s2810 + $0x130] sm:$0xff]
    %v3336 = vld [vmem:[%s2810 + $0x138] sm:$0xff]
    %v3337 = vld [vmem:[%s2810 + $0x140] sm:$0xff]
    %v3338 = vld [vmem:[%s2810 + $0x148] sm:$0xff]
    %v3339 = vld [vmem:[%s2810 + $0x150] sm:$0xff]
    %v3340 = vld [vmem:[%s2810 + $0x158] sm:$0xff]
    %v3341 = vld [vmem:[%s2810 + $0x160] sm:$0xff]
    %v3342 = vld [vmem:[%s2810 + $0x168] sm:$0xff]
    %v3343 = vld [vmem:[%s2810 + $0x170] sm:$0xff]
    %v3344 = vld [vmem:[%s2810 + $0x178] sm:$0xff]
    %v3345 = vld [vmem:[%s2810 + $0x180] sm:$0xff]
    %v3346 = vld [vmem:[%s2810 + $0x188] sm:$0xff]
    %v3347 = vld [vmem:[%s2810 + $0x190] sm:$0xff]
    %v3348 = vld [vmem:[%s2810 + $0x198] sm:$0xff]
    %v3349 = vld [vmem:[%s2810 + $0x1a0] sm:$0xff]
    %v3350 = vld [vmem:[%s2810 + $0x1a8] sm:$0xff]
    %v3351 = vld [vmem:[%s2810 + $0x1b0] sm:$0xff]
    %v3352 = vld [vmem:[%s2810 + $0x1b8] sm:$0xff]
    %v3353 = vld [vmem:[%s2810 + $0x1c0] sm:$0xff]
    %v3354 = vld [vmem:[%s2810 + $0x1c8] sm:$0xff]
    %v3355 = vld [vmem:[%s2810 + $0x1d0] sm:$0xff]
    %v3356 = vld [vmem:[%s2810 + $0x1d8] sm:$0xff]
    %v3357 = vld [vmem:[%s2810 + $0x1e0] sm:$0xff]
    %v3358 = vld [vmem:[%s2810 + $0x1e8] sm:$0xff]
    %v3359 = vld [vmem:[%s2810 + $0x1f0] sm:$0xff]
    %v3360 = vld [vmem:[%s2810 + $0x1f8] sm:$0xff]
    %3361 = vmatprep.subr.mxu0 %v3298
    %3362 = vmatpush1.msra.mxu0 %v3297
    %3363 = vmatprep.subr.mxu0 %v3302
    %3364 = vmatpush1.msra.mxu0 %v3301
    %3365 = vmatprep.subr.mxu0 %v3306
    %3366 = vmatpush1.msra.mxu0 %v3305
    %3367 = vmatprep.subr.mxu0 %v3310
    %3368 = vmatpush1.msra.mxu0 %v3309
    %3369 = vmatprep.subr.mxu0 %v3314
    %3370 = vmatpush1.msra.mxu0 %v3313
    %3371 = vmatprep.subr.mxu0 %v3318
    %3372 = vmatpush1.msra.mxu0 %v3317
    %3373 = vmatprep.subr.mxu0 %v3322
    %3374 = vmatpush1.msra.mxu0 %v3321
    %3375 = vmatprep.subr.mxu0 %v3326
    %3376 = vmatpush1.msra.mxu0 %v3325
    %3377 = vmatprep.subr.mxu0 %v3330
    %3378 = vmatpush1.msra.mxu0 %v3329
    %3379 = vmatprep.subr.mxu0 %v3334
    %3380 = vmatpush1.msra.mxu0 %v3333
    %3381 = vmatprep.subr.mxu0 %v3338
    %3382 = vmatpush1.msra.mxu0 %v3337
    %3383 = vmatprep.subr.mxu0 %v3342
    %3384 = vmatpush1.msra.mxu0 %v3341
    %3385 = vmatprep.subr.mxu0 %v3346
    %3386 = vmatpush1.msra.mxu0 %v3345
    %3387 = vmatprep.subr.mxu0 %v3350
    %3388 = vmatpush1.msra.mxu0 %v3349
    %3389 = vmatprep.subr.mxu0 %v3354
    %3390 = vmatpush1.msra.mxu0 %v3353
    %3391 = vmatprep.subr.mxu0 %v3358
    %3392 = vmatpush1.msra.mxu0 %v3357
    %3393 = vmatprep.subr.mxu0 0.0
    %3394 = vmatpush1.msra.mxu0 0.0
    %3395 = vmatprep.subr.mxu0 0.0
    %3396 = vmatpush1.msra.mxu0 0.0
    %3397 = vmatprep.subr.mxu0 0.0
    %3398 = vmatpush1.msra.mxu0 0.0
    %3399 = vmatprep.subr.mxu0 0.0
    %3400 = vmatpush1.msra.mxu0 0.0
    %3401 = vmatprep.subr.mxu0 0.0
    %3402 = vmatpush1.msra.mxu0 0.0
    %3403 = vmatprep.subr.mxu0 0.0
    %3404 = vmatpush1.msra.mxu0 0.0
    %3405 = vmatprep.subr.mxu0 0.0
    %3406 = vmatpush1.msra.mxu0 0.0
    %3407 = vmatprep.subr.mxu0 0.0
    %3408 = vmatpush1.msra.mxu0 0.0
    %3409 = vmatprep.subr.mxu0 0.0
    %3410 = vmatpush1.msra.mxu0 0.0
    %3411 = vmatprep.subr.mxu0 0.0
    %3412 = vmatpush1.msra.mxu0 0.0
    %3413 = vmatprep.subr.mxu0 0.0
    %3414 = vmatpush1.msra.mxu0 0.0
    %3415 = vmatprep.subr.mxu0 0.0
    %3416 = vmatpush1.msra.mxu0 0.0
    %3417 = vmatprep.subr.mxu0 0.0
    %3418 = vmatpush1.msra.mxu0 0.0
    %3419 = vmatprep.subr.mxu0 0.0
    %3420 = vmatpush1.msra.mxu0 0.0
    %3421 = vmatprep.subr.mxu0 0.0
    %3422 = vmatpush1.msra.mxu0 0.0
    %3423 = vmatprep.subr.mxu0 0.0
    %3424 = vmatpush1.msra.mxu0 0.0
    %3425 = vmatprep.mubr.f32.mxu0 0.0
    %3426 = vmatmul.mubr.f32.gmra.mrb[0].mxu0 %v3296
    %v3427 = vpop.f32.mrb[0].mxu0
    %v3428 = vadd.f32 0.0, %v3427
    %v3429 = vpop.f32.mrb[0].mxu0
    %v3430 = vadd.f32 0.0, %v3429
    %3431 = vdwg.mxu0
    %3432 = vmatprep.subr.mxu0 %v3300
    %3433 = vmatpush1.msra.mxu0 %v3299
    %3434 = vmatprep.subr.mxu0 %v3304
    %3435 = vmatpush1.msra.mxu0 %v3303
    %3436 = vmatprep.subr.mxu0 %v3308
    %3437 = vmatpush1.msra.mxu0 %v3307
    %3438 = vmatprep.subr.mxu0 %v3312
    %3439 = vmatpush1.msra.mxu0 %v3311
    %3440 = vmatprep.subr.mxu0 %v3316
    %3441 = vmatpush1.msra.mxu0 %v3315
    %3442 = vmatprep.subr.mxu0 %v3320
    %3443 = vmatpush1.msra.mxu0 %v3319
    %3444 = vmatprep.subr.mxu0 %v3324
    %3445 = vmatpush1.msra.mxu0 %v3323
    %3446 = vmatprep.subr.mxu0 %v3328
    %3447 = vmatpush1.msra.mxu0 %v3327
    %3448 = vmatprep.subr.mxu0 %v3332
    %3449 = vmatpush1.msra.mxu0 %v3331
    %3450 = vmatprep.subr.mxu0 %v3336
    %3451 = vmatpush1.msra.mxu0 %v3335
    %3452 = vmatprep.subr.mxu0 %v3340
    %3453 = vmatpush1.msra.mxu0 %v3339
    %3454 = vmatprep.subr.mxu0 %v3344
    %3455 = vmatpush1.msra.mxu0 %v3343
    %3456 = vmatprep.subr.mxu0 %v3348
    %3457 = vmatpush1.msra.mxu0 %v3347
    %3458 = vmatprep.subr.mxu0 %v3352
    %3459 = vmatpush1.msra.mxu0 %v3351
    %3460 = vmatprep.subr.mxu0 %v3356
    %3461 = vmatpush1.msra.mxu0 %v3355
    %3462 = vmatprep.subr.mxu0 %v3360
    %3463 = vmatpush1.msra.mxu0 %v3359
    %3464 = vmatprep.subr.mxu0 0.0
    %3465 = vmatpush1.msra.mxu0 0.0
    %3466 = vmatprep.subr.mxu0 0.0
    %3467 = vmatpush1.msra.mxu0 0.0
    %3468 = vmatprep.subr.mxu0 0.0
    %3469 = vmatpush1.msra.mxu0 0.0
    %3470 = vmatprep.subr.mxu0 0.0
    %3471 = vmatpush1.msra.mxu0 0.0
    %3472 = vmatprep.subr.mxu0 0.0
    %3473 = vmatpush1.msra.mxu0 0.0
    %3474 = vmatprep.subr.mxu0 0.0
    %3475 = vmatpush1.msra.mxu0 0.0
    %3476 = vmatprep.subr.mxu0 0.0
    %3477 = vmatpush1.msra.mxu0 0.0
    %3478 = vmatprep.subr.mxu0 0.0
    %3479 = vmatpush1.msra.mxu0 0.0
    %3480 = vmatprep.subr.mxu0 0.0
    %3481 = vmatpush1.msra.mxu0 0.0
    %3482 = vmatprep.subr.mxu0 0.0
    %3483 = vmatpush1.msra.mxu0 0.0
    %3484 = vmatprep.subr.mxu0 0.0
    %3485 = vmatpush1.msra.mxu0 0.0
    %3486 = vmatprep.subr.mxu0 0.0
    %3487 = vmatpush1.msra.mxu0 0.0
    %3488 = vmatprep.subr.mxu0 0.0
    %3489 = vmatpush1.msra.mxu0 0.0
    %3490 = vmatprep.subr.mxu0 0.0
    %3491 = vmatpush1.msra.mxu0 0.0
    %3492 = vmatprep.subr.mxu0 0.0
    %3493 = vmatpush1.msra.mxu0 0.0
    %3494 = vmatprep.subr.mxu0 0.0
    %3495 = vmatpush1.msra.mxu0 0.0
    %3496 = vmatprep.mubr.f32.mxu0 0.0
    %3497 = vmatmul.mubr.f32.gmra.mrb[0].mxu0 %v3296
    %v3498 = vpop.f32.mrb[0].mxu0
    %v3499 = vadd.f32 0.0, %v3498
    %v3500 = vpop.f32.mrb[0].mxu0
    %v3501 = vadd.f32 0.0, %v3500
    %3502 = vdwg.mxu0
    %v3503 = vadd.f32 %v3292, %v3428
    %v3504 = vadd.f32 %v3293, %v3430
    %v3505 = vadd.f32 %v3294, %v3499
    %v3506 = vadd.f32 %v3295, %v3501
    %v3507 = vxor.u32 %v3503, 2147483648
    %v3508 = vmul.f32 %v3507, 1.442695
    %v3509 = vpow.pop %v3508
    %v3510 = vadd.f32 %v3509, 1.0
    %v3511 = vrcp.pop %v3510
    %v3512 = vmul.f32 1.0, %v3511
    %v3513 = vxor.u32 %v3504, 2147483648
    %v3514 = vmul.f32 %v3513, 1.442695
    %v3515 = vpow.pop %v3514
    %v3516 = vadd.f32 %v3515, 1.0
    %v3517 = vrcp.pop %v3516
    %v3518 = vmul.f32 1.0, %v3517
    %v3519 = vtanh.pop %v3505
    %v3520 = vxor.u32 %v3506, 2147483648
    %v3521 = vmul.f32 %v3520, 1.442695
    %v3522 = vpow.pop %v3521
    %v3523 = vadd.f32 %v3522, 1.0
    %v3524 = vrcp.pop %v3523
    %v3525 = vmul.f32 1.0, %v3524
    %v3526 = vld [vmem:[#allocation5] sm:$0xff]
    %v3527 = vmul.f32 %v3518, %v3526
    %v3528 = vmul.f32 %v3512, %v3519
    %v3529 = vadd.f32 %v3527, %v3528
    %v3530 = vtanh.pop %v3529
    %v3531 = vmul.f32 %v3525, %v3530
    %3532 = vst [vmem:[#allocation5] sm:$0xff] %v3529
    %3533 = vst [vmem:[#allocation4] sm:$0xff] %v3531
    %3534 = vst [vmem:[%s1222] sm:$0xff] %v3531
    %v3535 = vld [vmem:[%s1224] sm:$0xff]
    %v3536 = vld [vmem:[%s1224 + $0x8] sm:$0xff]
    %v3537 = vld [vmem:[%s1224 + $0x10] sm:$0xff]
    %v3538 = vld [vmem:[%s1224 + $0x18] sm:$0xff]
    %v3539 = vld [vmem:[#allocation4] sm:$0xff]
    %v3540 = vld [vmem:[%s2810] sm:$0xff]
    %v3541 = vld [vmem:[%s2810 + $0x8] sm:$0xff]
    %v3542 = vld [vmem:[%s2810 + $0x10] sm:$0xff]
    %v3543 = vld [vmem:[%s2810 + $0x18] sm:$0xff]
    %v3544 = vld [vmem:[%s2810 + $0x20] sm:$0xff]
    %v3545 = vld [vmem:[%s2810 + $0x28] sm:$0xff]
    %v3546 = vld [vmem:[%s2810 + $0x30] sm:$0xff]
    %v3547 = vld [vmem:[%s2810 + $0x38] sm:$0xff]
    %v3548 = vld [vmem:[%s2810 + $0x40] sm:$0xff]
    %v3549 = vld [vmem:[%s2810 + $0x48] sm:$0xff]
    %v3550 = vld [vmem:[%s2810 + $0x50] sm:$0xff]
    %v3551 = vld [vmem:[%s2810 + $0x58] sm:$0xff]
    %v3552 = vld [vmem:[%s2810 + $0x60] sm:$0xff]
    %v3553 = vld [vmem:[%s2810 + $0x68] sm:$0xff]
    %v3554 = vld [vmem:[%s2810 + $0x70] sm:$0xff]
    %v3555 = vld [vmem:[%s2810 + $0x78] sm:$0xff]
    %v3556 = vld [vmem:[%s2810 + $0x80] sm:$0xff]
    %v3557 = vld [vmem:[%s2810 + $0x88] sm:$0xff]
    %v3558 = vld [vmem:[%s2810 + $0x90] sm:$0xff]
    %v3559 = vld [vmem:[%s2810 + $0x98] sm:$0xff]
    %v3560 = vld [vmem:[%s2810 + $0xa0] sm:$0xff]
    %v3561 = vld [vmem:[%s2810 + $0xa8] sm:$0xff]
    %v3562 = vld [vmem:[%s2810 + $0xb0] sm:$0xff]
    %v3563 = vld [vmem:[%s2810 + $0xb8] sm:$0xff]
    %v3564 = vld [vmem:[%s2810 + $0xc0] sm:$0xff]
    %v3565 = vld [vmem:[%s2810 + $0xc8] sm:$0xff]
    %v3566 = vld [vmem:[%s2810 + $0xd0] sm:$0xff]
    %v3567 = vld [vmem:[%s2810 + $0xd8] sm:$0xff]
    %v3568 = vld [vmem:[%s2810 + $0xe0] sm:$0xff]
    %v3569 = vld [vmem:[%s2810 + $0xe8] sm:$0xff]
    %v3570 = vld [vmem:[%s2810 + $0xf0] sm:$0xff]
    %v3571 = vld [vmem:[%s2810 + $0xf8] sm:$0xff]
    %v3572 = vld [vmem:[%s2810 + $0x100] sm:$0xff]
    %v3573 = vld [vmem:[%s2810 + $0x108] sm:$0xff]
    %v3574 = vld [vmem:[%s2810 + $0x110] sm:$0xff]
    %v3575 = vld [vmem:[%s2810 + $0x118] sm:$0xff]
    %v3576 = vld [vmem:[%s2810 + $0x120] sm:$0xff]
    %v3577 = vld [vmem:[%s2810 + $0x128] sm:$0xff]
    %v3578 = vld [vmem:[%s2810 + $0x130] sm:$0xff]
    %v3579 = vld [vmem:[%s2810 + $0x138] sm:$0xff]
    %v3580 = vld [vmem:[%s2810 + $0x140] sm:$0xff]
    %v3581 = vld [vmem:[%s2810 + $0x148] sm:$0xff]
    %v3582 = vld [vmem:[%s2810 + $0x150] sm:$0xff]
    %v3583 = vld [vmem:[%s2810 + $0x158] sm:$0xff]
    %v3584 = vld [vmem:[%s2810 + $0x160] sm:$0xff]
    %v3585 = vld [vmem:[%s2810 + $0x168] sm:$0xff]
    %v3586 = vld [vmem:[%s2810 + $0x170] sm:$0xff]
    %v3587 = vld [vmem:[%s2810 + $0x178] sm:$0xff]
    %v3588 = vld [vmem:[%s2810 + $0x180] sm:$0xff]
    %v3589 = vld [vmem:[%s2810 + $0x188] sm:$0xff]
    %v3590 = vld [vmem:[%s2810 + $0x190] sm:$0xff]
    %v3591 = vld [vmem:[%s2810 + $0x198] sm:$0xff]
    %v3592 = vld [vmem:[%s2810 + $0x1a0] sm:$0xff]
    %v3593 = vld [vmem:[%s2810 + $0x1a8] sm:$0xff]
    %v3594 = vld [vmem:[%s2810 + $0x1b0] sm:$0xff]
    %v3595 = vld [vmem:[%s2810 + $0x1b8] sm:$0xff]
    %v3596 = vld [vmem:[%s2810 + $0x1c0] sm:$0xff]
    %v3597 = vld [vmem:[%s2810 + $0x1c8] sm:$0xff]
    %v3598 = vld [vmem:[%s2810 + $0x1d0] sm:$0xff]
    %v3599 = vld [vmem:[%s2810 + $0x1d8] sm:$0xff]
    %v3600 = vld [vmem:[%s2810 + $0x1e0] sm:$0xff]
    %v3601 = vld [vmem:[%s2810 + $0x1e8] sm:$0xff]
    %v3602 = vld [vmem:[%s2810 + $0x1f0] sm:$0xff]
    %v3603 = vld [vmem:[%s2810 + $0x1f8] sm:$0xff]
    %3604 = vmatprep.subr.mxu0 %v3541
    %3605 = vmatpush1.msra.mxu0 %v3540
    %3606 = vmatprep.subr.mxu0 %v3545
    %3607 = vmatpush1.msra.mxu0 %v3544
    %3608 = vmatprep.subr.mxu0 %v3549
    %3609 = vmatpush1.msra.mxu0 %v3548
    %3610 = vmatprep.subr.mxu0 %v3553
    %3611 = vmatpush1.msra.mxu0 %v3552
    %3612 = vmatprep.subr.mxu0 %v3557
    %3613 = vmatpush1.msra.mxu0 %v3556
    %3614 = vmatprep.subr.mxu0 %v3561
    %3615 = vmatpush1.msra.mxu0 %v3560
    %3616 = vmatprep.subr.mxu0 %v3565
    %3617 = vmatpush1.msra.mxu0 %v3564
    %3618 = vmatprep.subr.mxu0 %v3569
    %3619 = vmatpush1.msra.mxu0 %v3568
    %3620 = vmatprep.subr.mxu0 %v3573
    %3621 = vmatpush1.msra.mxu0 %v3572
    %3622 = vmatprep.subr.mxu0 %v3577
    %3623 = vmatpush1.msra.mxu0 %v3576
    %3624 = vmatprep.subr.mxu0 %v3581
    %3625 = vmatpush1.msra.mxu0 %v3580
    %3626 = vmatprep.subr.mxu0 %v3585
    %3627 = vmatpush1.msra.mxu0 %v3584
    %3628 = vmatprep.subr.mxu0 %v3589
    %3629 = vmatpush1.msra.mxu0 %v3588
    %3630 = vmatprep.subr.mxu0 %v3593
    %3631 = vmatpush1.msra.mxu0 %v3592
    %3632 = vmatprep.subr.mxu0 %v3597
    %3633 = vmatpush1.msra.mxu0 %v3596
    %3634 = vmatprep.subr.mxu0 %v3601
    %3635 = vmatpush1.msra.mxu0 %v3600
    %3636 = vmatprep.subr.mxu0 0.0
    %3637 = vmatpush1.msra.mxu0 0.0
    %3638 = vmatprep.subr.mxu0 0.0
    %3639 = vmatpush1.msra.mxu0 0.0
    %3640 = vmatprep.subr.mxu0 0.0
    %3641 = vmatpush1.msra.mxu0 0.0
    %3642 = vmatprep.subr.mxu0 0.0
    %3643 = vmatpush1.msra.mxu0 0.0
    %3644 = vmatprep.subr.mxu0 0.0
    %3645 = vmatpush1.msra.mxu0 0.0
    %3646 = vmatprep.subr.mxu0 0.0
    %3647 = vmatpush1.msra.mxu0 0.0
    %3648 = vmatprep.subr.mxu0 0.0
    %3649 = vmatpush1.msra.mxu0 0.0
    %3650 = vmatprep.subr.mxu0 0.0
    %3651 = vmatpush1.msra.mxu0 0.0
    %3652 = vmatprep.subr.mxu0 0.0
    %3653 = vmatpush1.msra.mxu0 0.0
    %3654 = vmatprep.subr.mxu0 0.0
    %3655 = vmatpush1.msra.mxu0 0.0
    %3656 = vmatprep.subr.mxu0 0.0
    %3657 = vmatpush1.msra.mxu0 0.0
    %3658 = vmatprep.subr.mxu0 0.0
    %3659 = vmatpush1.msra.mxu0 0.0
    %3660 = vmatprep.subr.mxu0 0.0
    %3661 = vmatpush1.msra.mxu0 0.0
    %3662 = vmatprep.subr.mxu0 0.0
    %3663 = vmatpush1.msra.mxu0 0.0
    %3664 = vmatprep.subr.mxu0 0.0
    %3665 = vmatpush1.msra.mxu0 0.0
    %3666 = vmatprep.subr.mxu0 0.0
    %3667 = vmatpush1.msra.mxu0 0.0
    %3668 = vmatprep.mubr.f32.mxu0 0.0
    %3669 = vmatmul.mubr.f32.gmra.mrb[0].mxu0 %v3539
    %v3670 = vpop.f32.mrb[0].mxu0
    %v3671 = vadd.f32 0.0, %v3670
    %v3672 = vpop.f32.mrb[0].mxu0
    %v3673 = vadd.f32 0.0, %v3672
    %3674 = vdwg.mxu0
    %3675 = vmatprep.subr.mxu0 %v3543
    %3676 = vmatpush1.msra.mxu0 %v3542
    %3677 = vmatprep.subr.mxu0 %v3547
    %3678 = vmatpush1.msra.mxu0 %v3546
    %3679 = vmatprep.subr.mxu0 %v3551
    %3680 = vmatpush1.msra.mxu0 %v3550
    %3681 = vmatprep.subr.mxu0 %v3555
    %3682 = vmatpush1.msra.mxu0 %v3554
    %3683 = vmatprep.subr.mxu0 %v3559
    %3684 = vmatpush1.msra.mxu0 %v3558
    %3685 = vmatprep.subr.mxu0 %v3563
    %3686 = vmatpush1.msra.mxu0 %v3562
    %3687 = vmatprep.subr.mxu0 %v3567
    %3688 = vmatpush1.msra.mxu0 %v3566
    %3689 = vmatprep.subr.mxu0 %v3571
    %3690 = vmatpush1.msra.mxu0 %v3570
    %3691 = vmatprep.subr.mxu0 %v3575
    %3692 = vmatpush1.msra.mxu0 %v3574
    %3693 = vmatprep.subr.mxu0 %v3579
    %3694 = vmatpush1.msra.mxu0 %v3578
    %3695 = vmatprep.subr.mxu0 %v3583
    %3696 = vmatpush1.msra.mxu0 %v3582
    %3697 = vmatprep.subr.mxu0 %v3587
    %3698 = vmatpush1.msra.mxu0 %v3586
    %3699 = vmatprep.subr.mxu0 %v3591
    %3700 = vmatpush1.msra.mxu0 %v3590
    %3701 = vmatprep.subr.mxu0 %v3595
    %3702 = vmatpush1.msra.mxu0 %v3594
    %3703 = vmatprep.subr.mxu0 %v3599
    %3704 = vmatpush1.msra.mxu0 %v3598
    %3705 = vmatprep.subr.mxu0 %v3603
    %3706 = vmatpush1.msra.mxu0 %v3602
    %3707 = vmatprep.subr.mxu0 0.0
    %3708 = vmatpush1.msra.mxu0 0.0
    %3709 = vmatprep.subr.mxu0 0.0
    %3710 = vmatpush1.msra.mxu0 0.0
    %3711 = vmatprep.subr.mxu0 0.0
    %3712 = vmatpush1.msra.mxu0 0.0
    %3713 = vmatprep.subr.mxu0 0.0
    %3714 = vmatpush1.msra.mxu0 0.0
    %3715 = vmatprep.subr.mxu0 0.0
    %3716 = vmatpush1.msra.mxu0 0.0
    %3717 = vmatprep.subr.mxu0 0.0
    %3718 = vmatpush1.msra.mxu0 0.0
    %3719 = vmatprep.subr.mxu0 0.0
    %3720 = vmatpush1.msra.mxu0 0.0
    %3721 = vmatprep.subr.mxu0 0.0
    %3722 = vmatpush1.msra.mxu0 0.0
    %3723 = vmatprep.subr.mxu0 0.0
    %3724 = vmatpush1.msra.mxu0 0.0
    %3725 = vmatprep.subr.mxu0 0.0
    %3726 = vmatpush1.msra.mxu0 0.0
    %3727 = vmatprep.subr.mxu0 0.0
    %3728 = vmatpush1.msra.mxu0 0.0
    %3729 = vmatprep.subr.mxu0 0.0
    %3730 = vmatpush1.msra.mxu0 0.0
    %3731 = vmatprep.subr.mxu0 0.0
    %3732 = vmatpush1.msra.mxu0 0.0
    %3733 = vmatprep.subr.mxu0 0.0
    %3734 = vmatpush1.msra.mxu0 0.0
    %3735 = vmatprep.subr.mxu0 0.0
    %3736 = vmatpush1.msra.mxu0 0.0
    %3737 = vmatprep.subr.mxu0 0.0
    %3738 = vmatpush1.msra.mxu0 0.0
    %3739 = vmatprep.mubr.f32.mxu0 0.0
    %3740 = vmatmul.mubr.f32.gmra.mrb[0].mxu0 %v3539
    %v3741 = vpop.f32.mrb[0].mxu0
    %v3742 = vadd.f32 0.0, %v3741
    %v3743 = vpop.f32.mrb[0].mxu0
    %v3744 = vadd.f32 0.0, %v3743
    %3745 = vdwg.mxu0
    %v3746 = vadd.f32 %v3535, %v3671
    %v3747 = vadd.f32 %v3536, %v3673
    %v3748 = vadd.f32 %v3537, %v3742
    %v3749 = vadd.f32 %v3538, %v3744
    %v3750 = vxor.u32 %v3746, 2147483648
    %v3751 = vmul.f32 %v3750, 1.442695
    %v3752 = vpow.pop %v3751
    %v3753 = vadd.f32 %v3752, 1.0
    %v3754 = vrcp.pop %v3753
    %v3755 = vmul.f32 1.0, %v3754
    %v3756 = vxor.u32 %v3747, 2147483648
    %v3757 = vmul.f32 %v3756, 1.442695
    %v3758 = vpow.pop %v3757
    %v3759 = vadd.f32 %v3758, 1.0
    %v3760 = vrcp.pop %v3759
    %v3761 = vmul.f32 1.0, %v3760
    %v3762 = vtanh.pop %v3748
    %v3763 = vxor.u32 %v3749, 2147483648
    %v3764 = vmul.f32 %v3763, 1.442695
    %v3765 = vpow.pop %v3764
    %v3766 = vadd.f32 %v3765, 1.0
    %v3767 = vrcp.pop %v3766
    %v3768 = vmul.f32 1.0, %v3767
    %v3769 = vld [vmem:[#allocation5] sm:$0xff]
    %v3770 = vmul.f32 %v3761, %v3769
    %v3771 = vmul.f32 %v3755, %v3762
    %v3772 = vadd.f32 %v3770, %v3771
    %v3773 = vtanh.pop %v3772
    %v3774 = vmul.f32 %v3768, %v3773
    %3775 = vst [vmem:[#allocation5] sm:$0xff] %v3772
    %3776 = vst [vmem:[#allocation4] sm:$0xff] %v3774
    %3777 = vst [vmem:[%s1467] sm:$0xff] %v3774
    %v3778 = vld [vmem:[%s1469] sm:$0xff]
    %v3779 = vld [vmem:[%s1469 + $0x8] sm:$0xff]
    %v3780 = vld [vmem:[%s1469 + $0x10] sm:$0xff]
    %v3781 = vld [vmem:[%s1469 + $0x18] sm:$0xff]
    %v3782 = vld [vmem:[#allocation4] sm:$0xff]
    %v3783 = vld [vmem:[%s2810] sm:$0xff]
    %v3784 = vld [vmem:[%s2810 + $0x8] sm:$0xff]
    %v3785 = vld [vmem:[%s2810 + $0x10] sm:$0xff]
    %v3786 = vld [vmem:[%s2810 + $0x18] sm:$0xff]
    %v3787 = vld [vmem:[%s2810 + $0x20] sm:$0xff]
    %v3788 = vld [vmem:[%s2810 + $0x28] sm:$0xff]
    %v3789 = vld [vmem:[%s2810 + $0x30] sm:$0xff]
    %v3790 = vld [vmem:[%s2810 + $0x38] sm:$0xff]
    %v3791 = vld [vmem:[%s2810 + $0x40] sm:$0xff]
    %v3792 = vld [vmem:[%s2810 + $0x48] sm:$0xff]
    %v3793 = vld [vmem:[%s2810 + $0x50] sm:$0xff]
    %v3794 = vld [vmem:[%s2810 + $0x58] sm:$0xff]
    %v3795 = vld [vmem:[%s2810 + $0x60] sm:$0xff]
    %v3796 = vld [vmem:[%s2810 + $0x68] sm:$0xff]
    %v3797 = vld [vmem:[%s2810 + $0x70] sm:$0xff]
    %v3798 = vld [vmem:[%s2810 + $0x78] sm:$0xff]
    %v3799 = vld [vmem:[%s2810 + $0x80] sm:$0xff]
    %v3800 = vld [vmem:[%s2810 + $0x88] sm:$0xff]
    %v3801 = vld [vmem:[%s2810 + $0x90] sm:$0xff]
    %v3802 = vld [vmem:[%s2810 + $0x98] sm:$0xff]
    %v3803 = vld [vmem:[%s2810 + $0xa0] sm:$0xff]
    %v3804 = vld [vmem:[%s2810 + $0xa8] sm:$0xff]
    %v3805 = vld [vmem:[%s2810 + $0xb0] sm:$0xff]
    %v3806 = vld [vmem:[%s2810 + $0xb8] sm:$0xff]
    %v3807 = vld [vmem:[%s2810 + $0xc0] sm:$0xff]
    %v3808 = vld [vmem:[%s2810 + $0xc8] sm:$0xff]
    %v3809 = vld [vmem:[%s2810 + $0xd0] sm:$0xff]
    %v3810 = vld [vmem:[%s2810 + $0xd8] sm:$0xff]
    %v3811 = vld [vmem:[%s2810 + $0xe0] sm:$0xff]
    %v3812 = vld [vmem:[%s2810 + $0xe8] sm:$0xff]
    %v3813 = vld [vmem:[%s2810 + $0xf0] sm:$0xff]
    %v3814 = vld [vmem:[%s2810 + $0xf8] sm:$0xff]
    %v3815 = vld [vmem:[%s2810 + $0x100] sm:$0xff]
    %v3816 = vld [vmem:[%s2810 + $0x108] sm:$0xff]
    %v3817 = vld [vmem:[%s2810 + $0x110] sm:$0xff]
    %v3818 = vld [vmem:[%s2810 + $0x118] sm:$0xff]
    %v3819 = vld [vmem:[%s2810 + $0x120] sm:$0xff]
    %v3820 = vld [vmem:[%s2810 + $0x128] sm:$0xff]
    %v3821 = vld [vmem:[%s2810 + $0x130] sm:$0xff]
    %v3822 = vld [vmem:[%s2810 + $0x138] sm:$0xff]
    %v3823 = vld [vmem:[%s2810 + $0x140] sm:$0xff]
    %v3824 = vld [vmem:[%s2810 + $0x148] sm:$0xff]
    %v3825 = vld [vmem:[%s2810 + $0x150] sm:$0xff]
    %v3826 = vld [vmem:[%s2810 + $0x158] sm:$0xff]
    %v3827 = vld [vmem:[%s2810 + $0x160] sm:$0xff]
    %v3828 = vld [vmem:[%s2810 + $0x168] sm:$0xff]
    %v3829 = vld [vmem:[%s2810 + $0x170] sm:$0xff]
    %v3830 = vld [vmem:[%s2810 + $0x178] sm:$0xff]
    %v3831 = vld [vmem:[%s2810 + $0x180] sm:$0xff]
    %v3832 = vld [vmem:[%s2810 + $0x188] sm:$0xff]
    %v3833 = vld [vmem:[%s2810 + $0x190] sm:$0xff]
    %v3834 = vld [vmem:[%s2810 + $0x198] sm:$0xff]
    %v3835 = vld [vmem:[%s2810 + $0x1a0] sm:$0xff]
    %v3836 = vld [vmem:[%s2810 + $0x1a8] sm:$0xff]
    %v3837 = vld [vmem:[%s2810 + $0x1b0] sm:$0xff]
    %v3838 = vld [vmem:[%s2810 + $0x1b8] sm:$0xff]
    %v3839 = vld [vmem:[%s2810 + $0x1c0] sm:$0xff]
    %v3840 = vld [vmem:[%s2810 + $0x1c8] sm:$0xff]
    %v3841 = vld [vmem:[%s2810 + $0x1d0] sm:$0xff]
    %v3842 = vld [vmem:[%s2810 + $0x1d8] sm:$0xff]
    %v3843 = vld [vmem:[%s2810 + $0x1e0] sm:$0xff]
    %v3844 = vld [vmem:[%s2810 + $0x1e8] sm:$0xff]
    %v3845 = vld [vmem:[%s2810 + $0x1f0] sm:$0xff]
    %v3846 = vld [vmem:[%s2810 + $0x1f8] sm:$0xff]
    %3847 = vmatprep.subr.mxu0 %v3784
    %3848 = vmatpush1.msra.mxu0 %v3783
    %3849 = vmatprep.subr.mxu0 %v3788
    %3850 = vmatpush1.msra.mxu0 %v3787
    %3851 = vmatprep.subr.mxu0 %v3792
    %3852 = vmatpush1.msra.mxu0 %v3791
    %3853 = vmatprep.subr.mxu0 %v3796
    %3854 = vmatpush1.msra.mxu0 %v3795
    %3855 = vmatprep.subr.mxu0 %v3800
    %3856 = vmatpush1.msra.mxu0 %v3799
    %3857 = vmatprep.subr.mxu0 %v3804
    %3858 = vmatpush1.msra.mxu0 %v3803
    %3859 = vmatprep.subr.mxu0 %v3808
    %3860 = vmatpush1.msra.mxu0 %v3807
    %3861 = vmatprep.subr.mxu0 %v3812
    %3862 = vmatpush1.msra.mxu0 %v3811
    %3863 = vmatprep.subr.mxu0 %v3816
    %3864 = vmatpush1.msra.mxu0 %v3815
    %3865 = vmatprep.subr.mxu0 %v3820
    %3866 = vmatpush1.msra.mxu0 %v3819
    %3867 = vmatprep.subr.mxu0 %v3824
    %3868 = vmatpush1.msra.mxu0 %v3823
    %3869 = vmatprep.subr.mxu0 %v3828
    %3870 = vmatpush1.msra.mxu0 %v3827
    %3871 = vmatprep.subr.mxu0 %v3832
    %3872 = vmatpush1.msra.mxu0 %v3831
    %3873 = vmatprep.subr.mxu0 %v3836
    %3874 = vmatpush1.msra.mxu0 %v3835
    %3875 = vmatprep.subr.mxu0 %v3840
    %3876 = vmatpush1.msra.mxu0 %v3839
    %3877 = vmatprep.subr.mxu0 %v3844
    %3878 = vmatpush1.msra.mxu0 %v3843
    %3879 = vmatprep.subr.mxu0 0.0
    %3880 = vmatpush1.msra.mxu0 0.0
    %3881 = vmatprep.subr.mxu0 0.0
    %3882 = vmatpush1.msra.mxu0 0.0
    %3883 = vmatprep.subr.mxu0 0.0
    %3884 = vmatpush1.msra.mxu0 0.0
    %3885 = vmatprep.subr.mxu0 0.0
    %3886 = vmatpush1.msra.mxu0 0.0
    %3887 = vmatprep.subr.mxu0 0.0
    %3888 = vmatpush1.msra.mxu0 0.0
    %3889 = vmatprep.subr.mxu0 0.0
    %3890 = vmatpush1.msra.mxu0 0.0
    %3891 = vmatprep.subr.mxu0 0.0
    %3892 = vmatpush1.msra.mxu0 0.0
    %3893 = vmatprep.subr.mxu0 0.0
    %3894 = vmatpush1.msra.mxu0 0.0
    %3895 = vmatprep.subr.mxu0 0.0
    %3896 = vmatpush1.msra.mxu0 0.0
    %3897 = vmatprep.subr.mxu0 0.0
    %3898 = vmatpush1.msra.mxu0 0.0
    %3899 = vmatprep.subr.mxu0 0.0
    %3900 = vmatpush1.msra.mxu0 0.0
    %3901 = vmatprep.subr.mxu0 0.0
    %3902 = vmatpush1.msra.mxu0 0.0
    %3903 = vmatprep.subr.mxu0 0.0
    %3904 = vmatpush1.msra.mxu0 0.0
    %3905 = vmatprep.subr.mxu0 0.0
    %3906 = vmatpush1.msra.mxu0 0.0
    %3907 = vmatprep.subr.mxu0 0.0
    %3908 = vmatpush1.msra.mxu0 0.0
    %3909 = vmatprep.subr.mxu0 0.0
    %3910 = vmatpush1.msra.mxu0 0.0
    %3911 = vmatprep.mubr.f32.mxu0 0.0
    %3912 = vmatmul.mubr.f32.gmra.mrb[0].mxu0 %v3782
    %v3913 = vpop.f32.mrb[0].mxu0
    %v3914 = vadd.f32 0.0, %v3913
    %v3915 = vpop.f32.mrb[0].mxu0
    %v3916 = vadd.f32 0.0, %v3915
    %3917 = vdwg.mxu0
    %3918 = vmatprep.subr.mxu0 %v3786
    %3919 = vmatpush1.msra.mxu0 %v3785
    %3920 = vmatprep.subr.mxu0 %v3790
    %3921 = vmatpush1.msra.mxu0 %v3789
    %3922 = vmatprep.subr.mxu0 %v3794
    %3923 = vmatpush1.msra.mxu0 %v3793
    %3924 = vmatprep.subr.mxu0 %v3798
    %3925 = vmatpush1.msra.mxu0 %v3797
    %3926 = vmatprep.subr.mxu0 %v3802
    %3927 = vmatpush1.msra.mxu0 %v3801
    %3928 = vmatprep.subr.mxu0 %v3806
    %3929 = vmatpush1.msra.mxu0 %v3805
    %3930 = vmatprep.subr.mxu0 %v3810
    %3931 = vmatpush1.msra.mxu0 %v3809
    %3932 = vmatprep.subr.mxu0 %v3814
    %3933 = vmatpush1.msra.mxu0 %v3813
    %3934 = vmatprep.subr.mxu0 %v3818
    %3935 = vmatpush1.msra.mxu0 %v3817
    %3936 = vmatprep.subr.mxu0 %v3822
    %3937 = vmatpush1.msra.mxu0 %v3821
    %3938 = vmatprep.subr.mxu0 %v3826
    %3939 = vmatpush1.msra.mxu0 %v3825
    %3940 = vmatprep.subr.mxu0 %v3830
    %3941 = vmatpush1.msra.mxu0 %v3829
    %3942 = vmatprep.subr.mxu0 %v3834
    %3943 = vmatpush1.msra.mxu0 %v3833
    %3944 = vmatprep.subr.mxu0 %v3838
    %3945 = vmatpush1.msra.mxu0 %v3837
    %3946 = vmatprep.subr.mxu0 %v3842
    %3947 = vmatpush1.msra.mxu0 %v3841
    %3948 = vmatprep.subr.mxu0 %v3846
    %3949 = vmatpush1.msra.mxu0 %v3845
    %3950 = vmatprep.subr.mxu0 0.0
    %3951 = vmatpush1.msra.mxu0 0.0
    %3952 = vmatprep.subr.mxu0 0.0
    %3953 = vmatpush1.msra.mxu0 0.0
    %3954 = vmatprep.subr.mxu0 0.0
    %3955 = vmatpush1.msra.mxu0 0.0
    %3956 = vmatprep.subr.mxu0 0.0
    %3957 = vmatpush1.msra.mxu0 0.0
    %3958 = vmatprep.subr.mxu0 0.0
    %3959 = vmatpush1.msra.mxu0 0.0
    %3960 = vmatprep.subr.mxu0 0.0
    %3961 = vmatpush1.msra.mxu0 0.0
    %3962 = vmatprep.subr.mxu0 0.0
    %3963 = vmatpush1.msra.mxu0 0.0
    %3964 = vmatprep.subr.mxu0 0.0
    %3965 = vmatpush1.msra.mxu0 0.0
    %3966 = vmatprep.subr.mxu0 0.0
    %3967 = vmatpush1.msra.mxu0 0.0
    %3968 = vmatprep.subr.mxu0 0.0
    %3969 = vmatpush1.msra.mxu0 0.0
    %3970 = vmatprep.subr.mxu0 0.0
    %3971 = vmatpush1.msra.mxu0 0.0
    %3972 = vmatprep.subr.mxu0 0.0
    %3973 = vmatpush1.msra.mxu0 0.0
    %3974 = vmatprep.subr.mxu0 0.0
    %3975 = vmatpush1.msra.mxu0 0.0
    %3976 = vmatprep.subr.mxu0 0.0
    %3977 = vmatpush1.msra.mxu0 0.0
    %3978 = vmatprep.subr.mxu0 0.0
    %3979 = vmatpush1.msra.mxu0 0.0
    %3980 = vmatprep.subr.mxu0 0.0
    %3981 = vmatpush1.msra.mxu0 0.0
    %3982 = vmatprep.mubr.f32.mxu0 0.0
    %3983 = vmatmul.mubr.f32.gmra.mrb[0].mxu0 %v3782
    %v3984 = vpop.f32.mrb[0].mxu0
    %v3985 = vadd.f32 0.0, %v3984
    %v3986 = vpop.f32.mrb[0].mxu0
    %v3987 = vadd.f32 0.0, %v3986
    %3988 = vdwg.mxu0
    %v3989 = vadd.f32 %v3778, %v3914
    %v3990 = vadd.f32 %v3779, %v3916
    %v3991 = vadd.f32 %v3780, %v3985
    %v3992 = vadd.f32 %v3781, %v3987
    %v3993 = vxor.u32 %v3989, 2147483648
    %v3994 = vmul.f32 %v3993, 1.442695
    %v3995 = vpow.pop %v3994
    %v3996 = vadd.f32 %v3995, 1.0
    %v3997 = vrcp.pop %v3996
    %v3998 = vmul.f32 1.0, %v3997
    %v3999 = vxor.u32 %v3990, 2147483648
    %v4000 = vmul.f32 %v3999, 1.442695
    %v4001 = vpow.pop %v4000
    %v4002 = vadd.f32 %v4001, 1.0
    %v4003 = vrcp.pop %v4002
    %v4004 = vmul.f32 1.0, %v4003
    %v4005 = vtanh.pop %v3991
    %v4006 = vxor.u32 %v3992, 2147483648
    %v4007 = vmul.f32 %v4006, 1.442695
    %v4008 = vpow.pop %v4007
    %v4009 = vadd.f32 %v4008, 1.0
    %v4010 = vrcp.pop %v4009
    %v4011 = vmul.f32 1.0, %v4010
    %v4012 = vld [vmem:[#allocation5] sm:$0xff]
    %v4013 = vmul.f32 %v4004, %v4012
    %v4014 = vmul.f32 %v3998, %v4005
    %v4015 = vadd.f32 %v4013, %v4014
    %v4016 = vtanh.pop %v4015
    %v4017 = vmul.f32 %v4011, %v4016
    %4018 = vst [vmem:[#allocation5] sm:$0xff] %v4015
    %4019 = vst [vmem:[#allocation4] sm:$0xff] %v4017
    %4020 = vst [vmem:[%s1712] sm:$0xff] %v4017
    %v4021 = vld [vmem:[%s1714] sm:$0xff]
    %v4022 = vld [vmem:[%s1714 + $0x8] sm:$0xff]
    %v4023 = vld [vmem:[%s1714 + $0x10] sm:$0xff]
    %v4024 = vld [vmem:[%s1714 + $0x18] sm:$0xff]
    %v4025 = vld [vmem:[#allocation4] sm:$0xff]
    %v4026 = vld [vmem:[%s2810] sm:$0xff]
    %v4027 = vld [vmem:[%s2810 + $0x8] sm:$0xff]
    %v4028 = vld [vmem:[%s2810 + $0x10] sm:$0xff]
    %v4029 = vld [vmem:[%s2810 + $0x18] sm:$0xff]
    %v4030 = vld [vmem:[%s2810 + $0x20] sm:$0xff]
    %v4031 = vld [vmem:[%s2810 + $0x28] sm:$0xff]
    %v4032 = vld [vmem:[%s2810 + $0x30] sm:$0xff]
    %v4033 = vld [vmem:[%s2810 + $0x38] sm:$0xff]
    %v4034 = vld [vmem:[%s2810 + $0x40] sm:$0xff]
    %v4035 = vld [vmem:[%s2810 + $0x48] sm:$0xff]
    %v4036 = vld [vmem:[%s2810 + $0x50] sm:$0xff]
    %v4037 = vld [vmem:[%s2810 + $0x58] sm:$0xff]
    %v4038 = vld [vmem:[%s2810 + $0x60] sm:$0xff]
    %v4039 = vld [vmem:[%s2810 + $0x68] sm:$0xff]
    %v4040 = vld [vmem:[%s2810 + $0x70] sm:$0xff]
    %v4041 = vld [vmem:[%s2810 + $0x78] sm:$0xff]
    %v4042 = vld [vmem:[%s2810 + $0x80] sm:$0xff]
    %v4043 = vld [vmem:[%s2810 + $0x88] sm:$0xff]
    %v4044 = vld [vmem:[%s2810 + $0x90] sm:$0xff]
    %v4045 = vld [vmem:[%s2810 + $0x98] sm:$0xff]
    %v4046 = vld [vmem:[%s2810 + $0xa0] sm:$0xff]
    %v4047 = vld [vmem:[%s2810 + $0xa8] sm:$0xff]
    %v4048 = vld [vmem:[%s2810 + $0xb0] sm:$0xff]
    %v4049 = vld [vmem:[%s2810 + $0xb8] sm:$0xff]
    %v4050 = vld [vmem:[%s2810 + $0xc0] sm:$0xff]
    %v4051 = vld [vmem:[%s2810 + $0xc8] sm:$0xff]
    %v4052 = vld [vmem:[%s2810 + $0xd0] sm:$0xff]
    %v4053 = vld [vmem:[%s2810 + $0xd8] sm:$0xff]
    %v4054 = vld [vmem:[%s2810 + $0xe0] sm:$0xff]
    %v4055 = vld [vmem:[%s2810 + $0xe8] sm:$0xff]
    %v4056 = vld [vmem:[%s2810 + $0xf0] sm:$0xff]
    %v4057 = vld [vmem:[%s2810 + $0xf8] sm:$0xff]
    %v4058 = vld [vmem:[%s2810 + $0x100] sm:$0xff]
    %v4059 = vld [vmem:[%s2810 + $0x108] sm:$0xff]
    %v4060 = vld [vmem:[%s2810 + $0x110] sm:$0xff]
    %v4061 = vld [vmem:[%s2810 + $0x118] sm:$0xff]
    %v4062 = vld [vmem:[%s2810 + $0x120] sm:$0xff]
    %v4063 = vld [vmem:[%s2810 + $0x128] sm:$0xff]
    %v4064 = vld [vmem:[%s2810 + $0x130] sm:$0xff]
    %v4065 = vld [vmem:[%s2810 + $0x138] sm:$0xff]
    %v4066 = vld [vmem:[%s2810 + $0x140] sm:$0xff]
    %v4067 = vld [vmem:[%s2810 + $0x148] sm:$0xff]
    %v4068 = vld [vmem:[%s2810 + $0x150] sm:$0xff]
    %v4069 = vld [vmem:[%s2810 + $0x158] sm:$0xff]
    %v4070 = vld [vmem:[%s2810 + $0x160] sm:$0xff]
    %v4071 = vld [vmem:[%s2810 + $0x168] sm:$0xff]
    %v4072 = vld [vmem:[%s2810 + $0x170] sm:$0xff]
    %v4073 = vld [vmem:[%s2810 + $0x178] sm:$0xff]
    %v4074 = vld [vmem:[%s2810 + $0x180] sm:$0xff]
    %v4075 = vld [vmem:[%s2810 + $0x188] sm:$0xff]
    %v4076 = vld [vmem:[%s2810 + $0x190] sm:$0xff]
    %v4077 = vld [vmem:[%s2810 + $0x198] sm:$0xff]
    %v4078 = vld [vmem:[%s2810 + $0x1a0] sm:$0xff]
    %v4079 = vld [vmem:[%s2810 + $0x1a8] sm:$0xff]
    %v4080 = vld [vmem:[%s2810 + $0x1b0] sm:$0xff]
    %v4081 = vld [vmem:[%s2810 + $0x1b8] sm:$0xff]
    %v4082 = vld [vmem:[%s2810 + $0x1c0] sm:$0xff]
    %v4083 = vld [vmem:[%s2810 + $0x1c8] sm:$0xff]
    %v4084 = vld [vmem:[%s2810 + $0x1d0] sm:$0xff]
    %v4085 = vld [vmem:[%s2810 + $0x1d8] sm:$0xff]
    %v4086 = vld [vmem:[%s2810 + $0x1e0] sm:$0xff]
    %v4087 = vld [vmem:[%s2810 + $0x1e8] sm:$0xff]
    %v4088 = vld [vmem:[%s2810 + $0x1f0] sm:$0xff]
    %v4089 = vld [vmem:[%s2810 + $0x1f8] sm:$0xff]
    %4090 = vmatprep.subr.mxu0 %v4027
    %4091 = vmatpush1.msra.mxu0 %v4026
    %4092 = vmatprep.subr.mxu0 %v4031
    %4093 = vmatpush1.msra.mxu0 %v4030
    %4094 = vmatprep.subr.mxu0 %v4035
    %4095 = vmatpush1.msra.mxu0 %v4034
    %4096 = vmatprep.subr.mxu0 %v4039
    %4097 = vmatpush1.msra.mxu0 %v4038
    %4098 = vmatprep.subr.mxu0 %v4043
    %4099 = vmatpush1.msra.mxu0 %v4042
    %4100 = vmatprep.subr.mxu0 %v4047
    %4101 = vmatpush1.msra.mxu0 %v4046
    %4102 = vmatprep.subr.mxu0 %v4051
    %4103 = vmatpush1.msra.mxu0 %v4050
    %4104 = vmatprep.subr.mxu0 %v4055
    %4105 = vmatpush1.msra.mxu0 %v4054
    %4106 = vmatprep.subr.mxu0 %v4059
    %4107 = vmatpush1.msra.mxu0 %v4058
    %4108 = vmatprep.subr.mxu0 %v4063
    %4109 = vmatpush1.msra.mxu0 %v4062
    %4110 = vmatprep.subr.mxu0 %v4067
    %4111 = vmatpush1.msra.mxu0 %v4066
    %4112 = vmatprep.subr.mxu0 %v4071
    %4113 = vmatpush1.msra.mxu0 %v4070
    %4114 = vmatprep.subr.mxu0 %v4075
    %4115 = vmatpush1.msra.mxu0 %v4074
    %4116 = vmatprep.subr.mxu0 %v4079
    %4117 = vmatpush1.msra.mxu0 %v4078
    %4118 = vmatprep.subr.mxu0 %v4083
    %4119 = vmatpush1.msra.mxu0 %v4082
    %4120 = vmatprep.subr.mxu0 %v4087
    %4121 = vmatpush1.msra.mxu0 %v4086
    %4122 = vmatprep.subr.mxu0 0.0
    %4123 = vmatpush1.msra.mxu0 0.0
    %4124 = vmatprep.subr.mxu0 0.0
    %4125 = vmatpush1.msra.mxu0 0.0
    %4126 = vmatprep.subr.mxu0 0.0
    %4127 = vmatpush1.msra.mxu0 0.0
    %4128 = vmatprep.subr.mxu0 0.0
    %4129 = vmatpush1.msra.mxu0 0.0
    %4130 = vmatprep.subr.mxu0 0.0
    %4131 = vmatpush1.msra.mxu0 0.0
    %4132 = vmatprep.subr.mxu0 0.0
    %4133 = vmatpush1.msra.mxu0 0.0
    %4134 = vmatprep.subr.mxu0 0.0
    %4135 = vmatpush1.msra.mxu0 0.0
    %4136 = vmatprep.subr.mxu0 0.0
    %4137 = vmatpush1.msra.mxu0 0.0
    %4138 = vmatprep.subr.mxu0 0.0
    %4139 = vmatpush1.msra.mxu0 0.0
    %4140 = vmatprep.subr.mxu0 0.0
    %4141 = vmatpush1.msra.mxu0 0.0
    %4142 = vmatprep.subr.mxu0 0.0
    %4143 = vmatpush1.msra.mxu0 0.0
    %4144 = vmatprep.subr.mxu0 0.0
    %4145 = vmatpush1.msra.mxu0 0.0
    %4146 = vmatprep.subr.mxu0 0.0
    %4147 = vmatpush1.msra.mxu0 0.0
    %4148 = vmatprep.subr.mxu0 0.0
    %4149 = vmatpush1.msra.mxu0 0.0
    %4150 = vmatprep.subr.mxu0 0.0
    %4151 = vmatpush1.msra.mxu0 0.0
    %4152 = vmatprep.subr.mxu0 0.0
    %4153 = vmatpush1.msra.mxu0 0.0
    %4154 = vmatprep.mubr.f32.mxu0 0.0
    %4155 = vmatmul.mubr.f32.gmra.mrb[0].mxu0 %v4025
    %v4156 = vpop.f32.mrb[0].mxu0
    %v4157 = vadd.f32 0.0, %v4156
    %v4158 = vpop.f32.mrb[0].mxu0
    %v4159 = vadd.f32 0.0, %v4158
    %4160 = vdwg.mxu0
    %4161 = vmatprep.subr.mxu0 %v4029
    %4162 = vmatpush1.msra.mxu0 %v4028
    %4163 = vmatprep.subr.mxu0 %v4033
    %4164 = vmatpush1.msra.mxu0 %v4032
    %4165 = vmatprep.subr.mxu0 %v4037
    %4166 = vmatpush1.msra.mxu0 %v4036
    %4167 = vmatprep.subr.mxu0 %v4041
    %4168 = vmatpush1.msra.mxu0 %v4040
    %4169 = vmatprep.subr.mxu0 %v4045
    %4170 = vmatpush1.msra.mxu0 %v4044
    %4171 = vmatprep.subr.mxu0 %v4049
    %4172 = vmatpush1.msra.mxu0 %v4048
    %4173 = vmatprep.subr.mxu0 %v4053
    %4174 = vmatpush1.msra.mxu0 %v4052
    %4175 = vmatprep.subr.mxu0 %v4057
    %4176 = vmatpush1.msra.mxu0 %v4056
    %4177 = vmatprep.subr.mxu0 %v4061
    %4178 = vmatpush1.msra.mxu0 %v4060
    %4179 = vmatprep.subr.mxu0 %v4065
    %4180 = vmatpush1.msra.mxu0 %v4064
    %4181 = vmatprep.subr.mxu0 %v4069
    %4182 = vmatpush1.msra.mxu0 %v4068
    %4183 = vmatprep.subr.mxu0 %v4073
    %4184 = vmatpush1.msra.mxu0 %v4072
    %4185 = vmatprep.subr.mxu0 %v4077
    %4186 = vmatpush1.msra.mxu0 %v4076
    %4187 = vmatprep.subr.mxu0 %v4081
    %4188 = vmatpush1.msra.mxu0 %v4080
    %4189 = vmatprep.subr.mxu0 %v4085
    %4190 = vmatpush1.msra.mxu0 %v4084
    %4191 = vmatprep.subr.mxu0 %v4089
    %4192 = vmatpush1.msra.mxu0 %v4088
    %4193 = vmatprep.subr.mxu0 0.0
    %4194 = vmatpush1.msra.mxu0 0.0
    %4195 = vmatprep.subr.mxu0 0.0
    %4196 = vmatpush1.msra.mxu0 0.0
    %4197 = vmatprep.subr.mxu0 0.0
    %4198 = vmatpush1.msra.mxu0 0.0
    %4199 = vmatprep.subr.mxu0 0.0
    %4200 = vmatpush1.msra.mxu0 0.0
    %4201 = vmatprep.subr.mxu0 0.0
    %4202 = vmatpush1.msra.mxu0 0.0
    %4203 = vmatprep.subr.mxu0 0.0
    %4204 = vmatpush1.msra.mxu0 0.0
    %4205 = vmatprep.subr.mxu0 0.0
    %4206 = vmatpush1.msra.mxu0 0.0
    %4207 = vmatprep.subr.mxu0 0.0
    %4208 = vmatpush1.msra.mxu0 0.0
    %4209 = vmatprep.subr.mxu0 0.0
    %4210 = vmatpush1.msra.mxu0 0.0
    %4211 = vmatprep.subr.mxu0 0.0
    %4212 = vmatpush1.msra.mxu0 0.0
    %4213 = vmatprep.subr.mxu0 0.0
    %4214 = vmatpush1.msra.mxu0 0.0
    %4215 = vmatprep.subr.mxu0 0.0
    %4216 = vmatpush1.msra.mxu0 0.0
    %4217 = vmatprep.subr.mxu0 0.0
    %4218 = vmatpush1.msra.mxu0 0.0
    %4219 = vmatprep.subr.mxu0 0.0
    %4220 = vmatpush1.msra.mxu0 0.0
    %4221 = vmatprep.subr.mxu0 0.0
    %4222 = vmatpush1.msra.mxu0 0.0
    %4223 = vmatprep.subr.mxu0 0.0
    %4224 = vmatpush1.msra.mxu0 0.0
    %4225 = vmatprep.mubr.f32.mxu0 0.0
    %4226 = vmatmul.mubr.f32.gmra.mrb[0].mxu0 %v4025
    %v4227 = vpop.f32.mrb[0].mxu0
    %v4228 = vadd.f32 0.0, %v4227
    %v4229 = vpop.f32.mrb[0].mxu0
    %v4230 = vadd.f32 0.0, %v4229
    %4231 = vdwg.mxu0
    %v4232 = vadd.f32 %v4021, %v4157
    %v4233 = vadd.f32 %v4022, %v4159
    %v4234 = vadd.f32 %v4023, %v4228
    %v4235 = vadd.f32 %v4024, %v4230
    %v4236 = vxor.u32 %v4232, 2147483648
    %v4237 = vmul.f32 %v4236, 1.442695
    %v4238 = vpow.pop %v4237
    %v4239 = vadd.f32 %v4238, 1.0
    %v4240 = vrcp.pop %v4239
    %v4241 = vmul.f32 1.0, %v4240
    %v4242 = vxor.u32 %v4233, 2147483648
    %v4243 = vmul.f32 %v4242, 1.442695
    %v4244 = vpow.pop %v4243
    %v4245 = vadd.f32 %v4244, 1.0
    %v4246 = vrcp.pop %v4245
    %v4247 = vmul.f32 1.0, %v4246
    %v4248 = vtanh.pop %v4234
    %v4249 = vxor.u32 %v4235, 2147483648
    %v4250 = vmul.f32 %v4249, 1.442695
    %v4251 = vpow.pop %v4250
    %v4252 = vadd.f32 %v4251, 1.0
    %v4253 = vrcp.pop %v4252
    %v4254 = vmul.f32 1.0, %v4253
    %v4255 = vld [vmem:[#allocation5] sm:$0xff]
    %v4256 = vmul.f32 %v4247, %v4255
    %v4257 = vmul.f32 %v4241, %v4248
    %v4258 = vadd.f32 %v4256, %v4257
    %v4259 = vtanh.pop %v4258
    %v4260 = vmul.f32 %v4254, %v4259
    %4261 = vst [vmem:[#allocation5] sm:$0xff] %v4258
    %4262 = vst [vmem:[#allocation4] sm:$0xff] %v4260
    %4263 = vst [vmem:[%s1957] sm:$0xff] %v4260
    %v4264 = vld [vmem:[%s1959] sm:$0xff]
    %v4265 = vld [vmem:[%s1959 + $0x8] sm:$0xff]
    %v4266 = vld [vmem:[%s1959 + $0x10] sm:$0xff]
    %v4267 = vld [vmem:[%s1959 + $0x18] sm:$0xff]
    %v4268 = vld [vmem:[#allocation4] sm:$0xff]
    %v4269 = vld [vmem:[%s2810] sm:$0xff]
    %v4270 = vld [vmem:[%s2810 + $0x8] sm:$0xff]
    %v4271 = vld [vmem:[%s2810 + $0x10] sm:$0xff]
    %v4272 = vld [vmem:[%s2810 + $0x18] sm:$0xff]
    %v4273 = vld [vmem:[%s2810 + $0x20] sm:$0xff]
    %v4274 = vld [vmem:[%s2810 + $0x28] sm:$0xff]
    %v4275 = vld [vmem:[%s2810 + $0x30] sm:$0xff]
    %v4276 = vld [vmem:[%s2810 + $0x38] sm:$0xff]
    %v4277 = vld [vmem:[%s2810 + $0x40] sm:$0xff]
    %v4278 = vld [vmem:[%s2810 + $0x48] sm:$0xff]
    %v4279 = vld [vmem:[%s2810 + $0x50] sm:$0xff]
    %v4280 = vld [vmem:[%s2810 + $0x58] sm:$0xff]
    %v4281 = vld [vmem:[%s2810 + $0x60] sm:$0xff]
    %v4282 = vld [vmem:[%s2810 + $0x68] sm:$0xff]
    %v4283 = vld [vmem:[%s2810 + $0x70] sm:$0xff]
    %v4284 = vld [vmem:[%s2810 + $0x78] sm:$0xff]
    %v4285 = vld [vmem:[%s2810 + $0x80] sm:$0xff]
    %v4286 = vld [vmem:[%s2810 + $0x88] sm:$0xff]
    %v4287 = vld [vmem:[%s2810 + $0x90] sm:$0xff]
    %v4288 = vld [vmem:[%s2810 + $0x98] sm:$0xff]
    %v4289 = vld [vmem:[%s2810 + $0xa0] sm:$0xff]
    %v4290 = vld [vmem:[%s2810 + $0xa8] sm:$0xff]
    %v4291 = vld [vmem:[%s2810 + $0xb0] sm:$0xff]
    %v4292 = vld [vmem:[%s2810 + $0xb8] sm:$0xff]
    %v4293 = vld [vmem:[%s2810 + $0xc0] sm:$0xff]
    %v4294 = vld [vmem:[%s2810 + $0xc8] sm:$0xff]
    %v4295 = vld [vmem:[%s2810 + $0xd0] sm:$0xff]
    %v4296 = vld [vmem:[%s2810 + $0xd8] sm:$0xff]
    %v4297 = vld [vmem:[%s2810 + $0xe0] sm:$0xff]
    %v4298 = vld [vmem:[%s2810 + $0xe8] sm:$0xff]
    %v4299 = vld [vmem:[%s2810 + $0xf0] sm:$0xff]
    %v4300 = vld [vmem:[%s2810 + $0xf8] sm:$0xff]
    %v4301 = vld [vmem:[%s2810 + $0x100] sm:$0xff]
    %v4302 = vld [vmem:[%s2810 + $0x108] sm:$0xff]
    %v4303 = vld [vmem:[%s2810 + $0x110] sm:$0xff]
    %v4304 = vld [vmem:[%s2810 + $0x118] sm:$0xff]
    %v4305 = vld [vmem:[%s2810 + $0x120] sm:$0xff]
    %v4306 = vld [vmem:[%s2810 + $0x128] sm:$0xff]
    %v4307 = vld [vmem:[%s2810 + $0x130] sm:$0xff]
    %v4308 = vld [vmem:[%s2810 + $0x138] sm:$0xff]
    %v4309 = vld [vmem:[%s2810 + $0x140] sm:$0xff]
    %v4310 = vld [vmem:[%s2810 + $0x148] sm:$0xff]
    %v4311 = vld [vmem:[%s2810 + $0x150] sm:$0xff]
    %v4312 = vld [vmem:[%s2810 + $0x158] sm:$0xff]
    %v4313 = vld [vmem:[%s2810 + $0x160] sm:$0xff]
    %v4314 = vld [vmem:[%s2810 + $0x168] sm:$0xff]
    %v4315 = vld [vmem:[%s2810 + $0x170] sm:$0xff]
    %v4316 = vld [vmem:[%s2810 + $0x178] sm:$0xff]
    %v4317 = vld [vmem:[%s2810 + $0x180] sm:$0xff]
    %v4318 = vld [vmem:[%s2810 + $0x188] sm:$0xff]
    %v4319 = vld [vmem:[%s2810 + $0x190] sm:$0xff]
    %v4320 = vld [vmem:[%s2810 + $0x198] sm:$0xff]
    %v4321 = vld [vmem:[%s2810 + $0x1a0] sm:$0xff]
    %v4322 = vld [vmem:[%s2810 + $0x1a8] sm:$0xff]
    %v4323 = vld [vmem:[%s2810 + $0x1b0] sm:$0xff]
    %v4324 = vld [vmem:[%s2810 + $0x1b8] sm:$0xff]
    %v4325 = vld [vmem:[%s2810 + $0x1c0] sm:$0xff]
    %v4326 = vld [vmem:[%s2810 + $0x1c8] sm:$0xff]
    %v4327 = vld [vmem:[%s2810 + $0x1d0] sm:$0xff]
    %v4328 = vld [vmem:[%s2810 + $0x1d8] sm:$0xff]
    %v4329 = vld [vmem:[%s2810 + $0x1e0] sm:$0xff]
    %v4330 = vld [vmem:[%s2810 + $0x1e8] sm:$0xff]
    %v4331 = vld [vmem:[%s2810 + $0x1f0] sm:$0xff]
    %v4332 = vld [vmem:[%s2810 + $0x1f8] sm:$0xff]
    %4333 = vmatprep.subr.mxu0 %v4270
    %4334 = vmatpush1.msra.mxu0 %v4269
    %4335 = vmatprep.subr.mxu0 %v4274
    %4336 = vmatpush1.msra.mxu0 %v4273
    %4337 = vmatprep.subr.mxu0 %v4278
    %4338 = vmatpush1.msra.mxu0 %v4277
    %4339 = vmatprep.subr.mxu0 %v4282
    %4340 = vmatpush1.msra.mxu0 %v4281
    %4341 = vmatprep.subr.mxu0 %v4286
    %4342 = vmatpush1.msra.mxu0 %v4285
    %4343 = vmatprep.subr.mxu0 %v4290
    %4344 = vmatpush1.msra.mxu0 %v4289
    %4345 = vmatprep.subr.mxu0 %v4294
    %4346 = vmatpush1.msra.mxu0 %v4293
    %4347 = vmatprep.subr.mxu0 %v4298
    %4348 = vmatpush1.msra.mxu0 %v4297
    %4349 = vmatprep.subr.mxu0 %v4302
    %4350 = vmatpush1.msra.mxu0 %v4301
    %4351 = vmatprep.subr.mxu0 %v4306
    %4352 = vmatpush1.msra.mxu0 %v4305
    %4353 = vmatprep.subr.mxu0 %v4310
    %4354 = vmatpush1.msra.mxu0 %v4309
    %4355 = vmatprep.subr.mxu0 %v4314
    %4356 = vmatpush1.msra.mxu0 %v4313
    %4357 = vmatprep.subr.mxu0 %v4318
    %4358 = vmatpush1.msra.mxu0 %v4317
    %4359 = vmatprep.subr.mxu0 %v4322
    %4360 = vmatpush1.msra.mxu0 %v4321
    %4361 = vmatprep.subr.mxu0 %v4326
    %4362 = vmatpush1.msra.mxu0 %v4325
    %4363 = vmatprep.subr.mxu0 %v4330
    %4364 = vmatpush1.msra.mxu0 %v4329
    %4365 = vmatprep.subr.mxu0 0.0
    %4366 = vmatpush1.msra.mxu0 0.0
    %4367 = vmatprep.subr.mxu0 0.0
    %4368 = vmatpush1.msra.mxu0 0.0
    %4369 = vmatprep.subr.mxu0 0.0
    %4370 = vmatpush1.msra.mxu0 0.0
    %4371 = vmatprep.subr.mxu0 0.0
    %4372 = vmatpush1.msra.mxu0 0.0
    %4373 = vmatprep.subr.mxu0 0.0
    %4374 = vmatpush1.msra.mxu0 0.0
    %4375 = vmatprep.subr.mxu0 0.0
    %4376 = vmatpush1.msra.mxu0 0.0
    %4377 = vmatprep.subr.mxu0 0.0
    %4378 = vmatpush1.msra.mxu0 0.0
    %4379 = vmatprep.subr.mxu0 0.0
    %4380 = vmatpush1.msra.mxu0 0.0
    %4381 = vmatprep.subr.mxu0 0.0
    %4382 = vmatpush1.msra.mxu0 0.0
    %4383 = vmatprep.subr.mxu0 0.0
    %4384 = vmatpush1.msra.mxu0 0.0
    %4385 = vmatprep.subr.mxu0 0.0
    %4386 = vmatpush1.msra.mxu0 0.0
    %4387 = vmatprep.subr.mxu0 0.0
    %4388 = vmatpush1.msra.mxu0 0.0
    %4389 = vmatprep.subr.mxu0 0.0
    %4390 = vmatpush1.msra.mxu0 0.0
    %4391 = vmatprep.subr.mxu0 0.0
    %4392 = vmatpush1.msra.mxu0 0.0
    %4393 = vmatprep.subr.mxu0 0.0
    %4394 = vmatpush1.msra.mxu0 0.0
    %4395 = vmatprep.subr.mxu0 0.0
    %4396 = vmatpush1.msra.mxu0 0.0
    %4397 = vmatprep.mubr.f32.mxu0 0.0
    %4398 = vmatmul.mubr.f32.gmra.mrb[0].mxu0 %v4268
    %v4399 = vpop.f32.mrb[0].mxu0
    %v4400 = vadd.f32 0.0, %v4399
    %v4401 = vpop.f32.mrb[0].mxu0
    %v4402 = vadd.f32 0.0, %v4401
    %4403 = vdwg.mxu0
    %4404 = vmatprep.subr.mxu0 %v4272
    %4405 = vmatpush1.msra.mxu0 %v4271
    %4406 = vmatprep.subr.mxu0 %v4276
    %4407 = vmatpush1.msra.mxu0 %v4275
    %4408 = vmatprep.subr.mxu0 %v4280
    %4409 = vmatpush1.msra.mxu0 %v4279
    %4410 = vmatprep.subr.mxu0 %v4284
    %4411 = vmatpush1.msra.mxu0 %v4283
    %4412 = vmatprep.subr.mxu0 %v4288
    %4413 = vmatpush1.msra.mxu0 %v4287
    %4414 = vmatprep.subr.mxu0 %v4292
    %4415 = vmatpush1.msra.mxu0 %v4291
    %4416 = vmatprep.subr.mxu0 %v4296
    %4417 = vmatpush1.msra.mxu0 %v4295
    %4418 = vmatprep.subr.mxu0 %v4300
    %4419 = vmatpush1.msra.mxu0 %v4299
    %4420 = vmatprep.subr.mxu0 %v4304
    %4421 = vmatpush1.msra.mxu0 %v4303
    %4422 = vmatprep.subr.mxu0 %v4308
    %4423 = vmatpush1.msra.mxu0 %v4307
    %4424 = vmatprep.subr.mxu0 %v4312
    %4425 = vmatpush1.msra.mxu0 %v4311
    %4426 = vmatprep.subr.mxu0 %v4316
    %4427 = vmatpush1.msra.mxu0 %v4315
    %4428 = vmatprep.subr.mxu0 %v4320
    %4429 = vmatpush1.msra.mxu0 %v4319
    %4430 = vmatprep.subr.mxu0 %v4324
    %4431 = vmatpush1.msra.mxu0 %v4323
    %4432 = vmatprep.subr.mxu0 %v4328
    %4433 = vmatpush1.msra.mxu0 %v4327
    %4434 = vmatprep.subr.mxu0 %v4332
    %4435 = vmatpush1.msra.mxu0 %v4331
    %4436 = vmatprep.subr.mxu0 0.0
    %4437 = vmatpush1.msra.mxu0 0.0
    %4438 = vmatprep.subr.mxu0 0.0
    %4439 = vmatpush1.msra.mxu0 0.0
    %4440 = vmatprep.subr.mxu0 0.0
    %4441 = vmatpush1.msra.mxu0 0.0
    %4442 = vmatprep.subr.mxu0 0.0
    %4443 = vmatpush1.msra.mxu0 0.0
    %4444 = vmatprep.subr.mxu0 0.0
    %4445 = vmatpush1.msra.mxu0 0.0
    %4446 = vmatprep.subr.mxu0 0.0
    %4447 = vmatpush1.msra.mxu0 0.0
    %4448 = vmatprep.subr.mxu0 0.0
    %4449 = vmatpush1.msra.mxu0 0.0
    %4450 = vmatprep.subr.mxu0 0.0
    %4451 = vmatpush1.msra.mxu0 0.0
    %4452 = vmatprep.subr.mxu0 0.0
    %4453 = vmatpush1.msra.mxu0 0.0
    %4454 = vmatprep.subr.mxu0 0.0
    %4455 = vmatpush1.msra.mxu0 0.0
    %4456 = vmatprep.subr.mxu0 0.0
    %4457 = vmatpush1.msra.mxu0 0.0
    %4458 = vmatprep.subr.mxu0 0.0
    %4459 = vmatpush1.msra.mxu0 0.0
    %4460 = vmatprep.subr.mxu0 0.0
    %4461 = vmatpush1.msra.mxu0 0.0
    %4462 = vmatprep.subr.mxu0 0.0
    %4463 = vmatpush1.msra.mxu0 0.0
    %4464 = vmatprep.subr.mxu0 0.0
    %4465 = vmatpush1.msra.mxu0 0.0
    %4466 = vmatprep.subr.mxu0 0.0
    %4467 = vmatpush1.msra.mxu0 0.0
    %4468 = vmatprep.mubr.f32.mxu0 0.0
    %4469 = vmatmul.mubr.f32.gmra.mrb[0].mxu0 %v4268
    %v4470 = vpop.f32.mrb[0].mxu0
    %v4471 = vadd.f32 0.0, %v4470
    %v4472 = vpop.f32.mrb[0].mxu0
    %v4473 = vadd.f32 0.0, %v4472
    %4474 = vdwg.mxu0
    %v4475 = vadd.f32 %v4264, %v4400
    %v4476 = vadd.f32 %v4265, %v4402
    %v4477 = vadd.f32 %v4266, %v4471
    %v4478 = vadd.f32 %v4267, %v4473
    %v4479 = vxor.u32 %v4475, 2147483648
    %v4480 = vmul.f32 %v4479, 1.442695
    %v4481 = vpow.pop %v4480
    %v4482 = vadd.f32 %v4481, 1.0
    %v4483 = vrcp.pop %v4482
    %v4484 = vmul.f32 1.0, %v4483
    %v4485 = vxor.u32 %v4476, 2147483648
    %v4486 = vmul.f32 %v4485, 1.442695
    %v4487 = vpow.pop %v4486
    %v4488 = vadd.f32 %v4487, 1.0
    %v4489 = vrcp.pop %v4488
    %v4490 = vmul.f32 1.0, %v4489
    %v4491 = vtanh.pop %v4477
    %v4492 = vxor.u32 %v4478, 2147483648
    %v4493 = vmul.f32 %v4492, 1.442695
    %v4494 = vpow.pop %v4493
    %v4495 = vadd.f32 %v4494, 1.0
    %v4496 = vrcp.pop %v4495
    %v4497 = vmul.f32 1.0, %v4496
    %v4498 = vld [vmem:[#allocation5] sm:$0xff]
    %v4499 = vmul.f32 %v4490, %v4498
    %v4500 = vmul.f32 %v4484, %v4491
    %v4501 = vadd.f32 %v4499, %v4500
    %v4502 = vtanh.pop %v4501
    %v4503 = vmul.f32 %v4497, %v4502
    %4504 = vst [vmem:[#allocation5] sm:$0xff] %v4501
    %4505 = vst [vmem:[#allocation4] sm:$0xff] %v4503
    %4506 = vst [vmem:[%s2202] sm:$0xff] %v4503
    %v4507 = vld [vmem:[%s2204] sm:$0xff]
    %v4508 = vld [vmem:[%s2204 + $0x8] sm:$0xff]
    %v4509 = vld [vmem:[%s2204 + $0x10] sm:$0xff]
    %v4510 = vld [vmem:[%s2204 + $0x18] sm:$0xff]
    %v4511 = vld [vmem:[#allocation4] sm:$0xff]
    %v4512 = vld [vmem:[%s2810] sm:$0xff]
    %v4513 = vld [vmem:[%s2810 + $0x8] sm:$0xff]
    %v4514 = vld [vmem:[%s2810 + $0x10] sm:$0xff]
    %v4515 = vld [vmem:[%s2810 + $0x18] sm:$0xff]
    %v4516 = vld [vmem:[%s2810 + $0x20] sm:$0xff]
    %v4517 = vld [vmem:[%s2810 + $0x28] sm:$0xff]
    %v4518 = vld [vmem:[%s2810 + $0x30] sm:$0xff]
    %v4519 = vld [vmem:[%s2810 + $0x38] sm:$0xff]
    %v4520 = vld [vmem:[%s2810 + $0x40] sm:$0xff]
    %v4521 = vld [vmem:[%s2810 + $0x48] sm:$0xff]
    %v4522 = vld [vmem:[%s2810 + $0x50] sm:$0xff]
    %v4523 = vld [vmem:[%s2810 + $0x58] sm:$0xff]
    %v4524 = vld [vmem:[%s2810 + $0x60] sm:$0xff]
    %v4525 = vld [vmem:[%s2810 + $0x68] sm:$0xff]
    %v4526 = vld [vmem:[%s2810 + $0x70] sm:$0xff]
    %v4527 = vld [vmem:[%s2810 + $0x78] sm:$0xff]
    %v4528 = vld [vmem:[%s2810 + $0x80] sm:$0xff]
    %v4529 = vld [vmem:[%s2810 + $0x88] sm:$0xff]
    %v4530 = vld [vmem:[%s2810 + $0x90] sm:$0xff]
    %v4531 = vld [vmem:[%s2810 + $0x98] sm:$0xff]
    %v4532 = vld [vmem:[%s2810 + $0xa0] sm:$0xff]
    %v4533 = vld [vmem:[%s2810 + $0xa8] sm:$0xff]
    %v4534 = vld [vmem:[%s2810 + $0xb0] sm:$0xff]
    %v4535 = vld [vmem:[%s2810 + $0xb8] sm:$0xff]
    %v4536 = vld [vmem:[%s2810 + $0xc0] sm:$0xff]
    %v4537 = vld [vmem:[%s2810 + $0xc8] sm:$0xff]
    %v4538 = vld [vmem:[%s2810 + $0xd0] sm:$0xff]
    %v4539 = vld [vmem:[%s2810 + $0xd8] sm:$0xff]
    %v4540 = vld [vmem:[%s2810 + $0xe0] sm:$0xff]
    %v4541 = vld [vmem:[%s2810 + $0xe8] sm:$0xff]
    %v4542 = vld [vmem:[%s2810 + $0xf0] sm:$0xff]
    %v4543 = vld [vmem:[%s2810 + $0xf8] sm:$0xff]
    %v4544 = vld [vmem:[%s2810 + $0x100] sm:$0xff]
    %v4545 = vld [vmem:[%s2810 + $0x108] sm:$0xff]
    %v4546 = vld [vmem:[%s2810 + $0x110] sm:$0xff]
    %v4547 = vld [vmem:[%s2810 + $0x118] sm:$0xff]
    %v4548 = vld [vmem:[%s2810 + $0x120] sm:$0xff]
    %v4549 = vld [vmem:[%s2810 + $0x128] sm:$0xff]
    %v4550 = vld [vmem:[%s2810 + $0x130] sm:$0xff]
    %v4551 = vld [vmem:[%s2810 + $0x138] sm:$0xff]
    %v4552 = vld [vmem:[%s2810 + $0x140] sm:$0xff]
    %v4553 = vld [vmem:[%s2810 + $0x148] sm:$0xff]
    %v4554 = vld [vmem:[%s2810 + $0x150] sm:$0xff]
    %v4555 = vld [vmem:[%s2810 + $0x158] sm:$0xff]
    %v4556 = vld [vmem:[%s2810 + $0x160] sm:$0xff]
    %v4557 = vld [vmem:[%s2810 + $0x168] sm:$0xff]
    %v4558 = vld [vmem:[%s2810 + $0x170] sm:$0xff]
    %v4559 = vld [vmem:[%s2810 + $0x178] sm:$0xff]
    %v4560 = vld [vmem:[%s2810 + $0x180] sm:$0xff]
    %v4561 = vld [vmem:[%s2810 + $0x188] sm:$0xff]
    %v4562 = vld [vmem:[%s2810 + $0x190] sm:$0xff]
    %v4563 = vld [vmem:[%s2810 + $0x198] sm:$0xff]
    %v4564 = vld [vmem:[%s2810 + $0x1a0] sm:$0xff]
    %v4565 = vld [vmem:[%s2810 + $0x1a8] sm:$0xff]
    %v4566 = vld [vmem:[%s2810 + $0x1b0] sm:$0xff]
    %v4567 = vld [vmem:[%s2810 + $0x1b8] sm:$0xff]
    %v4568 = vld [vmem:[%s2810 + $0x1c0] sm:$0xff]
    %v4569 = vld [vmem:[%s2810 + $0x1c8] sm:$0xff]
    %v4570 = vld [vmem:[%s2810 + $0x1d0] sm:$0xff]
    %v4571 = vld [vmem:[%s2810 + $0x1d8] sm:$0xff]
    %v4572 = vld [vmem:[%s2810 + $0x1e0] sm:$0xff]
    %v4573 = vld [vmem:[%s2810 + $0x1e8] sm:$0xff]
    %v4574 = vld [vmem:[%s2810 + $0x1f0] sm:$0xff]
    %v4575 = vld [vmem:[%s2810 + $0x1f8] sm:$0xff]
    %4576 = vmatprep.subr.mxu0 %v4513
    %4577 = vmatpush1.msra.mxu0 %v4512
    %4578 = vmatprep.subr.mxu0 %v4517
    %4579 = vmatpush1.msra.mxu0 %v4516
    %4580 = vmatprep.subr.mxu0 %v4521
    %4581 = vmatpush1.msra.mxu0 %v4520
    %4582 = vmatprep.subr.mxu0 %v4525
    %4583 = vmatpush1.msra.mxu0 %v4524
    %4584 = vmatprep.subr.mxu0 %v4529
    %4585 = vmatpush1.msra.mxu0 %v4528
    %4586 = vmatprep.subr.mxu0 %v4533
    %4587 = vmatpush1.msra.mxu0 %v4532
    %4588 = vmatprep.subr.mxu0 %v4537
    %4589 = vmatpush1.msra.mxu0 %v4536
    %4590 = vmatprep.subr.mxu0 %v4541
    %4591 = vmatpush1.msra.mxu0 %v4540
    %4592 = vmatprep.subr.mxu0 %v4545
    %4593 = vmatpush1.msra.mxu0 %v4544
    %4594 = vmatprep.subr.mxu0 %v4549
    %4595 = vmatpush1.msra.mxu0 %v4548
    %4596 = vmatprep.subr.mxu0 %v4553
    %4597 = vmatpush1.msra.mxu0 %v4552
    %4598 = vmatprep.subr.mxu0 %v4557
    %4599 = vmatpush1.msra.mxu0 %v4556
    %4600 = vmatprep.subr.mxu0 %v4561
    %4601 = vmatpush1.msra.mxu0 %v4560
    %4602 = vmatprep.subr.mxu0 %v4565
    %4603 = vmatpush1.msra.mxu0 %v4564
    %4604 = vmatprep.subr.mxu0 %v4569
    %4605 = vmatpush1.msra.mxu0 %v4568
    %4606 = vmatprep.subr.mxu0 %v4573
    %4607 = vmatpush1.msra.mxu0 %v4572
    %4608 = vmatprep.subr.mxu0 0.0
    %4609 = vmatpush1.msra.mxu0 0.0
    %4610 = vmatprep.subr.mxu0 0.0
    %4611 = vmatpush1.msra.mxu0 0.0
    %4612 = vmatprep.subr.mxu0 0.0
    %4613 = vmatpush1.msra.mxu0 0.0
    %4614 = vmatprep.subr.mxu0 0.0
    %4615 = vmatpush1.msra.mxu0 0.0
    %4616 = vmatprep.subr.mxu0 0.0
    %4617 = vmatpush1.msra.mxu0 0.0
    %4618 = vmatprep.subr.mxu0 0.0
    %4619 = vmatpush1.msra.mxu0 0.0
    %4620 = vmatprep.subr.mxu0 0.0
    %4621 = vmatpush1.msra.mxu0 0.0
    %4622 = vmatprep.subr.mxu0 0.0
    %4623 = vmatpush1.msra.mxu0 0.0
    %4624 = vmatprep.subr.mxu0 0.0
    %4625 = vmatpush1.msra.mxu0 0.0
    %4626 = vmatprep.subr.mxu0 0.0
    %4627 = vmatpush1.msra.mxu0 0.0
    %4628 = vmatprep.subr.mxu0 0.0
    %4629 = vmatpush1.msra.mxu0 0.0
    %4630 = vmatprep.subr.mxu0 0.0
    %4631 = vmatpush1.msra.mxu0 0.0
    %4632 = vmatprep.subr.mxu0 0.0
    %4633 = vmatpush1.msra.mxu0 0.0
    %4634 = vmatprep.subr.mxu0 0.0
    %4635 = vmatpush1.msra.mxu0 0.0
    %4636 = vmatprep.subr.mxu0 0.0
    %4637 = vmatpush1.msra.mxu0 0.0
    %4638 = vmatprep.subr.mxu0 0.0
    %4639 = vmatpush1.msra.mxu0 0.0
    %4640 = vmatprep.mubr.f32.mxu0 0.0
    %4641 = vmatmul.mubr.f32.gmra.mrb[0].mxu0 %v4511
    %v4642 = vpop.f32.mrb[0].mxu0
    %v4643 = vadd.f32 0.0, %v4642
    %v4644 = vpop.f32.mrb[0].mxu0
    %v4645 = vadd.f32 0.0, %v4644
    %4646 = vdwg.mxu0
    %4647 = vmatprep.subr.mxu0 %v4515
    %4648 = vmatpush1.msra.mxu0 %v4514
    %4649 = vmatprep.subr.mxu0 %v4519
    %4650 = vmatpush1.msra.mxu0 %v4518
    %4651 = vmatprep.subr.mxu0 %v4523
    %4652 = vmatpush1.msra.mxu0 %v4522
    %4653 = vmatprep.subr.mxu0 %v4527
    %4654 = vmatpush1.msra.mxu0 %v4526
    %4655 = vmatprep.subr.mxu0 %v4531
    %4656 = vmatpush1.msra.mxu0 %v4530
    %4657 = vmatprep.subr.mxu0 %v4535
    %4658 = vmatpush1.msra.mxu0 %v4534
    %4659 = vmatprep.subr.mxu0 %v4539
    %4660 = vmatpush1.msra.mxu0 %v4538
    %4661 = vmatprep.subr.mxu0 %v4543
    %4662 = vmatpush1.msra.mxu0 %v4542
    %4663 = vmatprep.subr.mxu0 %v4547
    %4664 = vmatpush1.msra.mxu0 %v4546
    %4665 = vmatprep.subr.mxu0 %v4551
    %4666 = vmatpush1.msra.mxu0 %v4550
    %4667 = vmatprep.subr.mxu0 %v4555
    %4668 = vmatpush1.msra.mxu0 %v4554
    %4669 = vmatprep.subr.mxu0 %v4559
    %4670 = vmatpush1.msra.mxu0 %v4558
    %4671 = vmatprep.subr.mxu0 %v4563
    %4672 = vmatpush1.msra.mxu0 %v4562
    %4673 = vmatprep.subr.mxu0 %v4567
    %4674 = vmatpush1.msra.mxu0 %v4566
    %4675 = vmatprep.subr.mxu0 %v4571
    %4676 = vmatpush1.msra.mxu0 %v4570
    %4677 = vmatprep.subr.mxu0 %v4575
    %4678 = vmatpush1.msra.mxu0 %v4574
    %4679 = vmatprep.subr.mxu0 0.0
    %4680 = vmatpush1.msra.mxu0 0.0
    %4681 = vmatprep.subr.mxu0 0.0
    %4682 = vmatpush1.msra.mxu0 0.0
    %4683 = vmatprep.subr.mxu0 0.0
    %4684 = vmatpush1.msra.mxu0 0.0
    %4685 = vmatprep.subr.mxu0 0.0
    %4686 = vmatpush1.msra.mxu0 0.0
    %4687 = vmatprep.subr.mxu0 0.0
    %4688 = vmatpush1.msra.mxu0 0.0
    %4689 = vmatprep.subr.mxu0 0.0
    %4690 = vmatpush1.msra.mxu0 0.0
    %4691 = vmatprep.subr.mxu0 0.0
    %4692 = vmatpush1.msra.mxu0 0.0
    %4693 = vmatprep.subr.mxu0 0.0
    %4694 = vmatpush1.msra.mxu0 0.0
    %4695 = vmatprep.subr.mxu0 0.0
    %4696 = vmatpush1.msra.mxu0 0.0
    %4697 = vmatprep.subr.mxu0 0.0
    %4698 = vmatpush1.msra.mxu0 0.0
    %4699 = vmatprep.subr.mxu0 0.0
    %4700 = vmatpush1.msra.mxu0 0.0
    %4701 = vmatprep.subr.mxu0 0.0
    %4702 = vmatpush1.msra.mxu0 0.0
    %4703 = vmatprep.subr.mxu0 0.0
    %4704 = vmatpush1.msra.mxu0 0.0
    %4705 = vmatprep.subr.mxu0 0.0
    %4706 = vmatpush1.msra.mxu0 0.0
    %4707 = vmatprep.subr.mxu0 0.0
    %4708 = vmatpush1.msra.mxu0 0.0
    %4709 = vmatprep.subr.mxu0 0.0
    %4710 = vmatpush1.msra.mxu0 0.0
    %4711 = vmatprep.mubr.f32.mxu0 0.0
    %4712 = vmatmul.mubr.f32.gmra.mrb[0].mxu0 %v4511
    %v4713 = vpop.f32.mrb[0].mxu0
    %v4714 = vadd.f32 0.0, %v4713
    %v4715 = vpop.f32.mrb[0].mxu0
    %v4716 = vadd.f32 0.0, %v4715
    %4717 = vdwg.mxu0
    %v4718 = vadd.f32 %v4507, %v4643
    %v4719 = vadd.f32 %v4508, %v4645
    %v4720 = vadd.f32 %v4509, %v4714
    %v4721 = vadd.f32 %v4510, %v4716
    %v4722 = vxor.u32 %v4718, 2147483648
    %v4723 = vmul.f32 %v4722, 1.442695
    %v4724 = vpow.pop %v4723
    %v4725 = vadd.f32 %v4724, 1.0
    %v4726 = vrcp.pop %v4725
    %v4727 = vmul.f32 1.0, %v4726
    %v4728 = vxor.u32 %v4719, 2147483648
    %v4729 = vmul.f32 %v4728, 1.442695
    %v4730 = vpow.pop %v4729
    %v4731 = vadd.f32 %v4730, 1.0
    %v4732 = vrcp.pop %v4731
    %v4733 = vmul.f32 1.0, %v4732
    %v4734 = vtanh.pop %v4720
    %v4735 = vxor.u32 %v4721, 2147483648
    %v4736 = vmul.f32 %v4735, 1.442695
    %v4737 = vpow.pop %v4736
    %v4738 = vadd.f32 %v4737, 1.0
    %v4739 = vrcp.pop %v4738
    %v4740 = vmul.f32 1.0, %v4739
    %v4741 = vld [vmem:[#allocation5] sm:$0xff]
    %v4742 = vmul.f32 %v4733, %v4741
    %v4743 = vmul.f32 %v4727, %v4734
    %v4744 = vadd.f32 %v4742, %v4743
    %v4745 = vtanh.pop %v4744
    %v4746 = vmul.f32 %v4740, %v4745
    %4747 = vst [vmem:[#allocation5] sm:$0xff] %v4744
    %4748 = vst [vmem:[#allocation4] sm:$0xff] %v4746
    %4749 = vst [vmem:[%s2447] sm:$0xff] %v4746
    %v4750 = vld [vmem:[#allocation2] sm:$0xff]
    %v4751 = vld [vmem:[#allocation2 + $0x8] sm:$0xff]
    %v4752 = vld [vmem:[#allocation2 + $0x10] sm:$0xff]
    %v4753 = vld [vmem:[#allocation2 + $0x18] sm:$0xff]
    %v4754 = vld [vmem:[#allocation2 + $0x20] sm:$0xff]
    %v4755 = vld [vmem:[#allocation2 + $0x28] sm:$0xff]
    %v4756 = vld [vmem:[#allocation2 + $0x30] sm:$0xff]
    %v4757 = vld [vmem:[#allocation2 + $0x38] sm:$0xff]
    %v4758 = vld [vmem:[#allocation12] sm:$0xff]
    %v4759 = vld [vmem:[#allocation12 + $0x8] sm:$0xff]
    %v4760 = vld [vmem:[#allocation12 + $0x10] sm:$0xff]
    %v4761 = vld [vmem:[#allocation12 + $0x18] sm:$0xff]
    %v4762 = vld [vmem:[#allocation12 + $0x20] sm:$0xff]
    %v4763 = vld [vmem:[#allocation12 + $0x28] sm:$0xff]
    %v4764 = vld [vmem:[#allocation12 + $0x30] sm:$0xff]
    %v4765 = vld [vmem:[#allocation12 + $0x38] sm:$0xff]
    %v4766 = vld [vmem:[#allocation12 + $0x40] sm:$0xff]
    %v4767 = vld [vmem:[#allocation12 + $0x48] sm:$0xff]
    %v4768 = vld [vmem:[#allocation12 + $0x50] sm:$0xff]
    %v4769 = vld [vmem:[#allocation12 + $0x58] sm:$0xff]
    %v4770 = vld [vmem:[#allocation12 + $0x60] sm:$0xff]
    %v4771 = vld [vmem:[#allocation12 + $0x68] sm:$0xff]
    %v4772 = vld [vmem:[#allocation12 + $0x70] sm:$0xff]
    %v4773 = vld [vmem:[#allocation12 + $0x78] sm:$0xff]
    %v4774 = vld [vmem:[#allocation12 + $0x80] sm:$0xff]
    %v4775 = vld [vmem:[#allocation12 + $0x88] sm:$0xff]
    %v4776 = vld [vmem:[#allocation12 + $0x90] sm:$0xff]
    %v4777 = vld [vmem:[#allocation12 + $0x98] sm:$0xff]
    %v4778 = vld [vmem:[#allocation12 + $0xa0] sm:$0xff]
    %v4779 = vld [vmem:[#allocation12 + $0xa8] sm:$0xff]
    %v4780 = vld [vmem:[#allocation12 + $0xb0] sm:$0xff]
    %v4781 = vld [vmem:[#allocation12 + $0xb8] sm:$0xff]
    %v4782 = vld [vmem:[#allocation12 + $0xc0] sm:$0xff]
    %v4783 = vld [vmem:[#allocation12 + $0xc8] sm:$0xff]
    %v4784 = vld [vmem:[#allocation12 + $0xd0] sm:$0xff]
    %v4785 = vld [vmem:[#allocation12 + $0xd8] sm:$0xff]
    %v4786 = vld [vmem:[#allocation12 + $0xe0] sm:$0xff]
    %v4787 = vld [vmem:[#allocation12 + $0xe8] sm:$0xff]
    %v4788 = vld [vmem:[#allocation12 + $0xf0] sm:$0xff]
    %v4789 = vld [vmem:[#allocation12 + $0xf8] sm:$0xff]
    %v4790 = vld [vmem:[%s5] sm:$0x3]
    %v4792 = vlaneseq
    %v4793 = vshrl.u32 %v4792, 7
    %v4794 = vsub.s32 0, %v4793
    %v4795 = vrot.slane %v4790, %v4794
    %v4796 = vlaneseq
    %v4797 = vshrl.u32 %v4796, 7
    %v4798 = vsub.s32 1, %v4797
    %v4799 = vrot.slane %v4790, %v4798
    %4802 = vmatprep.subr.mxu0 %v4759
    %4803 = vmatpush1.msra.mxu0 %v4758
    %4804 = vmatprep.subr.mxu0 %v4761
    %4805 = vmatpush1.msra.mxu0 %v4760
    %4806 = vmatprep.subr.mxu0 %v4763
    %4807 = vmatpush1.msra.mxu0 %v4762
    %4808 = vmatprep.subr.mxu0 %v4765
    %4809 = vmatpush1.msra.mxu0 %v4764
    %4810 = vmatprep.subr.mxu0 %v4767
    %4811 = vmatpush1.msra.mxu0 %v4766
    %4812 = vmatprep.subr.mxu0 %v4769
    %4813 = vmatpush1.msra.mxu0 %v4768
    %4814 = vmatprep.subr.mxu0 %v4771
    %4815 = vmatpush1.msra.mxu0 %v4770
    %4816 = vmatprep.subr.mxu0 %v4773
    %4817 = vmatpush1.msra.mxu0 %v4772
    %4818 = vmatprep.subr.mxu0 %v4775
    %4819 = vmatpush1.msra.mxu0 %v4774
    %4820 = vmatprep.subr.mxu0 %v4777
    %4821 = vmatpush1.msra.mxu0 %v4776
    %4822 = vmatprep.subr.mxu0 %v4779
    %4823 = vmatpush1.msra.mxu0 %v4778
    %4824 = vmatprep.subr.mxu0 %v4781
    %4825 = vmatpush1.msra.mxu0 %v4780
    %4826 = vmatprep.subr.mxu0 %v4783
    %4827 = vmatpush1.msra.mxu0 %v4782
    %4828 = vmatprep.subr.mxu0 %v4785
    %4829 = vmatpush1.msra.mxu0 %v4784
    %4830 = vmatprep.subr.mxu0 %v4787
    %4831 = vmatpush1.msra.mxu0 %v4786
    %4832 = vmatprep.subr.mxu0 %v4789
    %4833 = vmatpush1.msra.mxu0 %v4788
    %4834 = vmatprep.subr.mxu0 0.0
    %4835 = vmatpush1.msra.mxu0 0.0
    %4836 = vmatprep.subr.mxu0 0.0
    %4837 = vmatpush1.msra.mxu0 0.0
    %4838 = vmatprep.subr.mxu0 0.0
    %4839 = vmatpush1.msra.mxu0 0.0
    %4840 = vmatprep.subr.mxu0 0.0
    %4841 = vmatpush1.msra.mxu0 0.0
    %4842 = vmatprep.subr.mxu0 0.0
    %4843 = vmatpush1.msra.mxu0 0.0
    %4844 = vmatprep.subr.mxu0 0.0
    %4845 = vmatpush1.msra.mxu0 0.0
    %4846 = vmatprep.subr.mxu0 0.0
    %4847 = vmatpush1.msra.mxu0 0.0
    %4848 = vmatprep.subr.mxu0 0.0
    %4849 = vmatpush1.msra.mxu0 0.0
    %4850 = vmatprep.subr.mxu0 0.0
    %4851 = vmatpush1.msra.mxu0 0.0
    %4852 = vmatprep.subr.mxu0 0.0
    %4853 = vmatpush1.msra.mxu0 0.0
    %4854 = vmatprep.subr.mxu0 0.0
    %4855 = vmatpush1.msra.mxu0 0.0
    %4856 = vmatprep.subr.mxu0 0.0
    %4857 = vmatpush1.msra.mxu0 0.0
    %4858 = vmatprep.subr.mxu0 0.0
    %4859 = vmatpush1.msra.mxu0 0.0
    %4860 = vmatprep.subr.mxu0 0.0
    %4861 = vmatpush1.msra.mxu0 0.0
    %4862 = vmatprep.subr.mxu0 0.0
    %4863 = vmatpush1.msra.mxu0 0.0
    %4864 = vmatprep.subr.mxu0 0.0
    %4865 = vmatpush1.msra.mxu0 0.0
    %4866 = vmatprep.mubr.f32.mxu0 0.0
    %4867 = vmatmul.mubr.f32.gmra.mrb[0].mxu0 %v4750
    %v4868 = vpop.f32.mrb[0].mxu0
    %v4869 = vadd.f32 %v4795, %v4868
    %v4870 = vpop.f32.mrb[0].mxu0
    %v4871 = vadd.f32 %v4799, %v4870
    %4872 = vmatprep.mubr.f32.mxu0 0.0
    %4873 = vmatmul.mubr.f32.gmra.mrb[0].mxu0 %v4751
    %v4874 = vpop.f32.mrb[0].mxu0
    %v4875 = vadd.f32 %v4795, %v4874
    %v4876 = vpop.f32.mrb[0].mxu0
    %v4877 = vadd.f32 %v4799, %v4876
    %4878 = vmatprep.mubr.f32.mxu0 0.0
    %4879 = vmatmul.mubr.f32.gmra.mrb[0].mxu0 %v4752
    %v4880 = vpop.f32.mrb[0].mxu0
    %v4881 = vadd.f32 %v4795, %v4880
    %v4882 = vpop.f32.mrb[0].mxu0
    %v4883 = vadd.f32 %v4799, %v4882
    %4884 = vmatprep.mubr.f32.mxu0 0.0
    %4885 = vmatmul.mubr.f32.gmra.mrb[0].mxu0 %v4753
    %v4886 = vpop.f32.mrb[0].mxu0
    %v4887 = vadd.f32 %v4795, %v4886
    %v4888 = vpop.f32.mrb[0].mxu0
    %v4889 = vadd.f32 %v4799, %v4888
    %4890 = vmatprep.mubr.f32.mxu0 0.0
    %4891 = vmatmul.mubr.f32.gmra.mrb[0].mxu0 %v4754
    %v4892 = vpop.f32.mrb[0].mxu0
    %v4893 = vadd.f32 %v4795, %v4892
    %v4894 = vpop.f32.mrb[0].mxu0
    %v4895 = vadd.f32 %v4799, %v4894
    %4896 = vmatprep.mubr.f32.mxu0 0.0
    %4897 = vmatmul.mubr.f32.gmra.mrb[0].mxu0 %v4755
    %v4898 = vpop.f32.mrb[0].mxu0
    %v4899 = vadd.f32 %v4795, %v4898
    %v4900 = vpop.f32.mrb[0].mxu0
    %v4901 = vadd.f32 %v4799, %v4900
    %4902 = vmatprep.mubr.f32.mxu0 0.0
    %4903 = vmatmul.mubr.f32.gmra.mrb[0].mxu0 %v4756
    %v4904 = vpop.f32.mrb[0].mxu0
    %v4905 = vadd.f32 %v4795, %v4904
    %v4906 = vpop.f32.mrb[0].mxu0
    %v4907 = vadd.f32 %v4799, %v4906
    %4908 = vmatprep.mubr.f32.mxu0 0.0
    %4909 = vmatmul.mubr.f32.gmra.mrb[0].mxu0 %v4757
    %v4910 = vpop.f32.mrb[0].mxu0
    %v4911 = vadd.f32 %v4795, %v4910
    %v4912 = vpop.f32.mrb[0].mxu0
    %v4913 = vadd.f32 %v4799, %v4912
    %4914 = vdwg.mxu0
    %v4915 = vmax.f32 %v4869, 0.0
    %v4916 = vmax.f32 %v4871, 0.0
    %v4917 = vmax.f32 %v4875, 0.0
    %v4918 = vmax.f32 %v4877, 0.0
    %v4919 = vmax.f32 %v4881, 0.0
    %v4920 = vmax.f32 %v4883, 0.0
    %v4921 = vmax.f32 %v4887, 0.0
    %v4922 = vmax.f32 %v4889, 0.0
    %v4923 = vmax.f32 %v4893, 0.0
    %v4924 = vmax.f32 %v4895, 0.0
    %v4925 = vmax.f32 %v4899, 0.0
    %v4926 = vmax.f32 %v4901, 0.0
    %v4927 = vmax.f32 %v4905, 0.0
    %v4928 = vmax.f32 %v4907, 0.0
    %v4929 = vmax.f32 %v4911, 0.0
    %v4930 = vmax.f32 %v4913, 0.0
    %v4931 = vld [vmem:[#allocation14] sm:$0xff]
    %v4932 = vld [vmem:[#allocation14 + $0x8] sm:$0xff]
    %v4933 = vld [vmem:[#allocation14 + $0x10] sm:$0xff]
    %v4934 = vld [vmem:[#allocation14 + $0x18] sm:$0xff]
    %v4935 = vld [vmem:[#allocation14 + $0x20] sm:$0xff]
    %v4936 = vld [vmem:[#allocation14 + $0x28] sm:$0xff]
    %v4937 = vld [vmem:[#allocation14 + $0x30] sm:$0xff]
    %v4938 = vld [vmem:[#allocation14 + $0x38] sm:$0xff]
    %v4939 = vld [vmem:[#allocation14 + $0x40] sm:$0xff]
    %v4940 = vld [vmem:[#allocation14 + $0x48] sm:$0xff]
    %v4941 = vld [vmem:[#allocation14 + $0x50] sm:$0xff]
    %v4942 = vld [vmem:[#allocation14 + $0x58] sm:$0xff]
    %v4943 = vld [vmem:[#allocation14 + $0x60] sm:$0xff]
    %v4944 = vld [vmem:[#allocation14 + $0x68] sm:$0xff]
    %v4945 = vld [vmem:[#allocation14 + $0x70] sm:$0xff]
    %v4946 = vld [vmem:[#allocation14 + $0x78] sm:$0xff]
    %v4947 = vld [vmem:[#allocation14 + $0x80] sm:$0xff]
    %v4948 = vld [vmem:[#allocation14 + $0x88] sm:$0xff]
    %v4949 = vld [vmem:[#allocation14 + $0x90] sm:$0xff]
    %v4950 = vld [vmem:[#allocation14 + $0x98] sm:$0xff]
    %v4951 = vld [vmem:[#allocation14 + $0xa0] sm:$0xff]
    %v4952 = vld [vmem:[#allocation14 + $0xa8] sm:$0xff]
    %v4953 = vld [vmem:[#allocation14 + $0xb0] sm:$0xff]
    %v4954 = vld [vmem:[#allocation14 + $0xb8] sm:$0xff]
    %v4955 = vld [vmem:[#allocation14 + $0xc0] sm:$0xff]
    %v4956 = vld [vmem:[#allocation14 + $0xc8] sm:$0xff]
    %v4957 = vld [vmem:[#allocation14 + $0xd0] sm:$0xff]
    %v4958 = vld [vmem:[#allocation14 + $0xd8] sm:$0xff]
    %v4959 = vld [vmem:[#allocation14 + $0xe0] sm:$0xff]
    %v4960 = vld [vmem:[#allocation14 + $0xe8] sm:$0xff]
    %v4961 = vld [vmem:[#allocation14 + $0xf0] sm:$0xff]
    %v4962 = vld [vmem:[#allocation14 + $0xf8] sm:$0xff]
    %v4963 = vld [vmem:[%s7] sm:$0x1]
    %v4965 = vlaneseq
    %v4966 = vshrl.u32 %v4965, 7
    %v4967 = vsub.s32 0, %v4966
    %v4968 = vrot.slane %v4963, %v4967
    %4970 = vmatprep.subr.mxu0 0.0
    %4971 = vmatpush1.msra.mxu0 %v4931
    %4972 = vmatprep.subr.mxu0 0.0
    %4973 = vmatpush1.msra.mxu0 %v4932
    %4974 = vmatprep.subr.mxu0 0.0
    %4975 = vmatpush1.msra.mxu0 %v4933
    %4976 = vmatprep.subr.mxu0 0.0
    %4977 = vmatpush1.msra.mxu0 %v4934
    %4978 = vmatprep.subr.mxu0 0.0
    %4979 = vmatpush1.msra.mxu0 %v4935
    %4980 = vmatprep.subr.mxu0 0.0
    %4981 = vmatpush1.msra.mxu0 %v4936
    %4982 = vmatprep.subr.mxu0 0.0
    %4983 = vmatpush1.msra.mxu0 %v4937
    %4984 = vmatprep.subr.mxu0 0.0
    %4985 = vmatpush1.msra.mxu0 %v4938
    %4986 = vmatprep.subr.mxu0 0.0
    %4987 = vmatpush1.msra.mxu0 %v4939
    %4988 = vmatprep.subr.mxu0 0.0
    %4989 = vmatpush1.msra.mxu0 %v4940
    %4990 = vmatprep.subr.mxu0 0.0
    %4991 = vmatpush1.msra.mxu0 %v4941
    %4992 = vmatprep.subr.mxu0 0.0
    %4993 = vmatpush1.msra.mxu0 %v4942
    %4994 = vmatprep.subr.mxu0 0.0
    %4995 = vmatpush1.msra.mxu0 %v4943
    %4996 = vmatprep.subr.mxu0 0.0
    %4997 = vmatpush1.msra.mxu0 %v4944
    %4998 = vmatprep.subr.mxu0 0.0
    %4999 = vmatpush1.msra.mxu0 %v4945
    %5000 = vmatprep.subr.mxu0 0.0
    %5001 = vmatpush1.msra.mxu0 %v4946
    %5002 = vmatprep.subr.mxu0 0.0
    %5003 = vmatpush1.msra.mxu0 %v4947
    %5004 = vmatprep.subr.mxu0 0.0
    %5005 = vmatpush1.msra.mxu0 %v4948
    %5006 = vmatprep.subr.mxu0 0.0
    %5007 = vmatpush1.msra.mxu0 %v4949
    %5008 = vmatprep.subr.mxu0 0.0
    %5009 = vmatpush1.msra.mxu0 %v4950
    %5010 = vmatprep.subr.mxu0 0.0
    %5011 = vmatpush1.msra.mxu0 %v4951
    %5012 = vmatprep.subr.mxu0 0.0
    %5013 = vmatpush1.msra.mxu0 %v4952
    %5014 = vmatprep.subr.mxu0 0.0
    %5015 = vmatpush1.msra.mxu0 %v4953
    %5016 = vmatprep.subr.mxu0 0.0
    %5017 = vmatpush1.msra.mxu0 %v4954
    %5018 = vmatprep.subr.mxu0 0.0
    %5019 = vmatpush1.msra.mxu0 %v4955
    %5020 = vmatprep.subr.mxu0 0.0
    %5021 = vmatpush1.msra.mxu0 %v4956
    %5022 = vmatprep.subr.mxu0 0.0
    %5023 = vmatpush1.msra.mxu0 %v4957
    %5024 = vmatprep.subr.mxu0 0.0
    %5025 = vmatpush1.msra.mxu0 %v4958
    %5026 = vmatprep.subr.mxu0 0.0
    %5027 = vmatpush1.msra.mxu0 %v4959
    %5028 = vmatprep.subr.mxu0 0.0
    %5029 = vmatpush1.msra.mxu0 %v4960
    %5030 = vmatprep.subr.mxu0 0.0
    %5031 = vmatpush1.msra.mxu0 %v4961
    %5032 = vmatprep.subr.mxu0 0.0
    %5033 = vmatpush1.msra.mxu0 %v4962
    %5034 = vmatprep.mubr.f32.mxu0 %v4916
    %5035 = vmatmul.mubr.f32.gmra.mrb[0].mxu0 %v4915
    %v5036 = vpop.f32.mrb[0].mxu0
    %v5037 = vadd.f32 %v4968, %v5036
    %v5038 = vpop.f32.mrb[0].mxu0
    %5039 = vmatprep.mubr.f32.mxu0 %v4918
    %5040 = vmatmul.mubr.f32.gmra.mrb[0].mxu0 %v4917
    %v5041 = vpop.f32.mrb[0].mxu0
    %v5042 = vadd.f32 %v4968, %v5041
    %v5043 = vpop.f32.mrb[0].mxu0
    %5044 = vmatprep.mubr.f32.mxu0 %v4920
    %5045 = vmatmul.mubr.f32.gmra.mrb[0].mxu0 %v4919
    %v5046 = vpop.f32.mrb[0].mxu0
    %v5047 = vadd.f32 %v4968, %v5046
    %v5048 = vpop.f32.mrb[0].mxu0
    %5049 = vmatprep.mubr.f32.mxu0 %v4922
    %5050 = vmatmul.mubr.f32.gmra.mrb[0].mxu0 %v4921
    %v5051 = vpop.f32.mrb[0].mxu0
    %v5052 = vadd.f32 %v4968, %v5051
    %v5053 = vpop.f32.mrb[0].mxu0
    %5054 = vmatprep.mubr.f32.mxu0 %v4924
    %5055 = vmatmul.mubr.f32.gmra.mrb[0].mxu0 %v4923
    %v5056 = vpop.f32.mrb[0].mxu0
    %v5057 = vadd.f32 %v4968, %v5056
    %v5058 = vpop.f32.mrb[0].mxu0
    %5059 = vmatprep.mubr.f32.mxu0 %v4926
    %5060 = vmatmul.mubr.f32.gmra.mrb[0].mxu0 %v4925
    %v5061 = vpop.f32.mrb[0].mxu0
    %v5062 = vadd.f32 %v4968, %v5061
    %v5063 = vpop.f32.mrb[0].mxu0
    %5064 = vmatprep.mubr.f32.mxu0 %v4928
    %5065 = vmatmul.mubr.f32.gmra.mrb[0].mxu0 %v4927
    %v5066 = vpop.f32.mrb[0].mxu0
    %v5067 = vadd.f32 %v4968, %v5066
    %v5068 = vpop.f32.mrb[0].mxu0
    %5069 = vmatprep.mubr.f32.mxu0 %v4930
    %5070 = vmatmul.mubr.f32.gmra.mrb[0].mxu0 %v4929
    %v5071 = vpop.f32.mrb[0].mxu0
    %v5072 = vadd.f32 %v4968, %v5071
    %v5073 = vpop.f32.mrb[0].mxu0
    %5074 = vdwg.mxu0
    %v5075 = vmax.f32 %v5037, 0.0
    %v5076 = vmax.f32 %v5042, 0.0
    %v5077 = vmax.f32 %v5047, 0.0
    %v5078 = vmax.f32 %v5052, 0.0
    %v5079 = vmax.f32 %v5057, 0.0
    %v5080 = vmax.f32 %v5062, 0.0
    %v5081 = vmax.f32 %v5067, 0.0
    %v5082 = vmax.f32 %v5072, 0.0
    %v5083 = vld [vmem:[#allocation15] sm:$0xff]
    %v5084 = vld [vmem:[#allocation15 + $0x8] sm:$0xff]
    %v5085 = vld [vmem:[#allocation15 + $0x10] sm:$0xff]
    %v5086 = vld [vmem:[#allocation15 + $0x18] sm:$0xff]
    %v5087 = vld [vmem:[#allocation15 + $0x20] sm:$0xff]
    %v5088 = vld [vmem:[#allocation15 + $0x28] sm:$0xff]
    %v5089 = vld [vmem:[#allocation15 + $0x30] sm:$0xff]
    %v5090 = vld [vmem:[#allocation15 + $0x38] sm:$0xff]
    %v5091 = vld [vmem:[#allocation15 + $0x40] sm:$0xff]
    %v5092 = vld [vmem:[#allocation15 + $0x48] sm:$0xff]
    %v5093 = vld [vmem:[#allocation15 + $0x50] sm:$0xff]
    %v5094 = vld [vmem:[#allocation15 + $0x58] sm:$0xff]
    %v5095 = vld [vmem:[#allocation15 + $0x60] sm:$0xff]
    %v5096 = vld [vmem:[#allocation15 + $0x68] sm:$0xff]
    %v5097 = vld [vmem:[#allocation15 + $0x70] sm:$0xff]
    %v5098 = vld [vmem:[#allocation15 + $0x78] sm:$0xff]
    %v5099 = vld [vmem:[%s9] sm:$0x1]
    %v5101 = vlaneseq
    %v5102 = vshrl.u32 %v5101, 7
    %v5103 = vsub.s32 0, %v5102
    %v5104 = vrot.slane %v5099, %v5103
    %5106 = vmatprep.subr.mxu0 0.0
    %5107 = vmatpush1.msra.mxu0 %v5083
    %5108 = vmatprep.subr.mxu0 0.0
    %5109 = vmatpush1.msra.mxu0 %v5084
    %5110 = vmatprep.subr.mxu0 0.0
    %5111 = vmatpush1.msra.mxu0 %v5085
    %5112 = vmatprep.subr.mxu0 0.0
    %5113 = vmatpush1.msra.mxu0 %v5086
    %5114 = vmatprep.subr.mxu0 0.0
    %5115 = vmatpush1.msra.mxu0 %v5087
    %5116 = vmatprep.subr.mxu0 0.0
    %5117 = vmatpush1.msra.mxu0 %v5088
    %5118 = vmatprep.subr.mxu0 0.0
    %5119 = vmatpush1.msra.mxu0 %v5089
    %5120 = vmatprep.subr.mxu0 0.0
    %5121 = vmatpush1.msra.mxu0 %v5090
    %5122 = vmatprep.subr.mxu0 0.0
    %5123 = vmatpush1.msra.mxu0 %v5091
    %5124 = vmatprep.subr.mxu0 0.0
    %5125 = vmatpush1.msra.mxu0 %v5092
    %5126 = vmatprep.subr.mxu0 0.0
    %5127 = vmatpush1.msra.mxu0 %v5093
    %5128 = vmatprep.subr.mxu0 0.0
    %5129 = vmatpush1.msra.mxu0 %v5094
    %5130 = vmatprep.subr.mxu0 0.0
    %5131 = vmatpush1.msra.mxu0 %v5095
    %5132 = vmatprep.subr.mxu0 0.0
    %5133 = vmatpush1.msra.mxu0 %v5096
    %5134 = vmatprep.subr.mxu0 0.0
    %5135 = vmatpush1.msra.mxu0 %v5097
    %5136 = vmatprep.subr.mxu0 0.0
    %5137 = vmatpush1.msra.mxu0 %v5098
    %5138 = vmatprep.subr.mxu0 0.0
    %5139 = vmatpush1.msra.mxu0 0.0
    %5140 = vmatprep.subr.mxu0 0.0
    %5141 = vmatpush1.msra.mxu0 0.0
    %5142 = vmatprep.subr.mxu0 0.0
    %5143 = vmatpush1.msra.mxu0 0.0
    %5144 = vmatprep.subr.mxu0 0.0
    %5145 = vmatpush1.msra.mxu0 0.0
    %5146 = vmatprep.subr.mxu0 0.0
    %5147 = vmatpush1.msra.mxu0 0.0
    %5148 = vmatprep.subr.mxu0 0.0
    %5149 = vmatpush1.msra.mxu0 0.0
    %5150 = vmatprep.subr.mxu0 0.0
    %5151 = vmatpush1.msra.mxu0 0.0
    %5152 = vmatprep.subr.mxu0 0.0
    %5153 = vmatpush1.msra.mxu0 0.0
    %5154 = vmatprep.subr.mxu0 0.0
    %5155 = vmatpush1.msra.mxu0 0.0
    %5156 = vmatprep.subr.mxu0 0.0
    %5157 = vmatpush1.msra.mxu0 0.0
    %5158 = vmatprep.subr.mxu0 0.0
    %5159 = vmatpush1.msra.mxu0 0.0
    %5160 = vmatprep.subr.mxu0 0.0
    %5161 = vmatpush1.msra.mxu0 0.0
    %5162 = vmatprep.subr.mxu0 0.0
    %5163 = vmatpush1.msra.mxu0 0.0
    %5164 = vmatprep.subr.mxu0 0.0
    %5165 = vmatpush1.msra.mxu0 0.0
    %5166 = vmatprep.subr.mxu0 0.0
    %5167 = vmatpush1.msra.mxu0 0.0
    %5168 = vmatprep.subr.mxu0 0.0
    %5169 = vmatpush1.msra.mxu0 0.0
    %5170 = vmatprep.mubr.f32.mxu0 0.0
    %5171 = vmatmul.mubr.f32.gmra.mrb[0].mxu0 %v5075
    %v5172 = vpop.f32.mrb[0].mxu0
    %v5173 = vadd.f32 %v5104, %v5172
    %v5174 = vpop.f32.mrb[0].mxu0
    %5175 = vmatprep.mubr.f32.mxu0 0.0
    %5176 = vmatmul.mubr.f32.gmra.mrb[0].mxu0 %v5076
    %v5177 = vpop.f32.mrb[0].mxu0
    %v5178 = vadd.f32 %v5104, %v5177
    %v5179 = vpop.f32.mrb[0].mxu0
    %5180 = vmatprep.mubr.f32.mxu0 0.0
    %5181 = vmatmul.mubr.f32.gmra.mrb[0].mxu0 %v5077
    %v5182 = vpop.f32.mrb[0].mxu0
    %v5183 = vadd.f32 %v5104, %v5182
    %v5184 = vpop.f32.mrb[0].mxu0
    %5185 = vmatprep.mubr.f32.mxu0 0.0
    %5186 = vmatmul.mubr.f32.gmra.mrb[0].mxu0 %v5078
    %v5187 = vpop.f32.mrb[0].mxu0
    %v5188 = vadd.f32 %v5104, %v5187
    %v5189 = vpop.f32.mrb[0].mxu0
    %5190 = vmatprep.mubr.f32.mxu0 0.0
    %5191 = vmatmul.mubr.f32.gmra.mrb[0].mxu0 %v5079
    %v5192 = vpop.f32.mrb[0].mxu0
    %v5193 = vadd.f32 %v5104, %v5192
    %v5194 = vpop.f32.mrb[0].mxu0
    %5195 = vmatprep.mubr.f32.mxu0 0.0
    %5196 = vmatmul.mubr.f32.gmra.mrb[0].mxu0 %v5080
    %v5197 = vpop.f32.mrb[0].mxu0
    %v5198 = vadd.f32 %v5104, %v5197
    %v5199 = vpop.f32.mrb[0].mxu0
    %5200 = vmatprep.mubr.f32.mxu0 0.0
    %5201 = vmatmul.mubr.f32.gmra.mrb[0].mxu0 %v5081
    %v5202 = vpop.f32.mrb[0].mxu0
    %v5203 = vadd.f32 %v5104, %v5202
    %v5204 = vpop.f32.mrb[0].mxu0
    %5205 = vmatprep.mubr.f32.mxu0 0.0
    %5206 = vmatmul.mubr.f32.gmra.mrb[0].mxu0 %v5082
    %v5207 = vpop.f32.mrb[0].mxu0
    %v5208 = vadd.f32 %v5104, %v5207
    %v5209 = vpop.f32.mrb[0].mxu0
    %5210 = vdwg.mxu0
    %v5211 = vmax.f32 %v5173, 0.0
    %v5212 = vmax.f32 %v5178, 0.0
    %v5213 = vmax.f32 %v5183, 0.0
    %v5214 = vmax.f32 %v5188, 0.0
    %v5215 = vmax.f32 %v5193, 0.0
    %v5216 = vmax.f32 %v5198, 0.0
    %v5217 = vmax.f32 %v5203, 0.0
    %v5218 = vmax.f32 %v5208, 0.0
    %v5219 = vld [vmem:[#allocation17] sm:$0xff]
    %v5220 = vld [vmem:[#allocation17 + $0x8] sm:$0xff]
    %v5221 = vld [vmem:[#allocation17 + $0x10] sm:$0xff]
    %v5222 = vld [vmem:[#allocation17 + $0x18] sm:$0xff]
    %v5223 = vld [vmem:[#allocation17 + $0x20] sm:$0xff]
    %v5224 = vld [vmem:[#allocation17 + $0x28] sm:$0xff]
    %v5225 = vld [vmem:[#allocation17 + $0x30] sm:$0xff]
    %v5226 = vld [vmem:[#allocation17 + $0x38] sm:$0xff]
    %v5227 = vld [vmem:[#allocation17 + $0x40] sm:$0xff]
    %v5228 = vld [vmem:[#allocation17 + $0x48] sm:$0xff]
    %v5229 = vld [vmem:[#allocation17 + $0x50] sm:$0xff]
    %v5230 = vld [vmem:[#allocation17 + $0x58] sm:$0xff]
    %v5231 = vld [vmem:[#allocation17 + $0x60] sm:$0xff]
    %v5232 = vld [vmem:[#allocation17 + $0x68] sm:$0xff]
    %v5233 = vld [vmem:[#allocation17 + $0x70] sm:$0xff]
    %v5234 = vld [vmem:[#allocation17 + $0x78] sm:$0xff]
    %v5235 = vld [vmem:[%s11] sm:$0x1]
    %v5237 = vlaneseq
    %v5238 = vshrl.u32 %v5237, 7
    %v5239 = vsub.s32 0, %v5238
    %v5240 = vrot.slane %v5235, %v5239
    %5242 = vmatprep.subr.mxu0 0.0
    %5243 = vmatpush1.msra.mxu0 %v5219
    %5244 = vmatprep.subr.mxu0 0.0
    %5245 = vmatpush1.msra.mxu0 %v5220
    %5246 = vmatprep.subr.mxu0 0.0
    %5247 = vmatpush1.msra.mxu0 %v5221
    %5248 = vmatprep.subr.mxu0 0.0
    %5249 = vmatpush1.msra.mxu0 %v5222
    %5250 = vmatprep.subr.mxu0 0.0
    %5251 = vmatpush1.msra.mxu0 %v5223
    %5252 = vmatprep.subr.mxu0 0.0
    %5253 = vmatpush1.msra.mxu0 %v5224
    %5254 = vmatprep.subr.mxu0 0.0
    %5255 = vmatpush1.msra.mxu0 %v5225
    %5256 = vmatprep.subr.mxu0 0.0
    %5257 = vmatpush1.msra.mxu0 %v5226
    %5258 = vmatprep.subr.mxu0 0.0
    %5259 = vmatpush1.msra.mxu0 %v5227
    %5260 = vmatprep.subr.mxu0 0.0
    %5261 = vmatpush1.msra.mxu0 %v5228
    %5262 = vmatprep.subr.mxu0 0.0
    %5263 = vmatpush1.msra.mxu0 %v5229
    %5264 = vmatprep.subr.mxu0 0.0
    %5265 = vmatpush1.msra.mxu0 %v5230
    %5266 = vmatprep.subr.mxu0 0.0
    %5267 = vmatpush1.msra.mxu0 %v5231
    %5268 = vmatprep.subr.mxu0 0.0
    %5269 = vmatpush1.msra.mxu0 %v5232
    %5270 = vmatprep.subr.mxu0 0.0
    %5271 = vmatpush1.msra.mxu0 %v5233
    %5272 = vmatprep.subr.mxu0 0.0
    %5273 = vmatpush1.msra.mxu0 %v5234
    %5274 = vmatprep.subr.mxu0 0.0
    %5275 = vmatpush1.msra.mxu0 0.0
    %5276 = vmatprep.subr.mxu0 0.0
    %5277 = vmatpush1.msra.mxu0 0.0
    %5278 = vmatprep.subr.mxu0 0.0
    %5279 = vmatpush1.msra.mxu0 0.0
    %5280 = vmatprep.subr.mxu0 0.0
    %5281 = vmatpush1.msra.mxu0 0.0
    %5282 = vmatprep.subr.mxu0 0.0
    %5283 = vmatpush1.msra.mxu0 0.0
    %5284 = vmatprep.subr.mxu0 0.0
    %5285 = vmatpush1.msra.mxu0 0.0
    %5286 = vmatprep.subr.mxu0 0.0
    %5287 = vmatpush1.msra.mxu0 0.0
    %5288 = vmatprep.subr.mxu0 0.0
    %5289 = vmatpush1.msra.mxu0 0.0
    %5290 = vmatprep.subr.mxu0 0.0
    %5291 = vmatpush1.msra.mxu0 0.0
    %5292 = vmatprep.subr.mxu0 0.0
    %5293 = vmatpush1.msra.mxu0 0.0
    %5294 = vmatprep.subr.mxu0 0.0
    %5295 = vmatpush1.msra.mxu0 0.0
    %5296 = vmatprep.subr.mxu0 0.0
    %5297 = vmatpush1.msra.mxu0 0.0
    %5298 = vmatprep.subr.mxu0 0.0
    %5299 = vmatpush1.msra.mxu0 0.0
    %5300 = vmatprep.subr.mxu0 0.0
    %5301 = vmatpush1.msra.mxu0 0.0
    %5302 = vmatprep.subr.mxu0 0.0
    %5303 = vmatpush1.msra.mxu0 0.0
    %5304 = vmatprep.subr.mxu0 0.0
    %5305 = vmatpush1.msra.mxu0 0.0
    %5306 = vmatprep.mubr.f32.mxu0 0.0
    %5307 = vmatmul.mubr.f32.gmra.mrb[0].mxu0 %v5211
    %v5308 = vpop.f32.mrb[0].mxu0
    %v5309 = vadd.f32 %v5240, %v5308
    %v5310 = vpop.f32.mrb[0].mxu0
    %5311 = vmatprep.mubr.f32.mxu0 0.0
    %5312 = vmatmul.mubr.f32.gmra.mrb[0].mxu0 %v5212
    %v5313 = vpop.f32.mrb[0].mxu0
    %v5314 = vadd.f32 %v5240, %v5313
    %v5315 = vpop.f32.mrb[0].mxu0
    %5316 = vmatprep.mubr.f32.mxu0 0.0
    %5317 = vmatmul.mubr.f32.gmra.mrb[0].mxu0 %v5213
    %v5318 = vpop.f32.mrb[0].mxu0
    %v5319 = vadd.f32 %v5240, %v5318
    %v5320 = vpop.f32.mrb[0].mxu0
    %5321 = vmatprep.mubr.f32.mxu0 0.0
    %5322 = vmatmul.mubr.f32.gmra.mrb[0].mxu0 %v5214
    %v5323 = vpop.f32.mrb[0].mxu0
    %v5324 = vadd.f32 %v5240, %v5323
    %v5325 = vpop.f32.mrb[0].mxu0
    %5326 = vmatprep.mubr.f32.mxu0 0.0
    %5327 = vmatmul.mubr.f32.gmra.mrb[0].mxu0 %v5215
    %v5328 = vpop.f32.mrb[0].mxu0
    %v5329 = vadd.f32 %v5240, %v5328
    %v5330 = vpop.f32.mrb[0].mxu0
    %5331 = vmatprep.mubr.f32.mxu0 0.0
    %5332 = vmatmul.mubr.f32.gmra.mrb[0].mxu0 %v5216
    %v5333 = vpop.f32.mrb[0].mxu0
    %v5334 = vadd.f32 %v5240, %v5333
    %v5335 = vpop.f32.mrb[0].mxu0
    %5336 = vmatprep.mubr.f32.mxu0 0.0
    %5337 = vmatmul.mubr.f32.gmra.mrb[0].mxu0 %v5217
    %v5338 = vpop.f32.mrb[0].mxu0
    %v5339 = vadd.f32 %v5240, %v5338
    %v5340 = vpop.f32.mrb[0].mxu0
    %5341 = vmatprep.mubr.f32.mxu0 0.0
    %5342 = vmatmul.mubr.f32.gmra.mrb[0].mxu0 %v5218
    %v5343 = vpop.f32.mrb[0].mxu0
    %v5344 = vadd.f32 %v5240, %v5343
    %v5345 = vpop.f32.mrb[0].mxu0
    %5346 = vdwg.mxu0
    %v5347 = vxor.u32 %v5309, 2147483648
    %v5348 = vxor.u32 %v5314, 2147483648
    %v5349 = vxor.u32 %v5319, 2147483648
    %v5350 = vxor.u32 %v5324, 2147483648
    %v5351 = vxor.u32 %v5329, 2147483648
    %v5352 = vxor.u32 %v5334, 2147483648
    %v5353 = vxor.u32 %v5339, 2147483648
    %v5354 = vxor.u32 %v5344, 2147483648
    %v5355 = vmul.f32 %v5347, 1.442695
    %v5356 = vpow.pop %v5355
    %v5357 = vmul.f32 %v5348, 1.442695
    %v5358 = vpow.pop %v5357
    %v5359 = vmul.f32 %v5349, 1.442695
    %v5360 = vpow.pop %v5359
    %v5361 = vmul.f32 %v5350, 1.442695
    %v5362 = vpow.pop %v5361
    %v5363 = vmul.f32 %v5351, 1.442695
    %v5364 = vpow.pop %v5363
    %v5365 = vmul.f32 %v5352, 1.442695
    %v5366 = vpow.pop %v5365
    %v5367 = vmul.f32 %v5353, 1.442695
    %v5368 = vpow.pop %v5367
    %v5369 = vmul.f32 %v5354, 1.442695
    %v5370 = vpow.pop %v5369
    %v5371 = vadd.f32 %v5356, 1.0
    %v5372 = vadd.f32 %v5358, 1.0
    %v5373 = vadd.f32 %v5360, 1.0
    %v5374 = vadd.f32 %v5362, 1.0
    %v5375 = vadd.f32 %v5364, 1.0
    %v5376 = vadd.f32 %v5366, 1.0
    %v5377 = vadd.f32 %v5368, 1.0
    %v5378 = vadd.f32 %v5370, 1.0
    %v5379 = vrcp.pop %v5371
    %v5380 = vmul.f32 1.0, %v5379
    %v5381 = vrcp.pop %v5372
    %v5382 = vmul.f32 1.0, %v5381
    %v5383 = vrcp.pop %v5373
    %v5384 = vmul.f32 1.0, %v5383
    %v5385 = vrcp.pop %v5374
    %v5386 = vmul.f32 1.0, %v5385
    %v5387 = vrcp.pop %v5375
    %v5388 = vmul.f32 1.0, %v5387
    %v5389 = vrcp.pop %v5376
    %v5390 = vmul.f32 1.0, %v5389
    %v5391 = vrcp.pop %v5377
    %v5392 = vmul.f32 1.0, %v5391
    %v5393 = vrcp.pop %v5378
    %v5394 = vmul.f32 1.0, %v5393
    %5395 = vst [vmem:[#allocation18] sm:$0xff] %v5380
    %5396 = vst [vmem:[#allocation18 + $0x8] sm:$0xff] %v5382
    %5397 = vst [vmem:[#allocation18 + $0x10] sm:$0xff] %v5384
    %5398 = vst [vmem:[#allocation18 + $0x18] sm:$0xff] %v5386
    %5399 = vst [vmem:[#allocation18 + $0x20] sm:$0xff] %v5388
    %5400 = vst [vmem:[#allocation18 + $0x28] sm:$0xff] %v5390
    %5401 = vst [vmem:[#allocation18 + $0x30] sm:$0xff] %v5392
    %5402 = vst [vmem:[#allocation18 + $0x38] sm:$0xff] %v5394
    // Predicated region
    $region78: #{tpu_custom_call.1} parent=1 // pred_check
      _
    $region79: #{tpu_custom_call.1} parent=1 // pred_check_branch
      %5404 = sbr.rel (0) target = $region81
    $region80: #{tpu_custom_call.1} parent=1 // pred_region
      %s5406 = ssub.s32 1024, 1024
      %5407 = vsyncadd [#allocation8], %s5406
      %s5408 = sshll.u32 [#allocation18], 4
      %s5409 = int_to_ptr.vmem [resolvable:$true] %s5408
      %5414 = dma.vmem_to_hbm [thread:$0]  %s5409, 1024, %s12, [#allocation8], 128, 128, 8
    $region81: #{tpu_custom_call.1} parent=1 // pred_fallthru
      _
    // Predicated region
    $region82: #{tpu_custom_call.1} parent=1 // pred_check
      _
    $region83: #{tpu_custom_call.1} parent=1 // pred_check_branch
      %5416 = sbr.rel (0) target = $region85
    $region84: #{tpu_custom_call.1} parent=1 // pred_region
      %5417 = dma.done [#allocation8], 1024
    $region85: #{tpu_custom_call.1} parent=1 // pred_fallthru
      _
    %5418 = vsyncpa [#allocation7], 1
    %5419 = vsyncpa [#allocation10], 1
    %5420 = vsyncpa [#allocation13], 1
    %5421 = vsyncpa [#allocation16], 1
    %5422 = vsyncpa [#allocation8], 1

</llo_original>
